<compile_context>
chip_gen: v6e
topology: v6e:2x2x1
jax: 0.10.0
libtpu: 0.0.40
codegen_flags: <defaults>
</compile_context>

<pallas_src>
import functools

import jax
import jax.numpy as jnp
from jax.experimental import pallas as pl
from jax.experimental.pallas import tpu as pltpu


_LANES = 128           # channels are zero-padded to 128 lanes everywhere
_TAPS = 9              # 3x3 taps folded into the GEMM contraction dimension
_KP = _TAPS * _LANES   # per-layer (padded) contraction size


def _decoder_kernel(x_ref, w_ref, b_ref, col_ref, out_ref, *pf_refs,
                    dims, S, b_tile, negative_slope, matmul_dtype):
    """Fused 5-layer ConvTranspose2d decoder for a tile of `b_tile` images.

    pf_refs[l] is the flat zero-padded input image of layer l for the whole
    sub-batch: image b's padded pixel (p, q) lives at flat row
    b*(H_l+2)*S + p*S + q (consecutive images share their 2 zero pad rows).
    Tap (ky, kx) of the im2col slab is then simply the contiguous window
    pf[ky*S + kx : ky*S + kx + M] with M = b_tile*(H_l+2)*S, no gathers.
    """
    n_layers = len(dims)
    pf_dtype = pf_refs[0].dtype
    pad_rows = 2 * S + 2                               # border strip height
    zpad = jnp.zeros((pad_rows, _LANES), pf_dtype)     # hoisted zero block

    for l, (H, W) in enumerate(dims):
        Ho, Wo = H + 2, W + 2          # this layer's output spatial dims
        M = b_tile * Ho * S            # wide-slab rows for the whole sub-batch
        pf = pf_refs[l]

        if l == 0:
            # Input block was padded/laid out by the wrapper: ONE wide copy
            # plus one small zero tail (covers the window read spill).
            pf[0:M, :] = x_ref[0]
            pf[M:M + pad_rows, :] = zpad

        # ---- im2col: 9 shifted contiguous windows of the flat image --------
        # Every piece is 128 lanes wide, so this concatenate needs no XLU
        # lane shifting; one cast feeds the MXU in `matmul_dtype`.
        slab = jnp.concatenate(
            [pf[ky * S + kx: ky * S + kx + M, :]
             for ky in range(3) for kx in range(3)],
            axis=-1).astype(matmul_dtype)                     # (M, 9*128)

        # ---- one big-K GEMM per layer (MXU), f32 accumulation --------------
        acc = jnp.dot(slab, w_ref[l * _KP:(l + 1) * _KP, :],
                      preferred_element_type=jnp.float32)     # (M, 128)
        acc = acc + b_ref[l:l + 1, :]                         # f32 bias

        if l < n_layers - 1:
            y = jnp.where(acc > 0.0, acc, acc * negative_slope)   # LeakyReLU
            # Zero the junk columns (j >= Wo): they land exactly on the next
            # layer's left/right padding, so no separate border fill is needed.
            y = jnp.where(col_ref[0:M, :] < Wo, y, 0.0)
            y = y.astype(pf_dtype)

            nxt = pf_refs[l + 1]
            stride_nxt = (Ho + 2) * S      # next layer's per-image row stride
            for b in range(b_tile):
                base = b * stride_nxt
                # top padding rows of image b (never overwritten otherwise)
                nxt[base:base + pad_rows, :] = zpad
                # whole masked layer output: ONE contiguous store per image
                nxt[base + pad_rows:base + pad_rows + Ho * S, :] = \
                    y[b * Ho * S:(b + 1) * Ho * S, :]
            tail = b_tile * stride_nxt
            nxt[tail:tail + pad_rows, :] = zpad
        else:
            out_ref[0] = jnp.maximum(acc, 0.0)                 # final ReLU


class PallasDecoder:
    """JAX/Pallas port of the PyTorch Decoder module (inference mode)."""

    def __init__(self, feature_maps, key, matmul_dtype=jnp.bfloat16,
                 scratch_dtype=jnp.float32):
        self.matmul_dtype = matmul_dtype
        self.scratch_dtype = scratch_dtype
        chans = [feature_maps * 16, feature_maps * 8, feature_maps * 4,
                 feature_maps * 2, feature_maps, 3]
        assert max(chans) <= _LANES
        self.channels = chans
        self.in_channels = chans[0]
        self.out_channels = chans[-1]

        self.raw_params = []       # (w (Cin,Cout,3,3), b (Cout,)) for reference
        w_blocks, b_rows = [], []
        for i in range(5):
            cin, cout = chans[i], chans[i + 1]
            key, kw, kb = jax.random.split(key, 3)
            bound = 1.0 / float((cin * 9) ** 0.5)    # PyTorch-style init bound
            w = jax.random.uniform(kw, (cin, cout, 3, 3), jnp.float32,
                                   -bound, bound)
            b = jax.random.uniform(kb, (cout,), jnp.float32, -bound, bound)
            self.raw_params.append((w, b))

            # Tap (ky,kx) pairs with the spatially flipped w[..., 2-ky, 2-kx].
            # Each tap's (cin, cout) block is embedded in a zero (128, 128)
            # block so every layer's GEMM is lane-dense and all 5 weights pack
            # into a single ref.
            wf = jnp.transpose(w[:, :, ::-1, ::-1], (2, 3, 0, 1))  # (3,3,ci,co)
            wp = jnp.zeros((_TAPS, _LANES, _LANES), jnp.float32)
            wp = wp.at[:, :cin, :cout].set(wf.reshape(_TAPS, cin, cout))
            w_blocks.append(wp.reshape(_KP, _LANES))
            b_rows.append(jnp.pad(b, (0, _LANES - cout)))

        self.w_all = jnp.concatenate(w_blocks, axis=0).astype(matmul_dtype)
        self.b_all = jnp.stack(b_rows, axis=0).astype(jnp.float32)   # (5, 128)

    def __call__(self, x_nchw, b_tile=None):
        N, C, H, W = x_nchw.shape
        assert C == self.in_channels
        n_layers = len(self.channels) - 1
        S = W + 2 * n_layers + 2          # common flat row stride (last Wp)
        dims = tuple((H + 2 * l, W + 2 * l) for l in range(n_layers))
        Ho_out, Wo_out = H + 2 * n_layers, W + 2 * n_layers

        # Fold a tile of images into the GEMM M dim; keep >= 2 grid steps so
        # v7x can shard the parallel axis over its 2 TensorCores.
        if b_tile is None:
            b_tile = max(1, min(8, pl.cdiv(N, 2)))
        num_steps = pl.cdiv(N, b_tile)
        Np = num_steps * b_tile

        # Pre-pad the input in the wrapper (XLA pad, fused): rows +2 top,
        # cols +2 left / to width S, channels to 128 lanes.  Flattened, this
        # is already layer 0's padded flat image layout -> one in-kernel copy.
        x = jnp.transpose(x_nchw, (0, 2, 3, 1))                  # NCHW -> NHWC
        xp = jnp.pad(x, ((0, Np - N), (2, 0), (2, S - 2 - W), (0, _LANES - C)))
        xp = xp.astype(self.scratch_dtype).reshape(
            num_steps, b_tile * (H + 2) * S, _LANES)

        M_in = b_tile * (H + 2) * S
        M_out = b_tile * Ho_out * S
        # Column-within-row index used for the junk-column mask (avoids an
        # in-kernel integer mod); sized for the largest masked layer.
        M_mask = b_tile * (dims[-2][0] + 2) * S
        col_idx = (jnp.arange(M_mask, dtype=jnp.int32) % S).reshape(M_mask, 1)

        kernel = functools.partial(
            _decoder_kernel,
            dims=dims, S=S, b_tile=b_tile,
            negative_slope=0.01,                 # PyTorch LeakyReLU default
            matmul_dtype=self.matmul_dtype)

        grid_spec = pltpu.PrefetchScalarGridSpec(
            num_scalar_prefetch=0,
            grid=(num_steps,),
            in_specs=[
                pl.BlockSpec((1, M_in, _LANES), lambda n: (n, 0, 0)),
                pl.BlockSpec(self.w_all.shape, lambda n: (0, 0)),
                pl.BlockSpec(self.b_all.shape, lambda n: (0, 0)),
                pl.BlockSpec((M_mask, 1), lambda n: (0, 0)),
            ],
            out_specs=pl.BlockSpec((1, M_out, _LANES), lambda n: (n, 0, 0)),
            scratch_shapes=[
                pltpu.VMEM((b_tile * (h + 2) * S + 2 * S + 2, _LANES),
                           self.scratch_dtype)
                for (h, _) in dims
            ],
        )

        flops = sum(2 * Np * (h + 2) * (w + 2) * 9
                    * self.channels[l] * self.channels[l + 1]
                    for l, (h, w) in enumerate(dims))
        bytes_accessed = (int(xp.size) * xp.dtype.itemsize
                          + int(self.w_all.size) * self.w_all.dtype.itemsize
                          + int(self.b_all.size) * 4
                          + int(num_steps * M_out * _LANES) * 4)
        cost = pl.CostEstimate(flops=int(flops), transcendentals=0,
                               bytes_accessed=int(bytes_accessed))

        out = pl.pallas_call(
            kernel,
            out_shape=jax.ShapeDtypeStruct((num_steps, M_out, _LANES),
                                           jnp.float32),
            grid_spec=grid_spec,
            compiler_params=pltpu.CompilerParams(
                dimension_semantics=("parallel",)),
            cost_estimate=cost,
        )(xp, self.w_all, self.b_all, col_idx)

        # Drop junk columns, padded lanes and the padded batch tail.
        y = out.reshape(Np, Ho_out, S, _LANES)[:N, :, :Wo_out,
                                               :self.out_channels]
        return jnp.transpose(y, (0, 3, 1, 2))                    # NHWC -> NCHW
        # TODO(synk): Dropout(0.3) is treated as identity (eval/inference
        # mode); training-mode stochastic dropout is not reproduced.


def _ref_decoder(x_nchw, raw_params):
    """Pure-JAX reference: literal ConvTranspose2d(k=3,s=1,p=0) scatter-add."""
    x = x_nchw
    n_layers = len(raw_params)
    for idx, (w, b) in enumerate(raw_params):        # w: (Cin, Cout, 3, 3)
        N, Cin, H, W = x.shape
        Cout = w.shape[1]
        out = jnp.zeros((N, Cout, H + 2, W + 2), jnp.float32)
        for ky in range(3):
            for kx in range(3):
                contrib = jnp.einsum('nchw,cd->ndhw', x, w[:, :, ky, kx])
                out = out.at[:, :, ky:ky + H, kx:kx + W].add(contrib)
        out = out + b[None, :, None, None]
        if idx < n_layers - 1:
            out = jnp.where(out > 0.0, out, 0.01 * out)
        else:
            out = jnp.maximum(out, 0.0)
        x = out
    return x


if __name__ == "__main__":
    key = jax.random.PRNGKey(0)
    key, kx = jax.random.split(key)

    feature_maps = 4
    # Input matches the torch module: (N, feature_maps*16, H, W) in NCHW.
    x = jax.random.normal(kx, (2, feature_maps * 16, 4, 4), jnp.float32)

    decoder = PallasDecoder(feature_maps, key)
    y = jax.block_until_ready(decoder(x))

    # 5 conv-transpose layers, each grows H/W by 2 -> 4+10=14, 3 channels,
    # ReLU output is non-negative.
    assert y.shape == (2, 3, 14, 14), y.shape
    assert bool(jnp.all(y >= 0.0))

    # Structural correctness check against a pure-JAX reference (loose
    # tolerance to accommodate the bf16 MXU inputs; accumulation is f32).
    ref = _ref_decoder(x, decoder.raw_params)
    max_err = float(jnp.max(jnp.abs(y - ref)))
    assert jnp.allclose(y, ref, rtol=1e-1, atol=1e-2), max_err

    print("KERNEL_OK")
</pallas_src>

<mosaic_0001>
module attributes {stable_mosaic.version = 11 : i64} {
  func.func @_decoder_kernel(%arg0: i32, %arg1: memref<1x96x128xf32, #tpu.memory_space<vmem>>, %arg2: memref<5760x128xbf16, #tpu.memory_space<vmem>>, %arg3: memref<5x128xf32, #tpu.memory_space<vmem>>, %arg4: memref<192x1xi32, #tpu.memory_space<vmem>>, %arg5: memref<1x224x128xf32, #tpu.memory_space<vmem>>, %arg6: memref<130x128xf32, #tpu.memory_space<vmem>>, %arg7: memref<162x128xf32, #tpu.memory_space<vmem>>, %arg8: memref<194x128xf32, #tpu.memory_space<vmem>>, %arg9: memref<226x128xf32, #tpu.memory_space<vmem>>, %arg10: memref<258x128xf32, #tpu.memory_space<vmem>>) attributes {dimension_semantics = [#tpu.dimension_semantics<parallel>], iteration_bounds = array<i64: 2>, scalar_prefetch = 0 : i64, scratch_operands = 5 : i64, tpu.core_type = #tpu.core_type<tc>, window_params = [{transform_indices = @transform_0, window_bounds = array<i64: 1, 96, 128>}, {pipeline_mode = #tpu.pipeline_mode<synchronous>, transform_indices = @transform_1, window_bounds = array<i64: 5760, 128>}, {pipeline_mode = #tpu.pipeline_mode<synchronous>, transform_indices = @transform_2, window_bounds = array<i64: 5, 128>}, {pipeline_mode = #tpu.pipeline_mode<synchronous>, transform_indices = @transform_3, window_bounds = array<i64: 192, 1>}, {transform_indices = @transform_4, window_bounds = array<i64: 1, 224, 128>}]} {
    %cst = arith.constant 0.000000e+00 : f32
    %0 = vector.broadcast %cst : f32 to vector<34x128xf32>
    %c0 = arith.constant 0 : index
    %c0_0 = arith.constant 0 : index
    %c0_1 = arith.constant 0 : index
    %1 = vector.load %arg1[%c0, %c0_0, %c0_1] : memref<1x96x128xf32, #tpu.memory_space<vmem>>, vector<1x96x128xf32>
    %2 = vector.shape_cast %1 : vector<1x96x128xf32> to vector<96x128xf32>
    %c0_2 = arith.constant 0 : index
    %c0_3 = arith.constant 0 : index
    %3 = vector.load %arg6[%c0_2, %c0_3] : memref<130x128xf32, #tpu.memory_space<vmem>>, vector<96x128xf32>
    tpu.vector_store %arg6[%c0_2, %c0_3], %2 {strides = array<i32>} : memref<130x128xf32, #tpu.memory_space<vmem>>, vector<96x128xf32>,
    %c96 = arith.constant 96 : index
    %c0_4 = arith.constant 0 : index
    %4 = vector.load %arg6[%c96, %c0_4] : memref<130x128xf32, #tpu.memory_space<vmem>>, vector<34x128xf32>
    tpu.vector_store %arg6[%c96, %c0_4], %0 {strides = array<i32>} : memref<130x128xf32, #tpu.memory_space<vmem>>, vector<34x128xf32>,
    %c0_5 = arith.constant 0 : index
    %c0_6 = arith.constant 0 : index
    %5 = vector.load %arg6[%c0_5, %c0_6] : memref<130x128xf32, #tpu.memory_space<vmem>>, vector<96x128xf32>
    %c1 = arith.constant 1 : index
    %c0_7 = arith.constant 0 : index
    %6 = vector.load %arg6[%c1, %c0_7] : memref<130x128xf32, #tpu.memory_space<vmem>>, vector<96x128xf32>
    %c2 = arith.constant 2 : index
    %c0_8 = arith.constant 0 : index
    %7 = vector.load %arg6[%c2, %c0_8] : memref<130x128xf32, #tpu.memory_space<vmem>>, vector<96x128xf32>
    %c16 = arith.constant 16 : index
    %c0_9 = arith.constant 0 : index
    %8 = vector.load %arg6[%c16, %c0_9] : memref<130x128xf32, #tpu.memory_space<vmem>>, vector<96x128xf32>
    %c17 = arith.constant 17 : index
    %c0_10 = arith.constant 0 : index
    %9 = vector.load %arg6[%c17, %c0_10] : memref<130x128xf32, #tpu.memory_space<vmem>>, vector<96x128xf32>
    %c18 = arith.constant 18 : index
    %c0_11 = arith.constant 0 : index
    %10 = vector.load %arg6[%c18, %c0_11] : memref<130x128xf32, #tpu.memory_space<vmem>>, vector<96x128xf32>
    %c32 = arith.constant 32 : index
    %c0_12 = arith.constant 0 : index
    %11 = vector.load %arg6[%c32, %c0_12] : memref<130x128xf32, #tpu.memory_space<vmem>>, vector<96x128xf32>
    %c33 = arith.constant 33 : index
    %c0_13 = arith.constant 0 : index
    %12 = vector.load %arg6[%c33, %c0_13] : memref<130x128xf32, #tpu.memory_space<vmem>>, vector<96x128xf32>
    %c34 = arith.constant 34 : index
    %c0_14 = arith.constant 0 : index
    %13 = vector.load %arg6[%c34, %c0_14] : memref<130x128xf32, #tpu.memory_space<vmem>>, vector<96x128xf32>
    %14 = tpu.concatenate %5, %6, %7, %8, %9, %10, %11, %12, %13 in 1 : vector<96x128xf32>, vector<96x128xf32>, vector<96x128xf32>, vector<96x128xf32>, vector<96x128xf32>, vector<96x128xf32>, vector<96x128xf32>, vector<96x128xf32>, vector<96x128xf32> -> vector<96x1152xf32>
    %15 = arith.truncf %14 : vector<96x1152xf32> to vector<96x1152xbf16>
    %c0_15 = arith.constant 0 : index
    %c0_16 = arith.constant 0 : index
    %16 = vector.load %arg2[%c0_15, %c0_16] : memref<5760x128xbf16, #tpu.memory_space<vmem>>, vector<1152x128xbf16>
    %cst_17 = arith.constant dense<0.000000e+00> : vector<96x128xf32>
    %17 = tpu.matmul %15, %16, %cst_17 {dimension_numbers = #tpu.dot_dimension_numbers<[1], [0], [0], [1], [0, 0, 1, 1], [], []>} : vector<96x1152xbf16>, vector<1152x128xbf16>, vector<96x128xf32> -> vector<96x128xf32>
    %c0_18 = arith.constant 0 : index
    %c0_19 = arith.constant 0 : index
    %18 = vector.load %arg3[%c0_18, %c0_19] : memref<5x128xf32, #tpu.memory_space<vmem>>, vector<1x128xf32>
    %19 = vector.broadcast %18 : vector<1x128xf32> to vector<96x128xf32>
    %20 = arith.addf %17, %19 : vector<96x128xf32>
    %cst_20 = arith.constant 0.000000e+00 : f32
    %21 = vector.broadcast %cst_20 : f32 to vector<96x128xf32>
    %22 = arith.cmpf ogt, %20, %21 : vector<96x128xf32>
    %cst_21 = arith.constant 0.00999999977 : f32
    %23 = vector.broadcast %cst_21 : f32 to vector<96x128xf32>
    %24 = arith.mulf %20, %23 : vector<96x128xf32>
    %25 = arith.select %22, %20, %24 : vector<96x128xi1>, vector<96x128xf32>
    %c0_22 = arith.constant 0 : index
    %c0_23 = arith.constant 0 : index
    %26 = vector.load %arg4[%c0_22, %c0_23] : memref<192x1xi32, #tpu.memory_space<vmem>>, vector<96x1xi32>
    %c6_i32 = arith.constant 6 : i32
    %27 = vector.broadcast %c6_i32 : i32 to vector<96x1xi32>
    %28 = arith.cmpi slt, %26, %27 : vector<96x1xi32>
    %cst_24 = arith.constant 0.000000e+00 : f32
    %29 = vector.shape_cast %28 : vector<96x1xi1> to vector<96x1xi1>
    %30 = vector.broadcast %29 : vector<96x1xi1> to vector<96x128xi1>
    %31 = vector.broadcast %cst_24 : f32 to vector<96x128xf32>
    %32 = arith.select %30, %25, %31 : vector<96x128xi1>, vector<96x128xf32>
    %c0_25 = arith.constant 0 : index
    %c0_26 = arith.constant 0 : index
    %33 = vector.load %arg7[%c0_25, %c0_26] : memref<162x128xf32, #tpu.memory_space<vmem>>, vector<34x128xf32>
    tpu.vector_store %arg7[%c0_25, %c0_26], %0 {strides = array<i32>} : memref<162x128xf32, #tpu.memory_space<vmem>>, vector<34x128xf32>,
    %c34_27 = arith.constant 34 : index
    %c0_28 = arith.constant 0 : index
    %34 = vector.load %arg7[%c34_27, %c0_28] : memref<162x128xf32, #tpu.memory_space<vmem>>, vector<96x128xf32>
    tpu.vector_store %arg7[%c34_27, %c0_28], %32 {strides = array<i32>} : memref<162x128xf32, #tpu.memory_space<vmem>>, vector<96x128xf32>,
    %c128 = arith.constant 128 : index
    %c0_29 = arith.constant 0 : index
    %35 = vector.load %arg7[%c128, %c0_29] : memref<162x128xf32, #tpu.memory_space<vmem>>, vector<34x128xf32>
    tpu.vector_store %arg7[%c128, %c0_29], %0 {strides = array<i32>} : memref<162x128xf32, #tpu.memory_space<vmem>>, vector<34x128xf32>,
    %c0_30 = arith.constant 0 : index
    %c0_31 = arith.constant 0 : index
    %36 = vector.load %arg7[%c0_30, %c0_31] : memref<162x128xf32, #tpu.memory_space<vmem>>, vector<128x128xf32>
    %c1_32 = arith.constant 1 : index
    %c0_33 = arith.constant 0 : index
    %37 = vector.load %arg7[%c1_32, %c0_33] : memref<162x128xf32, #tpu.memory_space<vmem>>, vector<128x128xf32>
    %c2_34 = arith.constant 2 : index
    %c0_35 = arith.constant 0 : index
    %38 = vector.load %arg7[%c2_34, %c0_35] : memref<162x128xf32, #tpu.memory_space<vmem>>, vector<128x128xf32>
    %c16_36 = arith.constant 16 : index
    %c0_37 = arith.constant 0 : index
    %39 = vector.load %arg7[%c16_36, %c0_37] : memref<162x128xf32, #tpu.memory_space<vmem>>, vector<128x128xf32>
    %c17_38 = arith.constant 17 : index
    %c0_39 = arith.constant 0 : index
    %40 = vector.load %arg7[%c17_38, %c0_39] : memref<162x128xf32, #tpu.memory_space<vmem>>, vector<128x128xf32>
    %c18_40 = arith.constant 18 : index
    %c0_41 = arith.constant 0 : index
    %41 = vector.load %arg7[%c18_40, %c0_41] : memref<162x128xf32, #tpu.memory_space<vmem>>, vector<128x128xf32>
    %c32_42 = arith.constant 32 : index
    %c0_43 = arith.constant 0 : index
    %42 = vector.load %arg7[%c32_42, %c0_43] : memref<162x128xf32, #tpu.memory_space<vmem>>, vector<128x128xf32>
    %c33_44 = arith.constant 33 : index
    %c0_45 = arith.constant 0 : index
    %43 = vector.load %arg7[%c33_44, %c0_45] : memref<162x128xf32, #tpu.memory_space<vmem>>, vector<128x128xf32>
    %c34_46 = arith.constant 34 : index
    %c0_47 = arith.constant 0 : index
    %44 = vector.load %arg7[%c34_46, %c0_47] : memref<162x128xf32, #tpu.memory_space<vmem>>, vector<128x128xf32>
    %45 = tpu.concatenate %36, %37, %38, %39, %40, %41, %42, %43, %44 in 1 : vector<128x128xf32>, vector<128x128xf32>, vector<128x128xf32>, vector<128x128xf32>, vector<128x128xf32>, vector<128x128xf32>, vector<128x128xf32>, vector<128x128xf32>, vector<128x128xf32> -> vector<128x1152xf32>
    %46 = arith.truncf %45 : vector<128x1152xf32> to vector<128x1152xbf16>
    %c1152 = arith.constant 1152 : index
    %c0_48 = arith.constant 0 : index
    %47 = vector.load %arg2[%c1152, %c0_48] : memref<5760x128xbf16, #tpu.memory_space<vmem>>, vector<1152x128xbf16>
    %cst_49 = arith.constant dense<0.000000e+00> : vector<128x128xf32>
    %48 = tpu.matmul %46, %47, %cst_49 {dimension_numbers = #tpu.dot_dimension_numbers<[1], [0], [0], [1], [0, 0, 1, 1], [], []>} : vector<128x1152xbf16>, vector<1152x128xbf16>, vector<128x128xf32> -> vector<128x128xf32>
    %c1_50 = arith.constant 1 : index
    %c0_51 = arith.constant 0 : index
    %49 = vector.load %arg3[%c1_50, %c0_51] : memref<5x128xf32, #tpu.memory_space<vmem>>, vector<1x128xf32>
    %50 = vector.broadcast %49 : vector<1x128xf32> to vector<128x128xf32>
    %51 = arith.addf %48, %50 : vector<128x128xf32>
    %cst_52 = arith.constant 0.000000e+00 : f32
    %52 = vector.broadcast %cst_52 : f32 to vector<128x128xf32>
    %53 = arith.cmpf ogt, %51, %52 : vector<128x128xf32>
    %cst_53 = arith.constant 0.00999999977 : f32
    %54 = vector.broadcast %cst_53 : f32 to vector<128x128xf32>
    %55 = arith.mulf %51, %54 : vector<128x128xf32>
    %56 = arith.select %53, %51, %55 : vector<128x128xi1>, vector<128x128xf32>
    %c0_54 = arith.constant 0 : index
    %c0_55 = arith.constant 0 : index
    %57 = vector.load %arg4[%c0_54, %c0_55] : memref<192x1xi32, #tpu.memory_space<vmem>>, vector<128x1xi32>
    %c8_i32 = arith.constant 8 : i32
    %58 = vector.broadcast %c8_i32 : i32 to vector<128x1xi32>
    %59 = arith.cmpi slt, %57, %58 : vector<128x1xi32>
    %cst_56 = arith.constant 0.000000e+00 : f32
    %60 = vector.shape_cast %59 : vector<128x1xi1> to vector<128x1xi1>
    %61 = vector.broadcast %60 : vector<128x1xi1> to vector<128x128xi1>
    %62 = vector.broadcast %cst_56 : f32 to vector<128x128xf32>
    %63 = arith.select %61, %56, %62 : vector<128x128xi1>, vector<128x128xf32>
    %c0_57 = arith.constant 0 : index
    %c0_58 = arith.constant 0 : index
    %64 = vector.load %arg8[%c0_57, %c0_58] : memref<194x128xf32, #tpu.memory_space<vmem>>, vector<34x128xf32>
    tpu.vector_store %arg8[%c0_57, %c0_58], %0 {strides = array<i32>} : memref<194x128xf32, #tpu.memory_space<vmem>>, vector<34x128xf32>,
    %c34_59 = arith.constant 34 : index
    %c0_60 = arith.constant 0 : index
    %65 = vector.load %arg8[%c34_59, %c0_60] : memref<194x128xf32, #tpu.memory_space<vmem>>, vector<128x128xf32>
    tpu.vector_store %arg8[%c34_59, %c0_60], %63 {strides = array<i32>} : memref<194x128xf32, #tpu.memory_space<vmem>>, vector<128x128xf32>,
    %c160 = arith.constant 160 : index
    %c0_61 = arith.constant 0 : index
    %66 = vector.load %arg8[%c160, %c0_61] : memref<194x128xf32, #tpu.memory_space<vmem>>, vector<34x128xf32>
    tpu.vector_store %arg8[%c160, %c0_61], %0 {strides = array<i32>} : memref<194x128xf32, #tpu.memory_space<vmem>>, vector<34x128xf32>,
    %c0_62 = arith.constant 0 : index
    %c0_63 = arith.constant 0 : index
    %67 = vector.load %arg8[%c0_62, %c0_63] : memref<194x128xf32, #tpu.memory_space<vmem>>, vector<160x128xf32>
    %c1_64 = arith.constant 1 : index
    %c0_65 = arith.constant 0 : index
    %68 = vector.load %arg8[%c1_64, %c0_65] : memref<194x128xf32, #tpu.memory_space<vmem>>, vector<160x128xf32>
    %c2_66 = arith.constant 2 : index
    %c0_67 = arith.constant 0 : index
    %69 = vector.load %arg8[%c2_66, %c0_67] : memref<194x128xf32, #tpu.memory_space<vmem>>, vector<160x128xf32>
    %c16_68 = arith.constant 16 : index
    %c0_69 = arith.constant 0 : index
    %70 = vector.load %arg8[%c16_68, %c0_69] : memref<194x128xf32, #tpu.memory_space<vmem>>, vector<160x128xf32>
    %c17_70 = arith.constant 17 : index
    %c0_71 = arith.constant 0 : index
    %71 = vector.load %arg8[%c17_70, %c0_71] : memref<194x128xf32, #tpu.memory_space<vmem>>, vector<160x128xf32>
    %c18_72 = arith.constant 18 : index
    %c0_73 = arith.constant 0 : index
    %72 = vector.load %arg8[%c18_72, %c0_73] : memref<194x128xf32, #tpu.memory_space<vmem>>, vector<160x128xf32>
    %c32_74 = arith.constant 32 : index
    %c0_75 = arith.constant 0 : index
    %73 = vector.load %arg8[%c32_74, %c0_75] : memref<194x128xf32, #tpu.memory_space<vmem>>, vector<160x128xf32>
    %c33_76 = arith.constant 33 : index
    %c0_77 = arith.constant 0 : index
    %74 = vector.load %arg8[%c33_76, %c0_77] : memref<194x128xf32, #tpu.memory_space<vmem>>, vector<160x128xf32>
    %c34_78 = arith.constant 34 : index
    %c0_79 = arith.constant 0 : index
    %75 = vector.load %arg8[%c34_78, %c0_79] : memref<194x128xf32, #tpu.memory_space<vmem>>, vector<160x128xf32>
    %76 = tpu.concatenate %67, %68, %69, %70, %71, %72, %73, %74, %75 in 1 : vector<160x128xf32>, vector<160x128xf32>, vector<160x128xf32>, vector<160x128xf32>, vector<160x128xf32>, vector<160x128xf32>, vector<160x128xf32>, vector<160x128xf32>, vector<160x128xf32> -> vector<160x1152xf32>
    %77 = arith.truncf %76 : vector<160x1152xf32> to vector<160x1152xbf16>
    %c2304 = arith.constant 2304 : index
    %c0_80 = arith.constant 0 : index
    %78 = vector.load %arg2[%c2304, %c0_80] : memref<5760x128xbf16, #tpu.memory_space<vmem>>, vector<1152x128xbf16>
    %cst_81 = arith.constant dense<0.000000e+00> : vector<160x128xf32>
    %79 = tpu.matmul %77, %78, %cst_81 {dimension_numbers = #tpu.dot_dimension_numbers<[1], [0], [0], [1], [0, 0, 1, 1], [], []>} : vector<160x1152xbf16>, vector<1152x128xbf16>, vector<160x128xf32> -> vector<160x128xf32>
    %c2_82 = arith.constant 2 : index
    %c0_83 = arith.constant 0 : index
    %80 = vector.load %arg3[%c2_82, %c0_83] : memref<5x128xf32, #tpu.memory_space<vmem>>, vector<1x128xf32>
    %81 = vector.broadcast %80 : vector<1x128xf32> to vector<160x128xf32>
    %82 = arith.addf %79, %81 : vector<160x128xf32>
    %cst_84 = arith.constant 0.000000e+00 : f32
    %83 = vector.broadcast %cst_84 : f32 to vector<160x128xf32>
    %84 = arith.cmpf ogt, %82, %83 : vector<160x128xf32>
    %cst_85 = arith.constant 0.00999999977 : f32
    %85 = vector.broadcast %cst_85 : f32 to vector<160x128xf32>
    %86 = arith.mulf %82, %85 : vector<160x128xf32>
    %87 = arith.select %84, %82, %86 : vector<160x128xi1>, vector<160x128xf32>
    %c0_86 = arith.constant 0 : index
    %c0_87 = arith.constant 0 : index
    %88 = vector.load %arg4[%c0_86, %c0_87] : memref<192x1xi32, #tpu.memory_space<vmem>>, vector<160x1xi32>
    %c10_i32 = arith.constant 10 : i32
    %89 = vector.broadcast %c10_i32 : i32 to vector<160x1xi32>
    %90 = arith.cmpi slt, %88, %89 : vector<160x1xi32>
    %cst_88 = arith.constant 0.000000e+00 : f32
    %91 = vector.shape_cast %90 : vector<160x1xi1> to vector<160x1xi1>
    %92 = vector.broadcast %91 : vector<160x1xi1> to vector<160x128xi1>
    %93 = vector.broadcast %cst_88 : f32 to vector<160x128xf32>
    %94 = arith.select %92, %87, %93 : vector<160x128xi1>, vector<160x128xf32>
    %c0_89 = arith.constant 0 : index
    %c0_90 = arith.constant 0 : index
    %95 = vector.load %arg9[%c0_89, %c0_90] : memref<226x128xf32, #tpu.memory_space<vmem>>, vector<34x128xf32>
    tpu.vector_store %arg9[%c0_89, %c0_90], %0 {strides = array<i32>} : memref<226x128xf32, #tpu.memory_space<vmem>>, vector<34x128xf32>,
    %c34_91 = arith.constant 34 : index
    %c0_92 = arith.constant 0 : index
    %96 = vector.load %arg9[%c34_91, %c0_92] : memref<226x128xf32, #tpu.memory_space<vmem>>, vector<160x128xf32>
    tpu.vector_store %arg9[%c34_91, %c0_92], %94 {strides = array<i32>} : memref<226x128xf32, #tpu.memory_space<vmem>>, vector<160x128xf32>,
    %c192 = arith.constant 192 : index
    %c0_93 = arith.constant 0 : index
    %97 = vector.load %arg9[%c192, %c0_93] : memref<226x128xf32, #tpu.memory_space<vmem>>, vector<34x128xf32>
    tpu.vector_store %arg9[%c192, %c0_93], %0 {strides = array<i32>} : memref<226x128xf32, #tpu.memory_space<vmem>>, vector<34x128xf32>,
    %c0_94 = arith.constant 0 : index
    %c0_95 = arith.constant 0 : index
    %98 = vector.load %arg9[%c0_94, %c0_95] : memref<226x128xf32, #tpu.memory_space<vmem>>, vector<192x128xf32>
    %c1_96 = arith.constant 1 : index
    %c0_97 = arith.constant 0 : index
    %99 = vector.load %arg9[%c1_96, %c0_97] : memref<226x128xf32, #tpu.memory_space<vmem>>, vector<192x128xf32>
    %c2_98 = arith.constant 2 : index
    %c0_99 = arith.constant 0 : index
    %100 = vector.load %arg9[%c2_98, %c0_99] : memref<226x128xf32, #tpu.memory_space<vmem>>, vector<192x128xf32>
    %c16_100 = arith.constant 16 : index
    %c0_101 = arith.constant 0 : index
    %101 = vector.load %arg9[%c16_100, %c0_101] : memref<226x128xf32, #tpu.memory_space<vmem>>, vector<192x128xf32>
    %c17_102 = arith.constant 17 : index
    %c0_103 = arith.constant 0 : index
    %102 = vector.load %arg9[%c17_102, %c0_103] : memref<226x128xf32, #tpu.memory_space<vmem>>, vector<192x128xf32>
    %c18_104 = arith.constant 18 : index
    %c0_105 = arith.constant 0 : index
    %103 = vector.load %arg9[%c18_104, %c0_105] : memref<226x128xf32, #tpu.memory_space<vmem>>, vector<192x128xf32>
    %c32_106 = arith.constant 32 : index
    %c0_107 = arith.constant 0 : index
    %104 = vector.load %arg9[%c32_106, %c0_107] : memref<226x128xf32, #tpu.memory_space<vmem>>, vector<192x128xf32>
    %c33_108 = arith.constant 33 : index
    %c0_109 = arith.constant 0 : index
    %105 = vector.load %arg9[%c33_108, %c0_109] : memref<226x128xf32, #tpu.memory_space<vmem>>, vector<192x128xf32>
    %c34_110 = arith.constant 34 : index
    %c0_111 = arith.constant 0 : index
    %106 = vector.load %arg9[%c34_110, %c0_111] : memref<226x128xf32, #tpu.memory_space<vmem>>, vector<192x128xf32>
    %107 = tpu.concatenate %98, %99, %100, %101, %102, %103, %104, %105, %106 in 1 : vector<192x128xf32>, vector<192x128xf32>, vector<192x128xf32>, vector<192x128xf32>, vector<192x128xf32>, vector<192x128xf32>, vector<192x128xf32>, vector<192x128xf32>, vector<192x128xf32> -> vector<192x1152xf32>
    %108 = arith.truncf %107 : vector<192x1152xf32> to vector<192x1152xbf16>
    %c3456 = arith.constant 3456 : index
    %c0_112 = arith.constant 0 : index
    %109 = vector.load %arg2[%c3456, %c0_112] : memref<5760x128xbf16, #tpu.memory_space<vmem>>, vector<1152x128xbf16>
    %cst_113 = arith.constant dense<0.000000e+00> : vector<192x128xf32>
    %110 = tpu.matmul %108, %109, %cst_113 {dimension_numbers = #tpu.dot_dimension_numbers<[1], [0], [0], [1], [0, 0, 1, 1], [], []>} : vector<192x1152xbf16>, vector<1152x128xbf16>, vector<192x128xf32> -> vector<192x128xf32>
    %c3 = arith.constant 3 : index
    %c0_114 = arith.constant 0 : index
    %111 = vector.load %arg3[%c3, %c0_114] : memref<5x128xf32, #tpu.memory_space<vmem>>, vector<1x128xf32>
    %112 = vector.broadcast %111 : vector<1x128xf32> to vector<192x128xf32>
    %113 = arith.addf %110, %112 : vector<192x128xf32>
    %cst_115 = arith.constant 0.000000e+00 : f32
    %114 = vector.broadcast %cst_115 : f32 to vector<192x128xf32>
    %115 = arith.cmpf ogt, %113, %114 : vector<192x128xf32>
    %cst_116 = arith.constant 0.00999999977 : f32
    %116 = vector.broadcast %cst_116 : f32 to vector<192x128xf32>
    %117 = arith.mulf %113, %116 : vector<192x128xf32>
    %118 = arith.select %115, %113, %117 : vector<192x128xi1>, vector<192x128xf32>
    %c0_117 = arith.constant 0 : index
    %c0_118 = arith.constant 0 : index
    %119 = vector.load %arg4[%c0_117, %c0_118] : memref<192x1xi32, #tpu.memory_space<vmem>>, vector<192x1xi32>
    %c12_i32 = arith.constant 12 : i32
    %120 = vector.broadcast %c12_i32 : i32 to vector<192x1xi32>
    %121 = arith.cmpi slt, %119, %120 : vector<192x1xi32>
    %cst_119 = arith.constant 0.000000e+00 : f32
    %122 = vector.shape_cast %121 : vector<192x1xi1> to vector<192x1xi1>
    %123 = vector.broadcast %122 : vector<192x1xi1> to vector<192x128xi1>
    %124 = vector.broadcast %cst_119 : f32 to vector<192x128xf32>
    %125 = arith.select %123, %118, %124 : vector<192x128xi1>, vector<192x128xf32>
    %c0_120 = arith.constant 0 : index
    %c0_121 = arith.constant 0 : index
    %126 = vector.load %arg10[%c0_120, %c0_121] : memref<258x128xf32, #tpu.memory_space<vmem>>, vector<34x128xf32>
    tpu.vector_store %arg10[%c0_120, %c0_121], %0 {strides = array<i32>} : memref<258x128xf32, #tpu.memory_space<vmem>>, vector<34x128xf32>,
    %c34_122 = arith.constant 34 : index
    %c0_123 = arith.constant 0 : index
    %127 = vector.load %arg10[%c34_122, %c0_123] : memref<258x128xf32, #tpu.memory_space<vmem>>, vector<192x128xf32>
    tpu.vector_store %arg10[%c34_122, %c0_123], %125 {strides = array<i32>} : memref<258x128xf32, #tpu.memory_space<vmem>>, vector<192x128xf32>,
    %c224 = arith.constant 224 : index
    %c0_124 = arith.constant 0 : index
    %128 = vector.load %arg10[%c224, %c0_124] : memref<258x128xf32, #tpu.memory_space<vmem>>, vector<34x128xf32>
    tpu.vector_store %arg10[%c224, %c0_124], %0 {strides = array<i32>} : memref<258x128xf32, #tpu.memory_space<vmem>>, vector<34x128xf32>,
    %c0_125 = arith.constant 0 : index
    %c0_126 = arith.constant 0 : index
    %129 = vector.load %arg10[%c0_125, %c0_126] : memref<258x128xf32, #tpu.memory_space<vmem>>, vector<224x128xf32>
    %c1_127 = arith.constant 1 : index
    %c0_128 = arith.constant 0 : index
    %130 = vector.load %arg10[%c1_127, %c0_128] : memref<258x128xf32, #tpu.memory_space<vmem>>, vector<224x128xf32>
    %c2_129 = arith.constant 2 : index
    %c0_130 = arith.constant 0 : index
    %131 = vector.load %arg10[%c2_129, %c0_130] : memref<258x128xf32, #tpu.memory_space<vmem>>, vector<224x128xf32>
    %c16_131 = arith.constant 16 : index
    %c0_132 = arith.constant 0 : index
    %132 = vector.load %arg10[%c16_131, %c0_132] : memref<258x128xf32, #tpu.memory_space<vmem>>, vector<224x128xf32>
    %c17_133 = arith.constant 17 : index
    %c0_134 = arith.constant 0 : index
    %133 = vector.load %arg10[%c17_133, %c0_134] : memref<258x128xf32, #tpu.memory_space<vmem>>, vector<224x128xf32>
    %c18_135 = arith.constant 18 : index
    %c0_136 = arith.constant 0 : index
    %134 = vector.load %arg10[%c18_135, %c0_136] : memref<258x128xf32, #tpu.memory_space<vmem>>, vector<224x128xf32>
    %c32_137 = arith.constant 32 : index
    %c0_138 = arith.constant 0 : index
    %135 = vector.load %arg10[%c32_137, %c0_138] : memref<258x128xf32, #tpu.memory_space<vmem>>, vector<224x128xf32>
    %c33_139 = arith.constant 33 : index
    %c0_140 = arith.constant 0 : index
    %136 = vector.load %arg10[%c33_139, %c0_140] : memref<258x128xf32, #tpu.memory_space<vmem>>, vector<224x128xf32>
    %c34_141 = arith.constant 34 : index
    %c0_142 = arith.constant 0 : index
    %137 = vector.load %arg10[%c34_141, %c0_142] : memref<258x128xf32, #tpu.memory_space<vmem>>, vector<224x128xf32>
    %138 = tpu.concatenate %129, %130, %131, %132, %133, %134, %135, %136, %137 in 1 : vector<224x128xf32>, vector<224x128xf32>, vector<224x128xf32>, vector<224x128xf32>, vector<224x128xf32>, vector<224x128xf32>, vector<224x128xf32>, vector<224x128xf32>, vector<224x128xf32> -> vector<224x1152xf32>
    %139 = arith.truncf %138 : vector<224x1152xf32> to vector<224x1152xbf16>
    %c4608 = arith.constant 4608 : index
    %c0_143 = arith.constant 0 : index
    %140 = vector.load %arg2[%c4608, %c0_143] : memref<5760x128xbf16, #tpu.memory_space<vmem>>, vector<1152x128xbf16>
    %cst_144 = arith.constant dense<0.000000e+00> : vector<224x128xf32>
    %141 = tpu.matmul %139, %140, %cst_144 {dimension_numbers = #tpu.dot_dimension_numbers<[1], [0], [0], [1], [0, 0, 1, 1], [], []>} : vector<224x1152xbf16>, vector<1152x128xbf16>, vector<224x128xf32> -> vector<224x128xf32>
    %c4 = arith.constant 4 : index
    %c0_145 = arith.constant 0 : index
    %142 = vector.load %arg3[%c4, %c0_145] : memref<5x128xf32, #tpu.memory_space<vmem>>, vector<1x128xf32>
    %143 = vector.broadcast %142 : vector<1x128xf32> to vector<224x128xf32>
    %144 = arith.addf %141, %143 : vector<224x128xf32>
    %cst_146 = arith.constant 0.000000e+00 : f32
    %145 = vector.broadcast %cst_146 : f32 to vector<224x128xf32>
    %146 = arith.maximumf %144, %145 : vector<224x128xf32>
    %c0_147 = arith.constant 0 : index
    %c0_148 = arith.constant 0 : index
    %c0_149 = arith.constant 0 : index
    %147 = vector.load %arg5[%c0_147, %c0_148, %c0_149] : memref<1x224x128xf32, #tpu.memory_space<vmem>>, vector<1x224x128xf32>
    %148 = vector.shape_cast %147 : vector<1x224x128xf32> to vector<224x128xf32>
    %149 = vector.shape_cast %146 : vector<224x128xf32> to vector<1x224x128xf32>
    tpu.vector_store %arg5[%c0_147, %c0_148, %c0_149], %149 {strides = array<i32>} : memref<1x224x128xf32, #tpu.memory_space<vmem>>, vector<1x224x128xf32>,
    return
  }
  func.func @transform_0(%arg0: i32) -> (i32, i32, i32) {
    %c0_i32 = arith.constant 0 : i32
    %c0_i32_0 = arith.constant 0 : i32
    %c0_i32_1 = arith.constant 0 : i32
    return %arg0, %c0_i32, %c0_i32_0 : i32, i32, i32
  }
  func.func @transform_1(%arg0: i32) -> (i32, i32) {
    %c0_i32 = arith.constant 0 : i32
    %c0_i32_0 = arith.constant 0 : i32
    %c0_i32_1 = arith.constant 0 : i32
    return %c0_i32, %c0_i32_0 : i32, i32
  }
  func.func @transform_2(%arg0: i32) -> (i32, i32) {
    %c0_i32 = arith.constant 0 : i32
    %c0_i32_0 = arith.constant 0 : i32
    %c0_i32_1 = arith.constant 0 : i32
    return %c0_i32, %c0_i32_0 : i32, i32
  }
  func.func @transform_3(%arg0: i32) -> (i32, i32) {
    %c0_i32 = arith.constant 0 : i32
    %c0_i32_0 = arith.constant 0 : i32
    %c0_i32_1 = arith.constant 0 : i32
    return %c0_i32, %c0_i32_0 : i32, i32
  }
  func.func @transform_4(%arg0: i32) -> (i32, i32, i32) {
    %c0_i32 = arith.constant 0 : i32
    %c0_i32_0 = arith.constant 0 : i32
    %c0_i32_1 = arith.constant 0 : i32
    return %arg0, %c0_i32, %c0_i32_0 : i32, i32, i32
  }
}

</mosaic_0001>

<llo_original>
// kernel: tpu_custom_call.1
$region0: #{tpu_custom_call.1}
  #allocation0 [shape = 'u32[]', space=smem, size = 0x4, offset = 0x4, fixed_abs, tag = 'smem constant byte address 0x4 - core index']
  #allocation1 [shape = 'u32[144,128]{1,0:T(1,128)}', space=vmem, size = 0x12000, scoped, tag = 'internal scratch']
  #allocation2 [shape = 'f32[130,128]{1,0:T(8,128)}', space=vmem, size = 0x11000, scoped, tag = 'scratch operand']
  #allocation3 [shape = 'f32[162,128]{1,0:T(8,128)}', space=vmem, size = 0x15000, scoped, tag = 'scratch operand']
  #allocation4 [shape = 'f32[194,128]{1,0:T(8,128)}', space=vmem, size = 0x19000, scoped, tag = 'scratch operand']
  #allocation5 [shape = 'f32[226,128]{1,0:T(8,128)}', space=vmem, size = 0x1d000, scoped, tag = 'scratch operand']
  #allocation6 [shape = 'f32[258,128]{1,0:T(8,128)}', space=vmem, size = 0x21000, scoped, tag = 'scratch operand']
  %s0 = inlined_call_operand.hbm [shape: f32[2,96,128], index: 0, kind: input, shape index: {}]
  %s1 = inlined_call_operand.hbm [shape: bf16[5760,128], index: 1, kind: input, shape index: {}]
  %s2 = inlined_call_operand.hbm [shape: f32[5,128], index: 2, kind: input, shape index: {}]
  %s3 = inlined_call_operand.vmem [shape: s32[192,1], index: 3, kind: input, shape index: {}]
  %s4 = inlined_call_operand.hbm [shape: f32[2,224,128], index: 4, kind: output, shape index: {}]
  %s5 = sld [smem:[#allocation0]]
  $region61: #{tpu_custom_call.1} parent=0
    _
  %s7 = ssub.s32 1, %s5
  %s8 = scalar_select 0, %s7, %s5
  $region1: #{tpu_custom_call.1} parent=0
    #allocation7 [shape = 'u8[98304]{0}', space=vmem, size = 0x18000, scoped, tag = 'input window, operand 0']
    #allocation8 [shape = 's32[2]{0}', space=sflag, size = 0x8, scoped, tag = 'scoped memory for tpu_custom_call.1']
    #allocation9 [shape = 's32[2]{0}', space=sflag, size = 0x8, scoped, tag = 'scoped memory for tpu_custom_call.1']
    #allocation10 [shape = 'u8[1474560]{0}', space=vmem, size = 0x168000, scoped, tag = 'input window, operand 1, single buffered']
    #allocation11 [shape = 's32[1]{0}', space=sflag, size = 0x4, scoped, tag = 'scoped memory for tpu_custom_call.1']
    #allocation12 [shape = 'u8[4096]{0}', space=vmem, size = 0x1000, scoped, tag = 'input window, operand 2, single buffered']
    #allocation13 [shape = 'u8[229376]{0}', space=vmem, size = 0x38000, scoped, tag = 'output window, operand 0']
    %9 = vsyncpa [#allocation8], 0
    %s10 = scalar_lea.sflag [#allocation8], 1
    %11 = vsyncpa %s10, 0
    %12 = vsyncpa [#allocation11], 0
    %13 = vsyncpa [#allocation9], 0
    %s14 = scalar_lea.sflag [#allocation9], 1
    %15 = vsyncpa %s14, 0
    loop: start=0, step=1, limit=4
    $region2: #{tpu_custom_call.1} parent=1 // loop_pre_header
      _
    $region3: #{tpu_custom_call.1} parent=1 // loop_header
      %s17 = sphi 0, %s21
      %p18 = scmp.ge.s32.totalorder %s17, 4
      %s27 = sphi 0, %s29
      %s30 = sphi 0, %s27
      %s31 = sphi 0, %s30
      %s47 = sphi 0, %s31
      %s51 = sphi 0, %s51
      %s53 = sphi 0, %s51
      %s54 = sphi 0, %s53
      %s68 = sphi 0, %s54
      %s72 = sphi 0, %s72
      %s74 = sphi 0, %s72
      %s75 = sphi 0, %s74
      %s89 = sphi 0, %s75
      %s93 = sphi 0, %s93
      %s95 = sphi 0, %s93
      %s96 = sphi 0, %s95
      %s110 = sphi 0, %s96
      %s116 = sphi 0, %s118
      %s119 = sphi 0, %s116
      %s120 = sphi 0, %s119
      %s136 = sphi 0, %s120
    $region4: #{tpu_custom_call.1} parent=1 // loop_header_branch
      %20 = sbr.rel (%p18) target = $region8
    $region5: #{tpu_custom_call.1} parent=1 // loop_body
      %s22 = ssub.s32 %s17, 1
      %s23 = ssub.s32 %s17, 2
      %s24 = sadd.s32 %s17, 1
      %s25 = ssub.s32 %s17, %s24
      %p26 = scmp.eq.s32.totalorder %s25, 0
      %s28 = sadd.s32 %s27, 1
      %s29 = scalar_select %p26, %s27, %s28
      %p32 = pneg %p26
      %p33 = scmp.eq.s32.totalorder %s17, 1
      %p34 = por %p32, %p33
      %p35 = scmp.ne.s32.totalorder %s27, %s30
      %p36 = scmp.eq.s32.totalorder %s17, 0
      %p37 = por %p35, %p36
      %p38 = scmp.ne.s32.totalorder %s27, %s30
      %p39 = scmp.eq.s32.totalorder %s22, 1
      %p40 = por %p38, %p39
      %p41 = scmp.ne.s32.totalorder %s30, %s31
      %p42 = scmp.eq.s32.totalorder %s22, 0
      %p43 = por %p41, %p42
      %p44 = scmp.ne.s32.totalorder %s30, %s31
      %p45 = scmp.eq.s32.totalorder %s23, 1
      %p46 = por %p44, %p45
      %p48 = scmp.ne.s32.totalorder %s31, %s47
      %p49 = scmp.eq.s32.totalorder %s23, 0
      %p50 = por %p48, %p49
      %s52 = sadd.s32 %s51, 1
      %p55 = scmp.eq.s32.totalorder %s17, 1
      %p56 = scmp.ne.s32.totalorder %s51, %s53
      %p57 = scmp.eq.s32.totalorder %s17, 0
      %p58 = por %p56, %p57
      %p59 = scmp.ne.s32.totalorder %s51, %s53
      %p60 = scmp.eq.s32.totalorder %s22, 1
      %p61 = por %p59, %p60
      %p62 = scmp.ne.s32.totalorder %s53, %s54
      %p63 = scmp.eq.s32.totalorder %s22, 0
      %p64 = por %p62, %p63
      %p65 = scmp.ne.s32.totalorder %s53, %s54
      %p66 = scmp.eq.s32.totalorder %s23, 1
      %p67 = por %p65, %p66
      %p69 = scmp.ne.s32.totalorder %s54, %s68
      %p70 = scmp.eq.s32.totalorder %s23, 0
      %p71 = por %p69, %p70
      %s73 = sadd.s32 %s72, 1
      %p76 = scmp.eq.s32.totalorder %s17, 1
      %p77 = scmp.ne.s32.totalorder %s72, %s74
      %p78 = scmp.eq.s32.totalorder %s17, 0
      %p79 = por %p77, %p78
      %p80 = scmp.ne.s32.totalorder %s72, %s74
      %p81 = scmp.eq.s32.totalorder %s22, 1
      %p82 = por %p80, %p81
      %p83 = scmp.ne.s32.totalorder %s74, %s75
      %p84 = scmp.eq.s32.totalorder %s22, 0
      %p85 = por %p83, %p84
      %p86 = scmp.ne.s32.totalorder %s74, %s75
      %p87 = scmp.eq.s32.totalorder %s23, 1
      %p88 = por %p86, %p87
      %p90 = scmp.ne.s32.totalorder %s75, %s89
      %p91 = scmp.eq.s32.totalorder %s23, 0
      %p92 = por %p90, %p91
      %s94 = sadd.s32 %s93, 1
      %p97 = scmp.eq.s32.totalorder %s17, 1
      %p98 = scmp.ne.s32.totalorder %s93, %s95
      %p99 = scmp.eq.s32.totalorder %s17, 0
      %p100 = por %p98, %p99
      %p101 = scmp.ne.s32.totalorder %s93, %s95
      %p102 = scmp.eq.s32.totalorder %s22, 1
      %p103 = por %p101, %p102
      %p104 = scmp.ne.s32.totalorder %s95, %s96
      %p105 = scmp.eq.s32.totalorder %s22, 0
      %p106 = por %p104, %p105
      %p107 = scmp.ne.s32.totalorder %s95, %s96
      %p108 = scmp.eq.s32.totalorder %s23, 1
      %p109 = por %p107, %p108
      %p111 = scmp.ne.s32.totalorder %s96, %s110
      %p112 = scmp.eq.s32.totalorder %s23, 0
      %p113 = por %p111, %p112
      %s114 = ssub.s32 %s17, %s24
      %p115 = scmp.eq.s32.totalorder %s114, 0
      %s117 = sadd.s32 %s116, 1
      %s118 = scalar_select %p115, %s116, %s117
      %p121 = pneg %p115
      %p122 = scmp.eq.s32.totalorder %s17, 1
      %p123 = por %p121, %p122
      %p124 = scmp.ne.s32.totalorder %s116, %s119
      %p125 = scmp.eq.s32.totalorder %s17, 0
      %p126 = por %p124, %p125
      %p127 = scmp.ne.s32.totalorder %s116, %s119
      %p128 = scmp.eq.s32.totalorder %s22, 1
      %p129 = por %p127, %p128
      %p130 = scmp.ne.s32.totalorder %s119, %s120
      %p131 = scmp.eq.s32.totalorder %s22, 0
      %p132 = por %p130, %p131
      %p133 = scmp.ne.s32.totalorder %s119, %s120
      %p134 = scmp.eq.s32.totalorder %s23, 1
      %p135 = por %p133, %p134
      %p137 = scmp.ne.s32.totalorder %s120, %s136
      %p138 = scmp.eq.s32.totalorder %s23, 0
      %p139 = por %p137, %p138
      %p140 = scmp.le.s32.totalorder 1, %s17
      %p141 = scmp.lt.s32.totalorder %s17, 3
      %p142 = pnand %p140, %p141
      %p143 = pneg %p142
      // Predicated region
      $region9: #{tpu_custom_call.1} parent=5 // pred_check
        _
      $region10: #{tpu_custom_call.1} parent=5 // pred_check_branch
        %145 = sbr.rel (%p142) target = $region12
      $region11: #{tpu_custom_call.1} parent=5 // pred_region
        %s146 = ssub.s32 %s17, 1
        // Predicated region
        $region13: #{tpu_custom_call.1} parent=11 // pred_check
          %p147 = pneg %p64
        $region14: #{tpu_custom_call.1} parent=11 // pred_check_branch
          %149 = sbr.rel (%p147) target = $region16
        $region15: #{tpu_custom_call.1} parent=11 // pred_region
          %s151 = ssub.s32 46080, 46080
          %152 = vsyncadd [#allocation11], %s151
          %s153 = sshll.u32 [#allocation10], 4
          %s154 = int_to_ptr.vmem [resolvable:$true] %s153
          %159 = dma.hbm_to_vmem [thread:$0]  %s1, 46080, %s154, [#allocation11], 64, 64, 4
        $region16: #{tpu_custom_call.1} parent=11 // pred_fallthru
          _
        // Predicated region
        $region17: #{tpu_custom_call.1} parent=11 // pred_check
          %p160 = pneg %p85
        $region18: #{tpu_custom_call.1} parent=11 // pred_check_branch
          %162 = sbr.rel (%p160) target = $region20
        $region19: #{tpu_custom_call.1} parent=11 // pred_region
          %s164 = ssub.s32 128, 128
          %165 = vsyncadd [#allocation11], %s164
          %s167 = sshll.u32 [#allocation12], 4
          %s168 = int_to_ptr.vmem [resolvable:$true] %s167
          %170 = dma.hbm_to_vmem [thread:$0]  %s2, 128, %s168, [#allocation11]
        $region20: #{tpu_custom_call.1} parent=11 // pred_fallthru
          _
        // Predicated region
        $region21: #{tpu_custom_call.1} parent=11 // pred_check
          %p171 = pneg %p106
        $region22: #{tpu_custom_call.1} parent=11 // pred_check_branch
          %173 = sbr.rel (%p171) target = $region24
        $region23: #{tpu_custom_call.1} parent=11 // pred_region
          _
        $region24: #{tpu_custom_call.1} parent=11 // pred_fallthru
          _
      $region12: #{tpu_custom_call.1} parent=5 // pred_fallthru
        _
      %p174 = scmp.lt.s32.totalorder %s17, 2
      // Predicated region
      $region25: #{tpu_custom_call.1} parent=5 // pred_check
        %p175 = pneg %p174
      $region26: #{tpu_custom_call.1} parent=5 // pred_check_branch
        %177 = sbr.rel (%p175) target = $region28
      $region27: #{tpu_custom_call.1} parent=5 // pred_region
        // Predicated region
        $region29: #{tpu_custom_call.1} parent=27 // pred_check
          %p178 = pneg %p37
        $region30: #{tpu_custom_call.1} parent=27 // pred_check_branch
          %180 = sbr.rel (%p178) target = $region32
        $region31: #{tpu_custom_call.1} parent=27 // pred_region
          %s181 = sand.u32 %s27, 1
          %s182 = scalar_lea.sflag [#allocation8], %s181
          %s183 = sand.u32 %s27, 1
          %s184 = smul.addr %s183, 96
          %s185 = scalar_lea.vmem [#allocation7], %s184
          %s187 = ssub.s32 1536, 1536
          %188 = vsyncadd %s182, %s187
          %s189 = smul.addr %s17, 12
          %s190 = smul.addr %s189, 128
          %s191 = scalar_lea.hbm %s0, %s190
          %s192 = sshll.u32 %s185, 4
          %s193 = int_to_ptr.vmem [resolvable:$true] %s192
          %198 = dma.hbm_to_vmem [thread:$0]  %s191, 1536, %s193, %s182, 128, 128, 8
        $region32: #{tpu_custom_call.1} parent=27 // pred_fallthru
          _
      $region28: #{tpu_custom_call.1} parent=5 // pred_fallthru
        _
      %p199 = scmp.le.s32.totalorder 1, %s17
      %p200 = scmp.lt.s32.totalorder %s17, 3
      %p201 = pnand %p199, %p200
      %p202 = pneg %p201
      // Predicated region
      $region33: #{tpu_custom_call.1} parent=5 // pred_check
        _
      $region34: #{tpu_custom_call.1} parent=5 // pred_check_branch
        %204 = sbr.rel (%p201) target = $region36
      $region35: #{tpu_custom_call.1} parent=5 // pred_region
        %s205 = ssub.s32 %s17, 1
        %s206 = sand.u32 %s30, 1
        %s207 = scalar_lea.sflag [#allocation8], %s206
        %s208 = sand.u32 %s30, 1
        %s209 = smul.addr %s208, 96
        %s210 = scalar_lea.vmem [#allocation7], %s209
        // Predicated region
        $region37: #{tpu_custom_call.1} parent=35 // pred_check
          %p211 = pneg %p43
        $region38: #{tpu_custom_call.1} parent=35 // pred_check_branch
          %213 = sbr.rel (%p211) target = $region40
        $region39: #{tpu_custom_call.1} parent=35 // pred_region
          %214 = dma.done %s207, 1536
        $region40: #{tpu_custom_call.1} parent=35 // pred_fallthru
          _
        // Predicated region
        $region41: #{tpu_custom_call.1} parent=35 // pred_check
          %p215 = pneg %p64
        $region42: #{tpu_custom_call.1} parent=35 // pred_check_branch
          %217 = sbr.rel (%p215) target = $region44
        $region43: #{tpu_custom_call.1} parent=35 // pred_region
          %218 = dma.done [#allocation11], 46080
        $region44: #{tpu_custom_call.1} parent=35 // pred_fallthru
          _
        // Predicated region
        $region45: #{tpu_custom_call.1} parent=35 // pred_check
          %p219 = pneg %p85
        $region46: #{tpu_custom_call.1} parent=35 // pred_check_branch
          %221 = sbr.rel (%p219) target = $region48
        $region47: #{tpu_custom_call.1} parent=35 // pred_region
          %222 = dma.done [#allocation11], 128
        $region48: #{tpu_custom_call.1} parent=35 // pred_fallthru
          _
        %s223 = sand.u32 %s30, 1
        %s224 = scalar_lea.sflag [#allocation8], %s223
        %s225 = sand.u32 %s30, 1
        %s226 = smul.addr %s225, 96
        %s227 = scalar_lea.vmem [#allocation7], %s226
        %p228 = pneg %p43
        %p229 = pneg %p40
        %p230 = pneg %p64
        %p231 = pneg %p61
        %p232 = pneg %p85
        %p233 = pneg %p82
        %p234 = pneg %p106
        %p235 = pneg %p103
        %p236 = pneg %p132
        %p237 = pneg %p129
        %s238 = sand.u32 %s119, 1
        %s239 = scalar_lea.sflag [#allocation9], %s238
        %s240 = sand.u32 %s119, 1
        %s241 = smul.addr %s240, 224
        %s242 = scalar_lea.vmem [#allocation13], %s241
        %v244 = vld [vmem:[%s210] sm:$0xff]
        %v245 = vld [vmem:[%s210 + $0x8] sm:$0xff]
        %v246 = vld [vmem:[%s210 + $0x10] sm:$0xff]
        %v247 = vld [vmem:[%s210 + $0x18] sm:$0xff]
        %v248 = vld [vmem:[%s210 + $0x20] sm:$0xff]
        %v249 = vld [vmem:[%s210 + $0x28] sm:$0xff]
        %v250 = vld [vmem:[%s210 + $0x30] sm:$0xff]
        %v251 = vld [vmem:[%s210 + $0x38] sm:$0xff]
        %v252 = vld [vmem:[%s210 + $0x40] sm:$0xff]
        %v253 = vld [vmem:[%s210 + $0x48] sm:$0xff]
        %v254 = vld [vmem:[%s210 + $0x50] sm:$0xff]
        %v255 = vld [vmem:[%s210 + $0x58] sm:$0xff]
        %256 = vst [vmem:[#allocation2] sm:$0xff] %v244
        %257 = vst [vmem:[#allocation2 + $0x8] sm:$0xff] %v245
        %258 = vst [vmem:[#allocation2 + $0x10] sm:$0xff] %v246
        %259 = vst [vmem:[#allocation2 + $0x18] sm:$0xff] %v247
        %260 = vst [vmem:[#allocation2 + $0x20] sm:$0xff] %v248
        %261 = vst [vmem:[#allocation2 + $0x28] sm:$0xff] %v249
        %262 = vst [vmem:[#allocation2 + $0x30] sm:$0xff] %v250
        %263 = vst [vmem:[#allocation2 + $0x38] sm:$0xff] %v251
        %264 = vst [vmem:[#allocation2 + $0x40] sm:$0xff] %v252
        %265 = vst [vmem:[#allocation2 + $0x48] sm:$0xff] %v253
        %266 = vst [vmem:[#allocation2 + $0x50] sm:$0xff] %v254
        %267 = vst [vmem:[#allocation2 + $0x58] sm:$0xff] %v255
        %268 = vst [vmem:[#allocation2 + $0x60] sm:$0xff] 0.0
        %269 = vst [vmem:[#allocation2 + $0x68] sm:$0xff] 0.0
        %270 = vst [vmem:[#allocation2 + $0x70] sm:$0xff] 0.0
        %271 = vst [vmem:[#allocation2 + $0x78] sm:$0xff] 0.0
        %272 = vst [vmem:[#allocation2 + $0x80] sm:$0x3] 0.0
        %v273 = vld [vmem:[#allocation2] sm:$0xff]
        %v274 = vld [vmem:[#allocation2 + $0x8] sm:$0xff]
        %v275 = vld [vmem:[#allocation2 + $0x10] sm:$0xff]
        %v276 = vld [vmem:[#allocation2 + $0x18] sm:$0xff]
        %v277 = vld [vmem:[#allocation2 + $0x20] sm:$0xff]
        %v278 = vld [vmem:[#allocation2 + $0x28] sm:$0xff]
        %v279 = vld [vmem:[#allocation2 + $0x30] sm:$0xff]
        %v280 = vld [vmem:[#allocation2 + $0x38] sm:$0xff]
        %v281 = vld [vmem:[#allocation2 + $0x40] sm:$0xff]
        %v282 = vld [vmem:[#allocation2 + $0x48] sm:$0xff]
        %v283 = vld [vmem:[#allocation2 + $0x50] sm:$0xff]
        %v284 = vld [vmem:[#allocation2 + $0x58] sm:$0xff]
        %v285 = vld [vmem:[#allocation2 + $0x1] sm:$0xff]
        %v286 = vld [vmem:[#allocation2 + $0x9] sm:$0xff]
        %v287 = vld [vmem:[#allocation2 + $0x11] sm:$0xff]
        %v288 = vld [vmem:[#allocation2 + $0x19] sm:$0xff]
        %v289 = vld [vmem:[#allocation2 + $0x21] sm:$0xff]
        %v290 = vld [vmem:[#allocation2 + $0x29] sm:$0xff]
        %v291 = vld [vmem:[#allocation2 + $0x31] sm:$0xff]
        %v292 = vld [vmem:[#allocation2 + $0x39] sm:$0xff]
        %v293 = vld [vmem:[#allocation2 + $0x41] sm:$0xff]
        %v294 = vld [vmem:[#allocation2 + $0x49] sm:$0xff]
        %v295 = vld [vmem:[#allocation2 + $0x51] sm:$0xff]
        %v296 = vld [vmem:[#allocation2 + $0x59] sm:$0xff]
        %v297 = vld [vmem:[#allocation2 + $0x2] sm:$0xff]
        %v298 = vld [vmem:[#allocation2 + $0xa] sm:$0xff]
        %v299 = vld [vmem:[#allocation2 + $0x12] sm:$0xff]
        %v300 = vld [vmem:[#allocation2 + $0x1a] sm:$0xff]
        %v301 = vld [vmem:[#allocation2 + $0x22] sm:$0xff]
        %v302 = vld [vmem:[#allocation2 + $0x2a] sm:$0xff]
        %v303 = vld [vmem:[#allocation2 + $0x32] sm:$0xff]
        %v304 = vld [vmem:[#allocation2 + $0x3a] sm:$0xff]
        %v305 = vld [vmem:[#allocation2 + $0x42] sm:$0xff]
        %v306 = vld [vmem:[#allocation2 + $0x4a] sm:$0xff]
        %v307 = vld [vmem:[#allocation2 + $0x52] sm:$0xff]
        %v308 = vld [vmem:[#allocation2 + $0x5a] sm:$0xff]
        %v309 = vld [vmem:[#allocation2 + $0x60] sm:$0xff]
        %v310 = vld [vmem:[#allocation2 + $0x68] sm:$0xff]
        %v311 = vld [vmem:[#allocation2 + $0x61] sm:$0xff]
        %v312 = vld [vmem:[#allocation2 + $0x69] sm:$0xff]
        %v313 = vld [vmem:[#allocation2 + $0x62] sm:$0xff]
        %v314 = vld [vmem:[#allocation2 + $0x6a] sm:$0xff]
        %v315 = vld [vmem:[#allocation2 + $0x70] sm:$0xff]
        %v316 = vld [vmem:[#allocation2 + $0x78] sm:$0xff]
        %v317 = vld [vmem:[#allocation2 + $0x71] sm:$0xff]
        %v318 = vld [vmem:[#allocation2 + $0x79] sm:$0xff]
        %v319 = vld [vmem:[#allocation2 + $0x22] sm:$0xff]
        %v320 = vld [vmem:[#allocation2 + $0x2a] sm:$0xff]
        %v321 = vld [vmem:[#allocation2 + $0x32] sm:$0xff]
        %v322 = vld [vmem:[#allocation2 + $0x3a] sm:$0xff]
        %v323 = vld [vmem:[#allocation2 + $0x42] sm:$0xff]
        %v324 = vld [vmem:[#allocation2 + $0x4a] sm:$0xff]
        %v325 = vld [vmem:[#allocation2 + $0x52] sm:$0xff]
        %v326 = vld [vmem:[#allocation2 + $0x5a] sm:$0xff]
        %v327 = vld [vmem:[#allocation2 + $0x62] sm:$0xff]
        %v328 = vld [vmem:[#allocation2 + $0x6a] sm:$0xff]
        %v329 = vld [vmem:[#allocation2 + $0x72] sm:$0xff]
        %v330 = vld [vmem:[#allocation2 + $0x7a] sm:$0xff]
        %v331 = vpack.c.bf16 %v274, %v273
        %v332 = vpack.c.bf16 %v286, %v285
        %v333 = vpack.c.bf16 %v298, %v297
        %v334 = vpack.c.bf16 %v276, %v275
        %v335 = vpack.c.bf16 %v288, %v287
        %v336 = vpack.c.bf16 %v300, %v299
        %v337 = vpack.c.bf16 %v278, %v277
        %v338 = vpack.c.bf16 %v290, %v289
        %v339 = vpack.c.bf16 %v320, %v319
        %v340 = vpack.c.bf16 %v302, %v301
        %v341 = vpack.c.bf16 %v280, %v279
        %v342 = vpack.c.bf16 %v292, %v291
        %v343 = vpack.c.bf16 %v322, %v321
        %v344 = vpack.c.bf16 %v304, %v303
        %v345 = vpack.c.bf16 %v282, %v281
        %v346 = vpack.c.bf16 %v294, %v293
        %v347 = vpack.c.bf16 %v324, %v323
        %v348 = vpack.c.bf16 %v306, %v305
        %v349 = vpack.c.bf16 %v284, %v283
        %v350 = vpack.c.bf16 %v296, %v295
        %v351 = vpack.c.bf16 %v326, %v325
        %v352 = vpack.c.bf16 %v308, %v307
        %v353 = vpack.c.bf16 %v310, %v309
        %v354 = vpack.c.bf16 %v312, %v311
        %v355 = vpack.c.bf16 %v328, %v327
        %v356 = vpack.c.bf16 %v314, %v313
        %v357 = vpack.c.bf16 %v316, %v315
        %v358 = vpack.c.bf16 %v318, %v317
        %v359 = vpack.c.bf16 %v330, %v329
        %v360 = vld [vmem:[#allocation10] sm:$0xf]
        %v361 = vld [vmem:[#allocation10 + $0x4] sm:$0xf]
        %v362 = vld [vmem:[#allocation10 + $0x8] sm:$0xf]
        %v363 = vld [vmem:[#allocation10 + $0xc] sm:$0xf]
        %v364 = vld [vmem:[#allocation10 + $0x10] sm:$0xf]
        %v365 = vld [vmem:[#allocation10 + $0x14] sm:$0xf]
        %v366 = vld [vmem:[#allocation10 + $0x18] sm:$0xf]
        %v367 = vld [vmem:[#allocation10 + $0x1c] sm:$0xf]
        %v368 = vld [vmem:[#allocation10 + $0x20] sm:$0xf]
        %v369 = vld [vmem:[#allocation10 + $0x24] sm:$0xf]
        %v370 = vld [vmem:[#allocation10 + $0x28] sm:$0xf]
        %v371 = vld [vmem:[#allocation10 + $0x2c] sm:$0xf]
        %v372 = vld [vmem:[#allocation10 + $0x30] sm:$0xf]
        %v373 = vld [vmem:[#allocation10 + $0x34] sm:$0xf]
        %v374 = vld [vmem:[#allocation10 + $0x38] sm:$0xf]
        %v375 = vld [vmem:[#allocation10 + $0x3c] sm:$0xf]
        %v376 = vld [vmem:[#allocation10 + $0x40] sm:$0xf]
        %v377 = vld [vmem:[#allocation10 + $0x44] sm:$0xf]
        %v378 = vld [vmem:[#allocation10 + $0x48] sm:$0xf]
        %v379 = vld [vmem:[#allocation10 + $0x4c] sm:$0xf]
        %v380 = vld [vmem:[#allocation10 + $0x50] sm:$0xf]
        %v381 = vld [vmem:[#allocation10 + $0x54] sm:$0xf]
        %v382 = vld [vmem:[#allocation10 + $0x58] sm:$0xf]
        %v383 = vld [vmem:[#allocation10 + $0x5c] sm:$0xf]
        %v384 = vld [vmem:[#allocation10 + $0x60] sm:$0xf]
        %v385 = vld [vmem:[#allocation10 + $0x64] sm:$0xf]
        %v386 = vld [vmem:[#allocation10 + $0x68] sm:$0xf]
        %v387 = vld [vmem:[#allocation10 + $0x6c] sm:$0xf]
        %v388 = vld [vmem:[#allocation10 + $0x70] sm:$0xf]
        %v389 = vld [vmem:[#allocation10 + $0x74] sm:$0xf]
        %v390 = vld [vmem:[#allocation10 + $0x78] sm:$0xf]
        %v391 = vld [vmem:[#allocation10 + $0x7c] sm:$0xf]
        %v392 = vld [vmem:[#allocation10 + $0x80] sm:$0xf]
        %v393 = vld [vmem:[#allocation10 + $0x84] sm:$0xf]
        %v394 = vld [vmem:[#allocation10 + $0x88] sm:$0xf]
        %v395 = vld [vmem:[#allocation10 + $0x8c] sm:$0xf]
        %v396 = vld [vmem:[#allocation10 + $0x90] sm:$0xf]
        %v397 = vld [vmem:[#allocation10 + $0x94] sm:$0xf]
        %v398 = vld [vmem:[#allocation10 + $0x98] sm:$0xf]
        %v399 = vld [vmem:[#allocation10 + $0x9c] sm:$0xf]
        %v400 = vld [vmem:[#allocation10 + $0xa0] sm:$0xf]
        %v401 = vld [vmem:[#allocation10 + $0xa4] sm:$0xf]
        %v402 = vld [vmem:[#allocation10 + $0xa8] sm:$0xf]
        %v403 = vld [vmem:[#allocation10 + $0xac] sm:$0xf]
        %v404 = vld [vmem:[#allocation10 + $0xb0] sm:$0xf]
        %v405 = vld [vmem:[#allocation10 + $0xb4] sm:$0xf]
        %v406 = vld [vmem:[#allocation10 + $0xb8] sm:$0xf]
        %v407 = vld [vmem:[#allocation10 + $0xbc] sm:$0xf]
        %v408 = vld [vmem:[#allocation10 + $0xc0] sm:$0xf]
        %v409 = vld [vmem:[#allocation10 + $0xc4] sm:$0xf]
        %v410 = vld [vmem:[#allocation10 + $0xc8] sm:$0xf]
        %v411 = vld [vmem:[#allocation10 + $0xcc] sm:$0xf]
        %v412 = vld [vmem:[#allocation10 + $0xd0] sm:$0xf]
        %v413 = vld [vmem:[#allocation10 + $0xd4] sm:$0xf]
        %v414 = vld [vmem:[#allocation10 + $0xd8] sm:$0xf]
        %v415 = vld [vmem:[#allocation10 + $0xdc] sm:$0xf]
        %v416 = vld [vmem:[#allocation10 + $0xe0] sm:$0xf]
        %v417 = vld [vmem:[#allocation10 + $0xe4] sm:$0xf]
        %v418 = vld [vmem:[#allocation10 + $0xe8] sm:$0xf]
        %v419 = vld [vmem:[#allocation10 + $0xec] sm:$0xf]
        %v420 = vld [vmem:[#allocation10 + $0xf0] sm:$0xf]
        %v421 = vld [vmem:[#allocation10 + $0xf4] sm:$0xf]
        %v422 = vld [vmem:[#allocation10 + $0xf8] sm:$0xf]
        %v423 = vld [vmem:[#allocation10 + $0xfc] sm:$0xf]
        %v424 = vld [vmem:[#allocation10 + $0x100] sm:$0xf]
        %v425 = vld [vmem:[#allocation10 + $0x104] sm:$0xf]
        %v426 = vld [vmem:[#allocation10 + $0x108] sm:$0xf]
        %v427 = vld [vmem:[#allocation10 + $0x10c] sm:$0xf]
        %v428 = vld [vmem:[#allocation10 + $0x110] sm:$0xf]
        %v429 = vld [vmem:[#allocation10 + $0x114] sm:$0xf]
        %v430 = vld [vmem:[#allocation10 + $0x118] sm:$0xf]
        %v431 = vld [vmem:[#allocation10 + $0x11c] sm:$0xf]
        %v432 = vld [vmem:[#allocation10 + $0x120] sm:$0xf]
        %v433 = vld [vmem:[#allocation10 + $0x124] sm:$0xf]
        %v434 = vld [vmem:[#allocation10 + $0x128] sm:$0xf]
        %v435 = vld [vmem:[#allocation10 + $0x12c] sm:$0xf]
        %v436 = vld [vmem:[#allocation10 + $0x130] sm:$0xf]
        %v437 = vld [vmem:[#allocation10 + $0x134] sm:$0xf]
        %v438 = vld [vmem:[#allocation10 + $0x138] sm:$0xf]
        %v439 = vld [vmem:[#allocation10 + $0x13c] sm:$0xf]
        %v440 = vld [vmem:[#allocation10 + $0x140] sm:$0xf]
        %v441 = vld [vmem:[#allocation10 + $0x144] sm:$0xf]
        %v442 = vld [vmem:[#allocation10 + $0x148] sm:$0xf]
        %v443 = vld [vmem:[#allocation10 + $0x14c] sm:$0xf]
        %v444 = vld [vmem:[#allocation10 + $0x150] sm:$0xf]
        %v445 = vld [vmem:[#allocation10 + $0x154] sm:$0xf]
        %v446 = vld [vmem:[#allocation10 + $0x158] sm:$0xf]
        %v447 = vld [vmem:[#allocation10 + $0x15c] sm:$0xf]
        %v448 = vld [vmem:[#allocation10 + $0x160] sm:$0xf]
        %v449 = vld [vmem:[#allocation10 + $0x164] sm:$0xf]
        %v450 = vld [vmem:[#allocation10 + $0x168] sm:$0xf]
        %v451 = vld [vmem:[#allocation10 + $0x16c] sm:$0xf]
        %v452 = vld [vmem:[#allocation10 + $0x170] sm:$0xf]
        %v453 = vld [vmem:[#allocation10 + $0x174] sm:$0xf]
        %v454 = vld [vmem:[#allocation10 + $0x178] sm:$0xf]
        %v455 = vld [vmem:[#allocation10 + $0x17c] sm:$0xf]
        %v456 = vld [vmem:[#allocation10 + $0x180] sm:$0xf]
        %v457 = vld [vmem:[#allocation10 + $0x184] sm:$0xf]
        %v458 = vld [vmem:[#allocation10 + $0x188] sm:$0xf]
        %v459 = vld [vmem:[#allocation10 + $0x18c] sm:$0xf]
        %v460 = vld [vmem:[#allocation10 + $0x190] sm:$0xf]
        %v461 = vld [vmem:[#allocation10 + $0x194] sm:$0xf]
        %v462 = vld [vmem:[#allocation10 + $0x198] sm:$0xf]
        %v463 = vld [vmem:[#allocation10 + $0x19c] sm:$0xf]
        %v464 = vld [vmem:[#allocation10 + $0x1a0] sm:$0xf]
        %v465 = vld [vmem:[#allocation10 + $0x1a4] sm:$0xf]
        %v466 = vld [vmem:[#allocation10 + $0x1a8] sm:$0xf]
        %v467 = vld [vmem:[#allocation10 + $0x1ac] sm:$0xf]
        %v468 = vld [vmem:[#allocation10 + $0x1b0] sm:$0xf]
        %v469 = vld [vmem:[#allocation10 + $0x1b4] sm:$0xf]
        %v470 = vld [vmem:[#allocation10 + $0x1b8] sm:$0xf]
        %v471 = vld [vmem:[#allocation10 + $0x1bc] sm:$0xf]
        %v472 = vld [vmem:[#allocation10 + $0x1c0] sm:$0xf]
        %v473 = vld [vmem:[#allocation10 + $0x1c4] sm:$0xf]
        %v474 = vld [vmem:[#allocation10 + $0x1c8] sm:$0xf]
        %v475 = vld [vmem:[#allocation10 + $0x1cc] sm:$0xf]
        %v476 = vld [vmem:[#allocation10 + $0x1d0] sm:$0xf]
        %v477 = vld [vmem:[#allocation10 + $0x1d4] sm:$0xf]
        %v478 = vld [vmem:[#allocation10 + $0x1d8] sm:$0xf]
        %v479 = vld [vmem:[#allocation10 + $0x1dc] sm:$0xf]
        %v480 = vld [vmem:[#allocation10 + $0x1e0] sm:$0xf]
        %v481 = vld [vmem:[#allocation10 + $0x1e4] sm:$0xf]
        %v482 = vld [vmem:[#allocation10 + $0x1e8] sm:$0xf]
        %v483 = vld [vmem:[#allocation10 + $0x1ec] sm:$0xf]
        %v484 = vld [vmem:[#allocation10 + $0x1f0] sm:$0xf]
        %v485 = vld [vmem:[#allocation10 + $0x1f4] sm:$0xf]
        %v486 = vld [vmem:[#allocation10 + $0x1f8] sm:$0xf]
        %v487 = vld [vmem:[#allocation10 + $0x1fc] sm:$0xf]
        %v488 = vld [vmem:[#allocation10 + $0x200] sm:$0xf]
        %v489 = vld [vmem:[#allocation10 + $0x204] sm:$0xf]
        %v490 = vld [vmem:[#allocation10 + $0x208] sm:$0xf]
        %v491 = vld [vmem:[#allocation10 + $0x20c] sm:$0xf]
        %v492 = vld [vmem:[#allocation10 + $0x210] sm:$0xf]
        %v493 = vld [vmem:[#allocation10 + $0x214] sm:$0xf]
        %v494 = vld [vmem:[#allocation10 + $0x218] sm:$0xf]
        %v495 = vld [vmem:[#allocation10 + $0x21c] sm:$0xf]
        %v496 = vld [vmem:[#allocation10 + $0x220] sm:$0xf]
        %v497 = vld [vmem:[#allocation10 + $0x224] sm:$0xf]
        %v498 = vld [vmem:[#allocation10 + $0x228] sm:$0xf]
        %v499 = vld [vmem:[#allocation10 + $0x22c] sm:$0xf]
        %v500 = vld [vmem:[#allocation10 + $0x230] sm:$0xf]
        %v501 = vld [vmem:[#allocation10 + $0x234] sm:$0xf]
        %v502 = vld [vmem:[#allocation10 + $0x238] sm:$0xf]
        %v503 = vld [vmem:[#allocation10 + $0x23c] sm:$0xf]
        %v504 = vld [vmem:[#allocation12] sm:$0x1]
        %v505 = vlaneseq
        %v506 = vshrl.u32 %v505, 7
        %v507 = vsub.s32 0, %v506
        %v508 = vrot.slane %v504, %v507
        %v653 = vunpack.c.l.b16 %v360
        %v654 = vunpack.c.l.b16 %v361
        %v655 = vunpack.c.l.b16 %v362
        %v656 = vunpack.c.l.b16 %v363
        %v657 = vunpack.c.l.b16 %v364
        %v658 = vunpack.c.l.b16 %v365
        %v659 = vunpack.c.l.b16 %v366
        %v660 = vunpack.c.l.b16 %v367
        %v661 = vunpack.c.l.b16 %v368
        %v662 = vunpack.c.l.b16 %v369
        %v663 = vunpack.c.l.b16 %v370
        %v664 = vunpack.c.l.b16 %v371
        %v665 = vunpack.c.l.b16 %v372
        %v666 = vunpack.c.l.b16 %v373
        %v667 = vunpack.c.l.b16 %v374
        %v668 = vunpack.c.l.b16 %v375
        %v669 = vunpack.c.l.b16 %v376
        %v670 = vunpack.c.l.b16 %v377
        %v671 = vunpack.c.l.b16 %v378
        %v672 = vunpack.c.l.b16 %v379
        %v673 = vunpack.c.l.b16 %v380
        %v674 = vunpack.c.l.b16 %v381
        %v675 = vunpack.c.l.b16 %v382
        %v676 = vunpack.c.l.b16 %v383
        %v677 = vunpack.c.l.b16 %v384
        %v678 = vunpack.c.l.b16 %v385
        %v679 = vunpack.c.l.b16 %v386
        %v680 = vunpack.c.l.b16 %v387
        %v681 = vunpack.c.l.b16 %v388
        %v682 = vunpack.c.l.b16 %v389
        %v683 = vunpack.c.l.b16 %v390
        %v684 = vunpack.c.l.b16 %v391
        %v685 = vunpack.c.l.b16 %v392
        %v686 = vunpack.c.l.b16 %v393
        %v687 = vunpack.c.l.b16 %v394
        %v688 = vunpack.c.l.b16 %v395
        %v689 = vunpack.c.l.b16 %v396
        %v690 = vunpack.c.l.b16 %v397
        %v691 = vunpack.c.l.b16 %v398
        %v692 = vunpack.c.l.b16 %v399
        %v693 = vunpack.c.l.b16 %v400
        %v694 = vunpack.c.l.b16 %v401
        %v695 = vunpack.c.l.b16 %v402
        %v696 = vunpack.c.l.b16 %v403
        %v697 = vunpack.c.l.b16 %v404
        %v698 = vunpack.c.l.b16 %v405
        %v699 = vunpack.c.l.b16 %v406
        %v700 = vunpack.c.l.b16 %v407
        %v701 = vunpack.c.l.b16 %v408
        %v702 = vunpack.c.l.b16 %v409
        %v703 = vunpack.c.l.b16 %v410
        %v704 = vunpack.c.l.b16 %v411
        %v705 = vunpack.c.l.b16 %v412
        %v706 = vunpack.c.l.b16 %v413
        %v707 = vunpack.c.l.b16 %v414
        %v708 = vunpack.c.l.b16 %v415
        %v709 = vunpack.c.l.b16 %v416
        %v710 = vunpack.c.l.b16 %v417
        %v711 = vunpack.c.l.b16 %v418
        %v712 = vunpack.c.l.b16 %v419
        %v713 = vunpack.c.l.b16 %v420
        %v714 = vunpack.c.l.b16 %v421
        %v715 = vunpack.c.l.b16 %v422
        %v716 = vunpack.c.l.b16 %v423
        %v717 = vunpack.c.l.b16 %v424
        %v718 = vunpack.c.l.b16 %v425
        %v719 = vunpack.c.l.b16 %v426
        %v720 = vunpack.c.l.b16 %v427
        %v721 = vunpack.c.l.b16 %v428
        %v722 = vunpack.c.l.b16 %v429
        %v723 = vunpack.c.l.b16 %v430
        %v724 = vunpack.c.l.b16 %v431
        %v725 = vunpack.c.l.b16 %v432
        %v726 = vunpack.c.l.b16 %v433
        %v727 = vunpack.c.l.b16 %v434
        %v728 = vunpack.c.l.b16 %v435
        %v729 = vunpack.c.l.b16 %v436
        %v730 = vunpack.c.l.b16 %v437
        %v731 = vunpack.c.l.b16 %v438
        %v732 = vunpack.c.l.b16 %v439
        %v733 = vunpack.c.l.b16 %v440
        %v734 = vunpack.c.l.b16 %v441
        %v735 = vunpack.c.l.b16 %v442
        %v736 = vunpack.c.l.b16 %v443
        %v737 = vunpack.c.l.b16 %v444
        %v738 = vunpack.c.l.b16 %v445
        %v739 = vunpack.c.l.b16 %v446
        %v740 = vunpack.c.l.b16 %v447
        %v741 = vunpack.c.l.b16 %v448
        %v742 = vunpack.c.l.b16 %v449
        %v743 = vunpack.c.l.b16 %v450
        %v744 = vunpack.c.l.b16 %v451
        %v745 = vunpack.c.l.b16 %v452
        %v746 = vunpack.c.l.b16 %v453
        %v747 = vunpack.c.l.b16 %v454
        %v748 = vunpack.c.l.b16 %v455
        %v749 = vunpack.c.l.b16 %v456
        %v750 = vunpack.c.l.b16 %v457
        %v751 = vunpack.c.l.b16 %v458
        %v752 = vunpack.c.l.b16 %v459
        %v753 = vunpack.c.l.b16 %v460
        %v754 = vunpack.c.l.b16 %v461
        %v755 = vunpack.c.l.b16 %v462
        %v756 = vunpack.c.l.b16 %v463
        %v757 = vunpack.c.l.b16 %v464
        %v758 = vunpack.c.l.b16 %v465
        %v759 = vunpack.c.l.b16 %v466
        %v760 = vunpack.c.l.b16 %v467
        %v761 = vunpack.c.l.b16 %v468
        %v762 = vunpack.c.l.b16 %v469
        %v763 = vunpack.c.l.b16 %v470
        %v764 = vunpack.c.l.b16 %v471
        %v765 = vunpack.c.l.b16 %v472
        %v766 = vunpack.c.l.b16 %v473
        %v767 = vunpack.c.l.b16 %v474
        %v768 = vunpack.c.l.b16 %v475
        %v769 = vunpack.c.l.b16 %v476
        %v770 = vunpack.c.l.b16 %v477
        %v771 = vunpack.c.l.b16 %v478
        %v772 = vunpack.c.l.b16 %v479
        %v773 = vunpack.c.l.b16 %v480
        %v774 = vunpack.c.l.b16 %v481
        %v775 = vunpack.c.l.b16 %v482
        %v776 = vunpack.c.l.b16 %v483
        %v777 = vunpack.c.l.b16 %v484
        %v778 = vunpack.c.l.b16 %v485
        %v779 = vunpack.c.l.b16 %v486
        %v780 = vunpack.c.l.b16 %v487
        %v781 = vunpack.c.l.b16 %v488
        %v782 = vunpack.c.l.b16 %v489
        %v783 = vunpack.c.l.b16 %v490
        %v784 = vunpack.c.l.b16 %v491
        %v785 = vunpack.c.l.b16 %v492
        %v786 = vunpack.c.l.b16 %v493
        %v787 = vunpack.c.l.b16 %v494
        %v788 = vunpack.c.l.b16 %v495
        %v789 = vunpack.c.l.b16 %v496
        %v790 = vunpack.c.l.b16 %v497
        %v791 = vunpack.c.l.b16 %v498
        %v792 = vunpack.c.l.b16 %v499
        %v793 = vunpack.c.l.b16 %v500
        %v794 = vunpack.c.l.b16 %v501
        %v795 = vunpack.c.l.b16 %v502
        %v796 = vunpack.c.l.b16 %v503
        %v797 = vpack.c.b16 %v654, %v653
        %v798 = vpack.c.b16 %v656, %v655
        %v799 = vpack.c.b16 %v658, %v657
        %v800 = vpack.c.b16 %v660, %v659
        %v801 = vpack.c.b16 %v662, %v661
        %v802 = vpack.c.b16 %v664, %v663
        %v803 = vpack.c.b16 %v666, %v665
        %v804 = vpack.c.b16 %v668, %v667
        %v805 = vpack.c.b16 %v670, %v669
        %v806 = vpack.c.b16 %v672, %v671
        %v807 = vpack.c.b16 %v674, %v673
        %v808 = vpack.c.b16 %v676, %v675
        %v809 = vpack.c.b16 %v678, %v677
        %v810 = vpack.c.b16 %v680, %v679
        %v811 = vpack.c.b16 %v682, %v681
        %v812 = vpack.c.b16 %v684, %v683
        %v813 = vpack.c.b16 %v686, %v685
        %v814 = vpack.c.b16 %v688, %v687
        %v815 = vpack.c.b16 %v690, %v689
        %v816 = vpack.c.b16 %v692, %v691
        %v817 = vpack.c.b16 %v694, %v693
        %v818 = vpack.c.b16 %v696, %v695
        %v819 = vpack.c.b16 %v698, %v697
        %v820 = vpack.c.b16 %v700, %v699
        %v821 = vpack.c.b16 %v702, %v701
        %v822 = vpack.c.b16 %v704, %v703
        %v823 = vpack.c.b16 %v706, %v705
        %v824 = vpack.c.b16 %v708, %v707
        %v825 = vpack.c.b16 %v710, %v709
        %v826 = vpack.c.b16 %v712, %v711
        %v827 = vpack.c.b16 %v714, %v713
        %v828 = vpack.c.b16 %v716, %v715
        %v829 = vpack.c.b16 %v718, %v717
        %v830 = vpack.c.b16 %v720, %v719
        %v831 = vpack.c.b16 %v722, %v721
        %v832 = vpack.c.b16 %v724, %v723
        %v833 = vpack.c.b16 %v726, %v725
        %v834 = vpack.c.b16 %v728, %v727
        %v835 = vpack.c.b16 %v730, %v729
        %v836 = vpack.c.b16 %v732, %v731
        %v837 = vpack.c.b16 %v734, %v733
        %v838 = vpack.c.b16 %v736, %v735
        %v839 = vpack.c.b16 %v738, %v737
        %v840 = vpack.c.b16 %v740, %v739
        %v841 = vpack.c.b16 %v742, %v741
        %v842 = vpack.c.b16 %v744, %v743
        %v843 = vpack.c.b16 %v746, %v745
        %v844 = vpack.c.b16 %v748, %v747
        %v845 = vpack.c.b16 %v750, %v749
        %v846 = vpack.c.b16 %v752, %v751
        %v847 = vpack.c.b16 %v754, %v753
        %v848 = vpack.c.b16 %v756, %v755
        %v849 = vpack.c.b16 %v758, %v757
        %v850 = vpack.c.b16 %v760, %v759
        %v851 = vpack.c.b16 %v762, %v761
        %v852 = vpack.c.b16 %v764, %v763
        %v853 = vpack.c.b16 %v766, %v765
        %v854 = vpack.c.b16 %v768, %v767
        %v855 = vpack.c.b16 %v770, %v769
        %v856 = vpack.c.b16 %v772, %v771
        %v857 = vpack.c.b16 %v774, %v773
        %v858 = vpack.c.b16 %v776, %v775
        %v859 = vpack.c.b16 %v778, %v777
        %v860 = vpack.c.b16 %v780, %v779
        %v861 = vpack.c.b16 %v782, %v781
        %v862 = vpack.c.b16 %v784, %v783
        %v863 = vpack.c.b16 %v786, %v785
        %v864 = vpack.c.b16 %v788, %v787
        %v865 = vpack.c.b16 %v790, %v789
        %v866 = vpack.c.b16 %v792, %v791
        %v867 = vpack.c.b16 %v794, %v793
        %v868 = vpack.c.b16 %v796, %v795
        %941 = vmatprep.subr.bf16.mxu0 0
        %942 = vmatpush1.bf16.msra.mxu0 %v804
        %943 = vmatprep.subr.bf16.mxu0 0
        %944 = vmatpush1.bf16.msra.mxu0 %v803
        %945 = vmatprep.subr.bf16.mxu0 0
        %946 = vmatpush1.bf16.msra.mxu0 %v802
        %947 = vmatprep.subr.bf16.mxu0 0
        %948 = vmatpush1.bf16.msra.mxu0 %v801
        %949 = vmatprep.subr.bf16.mxu0 0
        %950 = vmatpush1.bf16.msra.mxu0 %v800
        %951 = vmatprep.subr.bf16.mxu0 0
        %952 = vmatpush1.bf16.msra.mxu0 %v799
        %953 = vmatprep.subr.bf16.mxu0 0
        %954 = vmatpush1.bf16.msra.mxu0 %v798
        %955 = vmatprep.subr.bf16.mxu0 0
        %956 = vmatpush1.bf16.msra.mxu0 %v797
        %957 = vmatprep.subr.bf16.mxu0 0
        %958 = vmatpush2.bf16.msra.mxu0 %v812
        %959 = vmatprep.subr.bf16.mxu0 0
        %960 = vmatpush2.bf16.msra.mxu0 %v811
        %961 = vmatprep.subr.bf16.mxu0 0
        %962 = vmatpush2.bf16.msra.mxu0 %v810
        %963 = vmatprep.subr.bf16.mxu0 0
        %964 = vmatpush2.bf16.msra.mxu0 %v809
        %965 = vmatprep.subr.bf16.mxu0 0
        %966 = vmatpush2.bf16.msra.mxu0 %v808
        %967 = vmatprep.subr.bf16.mxu0 0
        %968 = vmatpush2.bf16.msra.mxu0 %v807
        %969 = vmatprep.subr.bf16.mxu0 0
        %970 = vmatpush2.bf16.msra.mxu0 %v806
        %971 = vmatprep.subr.bf16.mxu0 0
        %972 = vmatpush2.bf16.msra.mxu0 %v805
        %973 = vmatprep.mubr.bf16.mxu0 %v332
        %974 = vmatmul.mubr.bf16.gmra.mxu0 %v331
        %v975 = vpop.f32.mrf.mxu0
        %v976 = vadd.f32 %v508, %v975
        %v977 = vpop.f32.mrf.mxu0
        %v978 = vpop.f32.mrf.mxu0
        %v979 = vadd.f32 %v508, %v978
        %v980 = vpop.f32.mrf.mxu0
        %981 = vmatprep.mubr.bf16.mxu0 %v335
        %982 = vmatmul.mubr.bf16.gmra.mxu0 %v334
        %v983 = vpop.f32.mrf.mxu0
        %v984 = vadd.f32 %v508, %v983
        %v985 = vpop.f32.mrf.mxu0
        %v986 = vpop.f32.mrf.mxu0
        %v987 = vadd.f32 %v508, %v986
        %v988 = vpop.f32.mrf.mxu0
        %989 = vmatprep.mubr.bf16.mxu0 %v338
        %990 = vmatmul.mubr.bf16.gmra.mxu0 %v337
        %v991 = vpop.f32.mrf.mxu0
        %v992 = vadd.f32 %v508, %v991
        %v993 = vpop.f32.mrf.mxu0
        %v994 = vpop.f32.mrf.mxu0
        %v995 = vadd.f32 %v508, %v994
        %v996 = vpop.f32.mrf.mxu0
        %997 = vmatprep.mubr.bf16.mxu0 %v342
        %998 = vmatmul.mubr.bf16.gmra.mxu0 %v341
        %v999 = vpop.f32.mrf.mxu0
        %v1000 = vadd.f32 %v508, %v999
        %v1001 = vpop.f32.mrf.mxu0
        %v1002 = vpop.f32.mrf.mxu0
        %v1003 = vadd.f32 %v508, %v1002
        %v1004 = vpop.f32.mrf.mxu0
        %1005 = vmatprep.mubr.bf16.mxu0 %v346
        %1006 = vmatmul.mubr.bf16.gmra.mxu0 %v345
        %v1007 = vpop.f32.mrf.mxu0
        %v1008 = vadd.f32 %v508, %v1007
        %v1009 = vpop.f32.mrf.mxu0
        %v1010 = vpop.f32.mrf.mxu0
        %v1011 = vadd.f32 %v508, %v1010
        %v1012 = vpop.f32.mrf.mxu0
        %1013 = vmatprep.mubr.bf16.mxu0 %v350
        %1014 = vmatmul.mubr.bf16.gmra.mxu0 %v349
        %v1015 = vpop.f32.mrf.mxu0
        %v1016 = vadd.f32 %v508, %v1015
        %v1017 = vpop.f32.mrf.mxu0
        %v1018 = vpop.f32.mrf.mxu0
        %v1019 = vadd.f32 %v508, %v1018
        %v1020 = vpop.f32.mrf.mxu0
        %1021 = vdwg.mxu0
        %1022 = vmatprep.subr.bf16.mxu0 0
        %1023 = vmatpush1.bf16.msra.mxu0 %v820
        %1024 = vmatprep.subr.bf16.mxu0 0
        %1025 = vmatpush1.bf16.msra.mxu0 %v819
        %1026 = vmatprep.subr.bf16.mxu0 0
        %1027 = vmatpush1.bf16.msra.mxu0 %v818
        %1028 = vmatprep.subr.bf16.mxu0 0
        %1029 = vmatpush1.bf16.msra.mxu0 %v817
        %1030 = vmatprep.subr.bf16.mxu0 0
        %1031 = vmatpush1.bf16.msra.mxu0 %v816
        %1032 = vmatprep.subr.bf16.mxu0 0
        %1033 = vmatpush1.bf16.msra.mxu0 %v815
        %1034 = vmatprep.subr.bf16.mxu0 0
        %1035 = vmatpush1.bf16.msra.mxu0 %v814
        %1036 = vmatprep.subr.bf16.mxu0 0
        %1037 = vmatpush1.bf16.msra.mxu0 %v813
        %1038 = vmatprep.subr.bf16.mxu0 0
        %1039 = vmatpush2.bf16.msra.mxu0 %v828
        %1040 = vmatprep.subr.bf16.mxu0 0
        %1041 = vmatpush2.bf16.msra.mxu0 %v827
        %1042 = vmatprep.subr.bf16.mxu0 0
        %1043 = vmatpush2.bf16.msra.mxu0 %v826
        %1044 = vmatprep.subr.bf16.mxu0 0
        %1045 = vmatpush2.bf16.msra.mxu0 %v825
        %1046 = vmatprep.subr.bf16.mxu0 0
        %1047 = vmatpush2.bf16.msra.mxu0 %v824
        %1048 = vmatprep.subr.bf16.mxu0 0
        %1049 = vmatpush2.bf16.msra.mxu0 %v823
        %1050 = vmatprep.subr.bf16.mxu0 0
        %1051 = vmatpush2.bf16.msra.mxu0 %v822
        %1052 = vmatprep.subr.bf16.mxu0 0
        %1053 = vmatpush2.bf16.msra.mxu0 %v821
        %1054 = vmatprep.mubr.bf16.mxu0 %v334
        %1055 = vmatmul.mubr.bf16.gmra.mxu0 %v333
        %v1056 = vpop.f32.mrf.mxu0
        %v1057 = vadd.f32 %v976, %v1056
        %v1058 = vpop.f32.mrf.mxu0
        %v1059 = vpop.f32.mrf.mxu0
        %v1060 = vadd.f32 %v979, %v1059
        %v1061 = vpop.f32.mrf.mxu0
        %1062 = vmatprep.mubr.bf16.mxu0 %v337
        %1063 = vmatmul.mubr.bf16.gmra.mxu0 %v336
        %v1064 = vpop.f32.mrf.mxu0
        %v1065 = vadd.f32 %v984, %v1064
        %v1066 = vpop.f32.mrf.mxu0
        %v1067 = vpop.f32.mrf.mxu0
        %v1068 = vadd.f32 %v987, %v1067
        %v1069 = vpop.f32.mrf.mxu0
        %1070 = vmatprep.mubr.bf16.mxu0 %v341
        %1071 = vmatmul.mubr.bf16.gmra.mxu0 %v340
        %v1072 = vpop.f32.mrf.mxu0
        %v1073 = vadd.f32 %v992, %v1072
        %v1074 = vpop.f32.mrf.mxu0
        %v1075 = vpop.f32.mrf.mxu0
        %v1076 = vadd.f32 %v995, %v1075
        %v1077 = vpop.f32.mrf.mxu0
        %1078 = vmatprep.mubr.bf16.mxu0 %v345
        %1079 = vmatmul.mubr.bf16.gmra.mxu0 %v344
        %v1080 = vpop.f32.mrf.mxu0
        %v1081 = vadd.f32 %v1000, %v1080
        %v1082 = vpop.f32.mrf.mxu0
        %v1083 = vpop.f32.mrf.mxu0
        %v1084 = vadd.f32 %v1003, %v1083
        %v1085 = vpop.f32.mrf.mxu0
        %1086 = vmatprep.mubr.bf16.mxu0 %v349
        %1087 = vmatmul.mubr.bf16.gmra.mxu0 %v348
        %v1088 = vpop.f32.mrf.mxu0
        %v1089 = vadd.f32 %v1008, %v1088
        %v1090 = vpop.f32.mrf.mxu0
        %v1091 = vpop.f32.mrf.mxu0
        %v1092 = vadd.f32 %v1011, %v1091
        %v1093 = vpop.f32.mrf.mxu0
        %1094 = vmatprep.mubr.bf16.mxu0 %v353
        %1095 = vmatmul.mubr.bf16.gmra.mxu0 %v352
        %v1096 = vpop.f32.mrf.mxu0
        %v1097 = vadd.f32 %v1016, %v1096
        %v1098 = vpop.f32.mrf.mxu0
        %v1099 = vpop.f32.mrf.mxu0
        %v1100 = vadd.f32 %v1019, %v1099
        %v1101 = vpop.f32.mrf.mxu0
        %1102 = vdwg.mxu0
        %1103 = vmatprep.subr.bf16.mxu0 0
        %1104 = vmatpush1.bf16.msra.mxu0 %v836
        %1105 = vmatprep.subr.bf16.mxu0 0
        %1106 = vmatpush1.bf16.msra.mxu0 %v835
        %1107 = vmatprep.subr.bf16.mxu0 0
        %1108 = vmatpush1.bf16.msra.mxu0 %v834
        %1109 = vmatprep.subr.bf16.mxu0 0
        %1110 = vmatpush1.bf16.msra.mxu0 %v833
        %1111 = vmatprep.subr.bf16.mxu0 0
        %1112 = vmatpush1.bf16.msra.mxu0 %v832
        %1113 = vmatprep.subr.bf16.mxu0 0
        %1114 = vmatpush1.bf16.msra.mxu0 %v831
        %1115 = vmatprep.subr.bf16.mxu0 0
        %1116 = vmatpush1.bf16.msra.mxu0 %v830
        %1117 = vmatprep.subr.bf16.mxu0 0
        %1118 = vmatpush1.bf16.msra.mxu0 %v829
        %1119 = vmatprep.subr.bf16.mxu0 0
        %1120 = vmatpush2.bf16.msra.mxu0 %v844
        %1121 = vmatprep.subr.bf16.mxu0 0
        %1122 = vmatpush2.bf16.msra.mxu0 %v843
        %1123 = vmatprep.subr.bf16.mxu0 0
        %1124 = vmatpush2.bf16.msra.mxu0 %v842
        %1125 = vmatprep.subr.bf16.mxu0 0
        %1126 = vmatpush2.bf16.msra.mxu0 %v841
        %1127 = vmatprep.subr.bf16.mxu0 0
        %1128 = vmatpush2.bf16.msra.mxu0 %v840
        %1129 = vmatprep.subr.bf16.mxu0 0
        %1130 = vmatpush2.bf16.msra.mxu0 %v839
        %1131 = vmatprep.subr.bf16.mxu0 0
        %1132 = vmatpush2.bf16.msra.mxu0 %v838
        %1133 = vmatprep.subr.bf16.mxu0 0
        %1134 = vmatpush2.bf16.msra.mxu0 %v837
        %1135 = vmatprep.mubr.bf16.mxu0 %v336
        %1136 = vmatmul.mubr.bf16.gmra.mxu0 %v335
        %v1137 = vpop.f32.mrf.mxu0
        %v1138 = vadd.f32 %v1057, %v1137
        %v1139 = vpop.f32.mrf.mxu0
        %v1140 = vpop.f32.mrf.mxu0
        %v1141 = vadd.f32 %v1060, %v1140
        %v1142 = vpop.f32.mrf.mxu0
        %1143 = vmatprep.mubr.bf16.mxu0 %v340
        %1144 = vmatmul.mubr.bf16.gmra.mxu0 %v338
        %v1145 = vpop.f32.mrf.mxu0
        %v1146 = vadd.f32 %v1065, %v1145
        %v1147 = vpop.f32.mrf.mxu0
        %v1148 = vpop.f32.mrf.mxu0
        %v1149 = vadd.f32 %v1068, %v1148
        %v1150 = vpop.f32.mrf.mxu0
        %1151 = vmatprep.mubr.bf16.mxu0 %v344
        %1152 = vmatmul.mubr.bf16.gmra.mxu0 %v342
        %v1153 = vpop.f32.mrf.mxu0
        %v1154 = vadd.f32 %v1073, %v1153
        %v1155 = vpop.f32.mrf.mxu0
        %v1156 = vpop.f32.mrf.mxu0
        %v1157 = vadd.f32 %v1076, %v1156
        %v1158 = vpop.f32.mrf.mxu0
        %1159 = vmatprep.mubr.bf16.mxu0 %v348
        %1160 = vmatmul.mubr.bf16.gmra.mxu0 %v346
        %v1161 = vpop.f32.mrf.mxu0
        %v1162 = vadd.f32 %v1081, %v1161
        %v1163 = vpop.f32.mrf.mxu0
        %v1164 = vpop.f32.mrf.mxu0
        %v1165 = vadd.f32 %v1084, %v1164
        %v1166 = vpop.f32.mrf.mxu0
        %1167 = vmatprep.mubr.bf16.mxu0 %v352
        %1168 = vmatmul.mubr.bf16.gmra.mxu0 %v350
        %v1169 = vpop.f32.mrf.mxu0
        %v1170 = vadd.f32 %v1089, %v1169
        %v1171 = vpop.f32.mrf.mxu0
        %v1172 = vpop.f32.mrf.mxu0
        %v1173 = vadd.f32 %v1092, %v1172
        %v1174 = vpop.f32.mrf.mxu0
        %1175 = vmatprep.mubr.bf16.mxu0 %v356
        %1176 = vmatmul.mubr.bf16.gmra.mxu0 %v354
        %v1177 = vpop.f32.mrf.mxu0
        %v1178 = vadd.f32 %v1097, %v1177
        %v1179 = vpop.f32.mrf.mxu0
        %v1180 = vpop.f32.mrf.mxu0
        %v1181 = vadd.f32 %v1100, %v1180
        %v1182 = vpop.f32.mrf.mxu0
        %1183 = vdwg.mxu0
        %1184 = vmatprep.subr.bf16.mxu0 0
        %1185 = vmatpush1.bf16.msra.mxu0 %v852
        %1186 = vmatprep.subr.bf16.mxu0 0
        %1187 = vmatpush1.bf16.msra.mxu0 %v851
        %1188 = vmatprep.subr.bf16.mxu0 0
        %1189 = vmatpush1.bf16.msra.mxu0 %v850
        %1190 = vmatprep.subr.bf16.mxu0 0
        %1191 = vmatpush1.bf16.msra.mxu0 %v849
        %1192 = vmatprep.subr.bf16.mxu0 0
        %1193 = vmatpush1.bf16.msra.mxu0 %v848
        %1194 = vmatprep.subr.bf16.mxu0 0
        %1195 = vmatpush1.bf16.msra.mxu0 %v847
        %1196 = vmatprep.subr.bf16.mxu0 0
        %1197 = vmatpush1.bf16.msra.mxu0 %v846
        %1198 = vmatprep.subr.bf16.mxu0 0
        %1199 = vmatpush1.bf16.msra.mxu0 %v845
        %1200 = vmatprep.subr.bf16.mxu0 0
        %1201 = vmatpush2.bf16.msra.mxu0 %v860
        %1202 = vmatprep.subr.bf16.mxu0 0
        %1203 = vmatpush2.bf16.msra.mxu0 %v859
        %1204 = vmatprep.subr.bf16.mxu0 0
        %1205 = vmatpush2.bf16.msra.mxu0 %v858
        %1206 = vmatprep.subr.bf16.mxu0 0
        %1207 = vmatpush2.bf16.msra.mxu0 %v857
        %1208 = vmatprep.subr.bf16.mxu0 0
        %1209 = vmatpush2.bf16.msra.mxu0 %v856
        %1210 = vmatprep.subr.bf16.mxu0 0
        %1211 = vmatpush2.bf16.msra.mxu0 %v855
        %1212 = vmatprep.subr.bf16.mxu0 0
        %1213 = vmatpush2.bf16.msra.mxu0 %v854
        %1214 = vmatprep.subr.bf16.mxu0 0
        %1215 = vmatpush2.bf16.msra.mxu0 %v853
        %1216 = vmatprep.mubr.bf16.mxu0 %v338
        %1217 = vmatmul.mubr.bf16.gmra.mxu0 %v337
        %v1218 = vpop.f32.mrf.mxu0
        %v1219 = vadd.f32 %v1138, %v1218
        %v1220 = vpop.f32.mrf.mxu0
        %v1221 = vpop.f32.mrf.mxu0
        %v1222 = vadd.f32 %v1141, %v1221
        %v1223 = vpop.f32.mrf.mxu0
        %1224 = vmatprep.mubr.bf16.mxu0 %v342
        %1225 = vmatmul.mubr.bf16.gmra.mxu0 %v341
        %v1226 = vpop.f32.mrf.mxu0
        %v1227 = vadd.f32 %v1146, %v1226
        %v1228 = vpop.f32.mrf.mxu0
        %v1229 = vpop.f32.mrf.mxu0
        %v1230 = vadd.f32 %v1149, %v1229
        %v1231 = vpop.f32.mrf.mxu0
        %1232 = vmatprep.mubr.bf16.mxu0 %v346
        %1233 = vmatmul.mubr.bf16.gmra.mxu0 %v345
        %v1234 = vpop.f32.mrf.mxu0
        %v1235 = vadd.f32 %v1154, %v1234
        %v1236 = vpop.f32.mrf.mxu0
        %v1237 = vpop.f32.mrf.mxu0
        %v1238 = vadd.f32 %v1157, %v1237
        %v1239 = vpop.f32.mrf.mxu0
        %1240 = vmatprep.mubr.bf16.mxu0 %v350
        %1241 = vmatmul.mubr.bf16.gmra.mxu0 %v349
        %v1242 = vpop.f32.mrf.mxu0
        %v1243 = vadd.f32 %v1162, %v1242
        %v1244 = vpop.f32.mrf.mxu0
        %v1245 = vpop.f32.mrf.mxu0
        %v1246 = vadd.f32 %v1165, %v1245
        %v1247 = vpop.f32.mrf.mxu0
        %1248 = vmatprep.mubr.bf16.mxu0 %v354
        %1249 = vmatmul.mubr.bf16.gmra.mxu0 %v353
        %v1250 = vpop.f32.mrf.mxu0
        %v1251 = vadd.f32 %v1170, %v1250
        %v1252 = vpop.f32.mrf.mxu0
        %v1253 = vpop.f32.mrf.mxu0
        %v1254 = vadd.f32 %v1173, %v1253
        %v1255 = vpop.f32.mrf.mxu0
        %1256 = vmatprep.mubr.bf16.mxu0 %v358
        %1257 = vmatmul.mubr.bf16.gmra.mxu0 %v357
        %v1258 = vpop.f32.mrf.mxu0
        %v1259 = vadd.f32 %v1178, %v1258
        %v1260 = vpop.f32.mrf.mxu0
        %v1261 = vpop.f32.mrf.mxu0
        %v1262 = vadd.f32 %v1181, %v1261
        %v1263 = vpop.f32.mrf.mxu0
        %1264 = vdwg.mxu0
        %1265 = vmatprep.subr.bf16.mxu0 0
        %1266 = vmatpush1.bf16.msra.mxu0 %v868
        %1267 = vmatprep.subr.bf16.mxu0 0
        %1268 = vmatpush1.bf16.msra.mxu0 %v867
        %1269 = vmatprep.subr.bf16.mxu0 0
        %1270 = vmatpush1.bf16.msra.mxu0 %v866
        %1271 = vmatprep.subr.bf16.mxu0 0
        %1272 = vmatpush1.bf16.msra.mxu0 %v865
        %1273 = vmatprep.subr.bf16.mxu0 0
        %1274 = vmatpush1.bf16.msra.mxu0 %v864
        %1275 = vmatprep.subr.bf16.mxu0 0
        %1276 = vmatpush1.bf16.msra.mxu0 %v863
        %1277 = vmatprep.subr.bf16.mxu0 0
        %1278 = vmatpush1.bf16.msra.mxu0 %v862
        %1279 = vmatprep.subr.bf16.mxu0 0
        %1280 = vmatpush1.bf16.msra.mxu0 %v861
        %1281 = vmatprep.subr.bf16.mxu0 0
        %1282 = vmatpush2.bf16.msra.mxu0 0
        %1283 = vmatprep.subr.bf16.mxu0 0
        %1284 = vmatpush2.bf16.msra.mxu0 0
        %1285 = vmatprep.subr.bf16.mxu0 0
        %1286 = vmatpush2.bf16.msra.mxu0 0
        %1287 = vmatprep.subr.bf16.mxu0 0
        %1288 = vmatpush2.bf16.msra.mxu0 0
        %1289 = vmatprep.subr.bf16.mxu0 0
        %1290 = vmatpush2.bf16.msra.mxu0 0
        %1291 = vmatprep.subr.bf16.mxu0 0
        %1292 = vmatpush2.bf16.msra.mxu0 0
        %1293 = vmatprep.subr.bf16.mxu0 0
        %1294 = vmatpush2.bf16.msra.mxu0 0
        %1295 = vmatprep.subr.bf16.mxu0 0
        %1296 = vmatpush2.bf16.msra.mxu0 0
        %1297 = vmatprep.mubr.bf16.mxu0 0
        %1298 = vmatmul.mubr.bf16.gmra.mxu0 %v339
        %v1299 = vpop.f32.mrf.mxu0
        %v1300 = vadd.f32 %v1219, %v1299
        %v1301 = vpop.f32.mrf.mxu0
        %v1302 = vpop.f32.mrf.mxu0
        %v1303 = vadd.f32 %v1222, %v1302
        %v1304 = vpop.f32.mrf.mxu0
        %1305 = vmatprep.mubr.bf16.mxu0 0
        %1306 = vmatmul.mubr.bf16.gmra.mxu0 %v343
        %v1307 = vpop.f32.mrf.mxu0
        %v1308 = vadd.f32 %v1227, %v1307
        %v1309 = vpop.f32.mrf.mxu0
        %v1310 = vpop.f32.mrf.mxu0
        %v1311 = vadd.f32 %v1230, %v1310
        %v1312 = vpop.f32.mrf.mxu0
        %1313 = vmatprep.mubr.bf16.mxu0 0
        %1314 = vmatmul.mubr.bf16.gmra.mxu0 %v347
        %v1315 = vpop.f32.mrf.mxu0
        %v1316 = vadd.f32 %v1235, %v1315
        %v1317 = vpop.f32.mrf.mxu0
        %v1318 = vpop.f32.mrf.mxu0
        %v1319 = vadd.f32 %v1238, %v1318
        %v1320 = vpop.f32.mrf.mxu0
        %1321 = vmatprep.mubr.bf16.mxu0 0
        %1322 = vmatmul.mubr.bf16.gmra.mxu0 %v351
        %v1323 = vpop.f32.mrf.mxu0
        %v1324 = vadd.f32 %v1243, %v1323
        %v1325 = vpop.f32.mrf.mxu0
        %v1326 = vpop.f32.mrf.mxu0
        %v1327 = vadd.f32 %v1246, %v1326
        %v1328 = vpop.f32.mrf.mxu0
        %1329 = vmatprep.mubr.bf16.mxu0 0
        %1330 = vmatmul.mubr.bf16.gmra.mxu0 %v355
        %v1331 = vpop.f32.mrf.mxu0
        %v1332 = vadd.f32 %v1251, %v1331
        %v1333 = vpop.f32.mrf.mxu0
        %v1334 = vpop.f32.mrf.mxu0
        %v1335 = vadd.f32 %v1254, %v1334
        %v1336 = vpop.f32.mrf.mxu0
        %1337 = vmatprep.mubr.bf16.mxu0 0
        %1338 = vmatmul.mubr.bf16.gmra.mxu0 %v359
        %v1339 = vpop.f32.mrf.mxu0
        %v1340 = vadd.f32 %v1259, %v1339
        %v1341 = vpop.f32.mrf.mxu0
        %v1342 = vpop.f32.mrf.mxu0
        %v1343 = vadd.f32 %v1262, %v1342
        %v1344 = vpop.f32.mrf.mxu0
        %1345 = vdwg.mxu0
        %vm1346 = vcmp.gt.f32.partialorder %v1300, 0.0
        %vm1347 = vcmp.gt.f32.partialorder %v1303, 0.0
        %vm1348 = vcmp.gt.f32.partialorder %v1308, 0.0
        %vm1349 = vcmp.gt.f32.partialorder %v1311, 0.0
        %vm1350 = vcmp.gt.f32.partialorder %v1316, 0.0
        %vm1351 = vcmp.gt.f32.partialorder %v1319, 0.0
        %vm1352 = vcmp.gt.f32.partialorder %v1324, 0.0
        %vm1353 = vcmp.gt.f32.partialorder %v1327, 0.0
        %vm1354 = vcmp.gt.f32.partialorder %v1332, 0.0
        %vm1355 = vcmp.gt.f32.partialorder %v1335, 0.0
        %vm1356 = vcmp.gt.f32.partialorder %v1340, 0.0
        %vm1357 = vcmp.gt.f32.partialorder %v1343, 0.0
        %v1358 = vmul.f32 %v1300, 0.01
        %v1359 = vmul.f32 %v1303, 0.01
        %v1360 = vmul.f32 %v1308, 0.01
        %v1361 = vmul.f32 %v1311, 0.01
        %v1362 = vmul.f32 %v1316, 0.01
        %v1363 = vmul.f32 %v1319, 0.01
        %v1364 = vmul.f32 %v1324, 0.01
        %v1365 = vmul.f32 %v1327, 0.01
        %v1366 = vmul.f32 %v1332, 0.01
        %v1367 = vmul.f32 %v1335, 0.01
        %v1368 = vmul.f32 %v1340, 0.01
        %v1369 = vmul.f32 %v1343, 0.01
        %v1370 = vsel %vm1346, %v1300, %v1358
        %v1371 = vsel %vm1347, %v1303, %v1359
        %v1372 = vsel %vm1348, %v1308, %v1360
        %v1373 = vsel %vm1349, %v1311, %v1361
        %v1374 = vsel %vm1350, %v1316, %v1362
        %v1375 = vsel %vm1351, %v1319, %v1363
        %v1376 = vsel %vm1352, %v1324, %v1364
        %v1377 = vsel %vm1353, %v1327, %v1365
        %v1378 = vsel %vm1354, %v1332, %v1366
        %v1379 = vsel %vm1355, %v1335, %v1367
        %v1380 = vsel %vm1356, %v1340, %v1368
        %v1381 = vsel %vm1357, %v1343, %v1369
        %v1382 = vld [vmem:[%s3] sm:$0xff]
        %v1383 = vld [vmem:[%s3 + $0x8] sm:$0xff]
        %v1384 = vld [vmem:[%s3 + $0x10] sm:$0xff]
        %v1385 = vld [vmem:[%s3 + $0x18] sm:$0xff]
        %v1386 = vld [vmem:[%s3 + $0x20] sm:$0xff]
        %v1387 = vld [vmem:[%s3 + $0x28] sm:$0xff]
        %v1388 = vld [vmem:[%s3 + $0x30] sm:$0xff]
        %v1389 = vld [vmem:[%s3 + $0x38] sm:$0xff]
        %v1390 = vld [vmem:[%s3 + $0x40] sm:$0xff]
        %v1391 = vld [vmem:[%s3 + $0x48] sm:$0xff]
        %v1392 = vld [vmem:[%s3 + $0x50] sm:$0xff]
        %v1393 = vld [vmem:[%s3 + $0x58] sm:$0xff]
        %vm1394 = vcmp.lt.s32.totalorder %v1382, 6
        %vm1395 = vcmp.lt.s32.totalorder %v1383, 6
        %vm1396 = vcmp.lt.s32.totalorder %v1384, 6
        %vm1397 = vcmp.lt.s32.totalorder %v1385, 6
        %vm1398 = vcmp.lt.s32.totalorder %v1386, 6
        %vm1399 = vcmp.lt.s32.totalorder %v1387, 6
        %vm1400 = vcmp.lt.s32.totalorder %v1388, 6
        %vm1401 = vcmp.lt.s32.totalorder %v1389, 6
        %vm1402 = vcmp.lt.s32.totalorder %v1390, 6
        %vm1403 = vcmp.lt.s32.totalorder %v1391, 6
        %vm1404 = vcmp.lt.s32.totalorder %v1392, 6
        %vm1405 = vcmp.lt.s32.totalorder %v1393, 6
        %v1406 = vsel %vm1394, 1, 0
        %v1407 = vsel %vm1395, 1, 0
        %v1408 = vsel %vm1396, 1, 0
        %v1409 = vsel %vm1397, 1, 0
        %v1410 = vsel %vm1398, 1, 0
        %v1411 = vsel %vm1399, 1, 0
        %v1412 = vsel %vm1400, 1, 0
        %v1413 = vsel %vm1401, 1, 0
        %v1414 = vsel %vm1402, 1, 0
        %v1415 = vsel %vm1403, 1, 0
        %v1416 = vsel %vm1404, 1, 0
        %v1417 = vsel %vm1405, 1, 0
        %1418 = vset.pattern.permute.xlu0 0
        %1419 = vperm.xlu0 %1418, %v1406
        %v1420 = vpop.permute.xlu0 %1419
        %1421 = vset.pattern.permute.xlu0 0
        %1422 = vperm.xlu0 %1421, %v1407
        %v1423 = vpop.permute.xlu0 %1422
        %1424 = vset.pattern.permute.xlu0 0
        %1425 = vperm.xlu0 %1424, %v1408
        %v1426 = vpop.permute.xlu0 %1425
        %1427 = vset.pattern.permute.xlu0 0
        %1428 = vperm.xlu0 %1427, %v1409
        %v1429 = vpop.permute.xlu0 %1428
        %1430 = vset.pattern.permute.xlu0 0
        %1431 = vperm.xlu0 %1430, %v1410
        %v1432 = vpop.permute.xlu0 %1431
        %1433 = vset.pattern.permute.xlu0 0
        %1434 = vperm.xlu0 %1433, %v1411
        %v1435 = vpop.permute.xlu0 %1434
        %1436 = vset.pattern.permute.xlu0 0
        %1437 = vperm.xlu0 %1436, %v1412
        %v1438 = vpop.permute.xlu0 %1437
        %1439 = vset.pattern.permute.xlu0 0
        %1440 = vperm.xlu0 %1439, %v1413
        %v1441 = vpop.permute.xlu0 %1440
        %1442 = vset.pattern.permute.xlu0 0
        %1443 = vperm.xlu0 %1442, %v1414
        %v1444 = vpop.permute.xlu0 %1443
        %1445 = vset.pattern.permute.xlu0 0
        %1446 = vperm.xlu0 %1445, %v1415
        %v1447 = vpop.permute.xlu0 %1446
        %1448 = vset.pattern.permute.xlu0 0
        %1449 = vperm.xlu0 %1448, %v1416
        %v1450 = vpop.permute.xlu0 %1449
        %1451 = vset.pattern.permute.xlu0 0
        %1452 = vperm.xlu0 %1451, %v1417
        %v1453 = vpop.permute.xlu0 %1452
        %vm1454 = vcmp.eq.s32.totalorder %v1420, 1
        %vm1455 = vcmp.eq.s32.totalorder %v1423, 1
        %vm1456 = vcmp.eq.s32.totalorder %v1426, 1
        %vm1457 = vcmp.eq.s32.totalorder %v1429, 1
        %vm1458 = vcmp.eq.s32.totalorder %v1432, 1
        %vm1459 = vcmp.eq.s32.totalorder %v1435, 1
        %vm1460 = vcmp.eq.s32.totalorder %v1438, 1
        %vm1461 = vcmp.eq.s32.totalorder %v1441, 1
        %vm1462 = vcmp.eq.s32.totalorder %v1444, 1
        %vm1463 = vcmp.eq.s32.totalorder %v1447, 1
        %vm1464 = vcmp.eq.s32.totalorder %v1450, 1
        %vm1465 = vcmp.eq.s32.totalorder %v1453, 1
        %v1466 = vsel %vm1454, %v1370, 0.0
        %v1467 = vsel %vm1455, %v1371, 0.0
        %v1468 = vsel %vm1456, %v1372, 0.0
        %v1469 = vsel %vm1457, %v1373, 0.0
        %v1470 = vsel %vm1458, %v1374, 0.0
        %v1471 = vsel %vm1459, %v1375, 0.0
        %v1472 = vsel %vm1460, %v1376, 0.0
        %v1473 = vsel %vm1461, %v1377, 0.0
        %v1474 = vsel %vm1462, %v1378, 0.0
        %v1475 = vsel %vm1463, %v1379, 0.0
        %v1476 = vsel %vm1464, %v1380, 0.0
        %v1477 = vsel %vm1465, %v1381, 0.0
        %1478 = vst [vmem:[#allocation3] sm:$0xff] 0.0
        %1479 = vst [vmem:[#allocation3 + $0x8] sm:$0xff] 0.0
        %1480 = vst [vmem:[#allocation3 + $0x10] sm:$0xff] 0.0
        %1481 = vst [vmem:[#allocation3 + $0x18] sm:$0xff] 0.0
        %1482 = vst [vmem:[#allocation3 + $0x20] sm:$0x3] 0.0
        %1483 = vst [vmem:[#allocation3 + $0x22] sm:$0xff] %v1466
        %1484 = vst [vmem:[#allocation3 + $0x2a] sm:$0xff] %v1467
        %1485 = vst [vmem:[#allocation3 + $0x32] sm:$0xff] %v1468
        %1486 = vst [vmem:[#allocation3 + $0x3a] sm:$0xff] %v1469
        %1487 = vst [vmem:[#allocation3 + $0x42] sm:$0xff] %v1470
        %1488 = vst [vmem:[#allocation3 + $0x4a] sm:$0xff] %v1471
        %1489 = vst [vmem:[#allocation3 + $0x52] sm:$0xff] %v1472
        %1490 = vst [vmem:[#allocation3 + $0x5a] sm:$0xff] %v1473
        %1491 = vst [vmem:[#allocation3 + $0x62] sm:$0xff] %v1474
        %1492 = vst [vmem:[#allocation3 + $0x6a] sm:$0xff] %v1475
        %1493 = vst [vmem:[#allocation3 + $0x72] sm:$0xff] %v1476
        %1494 = vst [vmem:[#allocation3 + $0x7a] sm:$0xff] %v1477
        %1495 = vst [vmem:[#allocation3 + $0x80] sm:$0xff] 0.0
        %1496 = vst [vmem:[#allocation3 + $0x88] sm:$0xff] 0.0
        %1497 = vst [vmem:[#allocation3 + $0x90] sm:$0xff] 0.0
        %1498 = vst [vmem:[#allocation3 + $0x98] sm:$0xff] 0.0
        %1499 = vst [vmem:[#allocation3 + $0xa0] sm:$0x3] 0.0
        %v1500 = vld [vmem:[#allocation3] sm:$0xff]
        %v1501 = vld [vmem:[#allocation3 + $0x8] sm:$0xff]
        %v1502 = vld [vmem:[#allocation3 + $0x10] sm:$0xff]
        %v1503 = vld [vmem:[#allocation3 + $0x18] sm:$0xff]
        %v1504 = vld [vmem:[#allocation3 + $0x20] sm:$0xff]
        %v1505 = vld [vmem:[#allocation3 + $0x28] sm:$0xff]
        %v1506 = vld [vmem:[#allocation3 + $0x30] sm:$0xff]
        %v1507 = vld [vmem:[#allocation3 + $0x38] sm:$0xff]
        %v1508 = vld [vmem:[#allocation3 + $0x40] sm:$0xff]
        %v1509 = vld [vmem:[#allocation3 + $0x48] sm:$0xff]
        %v1510 = vld [vmem:[#allocation3 + $0x50] sm:$0xff]
        %v1511 = vld [vmem:[#allocation3 + $0x58] sm:$0xff]
        %v1512 = vld [vmem:[#allocation3 + $0x60] sm:$0xff]
        %v1513 = vld [vmem:[#allocation3 + $0x68] sm:$0xff]
        %v1514 = vld [vmem:[#allocation3 + $0x70] sm:$0xff]
        %v1515 = vld [vmem:[#allocation3 + $0x78] sm:$0xff]
        %v1516 = vld [vmem:[#allocation3 + $0x1] sm:$0xff]
        %v1517 = vld [vmem:[#allocation3 + $0x9] sm:$0xff]
        %v1518 = vld [vmem:[#allocation3 + $0x11] sm:$0xff]
        %v1519 = vld [vmem:[#allocation3 + $0x19] sm:$0xff]
        %v1520 = vld [vmem:[#allocation3 + $0x21] sm:$0xff]
        %v1521 = vld [vmem:[#allocation3 + $0x29] sm:$0xff]
        %v1522 = vld [vmem:[#allocation3 + $0x31] sm:$0xff]
        %v1523 = vld [vmem:[#allocation3 + $0x39] sm:$0xff]
        %v1524 = vld [vmem:[#allocation3 + $0x41] sm:$0xff]
        %v1525 = vld [vmem:[#allocation3 + $0x49] sm:$0xff]
        %v1526 = vld [vmem:[#allocation3 + $0x51] sm:$0xff]
        %v1527 = vld [vmem:[#allocation3 + $0x59] sm:$0xff]
        %v1528 = vld [vmem:[#allocation3 + $0x61] sm:$0xff]
        %v1529 = vld [vmem:[#allocation3 + $0x69] sm:$0xff]
        %v1530 = vld [vmem:[#allocation3 + $0x71] sm:$0xff]
        %v1531 = vld [vmem:[#allocation3 + $0x79] sm:$0xff]
        %v1532 = vld [vmem:[#allocation3 + $0x2] sm:$0xff]
        %v1533 = vld [vmem:[#allocation3 + $0xa] sm:$0xff]
        %v1534 = vld [vmem:[#allocation3 + $0x12] sm:$0xff]
        %v1535 = vld [vmem:[#allocation3 + $0x1a] sm:$0xff]
        %v1536 = vld [vmem:[#allocation3 + $0x22] sm:$0xff]
        %v1537 = vld [vmem:[#allocation3 + $0x2a] sm:$0xff]
        %v1538 = vld [vmem:[#allocation3 + $0x32] sm:$0xff]
        %v1539 = vld [vmem:[#allocation3 + $0x3a] sm:$0xff]
        %v1540 = vld [vmem:[#allocation3 + $0x42] sm:$0xff]
        %v1541 = vld [vmem:[#allocation3 + $0x4a] sm:$0xff]
        %v1542 = vld [vmem:[#allocation3 + $0x52] sm:$0xff]
        %v1543 = vld [vmem:[#allocation3 + $0x5a] sm:$0xff]
        %v1544 = vld [vmem:[#allocation3 + $0x62] sm:$0xff]
        %v1545 = vld [vmem:[#allocation3 + $0x6a] sm:$0xff]
        %v1546 = vld [vmem:[#allocation3 + $0x72] sm:$0xff]
        %v1547 = vld [vmem:[#allocation3 + $0x7a] sm:$0xff]
        %v1548 = vld [vmem:[#allocation3 + $0x80] sm:$0xff]
        %v1549 = vld [vmem:[#allocation3 + $0x88] sm:$0xff]
        %v1550 = vld [vmem:[#allocation3 + $0x81] sm:$0xff]
        %v1551 = vld [vmem:[#allocation3 + $0x89] sm:$0xff]
        %v1552 = vld [vmem:[#allocation3 + $0x82] sm:$0xff]
        %v1553 = vld [vmem:[#allocation3 + $0x8a] sm:$0xff]
        %v1554 = vld [vmem:[#allocation3 + $0x90] sm:$0xff]
        %v1555 = vld [vmem:[#allocation3 + $0x98] sm:$0xff]
        %v1556 = vld [vmem:[#allocation3 + $0x91] sm:$0xff]
        %v1557 = vld [vmem:[#allocation3 + $0x99] sm:$0xff]
        %v1558 = vld [vmem:[#allocation3 + $0x22] sm:$0xff]
        %v1559 = vld [vmem:[#allocation3 + $0x2a] sm:$0xff]
        %v1560 = vld [vmem:[#allocation3 + $0x32] sm:$0xff]
        %v1561 = vld [vmem:[#allocation3 + $0x3a] sm:$0xff]
        %v1562 = vld [vmem:[#allocation3 + $0x42] sm:$0xff]
        %v1563 = vld [vmem:[#allocation3 + $0x4a] sm:$0xff]
        %v1564 = vld [vmem:[#allocation3 + $0x52] sm:$0xff]
        %v1565 = vld [vmem:[#allocation3 + $0x5a] sm:$0xff]
        %v1566 = vld [vmem:[#allocation3 + $0x62] sm:$0xff]
        %v1567 = vld [vmem:[#allocation3 + $0x6a] sm:$0xff]
        %v1568 = vld [vmem:[#allocation3 + $0x72] sm:$0xff]
        %v1569 = vld [vmem:[#allocation3 + $0x7a] sm:$0xff]
        %v1570 = vld [vmem:[#allocation3 + $0x82] sm:$0xff]
        %v1571 = vld [vmem:[#allocation3 + $0x8a] sm:$0xff]
        %v1572 = vld [vmem:[#allocation3 + $0x92] sm:$0xff]
        %v1573 = vld [vmem:[#allocation3 + $0x9a] sm:$0xff]
        %v1574 = vpack.c.bf16 %v1501, %v1500
        %v1575 = vpack.c.bf16 %v1517, %v1516
        %v1576 = vpack.c.bf16 %v1533, %v1532
        %v1577 = vpack.c.bf16 %v1503, %v1502
        %v1578 = vpack.c.bf16 %v1519, %v1518
        %v1579 = vpack.c.bf16 %v1535, %v1534
        %v1580 = vpack.c.bf16 %v1505, %v1504
        %v1581 = vpack.c.bf16 %v1521, %v1520
        %v1582 = vpack.c.bf16 %v1559, %v1558
        %v1583 = vpack.c.bf16 %v1537, %v1536
        %v1584 = vpack.c.bf16 %v1507, %v1506
        %v1585 = vpack.c.bf16 %v1523, %v1522
        %v1586 = vpack.c.bf16 %v1561, %v1560
        %v1587 = vpack.c.bf16 %v1539, %v1538
        %v1588 = vpack.c.bf16 %v1509, %v1508
        %v1589 = vpack.c.bf16 %v1525, %v1524
        %v1590 = vpack.c.bf16 %v1563, %v1562
        %v1591 = vpack.c.bf16 %v1541, %v1540
        %v1592 = vpack.c.bf16 %v1511, %v1510
        %v1593 = vpack.c.bf16 %v1527, %v1526
        %v1594 = vpack.c.bf16 %v1565, %v1564
        %v1595 = vpack.c.bf16 %v1543, %v1542
        %v1596 = vpack.c.bf16 %v1513, %v1512
        %v1597 = vpack.c.bf16 %v1529, %v1528
        %v1598 = vpack.c.bf16 %v1567, %v1566
        %v1599 = vpack.c.bf16 %v1545, %v1544
        %v1600 = vpack.c.bf16 %v1515, %v1514
        %v1601 = vpack.c.bf16 %v1531, %v1530
        %v1602 = vpack.c.bf16 %v1569, %v1568
        %v1603 = vpack.c.bf16 %v1547, %v1546
        %v1604 = vpack.c.bf16 %v1549, %v1548
        %v1605 = vpack.c.bf16 %v1551, %v1550
        %v1606 = vpack.c.bf16 %v1571, %v1570
        %v1607 = vpack.c.bf16 %v1553, %v1552
        %v1608 = vpack.c.bf16 %v1555, %v1554
        %v1609 = vpack.c.bf16 %v1557, %v1556
        %v1610 = vpack.c.bf16 %v1573, %v1572
        %v1611 = vld [vmem:[#allocation10 + $0x240] sm:$0xf]
        %v1612 = vld [vmem:[#allocation10 + $0x244] sm:$0xf]
        %v1613 = vld [vmem:[#allocation10 + $0x248] sm:$0xf]
        %v1614 = vld [vmem:[#allocation10 + $0x24c] sm:$0xf]
        %v1615 = vld [vmem:[#allocation10 + $0x250] sm:$0xf]
        %v1616 = vld [vmem:[#allocation10 + $0x254] sm:$0xf]
        %v1617 = vld [vmem:[#allocation10 + $0x258] sm:$0xf]
        %v1618 = vld [vmem:[#allocation10 + $0x25c] sm:$0xf]
        %v1619 = vld [vmem:[#allocation10 + $0x260] sm:$0xf]
        %v1620 = vld [vmem:[#allocation10 + $0x264] sm:$0xf]
        %v1621 = vld [vmem:[#allocation10 + $0x268] sm:$0xf]
        %v1622 = vld [vmem:[#allocation10 + $0x26c] sm:$0xf]
        %v1623 = vld [vmem:[#allocation10 + $0x270] sm:$0xf]
        %v1624 = vld [vmem:[#allocation10 + $0x274] sm:$0xf]
        %v1625 = vld [vmem:[#allocation10 + $0x278] sm:$0xf]
        %v1626 = vld [vmem:[#allocation10 + $0x27c] sm:$0xf]
        %v1627 = vld [vmem:[#allocation10 + $0x280] sm:$0xf]
        %v1628 = vld [vmem:[#allocation10 + $0x284] sm:$0xf]
        %v1629 = vld [vmem:[#allocation10 + $0x288] sm:$0xf]
        %v1630 = vld [vmem:[#allocation10 + $0x28c] sm:$0xf]
        %v1631 = vld [vmem:[#allocation10 + $0x290] sm:$0xf]
        %v1632 = vld [vmem:[#allocation10 + $0x294] sm:$0xf]
        %v1633 = vld [vmem:[#allocation10 + $0x298] sm:$0xf]
        %v1634 = vld [vmem:[#allocation10 + $0x29c] sm:$0xf]
        %v1635 = vld [vmem:[#allocation10 + $0x2a0] sm:$0xf]
        %v1636 = vld [vmem:[#allocation10 + $0x2a4] sm:$0xf]
        %v1637 = vld [vmem:[#allocation10 + $0x2a8] sm:$0xf]
        %v1638 = vld [vmem:[#allocation10 + $0x2ac] sm:$0xf]
        %v1639 = vld [vmem:[#allocation10 + $0x2b0] sm:$0xf]
        %v1640 = vld [vmem:[#allocation10 + $0x2b4] sm:$0xf]
        %v1641 = vld [vmem:[#allocation10 + $0x2b8] sm:$0xf]
        %v1642 = vld [vmem:[#allocation10 + $0x2bc] sm:$0xf]
        %v1643 = vld [vmem:[#allocation10 + $0x2c0] sm:$0xf]
        %v1644 = vld [vmem:[#allocation10 + $0x2c4] sm:$0xf]
        %v1645 = vld [vmem:[#allocation10 + $0x2c8] sm:$0xf]
        %v1646 = vld [vmem:[#allocation10 + $0x2cc] sm:$0xf]
        %v1647 = vld [vmem:[#allocation10 + $0x2d0] sm:$0xf]
        %v1648 = vld [vmem:[#allocation10 + $0x2d4] sm:$0xf]
        %v1649 = vld [vmem:[#allocation10 + $0x2d8] sm:$0xf]
        %v1650 = vld [vmem:[#allocation10 + $0x2dc] sm:$0xf]
        %v1651 = vld [vmem:[#allocation10 + $0x2e0] sm:$0xf]
        %v1652 = vld [vmem:[#allocation10 + $0x2e4] sm:$0xf]
        %v1653 = vld [vmem:[#allocation10 + $0x2e8] sm:$0xf]
        %v1654 = vld [vmem:[#allocation10 + $0x2ec] sm:$0xf]
        %v1655 = vld [vmem:[#allocation10 + $0x2f0] sm:$0xf]
        %v1656 = vld [vmem:[#allocation10 + $0x2f4] sm:$0xf]
        %v1657 = vld [vmem:[#allocation10 + $0x2f8] sm:$0xf]
        %v1658 = vld [vmem:[#allocation10 + $0x2fc] sm:$0xf]
        %v1659 = vld [vmem:[#allocation10 + $0x300] sm:$0xf]
        %v1660 = vld [vmem:[#allocation10 + $0x304] sm:$0xf]
        %v1661 = vld [vmem:[#allocation10 + $0x308] sm:$0xf]
        %v1662 = vld [vmem:[#allocation10 + $0x30c] sm:$0xf]
        %v1663 = vld [vmem:[#allocation10 + $0x310] sm:$0xf]
        %v1664 = vld [vmem:[#allocation10 + $0x314] sm:$0xf]
        %v1665 = vld [vmem:[#allocation10 + $0x318] sm:$0xf]
        %v1666 = vld [vmem:[#allocation10 + $0x31c] sm:$0xf]
        %v1667 = vld [vmem:[#allocation10 + $0x320] sm:$0xf]
        %v1668 = vld [vmem:[#allocation10 + $0x324] sm:$0xf]
        %v1669 = vld [vmem:[#allocation10 + $0x328] sm:$0xf]
        %v1670 = vld [vmem:[#allocation10 + $0x32c] sm:$0xf]
        %v1671 = vld [vmem:[#allocation10 + $0x330] sm:$0xf]
        %v1672 = vld [vmem:[#allocation10 + $0x334] sm:$0xf]
        %v1673 = vld [vmem:[#allocation10 + $0x338] sm:$0xf]
        %v1674 = vld [vmem:[#allocation10 + $0x33c] sm:$0xf]
        %v1675 = vld [vmem:[#allocation10 + $0x340] sm:$0xf]
        %v1676 = vld [vmem:[#allocation10 + $0x344] sm:$0xf]
        %v1677 = vld [vmem:[#allocation10 + $0x348] sm:$0xf]
        %v1678 = vld [vmem:[#allocation10 + $0x34c] sm:$0xf]
        %v1679 = vld [vmem:[#allocation10 + $0x350] sm:$0xf]
        %v1680 = vld [vmem:[#allocation10 + $0x354] sm:$0xf]
        %v1681 = vld [vmem:[#allocation10 + $0x358] sm:$0xf]
        %v1682 = vld [vmem:[#allocation10 + $0x35c] sm:$0xf]
        %v1683 = vld [vmem:[#allocation10 + $0x360] sm:$0xf]
        %v1684 = vld [vmem:[#allocation10 + $0x364] sm:$0xf]
        %v1685 = vld [vmem:[#allocation10 + $0x368] sm:$0xf]
        %v1686 = vld [vmem:[#allocation10 + $0x36c] sm:$0xf]
        %v1687 = vld [vmem:[#allocation10 + $0x370] sm:$0xf]
        %v1688 = vld [vmem:[#allocation10 + $0x374] sm:$0xf]
        %v1689 = vld [vmem:[#allocation10 + $0x378] sm:$0xf]
        %v1690 = vld [vmem:[#allocation10 + $0x37c] sm:$0xf]
        %v1691 = vld [vmem:[#allocation10 + $0x380] sm:$0xf]
        %v1692 = vld [vmem:[#allocation10 + $0x384] sm:$0xf]
        %v1693 = vld [vmem:[#allocation10 + $0x388] sm:$0xf]
        %v1694 = vld [vmem:[#allocation10 + $0x38c] sm:$0xf]
        %v1695 = vld [vmem:[#allocation10 + $0x390] sm:$0xf]
        %v1696 = vld [vmem:[#allocation10 + $0x394] sm:$0xf]
        %v1697 = vld [vmem:[#allocation10 + $0x398] sm:$0xf]
        %v1698 = vld [vmem:[#allocation10 + $0x39c] sm:$0xf]
        %v1699 = vld [vmem:[#allocation10 + $0x3a0] sm:$0xf]
        %v1700 = vld [vmem:[#allocation10 + $0x3a4] sm:$0xf]
        %v1701 = vld [vmem:[#allocation10 + $0x3a8] sm:$0xf]
        %v1702 = vld [vmem:[#allocation10 + $0x3ac] sm:$0xf]
        %v1703 = vld [vmem:[#allocation10 + $0x3b0] sm:$0xf]
        %v1704 = vld [vmem:[#allocation10 + $0x3b4] sm:$0xf]
        %v1705 = vld [vmem:[#allocation10 + $0x3b8] sm:$0xf]
        %v1706 = vld [vmem:[#allocation10 + $0x3bc] sm:$0xf]
        %v1707 = vld [vmem:[#allocation10 + $0x3c0] sm:$0xf]
        %v1708 = vld [vmem:[#allocation10 + $0x3c4] sm:$0xf]
        %v1709 = vld [vmem:[#allocation10 + $0x3c8] sm:$0xf]
        %v1710 = vld [vmem:[#allocation10 + $0x3cc] sm:$0xf]
        %v1711 = vld [vmem:[#allocation10 + $0x3d0] sm:$0xf]
        %v1712 = vld [vmem:[#allocation10 + $0x3d4] sm:$0xf]
        %v1713 = vld [vmem:[#allocation10 + $0x3d8] sm:$0xf]
        %v1714 = vld [vmem:[#allocation10 + $0x3dc] sm:$0xf]
        %v1715 = vld [vmem:[#allocation10 + $0x3e0] sm:$0xf]
        %v1716 = vld [vmem:[#allocation10 + $0x3e4] sm:$0xf]
        %v1717 = vld [vmem:[#allocation10 + $0x3e8] sm:$0xf]
        %v1718 = vld [vmem:[#allocation10 + $0x3ec] sm:$0xf]
        %v1719 = vld [vmem:[#allocation10 + $0x3f0] sm:$0xf]
        %v1720 = vld [vmem:[#allocation10 + $0x3f4] sm:$0xf]
        %v1721 = vld [vmem:[#allocation10 + $0x3f8] sm:$0xf]
        %v1722 = vld [vmem:[#allocation10 + $0x3fc] sm:$0xf]
        %v1723 = vld [vmem:[#allocation10 + $0x400] sm:$0xf]
        %v1724 = vld [vmem:[#allocation10 + $0x404] sm:$0xf]
        %v1725 = vld [vmem:[#allocation10 + $0x408] sm:$0xf]
        %v1726 = vld [vmem:[#allocation10 + $0x40c] sm:$0xf]
        %v1727 = vld [vmem:[#allocation10 + $0x410] sm:$0xf]
        %v1728 = vld [vmem:[#allocation10 + $0x414] sm:$0xf]
        %v1729 = vld [vmem:[#allocation10 + $0x418] sm:$0xf]
        %v1730 = vld [vmem:[#allocation10 + $0x41c] sm:$0xf]
        %v1731 = vld [vmem:[#allocation10 + $0x420] sm:$0xf]
        %v1732 = vld [vmem:[#allocation10 + $0x424] sm:$0xf]
        %v1733 = vld [vmem:[#allocation10 + $0x428] sm:$0xf]
        %v1734 = vld [vmem:[#allocation10 + $0x42c] sm:$0xf]
        %v1735 = vld [vmem:[#allocation10 + $0x430] sm:$0xf]
        %v1736 = vld [vmem:[#allocation10 + $0x434] sm:$0xf]
        %v1737 = vld [vmem:[#allocation10 + $0x438] sm:$0xf]
        %v1738 = vld [vmem:[#allocation10 + $0x43c] sm:$0xf]
        %v1739 = vld [vmem:[#allocation10 + $0x440] sm:$0xf]
        %v1740 = vld [vmem:[#allocation10 + $0x444] sm:$0xf]
        %v1741 = vld [vmem:[#allocation10 + $0x448] sm:$0xf]
        %v1742 = vld [vmem:[#allocation10 + $0x44c] sm:$0xf]
        %v1743 = vld [vmem:[#allocation10 + $0x450] sm:$0xf]
        %v1744 = vld [vmem:[#allocation10 + $0x454] sm:$0xf]
        %v1745 = vld [vmem:[#allocation10 + $0x458] sm:$0xf]
        %v1746 = vld [vmem:[#allocation10 + $0x45c] sm:$0xf]
        %v1747 = vld [vmem:[#allocation10 + $0x460] sm:$0xf]
        %v1748 = vld [vmem:[#allocation10 + $0x464] sm:$0xf]
        %v1749 = vld [vmem:[#allocation10 + $0x468] sm:$0xf]
        %v1750 = vld [vmem:[#allocation10 + $0x46c] sm:$0xf]
        %v1751 = vld [vmem:[#allocation10 + $0x470] sm:$0xf]
        %v1752 = vld [vmem:[#allocation10 + $0x474] sm:$0xf]
        %v1753 = vld [vmem:[#allocation10 + $0x478] sm:$0xf]
        %v1754 = vld [vmem:[#allocation10 + $0x47c] sm:$0xf]
        %v1755 = vld [vmem:[#allocation12 + $0x1] sm:$0x1]
        %v1756 = vlaneseq
        %v1757 = vshrl.u32 %v1756, 7
        %v1758 = vsub.s32 0, %v1757
        %v1759 = vrot.slane %v1755, %v1758
        %v1904 = vunpack.c.l.b16 %v1611
        %v1905 = vunpack.c.l.b16 %v1612
        %v1906 = vunpack.c.l.b16 %v1613
        %v1907 = vunpack.c.l.b16 %v1614
        %v1908 = vunpack.c.l.b16 %v1615
        %v1909 = vunpack.c.l.b16 %v1616
        %v1910 = vunpack.c.l.b16 %v1617
        %v1911 = vunpack.c.l.b16 %v1618
        %v1912 = vunpack.c.l.b16 %v1619
        %v1913 = vunpack.c.l.b16 %v1620
        %v1914 = vunpack.c.l.b16 %v1621
        %v1915 = vunpack.c.l.b16 %v1622
        %v1916 = vunpack.c.l.b16 %v1623
        %v1917 = vunpack.c.l.b16 %v1624
        %v1918 = vunpack.c.l.b16 %v1625
        %v1919 = vunpack.c.l.b16 %v1626
        %v1920 = vunpack.c.l.b16 %v1627
        %v1921 = vunpack.c.l.b16 %v1628
        %v1922 = vunpack.c.l.b16 %v1629
        %v1923 = vunpack.c.l.b16 %v1630
        %v1924 = vunpack.c.l.b16 %v1631
        %v1925 = vunpack.c.l.b16 %v1632
        %v1926 = vunpack.c.l.b16 %v1633
        %v1927 = vunpack.c.l.b16 %v1634
        %v1928 = vunpack.c.l.b16 %v1635
        %v1929 = vunpack.c.l.b16 %v1636
        %v1930 = vunpack.c.l.b16 %v1637
        %v1931 = vunpack.c.l.b16 %v1638
        %v1932 = vunpack.c.l.b16 %v1639
        %v1933 = vunpack.c.l.b16 %v1640
        %v1934 = vunpack.c.l.b16 %v1641
        %v1935 = vunpack.c.l.b16 %v1642
        %v1936 = vunpack.c.l.b16 %v1643
        %v1937 = vunpack.c.l.b16 %v1644
        %v1938 = vunpack.c.l.b16 %v1645
        %v1939 = vunpack.c.l.b16 %v1646
        %v1940 = vunpack.c.l.b16 %v1647
        %v1941 = vunpack.c.l.b16 %v1648
        %v1942 = vunpack.c.l.b16 %v1649
        %v1943 = vunpack.c.l.b16 %v1650
        %v1944 = vunpack.c.l.b16 %v1651
        %v1945 = vunpack.c.l.b16 %v1652
        %v1946 = vunpack.c.l.b16 %v1653
        %v1947 = vunpack.c.l.b16 %v1654
        %v1948 = vunpack.c.l.b16 %v1655
        %v1949 = vunpack.c.l.b16 %v1656
        %v1950 = vunpack.c.l.b16 %v1657
        %v1951 = vunpack.c.l.b16 %v1658
        %v1952 = vunpack.c.l.b16 %v1659
        %v1953 = vunpack.c.l.b16 %v1660
        %v1954 = vunpack.c.l.b16 %v1661
        %v1955 = vunpack.c.l.b16 %v1662
        %v1956 = vunpack.c.l.b16 %v1663
        %v1957 = vunpack.c.l.b16 %v1664
        %v1958 = vunpack.c.l.b16 %v1665
        %v1959 = vunpack.c.l.b16 %v1666
        %v1960 = vunpack.c.l.b16 %v1667
        %v1961 = vunpack.c.l.b16 %v1668
        %v1962 = vunpack.c.l.b16 %v1669
        %v1963 = vunpack.c.l.b16 %v1670
        %v1964 = vunpack.c.l.b16 %v1671
        %v1965 = vunpack.c.l.b16 %v1672
        %v1966 = vunpack.c.l.b16 %v1673
        %v1967 = vunpack.c.l.b16 %v1674
        %v1968 = vunpack.c.l.b16 %v1675
        %v1969 = vunpack.c.l.b16 %v1676
        %v1970 = vunpack.c.l.b16 %v1677
        %v1971 = vunpack.c.l.b16 %v1678
        %v1972 = vunpack.c.l.b16 %v1679
        %v1973 = vunpack.c.l.b16 %v1680
        %v1974 = vunpack.c.l.b16 %v1681
        %v1975 = vunpack.c.l.b16 %v1682
        %v1976 = vunpack.c.l.b16 %v1683
        %v1977 = vunpack.c.l.b16 %v1684
        %v1978 = vunpack.c.l.b16 %v1685
        %v1979 = vunpack.c.l.b16 %v1686
        %v1980 = vunpack.c.l.b16 %v1687
        %v1981 = vunpack.c.l.b16 %v1688
        %v1982 = vunpack.c.l.b16 %v1689
        %v1983 = vunpack.c.l.b16 %v1690
        %v1984 = vunpack.c.l.b16 %v1691
        %v1985 = vunpack.c.l.b16 %v1692
        %v1986 = vunpack.c.l.b16 %v1693
        %v1987 = vunpack.c.l.b16 %v1694
        %v1988 = vunpack.c.l.b16 %v1695
        %v1989 = vunpack.c.l.b16 %v1696
        %v1990 = vunpack.c.l.b16 %v1697
        %v1991 = vunpack.c.l.b16 %v1698
        %v1992 = vunpack.c.l.b16 %v1699
        %v1993 = vunpack.c.l.b16 %v1700
        %v1994 = vunpack.c.l.b16 %v1701
        %v1995 = vunpack.c.l.b16 %v1702
        %v1996 = vunpack.c.l.b16 %v1703
        %v1997 = vunpack.c.l.b16 %v1704
        %v1998 = vunpack.c.l.b16 %v1705
        %v1999 = vunpack.c.l.b16 %v1706
        %v2000 = vunpack.c.l.b16 %v1707
        %v2001 = vunpack.c.l.b16 %v1708
        %v2002 = vunpack.c.l.b16 %v1709
        %v2003 = vunpack.c.l.b16 %v1710
        %v2004 = vunpack.c.l.b16 %v1711
        %v2005 = vunpack.c.l.b16 %v1712
        %v2006 = vunpack.c.l.b16 %v1713
        %v2007 = vunpack.c.l.b16 %v1714
        %v2008 = vunpack.c.l.b16 %v1715
        %v2009 = vunpack.c.l.b16 %v1716
        %v2010 = vunpack.c.l.b16 %v1717
        %v2011 = vunpack.c.l.b16 %v1718
        %v2012 = vunpack.c.l.b16 %v1719
        %v2013 = vunpack.c.l.b16 %v1720
        %v2014 = vunpack.c.l.b16 %v1721
        %v2015 = vunpack.c.l.b16 %v1722
        %v2016 = vunpack.c.l.b16 %v1723
        %v2017 = vunpack.c.l.b16 %v1724
        %v2018 = vunpack.c.l.b16 %v1725
        %v2019 = vunpack.c.l.b16 %v1726
        %v2020 = vunpack.c.l.b16 %v1727
        %v2021 = vunpack.c.l.b16 %v1728
        %v2022 = vunpack.c.l.b16 %v1729
        %v2023 = vunpack.c.l.b16 %v1730
        %v2024 = vunpack.c.l.b16 %v1731
        %v2025 = vunpack.c.l.b16 %v1732
        %v2026 = vunpack.c.l.b16 %v1733
        %v2027 = vunpack.c.l.b16 %v1734
        %v2028 = vunpack.c.l.b16 %v1735
        %v2029 = vunpack.c.l.b16 %v1736
        %v2030 = vunpack.c.l.b16 %v1737
        %v2031 = vunpack.c.l.b16 %v1738
        %v2032 = vunpack.c.l.b16 %v1739
        %v2033 = vunpack.c.l.b16 %v1740
        %v2034 = vunpack.c.l.b16 %v1741
        %v2035 = vunpack.c.l.b16 %v1742
        %v2036 = vunpack.c.l.b16 %v1743
        %v2037 = vunpack.c.l.b16 %v1744
        %v2038 = vunpack.c.l.b16 %v1745
        %v2039 = vunpack.c.l.b16 %v1746
        %v2040 = vunpack.c.l.b16 %v1747
        %v2041 = vunpack.c.l.b16 %v1748
        %v2042 = vunpack.c.l.b16 %v1749
        %v2043 = vunpack.c.l.b16 %v1750
        %v2044 = vunpack.c.l.b16 %v1751
        %v2045 = vunpack.c.l.b16 %v1752
        %v2046 = vunpack.c.l.b16 %v1753
        %v2047 = vunpack.c.l.b16 %v1754
        %v2048 = vpack.c.b16 %v1905, %v1904
        %v2049 = vpack.c.b16 %v1907, %v1906
        %v2050 = vpack.c.b16 %v1909, %v1908
        %v2051 = vpack.c.b16 %v1911, %v1910
        %v2052 = vpack.c.b16 %v1913, %v1912
        %v2053 = vpack.c.b16 %v1915, %v1914
        %v2054 = vpack.c.b16 %v1917, %v1916
        %v2055 = vpack.c.b16 %v1919, %v1918
        %v2056 = vpack.c.b16 %v1921, %v1920
        %v2057 = vpack.c.b16 %v1923, %v1922
        %v2058 = vpack.c.b16 %v1925, %v1924
        %v2059 = vpack.c.b16 %v1927, %v1926
        %v2060 = vpack.c.b16 %v1929, %v1928
        %v2061 = vpack.c.b16 %v1931, %v1930
        %v2062 = vpack.c.b16 %v1933, %v1932
        %v2063 = vpack.c.b16 %v1935, %v1934
        %v2064 = vpack.c.b16 %v1937, %v1936
        %v2065 = vpack.c.b16 %v1939, %v1938
        %v2066 = vpack.c.b16 %v1941, %v1940
        %v2067 = vpack.c.b16 %v1943, %v1942
        %v2068 = vpack.c.b16 %v1945, %v1944
        %v2069 = vpack.c.b16 %v1947, %v1946
        %v2070 = vpack.c.b16 %v1949, %v1948
        %v2071 = vpack.c.b16 %v1951, %v1950
        %v2072 = vpack.c.b16 %v1953, %v1952
        %v2073 = vpack.c.b16 %v1955, %v1954
        %v2074 = vpack.c.b16 %v1957, %v1956
        %v2075 = vpack.c.b16 %v1959, %v1958
        %v2076 = vpack.c.b16 %v1961, %v1960
        %v2077 = vpack.c.b16 %v1963, %v1962
        %v2078 = vpack.c.b16 %v1965, %v1964
        %v2079 = vpack.c.b16 %v1967, %v1966
        %v2080 = vpack.c.b16 %v1969, %v1968
        %v2081 = vpack.c.b16 %v1971, %v1970
        %v2082 = vpack.c.b16 %v1973, %v1972
        %v2083 = vpack.c.b16 %v1975, %v1974
        %v2084 = vpack.c.b16 %v1977, %v1976
        %v2085 = vpack.c.b16 %v1979, %v1978
        %v2086 = vpack.c.b16 %v1981, %v1980
        %v2087 = vpack.c.b16 %v1983, %v1982
        %v2088 = vpack.c.b16 %v1985, %v1984
        %v2089 = vpack.c.b16 %v1987, %v1986
        %v2090 = vpack.c.b16 %v1989, %v1988
        %v2091 = vpack.c.b16 %v1991, %v1990
        %v2092 = vpack.c.b16 %v1993, %v1992
        %v2093 = vpack.c.b16 %v1995, %v1994
        %v2094 = vpack.c.b16 %v1997, %v1996
        %v2095 = vpack.c.b16 %v1999, %v1998
        %v2096 = vpack.c.b16 %v2001, %v2000
        %v2097 = vpack.c.b16 %v2003, %v2002
        %v2098 = vpack.c.b16 %v2005, %v2004
        %v2099 = vpack.c.b16 %v2007, %v2006
        %v2100 = vpack.c.b16 %v2009, %v2008
        %v2101 = vpack.c.b16 %v2011, %v2010
        %v2102 = vpack.c.b16 %v2013, %v2012
        %v2103 = vpack.c.b16 %v2015, %v2014
        %v2104 = vpack.c.b16 %v2017, %v2016
        %v2105 = vpack.c.b16 %v2019, %v2018
        %v2106 = vpack.c.b16 %v2021, %v2020
        %v2107 = vpack.c.b16 %v2023, %v2022
        %v2108 = vpack.c.b16 %v2025, %v2024
        %v2109 = vpack.c.b16 %v2027, %v2026
        %v2110 = vpack.c.b16 %v2029, %v2028
        %v2111 = vpack.c.b16 %v2031, %v2030
        %v2112 = vpack.c.b16 %v2033, %v2032
        %v2113 = vpack.c.b16 %v2035, %v2034
        %v2114 = vpack.c.b16 %v2037, %v2036
        %v2115 = vpack.c.b16 %v2039, %v2038
        %v2116 = vpack.c.b16 %v2041, %v2040
        %v2117 = vpack.c.b16 %v2043, %v2042
        %v2118 = vpack.c.b16 %v2045, %v2044
        %v2119 = vpack.c.b16 %v2047, %v2046
        %2192 = vmatprep.subr.bf16.mxu0 0
        %2193 = vmatpush1.bf16.msra.mxu0 %v2055
        %2194 = vmatprep.subr.bf16.mxu0 0
        %2195 = vmatpush1.bf16.msra.mxu0 %v2054
        %2196 = vmatprep.subr.bf16.mxu0 0
        %2197 = vmatpush1.bf16.msra.mxu0 %v2053
        %2198 = vmatprep.subr.bf16.mxu0 0
        %2199 = vmatpush1.bf16.msra.mxu0 %v2052
        %2200 = vmatprep.subr.bf16.mxu0 0
        %2201 = vmatpush1.bf16.msra.mxu0 %v2051
        %2202 = vmatprep.subr.bf16.mxu0 0
        %2203 = vmatpush1.bf16.msra.mxu0 %v2050
        %2204 = vmatprep.subr.bf16.mxu0 0
        %2205 = vmatpush1.bf16.msra.mxu0 %v2049
        %2206 = vmatprep.subr.bf16.mxu0 0
        %2207 = vmatpush1.bf16.msra.mxu0 %v2048
        %2208 = vmatprep.subr.bf16.mxu0 0
        %2209 = vmatpush2.bf16.msra.mxu0 %v2063
        %2210 = vmatprep.subr.bf16.mxu0 0
        %2211 = vmatpush2.bf16.msra.mxu0 %v2062
        %2212 = vmatprep.subr.bf16.mxu0 0
        %2213 = vmatpush2.bf16.msra.mxu0 %v2061
        %2214 = vmatprep.subr.bf16.mxu0 0
        %2215 = vmatpush2.bf16.msra.mxu0 %v2060
        %2216 = vmatprep.subr.bf16.mxu0 0
        %2217 = vmatpush2.bf16.msra.mxu0 %v2059
        %2218 = vmatprep.subr.bf16.mxu0 0
        %2219 = vmatpush2.bf16.msra.mxu0 %v2058
        %2220 = vmatprep.subr.bf16.mxu0 0
        %2221 = vmatpush2.bf16.msra.mxu0 %v2057
        %2222 = vmatprep.subr.bf16.mxu0 0
        %2223 = vmatpush2.bf16.msra.mxu0 %v2056
        %2224 = vmatprep.mubr.bf16.mxu0 %v1575
        %2225 = vmatmul.mubr.bf16.gmra.mxu0 %v1574
        %v2226 = vpop.f32.mrf.mxu0
        %v2227 = vadd.f32 %v1759, %v2226
        %v2228 = vpop.f32.mrf.mxu0
        %v2229 = vpop.f32.mrf.mxu0
        %v2230 = vadd.f32 %v1759, %v2229
        %v2231 = vpop.f32.mrf.mxu0
        %2232 = vmatprep.mubr.bf16.mxu0 %v1578
        %2233 = vmatmul.mubr.bf16.gmra.mxu0 %v1577
        %v2234 = vpop.f32.mrf.mxu0
        %v2235 = vadd.f32 %v1759, %v2234
        %v2236 = vpop.f32.mrf.mxu0
        %v2237 = vpop.f32.mrf.mxu0
        %v2238 = vadd.f32 %v1759, %v2237
        %v2239 = vpop.f32.mrf.mxu0
        %2240 = vmatprep.mubr.bf16.mxu0 %v1581
        %2241 = vmatmul.mubr.bf16.gmra.mxu0 %v1580
        %v2242 = vpop.f32.mrf.mxu0
        %v2243 = vadd.f32 %v1759, %v2242
        %v2244 = vpop.f32.mrf.mxu0
        %v2245 = vpop.f32.mrf.mxu0
        %v2246 = vadd.f32 %v1759, %v2245
        %v2247 = vpop.f32.mrf.mxu0
        %2248 = vmatprep.mubr.bf16.mxu0 %v1585
        %2249 = vmatmul.mubr.bf16.gmra.mxu0 %v1584
        %v2250 = vpop.f32.mrf.mxu0
        %v2251 = vadd.f32 %v1759, %v2250
        %v2252 = vpop.f32.mrf.mxu0
        %v2253 = vpop.f32.mrf.mxu0
        %v2254 = vadd.f32 %v1759, %v2253
        %v2255 = vpop.f32.mrf.mxu0
        %2256 = vmatprep.mubr.bf16.mxu0 %v1589
        %2257 = vmatmul.mubr.bf16.gmra.mxu0 %v1588
        %v2258 = vpop.f32.mrf.mxu0
        %v2259 = vadd.f32 %v1759, %v2258
        %v2260 = vpop.f32.mrf.mxu0
        %v2261 = vpop.f32.mrf.mxu0
        %v2262 = vadd.f32 %v1759, %v2261
        %v2263 = vpop.f32.mrf.mxu0
        %2264 = vmatprep.mubr.bf16.mxu0 %v1593
        %2265 = vmatmul.mubr.bf16.gmra.mxu0 %v1592
        %v2266 = vpop.f32.mrf.mxu0
        %v2267 = vadd.f32 %v1759, %v2266
        %v2268 = vpop.f32.mrf.mxu0
        %v2269 = vpop.f32.mrf.mxu0
        %v2270 = vadd.f32 %v1759, %v2269
        %v2271 = vpop.f32.mrf.mxu0
        %2272 = vmatprep.mubr.bf16.mxu0 %v1597
        %2273 = vmatmul.mubr.bf16.gmra.mxu0 %v1596
        %v2274 = vpop.f32.mrf.mxu0
        %v2275 = vadd.f32 %v1759, %v2274
        %v2276 = vpop.f32.mrf.mxu0
        %v2277 = vpop.f32.mrf.mxu0
        %v2278 = vadd.f32 %v1759, %v2277
        %v2279 = vpop.f32.mrf.mxu0
        %2280 = vmatprep.mubr.bf16.mxu0 %v1601
        %2281 = vmatmul.mubr.bf16.gmra.mxu0 %v1600
        %v2282 = vpop.f32.mrf.mxu0
        %v2283 = vadd.f32 %v1759, %v2282
        %v2284 = vpop.f32.mrf.mxu0
        %v2285 = vpop.f32.mrf.mxu0
        %v2286 = vadd.f32 %v1759, %v2285
        %v2287 = vpop.f32.mrf.mxu0
        %2288 = vdwg.mxu0
        %2289 = vmatprep.subr.bf16.mxu0 0
        %2290 = vmatpush1.bf16.msra.mxu0 %v2071
        %2291 = vmatprep.subr.bf16.mxu0 0
        %2292 = vmatpush1.bf16.msra.mxu0 %v2070
        %2293 = vmatprep.subr.bf16.mxu0 0
        %2294 = vmatpush1.bf16.msra.mxu0 %v2069
        %2295 = vmatprep.subr.bf16.mxu0 0
        %2296 = vmatpush1.bf16.msra.mxu0 %v2068
        %2297 = vmatprep.subr.bf16.mxu0 0
        %2298 = vmatpush1.bf16.msra.mxu0 %v2067
        %2299 = vmatprep.subr.bf16.mxu0 0
        %2300 = vmatpush1.bf16.msra.mxu0 %v2066
        %2301 = vmatprep.subr.bf16.mxu0 0
        %2302 = vmatpush1.bf16.msra.mxu0 %v2065
        %2303 = vmatprep.subr.bf16.mxu0 0
        %2304 = vmatpush1.bf16.msra.mxu0 %v2064
        %2305 = vmatprep.subr.bf16.mxu0 0
        %2306 = vmatpush2.bf16.msra.mxu0 %v2079
        %2307 = vmatprep.subr.bf16.mxu0 0
        %2308 = vmatpush2.bf16.msra.mxu0 %v2078
        %2309 = vmatprep.subr.bf16.mxu0 0
        %2310 = vmatpush2.bf16.msra.mxu0 %v2077
        %2311 = vmatprep.subr.bf16.mxu0 0
        %2312 = vmatpush2.bf16.msra.mxu0 %v2076
        %2313 = vmatprep.subr.bf16.mxu0 0
        %2314 = vmatpush2.bf16.msra.mxu0 %v2075
        %2315 = vmatprep.subr.bf16.mxu0 0
        %2316 = vmatpush2.bf16.msra.mxu0 %v2074
        %2317 = vmatprep.subr.bf16.mxu0 0
        %2318 = vmatpush2.bf16.msra.mxu0 %v2073
        %2319 = vmatprep.subr.bf16.mxu0 0
        %2320 = vmatpush2.bf16.msra.mxu0 %v2072
        %2321 = vmatprep.mubr.bf16.mxu0 %v1577
        %2322 = vmatmul.mubr.bf16.gmra.mxu0 %v1576
        %v2323 = vpop.f32.mrf.mxu0
        %v2324 = vadd.f32 %v2227, %v2323
        %v2325 = vpop.f32.mrf.mxu0
        %v2326 = vpop.f32.mrf.mxu0
        %v2327 = vadd.f32 %v2230, %v2326
        %v2328 = vpop.f32.mrf.mxu0
        %2329 = vmatprep.mubr.bf16.mxu0 %v1580
        %2330 = vmatmul.mubr.bf16.gmra.mxu0 %v1579
        %v2331 = vpop.f32.mrf.mxu0
        %v2332 = vadd.f32 %v2235, %v2331
        %v2333 = vpop.f32.mrf.mxu0
        %v2334 = vpop.f32.mrf.mxu0
        %v2335 = vadd.f32 %v2238, %v2334
        %v2336 = vpop.f32.mrf.mxu0
        %2337 = vmatprep.mubr.bf16.mxu0 %v1584
        %2338 = vmatmul.mubr.bf16.gmra.mxu0 %v1583
        %v2339 = vpop.f32.mrf.mxu0
        %v2340 = vadd.f32 %v2243, %v2339
        %v2341 = vpop.f32.mrf.mxu0
        %v2342 = vpop.f32.mrf.mxu0
        %v2343 = vadd.f32 %v2246, %v2342
        %v2344 = vpop.f32.mrf.mxu0
        %2345 = vmatprep.mubr.bf16.mxu0 %v1588
        %2346 = vmatmul.mubr.bf16.gmra.mxu0 %v1587
        %v2347 = vpop.f32.mrf.mxu0
        %v2348 = vadd.f32 %v2251, %v2347
        %v2349 = vpop.f32.mrf.mxu0
        %v2350 = vpop.f32.mrf.mxu0
        %v2351 = vadd.f32 %v2254, %v2350
        %v2352 = vpop.f32.mrf.mxu0
        %2353 = vmatprep.mubr.bf16.mxu0 %v1592
        %2354 = vmatmul.mubr.bf16.gmra.mxu0 %v1591
        %v2355 = vpop.f32.mrf.mxu0
        %v2356 = vadd.f32 %v2259, %v2355
        %v2357 = vpop.f32.mrf.mxu0
        %v2358 = vpop.f32.mrf.mxu0
        %v2359 = vadd.f32 %v2262, %v2358
        %v2360 = vpop.f32.mrf.mxu0
        %2361 = vmatprep.mubr.bf16.mxu0 %v1596
        %2362 = vmatmul.mubr.bf16.gmra.mxu0 %v1595
        %v2363 = vpop.f32.mrf.mxu0
        %v2364 = vadd.f32 %v2267, %v2363
        %v2365 = vpop.f32.mrf.mxu0
        %v2366 = vpop.f32.mrf.mxu0
        %v2367 = vadd.f32 %v2270, %v2366
        %v2368 = vpop.f32.mrf.mxu0
        %2369 = vmatprep.mubr.bf16.mxu0 %v1600
        %2370 = vmatmul.mubr.bf16.gmra.mxu0 %v1599
        %v2371 = vpop.f32.mrf.mxu0
        %v2372 = vadd.f32 %v2275, %v2371
        %v2373 = vpop.f32.mrf.mxu0
        %v2374 = vpop.f32.mrf.mxu0
        %v2375 = vadd.f32 %v2278, %v2374
        %v2376 = vpop.f32.mrf.mxu0
        %2377 = vmatprep.mubr.bf16.mxu0 %v1604
        %2378 = vmatmul.mubr.bf16.gmra.mxu0 %v1603
        %v2379 = vpop.f32.mrf.mxu0
        %v2380 = vadd.f32 %v2283, %v2379
        %v2381 = vpop.f32.mrf.mxu0
        %v2382 = vpop.f32.mrf.mxu0
        %v2383 = vadd.f32 %v2286, %v2382
        %v2384 = vpop.f32.mrf.mxu0
        %2385 = vdwg.mxu0
        %2386 = vmatprep.subr.bf16.mxu0 0
        %2387 = vmatpush1.bf16.msra.mxu0 %v2087
        %2388 = vmatprep.subr.bf16.mxu0 0
        %2389 = vmatpush1.bf16.msra.mxu0 %v2086
        %2390 = vmatprep.subr.bf16.mxu0 0
        %2391 = vmatpush1.bf16.msra.mxu0 %v2085
        %2392 = vmatprep.subr.bf16.mxu0 0
        %2393 = vmatpush1.bf16.msra.mxu0 %v2084
        %2394 = vmatprep.subr.bf16.mxu0 0
        %2395 = vmatpush1.bf16.msra.mxu0 %v2083
        %2396 = vmatprep.subr.bf16.mxu0 0
        %2397 = vmatpush1.bf16.msra.mxu0 %v2082
        %2398 = vmatprep.subr.bf16.mxu0 0
        %2399 = vmatpush1.bf16.msra.mxu0 %v2081
        %2400 = vmatprep.subr.bf16.mxu0 0
        %2401 = vmatpush1.bf16.msra.mxu0 %v2080
        %2402 = vmatprep.subr.bf16.mxu0 0
        %2403 = vmatpush2.bf16.msra.mxu0 %v2095
        %2404 = vmatprep.subr.bf16.mxu0 0
        %2405 = vmatpush2.bf16.msra.mxu0 %v2094
        %2406 = vmatprep.subr.bf16.mxu0 0
        %2407 = vmatpush2.bf16.msra.mxu0 %v2093
        %2408 = vmatprep.subr.bf16.mxu0 0
        %2409 = vmatpush2.bf16.msra.mxu0 %v2092
        %2410 = vmatprep.subr.bf16.mxu0 0
        %2411 = vmatpush2.bf16.msra.mxu0 %v2091
        %2412 = vmatprep.subr.bf16.mxu0 0
        %2413 = vmatpush2.bf16.msra.mxu0 %v2090
        %2414 = vmatprep.subr.bf16.mxu0 0
        %2415 = vmatpush2.bf16.msra.mxu0 %v2089
        %2416 = vmatprep.subr.bf16.mxu0 0
        %2417 = vmatpush2.bf16.msra.mxu0 %v2088
        %2418 = vmatprep.mubr.bf16.mxu0 %v1579
        %2419 = vmatmul.mubr.bf16.gmra.mxu0 %v1578
        %v2420 = vpop.f32.mrf.mxu0
        %v2421 = vadd.f32 %v2324, %v2420
        %v2422 = vpop.f32.mrf.mxu0
        %v2423 = vpop.f32.mrf.mxu0
        %v2424 = vadd.f32 %v2327, %v2423
        %v2425 = vpop.f32.mrf.mxu0
        %2426 = vmatprep.mubr.bf16.mxu0 %v1583
        %2427 = vmatmul.mubr.bf16.gmra.mxu0 %v1581
        %v2428 = vpop.f32.mrf.mxu0
        %v2429 = vadd.f32 %v2332, %v2428
        %v2430 = vpop.f32.mrf.mxu0
        %v2431 = vpop.f32.mrf.mxu0
        %v2432 = vadd.f32 %v2335, %v2431
        %v2433 = vpop.f32.mrf.mxu0
        %2434 = vmatprep.mubr.bf16.mxu0 %v1587
        %2435 = vmatmul.mubr.bf16.gmra.mxu0 %v1585
        %v2436 = vpop.f32.mrf.mxu0
        %v2437 = vadd.f32 %v2340, %v2436
        %v2438 = vpop.f32.mrf.mxu0
        %v2439 = vpop.f32.mrf.mxu0
        %v2440 = vadd.f32 %v2343, %v2439
        %v2441 = vpop.f32.mrf.mxu0
        %2442 = vmatprep.mubr.bf16.mxu0 %v1591
        %2443 = vmatmul.mubr.bf16.gmra.mxu0 %v1589
        %v2444 = vpop.f32.mrf.mxu0
        %v2445 = vadd.f32 %v2348, %v2444
        %v2446 = vpop.f32.mrf.mxu0
        %v2447 = vpop.f32.mrf.mxu0
        %v2448 = vadd.f32 %v2351, %v2447
        %v2449 = vpop.f32.mrf.mxu0
        %2450 = vmatprep.mubr.bf16.mxu0 %v1595
        %2451 = vmatmul.mubr.bf16.gmra.mxu0 %v1593
        %v2452 = vpop.f32.mrf.mxu0
        %v2453 = vadd.f32 %v2356, %v2452
        %v2454 = vpop.f32.mrf.mxu0
        %v2455 = vpop.f32.mrf.mxu0
        %v2456 = vadd.f32 %v2359, %v2455
        %v2457 = vpop.f32.mrf.mxu0
        %2458 = vmatprep.mubr.bf16.mxu0 %v1599
        %2459 = vmatmul.mubr.bf16.gmra.mxu0 %v1597
        %v2460 = vpop.f32.mrf.mxu0
        %v2461 = vadd.f32 %v2364, %v2460
        %v2462 = vpop.f32.mrf.mxu0
        %v2463 = vpop.f32.mrf.mxu0
        %v2464 = vadd.f32 %v2367, %v2463
        %v2465 = vpop.f32.mrf.mxu0
        %2466 = vmatprep.mubr.bf16.mxu0 %v1603
        %2467 = vmatmul.mubr.bf16.gmra.mxu0 %v1601
        %v2468 = vpop.f32.mrf.mxu0
        %v2469 = vadd.f32 %v2372, %v2468
        %v2470 = vpop.f32.mrf.mxu0
        %v2471 = vpop.f32.mrf.mxu0
        %v2472 = vadd.f32 %v2375, %v2471
        %v2473 = vpop.f32.mrf.mxu0
        %2474 = vmatprep.mubr.bf16.mxu0 %v1607
        %2475 = vmatmul.mubr.bf16.gmra.mxu0 %v1605
        %v2476 = vpop.f32.mrf.mxu0
        %v2477 = vadd.f32 %v2380, %v2476
        %v2478 = vpop.f32.mrf.mxu0
        %v2479 = vpop.f32.mrf.mxu0
        %v2480 = vadd.f32 %v2383, %v2479
        %v2481 = vpop.f32.mrf.mxu0
        %2482 = vdwg.mxu0
        %2483 = vmatprep.subr.bf16.mxu0 0
        %2484 = vmatpush1.bf16.msra.mxu0 %v2103
        %2485 = vmatprep.subr.bf16.mxu0 0
        %2486 = vmatpush1.bf16.msra.mxu0 %v2102
        %2487 = vmatprep.subr.bf16.mxu0 0
        %2488 = vmatpush1.bf16.msra.mxu0 %v2101
        %2489 = vmatprep.subr.bf16.mxu0 0
        %2490 = vmatpush1.bf16.msra.mxu0 %v2100
        %2491 = vmatprep.subr.bf16.mxu0 0
        %2492 = vmatpush1.bf16.msra.mxu0 %v2099
        %2493 = vmatprep.subr.bf16.mxu0 0
        %2494 = vmatpush1.bf16.msra.mxu0 %v2098
        %2495 = vmatprep.subr.bf16.mxu0 0
        %2496 = vmatpush1.bf16.msra.mxu0 %v2097
        %2497 = vmatprep.subr.bf16.mxu0 0
        %2498 = vmatpush1.bf16.msra.mxu0 %v2096
        %2499 = vmatprep.subr.bf16.mxu0 0
        %2500 = vmatpush2.bf16.msra.mxu0 %v2111
        %2501 = vmatprep.subr.bf16.mxu0 0
        %2502 = vmatpush2.bf16.msra.mxu0 %v2110
        %2503 = vmatprep.subr.bf16.mxu0 0
        %2504 = vmatpush2.bf16.msra.mxu0 %v2109
        %2505 = vmatprep.subr.bf16.mxu0 0
        %2506 = vmatpush2.bf16.msra.mxu0 %v2108
        %2507 = vmatprep.subr.bf16.mxu0 0
        %2508 = vmatpush2.bf16.msra.mxu0 %v2107
        %2509 = vmatprep.subr.bf16.mxu0 0
        %2510 = vmatpush2.bf16.msra.mxu0 %v2106
        %2511 = vmatprep.subr.bf16.mxu0 0
        %2512 = vmatpush2.bf16.msra.mxu0 %v2105
        %2513 = vmatprep.subr.bf16.mxu0 0
        %2514 = vmatpush2.bf16.msra.mxu0 %v2104
        %2515 = vmatprep.mubr.bf16.mxu0 %v1581
        %2516 = vmatmul.mubr.bf16.gmra.mxu0 %v1580
        %v2517 = vpop.f32.mrf.mxu0
        %v2518 = vadd.f32 %v2421, %v2517
        %v2519 = vpop.f32.mrf.mxu0
        %v2520 = vpop.f32.mrf.mxu0
        %v2521 = vadd.f32 %v2424, %v2520
        %v2522 = vpop.f32.mrf.mxu0
        %2523 = vmatprep.mubr.bf16.mxu0 %v1585
        %2524 = vmatmul.mubr.bf16.gmra.mxu0 %v1584
        %v2525 = vpop.f32.mrf.mxu0
        %v2526 = vadd.f32 %v2429, %v2525
        %v2527 = vpop.f32.mrf.mxu0
        %v2528 = vpop.f32.mrf.mxu0
        %v2529 = vadd.f32 %v2432, %v2528
        %v2530 = vpop.f32.mrf.mxu0
        %2531 = vmatprep.mubr.bf16.mxu0 %v1589
        %2532 = vmatmul.mubr.bf16.gmra.mxu0 %v1588
        %v2533 = vpop.f32.mrf.mxu0
        %v2534 = vadd.f32 %v2437, %v2533
        %v2535 = vpop.f32.mrf.mxu0
        %v2536 = vpop.f32.mrf.mxu0
        %v2537 = vadd.f32 %v2440, %v2536
        %v2538 = vpop.f32.mrf.mxu0
        %2539 = vmatprep.mubr.bf16.mxu0 %v1593
        %2540 = vmatmul.mubr.bf16.gmra.mxu0 %v1592
        %v2541 = vpop.f32.mrf.mxu0
        %v2542 = vadd.f32 %v2445, %v2541
        %v2543 = vpop.f32.mrf.mxu0
        %v2544 = vpop.f32.mrf.mxu0
        %v2545 = vadd.f32 %v2448, %v2544
        %v2546 = vpop.f32.mrf.mxu0
        %2547 = vmatprep.mubr.bf16.mxu0 %v1597
        %2548 = vmatmul.mubr.bf16.gmra.mxu0 %v1596
        %v2549 = vpop.f32.mrf.mxu0
        %v2550 = vadd.f32 %v2453, %v2549
        %v2551 = vpop.f32.mrf.mxu0
        %v2552 = vpop.f32.mrf.mxu0
        %v2553 = vadd.f32 %v2456, %v2552
        %v2554 = vpop.f32.mrf.mxu0
        %2555 = vmatprep.mubr.bf16.mxu0 %v1601
        %2556 = vmatmul.mubr.bf16.gmra.mxu0 %v1600
        %v2557 = vpop.f32.mrf.mxu0
        %v2558 = vadd.f32 %v2461, %v2557
        %v2559 = vpop.f32.mrf.mxu0
        %v2560 = vpop.f32.mrf.mxu0
        %v2561 = vadd.f32 %v2464, %v2560
        %v2562 = vpop.f32.mrf.mxu0
        %2563 = vmatprep.mubr.bf16.mxu0 %v1605
        %2564 = vmatmul.mubr.bf16.gmra.mxu0 %v1604
        %v2565 = vpop.f32.mrf.mxu0
        %v2566 = vadd.f32 %v2469, %v2565
        %v2567 = vpop.f32.mrf.mxu0
        %v2568 = vpop.f32.mrf.mxu0
        %v2569 = vadd.f32 %v2472, %v2568
        %v2570 = vpop.f32.mrf.mxu0
        %2571 = vmatprep.mubr.bf16.mxu0 %v1609
        %2572 = vmatmul.mubr.bf16.gmra.mxu0 %v1608
        %v2573 = vpop.f32.mrf.mxu0
        %v2574 = vadd.f32 %v2477, %v2573
        %v2575 = vpop.f32.mrf.mxu0
        %v2576 = vpop.f32.mrf.mxu0
        %v2577 = vadd.f32 %v2480, %v2576
        %v2578 = vpop.f32.mrf.mxu0
        %2579 = vdwg.mxu0
        %2580 = vmatprep.subr.bf16.mxu0 0
        %2581 = vmatpush1.bf16.msra.mxu0 %v2119
        %2582 = vmatprep.subr.bf16.mxu0 0
        %2583 = vmatpush1.bf16.msra.mxu0 %v2118
        %2584 = vmatprep.subr.bf16.mxu0 0
        %2585 = vmatpush1.bf16.msra.mxu0 %v2117
        %2586 = vmatprep.subr.bf16.mxu0 0
        %2587 = vmatpush1.bf16.msra.mxu0 %v2116
        %2588 = vmatprep.subr.bf16.mxu0 0
        %2589 = vmatpush1.bf16.msra.mxu0 %v2115
        %2590 = vmatprep.subr.bf16.mxu0 0
        %2591 = vmatpush1.bf16.msra.mxu0 %v2114
        %2592 = vmatprep.subr.bf16.mxu0 0
        %2593 = vmatpush1.bf16.msra.mxu0 %v2113
        %2594 = vmatprep.subr.bf16.mxu0 0
        %2595 = vmatpush1.bf16.msra.mxu0 %v2112
        %2596 = vmatprep.subr.bf16.mxu0 0
        %2597 = vmatpush2.bf16.msra.mxu0 0
        %2598 = vmatprep.subr.bf16.mxu0 0
        %2599 = vmatpush2.bf16.msra.mxu0 0
        %2600 = vmatprep.subr.bf16.mxu0 0
        %2601 = vmatpush2.bf16.msra.mxu0 0
        %2602 = vmatprep.subr.bf16.mxu0 0
        %2603 = vmatpush2.bf16.msra.mxu0 0
        %2604 = vmatprep.subr.bf16.mxu0 0
        %2605 = vmatpush2.bf16.msra.mxu0 0
        %2606 = vmatprep.subr.bf16.mxu0 0
        %2607 = vmatpush2.bf16.msra.mxu0 0
        %2608 = vmatprep.subr.bf16.mxu0 0
        %2609 = vmatpush2.bf16.msra.mxu0 0
        %2610 = vmatprep.subr.bf16.mxu0 0
        %2611 = vmatpush2.bf16.msra.mxu0 0
        %2612 = vmatprep.mubr.bf16.mxu0 0
        %2613 = vmatmul.mubr.bf16.gmra.mxu0 %v1582
        %v2614 = vpop.f32.mrf.mxu0
        %v2615 = vadd.f32 %v2518, %v2614
        %v2616 = vpop.f32.mrf.mxu0
        %v2617 = vpop.f32.mrf.mxu0
        %v2618 = vadd.f32 %v2521, %v2617
        %v2619 = vpop.f32.mrf.mxu0
        %2620 = vmatprep.mubr.bf16.mxu0 0
        %2621 = vmatmul.mubr.bf16.gmra.mxu0 %v1586
        %v2622 = vpop.f32.mrf.mxu0
        %v2623 = vadd.f32 %v2526, %v2622
        %v2624 = vpop.f32.mrf.mxu0
        %v2625 = vpop.f32.mrf.mxu0
        %v2626 = vadd.f32 %v2529, %v2625
        %v2627 = vpop.f32.mrf.mxu0
        %2628 = vmatprep.mubr.bf16.mxu0 0
        %2629 = vmatmul.mubr.bf16.gmra.mxu0 %v1590
        %v2630 = vpop.f32.mrf.mxu0
        %v2631 = vadd.f32 %v2534, %v2630
        %v2632 = vpop.f32.mrf.mxu0
        %v2633 = vpop.f32.mrf.mxu0
        %v2634 = vadd.f32 %v2537, %v2633
        %v2635 = vpop.f32.mrf.mxu0
        %2636 = vmatprep.mubr.bf16.mxu0 0
        %2637 = vmatmul.mubr.bf16.gmra.mxu0 %v1594
        %v2638 = vpop.f32.mrf.mxu0
        %v2639 = vadd.f32 %v2542, %v2638
        %v2640 = vpop.f32.mrf.mxu0
        %v2641 = vpop.f32.mrf.mxu0
        %v2642 = vadd.f32 %v2545, %v2641
        %v2643 = vpop.f32.mrf.mxu0
        %2644 = vmatprep.mubr.bf16.mxu0 0
        %2645 = vmatmul.mubr.bf16.gmra.mxu0 %v1598
        %v2646 = vpop.f32.mrf.mxu0
        %v2647 = vadd.f32 %v2550, %v2646
        %v2648 = vpop.f32.mrf.mxu0
        %v2649 = vpop.f32.mrf.mxu0
        %v2650 = vadd.f32 %v2553, %v2649
        %v2651 = vpop.f32.mrf.mxu0
        %2652 = vmatprep.mubr.bf16.mxu0 0
        %2653 = vmatmul.mubr.bf16.gmra.mxu0 %v1602
        %v2654 = vpop.f32.mrf.mxu0
        %v2655 = vadd.f32 %v2558, %v2654
        %v2656 = vpop.f32.mrf.mxu0
        %v2657 = vpop.f32.mrf.mxu0
        %v2658 = vadd.f32 %v2561, %v2657
        %v2659 = vpop.f32.mrf.mxu0
        %2660 = vmatprep.mubr.bf16.mxu0 0
        %2661 = vmatmul.mubr.bf16.gmra.mxu0 %v1606
        %v2662 = vpop.f32.mrf.mxu0
        %v2663 = vadd.f32 %v2566, %v2662
        %v2664 = vpop.f32.mrf.mxu0
        %v2665 = vpop.f32.mrf.mxu0
        %v2666 = vadd.f32 %v2569, %v2665
        %v2667 = vpop.f32.mrf.mxu0
        %2668 = vmatprep.mubr.bf16.mxu0 0
        %2669 = vmatmul.mubr.bf16.gmra.mxu0 %v1610
        %v2670 = vpop.f32.mrf.mxu0
        %v2671 = vadd.f32 %v2574, %v2670
        %v2672 = vpop.f32.mrf.mxu0
        %v2673 = vpop.f32.mrf.mxu0
        %v2674 = vadd.f32 %v2577, %v2673
        %v2675 = vpop.f32.mrf.mxu0
        %2676 = vdwg.mxu0
        %vm2677 = vcmp.gt.f32.partialorder %v2615, 0.0
        %vm2678 = vcmp.gt.f32.partialorder %v2618, 0.0
        %vm2679 = vcmp.gt.f32.partialorder %v2623, 0.0
        %vm2680 = vcmp.gt.f32.partialorder %v2626, 0.0
        %vm2681 = vcmp.gt.f32.partialorder %v2631, 0.0
        %vm2682 = vcmp.gt.f32.partialorder %v2634, 0.0
        %vm2683 = vcmp.gt.f32.partialorder %v2639, 0.0
        %vm2684 = vcmp.gt.f32.partialorder %v2642, 0.0
        %vm2685 = vcmp.gt.f32.partialorder %v2647, 0.0
        %vm2686 = vcmp.gt.f32.partialorder %v2650, 0.0
        %vm2687 = vcmp.gt.f32.partialorder %v2655, 0.0
        %vm2688 = vcmp.gt.f32.partialorder %v2658, 0.0
        %vm2689 = vcmp.gt.f32.partialorder %v2663, 0.0
        %vm2690 = vcmp.gt.f32.partialorder %v2666, 0.0
        %vm2691 = vcmp.gt.f32.partialorder %v2671, 0.0
        %vm2692 = vcmp.gt.f32.partialorder %v2674, 0.0
        %v2693 = vmul.f32 %v2615, 0.01
        %v2694 = vmul.f32 %v2618, 0.01
        %v2695 = vmul.f32 %v2623, 0.01
        %v2696 = vmul.f32 %v2626, 0.01
        %v2697 = vmul.f32 %v2631, 0.01
        %v2698 = vmul.f32 %v2634, 0.01
        %v2699 = vmul.f32 %v2639, 0.01
        %v2700 = vmul.f32 %v2642, 0.01
        %v2701 = vmul.f32 %v2647, 0.01
        %v2702 = vmul.f32 %v2650, 0.01
        %v2703 = vmul.f32 %v2655, 0.01
        %v2704 = vmul.f32 %v2658, 0.01
        %v2705 = vmul.f32 %v2663, 0.01
        %v2706 = vmul.f32 %v2666, 0.01
        %v2707 = vmul.f32 %v2671, 0.01
        %v2708 = vmul.f32 %v2674, 0.01
        %v2709 = vsel %vm2677, %v2615, %v2693
        %v2710 = vsel %vm2678, %v2618, %v2694
        %v2711 = vsel %vm2679, %v2623, %v2695
        %v2712 = vsel %vm2680, %v2626, %v2696
        %v2713 = vsel %vm2681, %v2631, %v2697
        %v2714 = vsel %vm2682, %v2634, %v2698
        %v2715 = vsel %vm2683, %v2639, %v2699
        %v2716 = vsel %vm2684, %v2642, %v2700
        %v2717 = vsel %vm2685, %v2647, %v2701
        %v2718 = vsel %vm2686, %v2650, %v2702
        %v2719 = vsel %vm2687, %v2655, %v2703
        %v2720 = vsel %vm2688, %v2658, %v2704
        %v2721 = vsel %vm2689, %v2663, %v2705
        %v2722 = vsel %vm2690, %v2666, %v2706
        %v2723 = vsel %vm2691, %v2671, %v2707
        %v2724 = vsel %vm2692, %v2674, %v2708
        %v2725 = vld [vmem:[%s3] sm:$0xff]
        %v2726 = vld [vmem:[%s3 + $0x8] sm:$0xff]
        %v2727 = vld [vmem:[%s3 + $0x10] sm:$0xff]
        %v2728 = vld [vmem:[%s3 + $0x18] sm:$0xff]
        %v2729 = vld [vmem:[%s3 + $0x20] sm:$0xff]
        %v2730 = vld [vmem:[%s3 + $0x28] sm:$0xff]
        %v2731 = vld [vmem:[%s3 + $0x30] sm:$0xff]
        %v2732 = vld [vmem:[%s3 + $0x38] sm:$0xff]
        %v2733 = vld [vmem:[%s3 + $0x40] sm:$0xff]
        %v2734 = vld [vmem:[%s3 + $0x48] sm:$0xff]
        %v2735 = vld [vmem:[%s3 + $0x50] sm:$0xff]
        %v2736 = vld [vmem:[%s3 + $0x58] sm:$0xff]
        %v2737 = vld [vmem:[%s3 + $0x60] sm:$0xff]
        %v2738 = vld [vmem:[%s3 + $0x68] sm:$0xff]
        %v2739 = vld [vmem:[%s3 + $0x70] sm:$0xff]
        %v2740 = vld [vmem:[%s3 + $0x78] sm:$0xff]
        %vm2741 = vcmp.lt.s32.totalorder %v2725, 8
        %vm2742 = vcmp.lt.s32.totalorder %v2726, 8
        %vm2743 = vcmp.lt.s32.totalorder %v2727, 8
        %vm2744 = vcmp.lt.s32.totalorder %v2728, 8
        %vm2745 = vcmp.lt.s32.totalorder %v2729, 8
        %vm2746 = vcmp.lt.s32.totalorder %v2730, 8
        %vm2747 = vcmp.lt.s32.totalorder %v2731, 8
        %vm2748 = vcmp.lt.s32.totalorder %v2732, 8
        %vm2749 = vcmp.lt.s32.totalorder %v2733, 8
        %vm2750 = vcmp.lt.s32.totalorder %v2734, 8
        %vm2751 = vcmp.lt.s32.totalorder %v2735, 8
        %vm2752 = vcmp.lt.s32.totalorder %v2736, 8
        %vm2753 = vcmp.lt.s32.totalorder %v2737, 8
        %vm2754 = vcmp.lt.s32.totalorder %v2738, 8
        %vm2755 = vcmp.lt.s32.totalorder %v2739, 8
        %vm2756 = vcmp.lt.s32.totalorder %v2740, 8
        %v2757 = vsel %vm2741, 1, 0
        %v2758 = vsel %vm2742, 1, 0
        %v2759 = vsel %vm2743, 1, 0
        %v2760 = vsel %vm2744, 1, 0
        %v2761 = vsel %vm2745, 1, 0
        %v2762 = vsel %vm2746, 1, 0
        %v2763 = vsel %vm2747, 1, 0
        %v2764 = vsel %vm2748, 1, 0
        %v2765 = vsel %vm2749, 1, 0
        %v2766 = vsel %vm2750, 1, 0
        %v2767 = vsel %vm2751, 1, 0
        %v2768 = vsel %vm2752, 1, 0
        %v2769 = vsel %vm2753, 1, 0
        %v2770 = vsel %vm2754, 1, 0
        %v2771 = vsel %vm2755, 1, 0
        %v2772 = vsel %vm2756, 1, 0
        %2773 = vset.pattern.permute.xlu0 0
        %2774 = vperm.xlu0 %2773, %v2757
        %v2775 = vpop.permute.xlu0 %2774
        %2776 = vset.pattern.permute.xlu0 0
        %2777 = vperm.xlu0 %2776, %v2758
        %v2778 = vpop.permute.xlu0 %2777
        %2779 = vset.pattern.permute.xlu0 0
        %2780 = vperm.xlu0 %2779, %v2759
        %v2781 = vpop.permute.xlu0 %2780
        %2782 = vset.pattern.permute.xlu0 0
        %2783 = vperm.xlu0 %2782, %v2760
        %v2784 = vpop.permute.xlu0 %2783
        %2785 = vset.pattern.permute.xlu0 0
        %2786 = vperm.xlu0 %2785, %v2761
        %v2787 = vpop.permute.xlu0 %2786
        %2788 = vset.pattern.permute.xlu0 0
        %2789 = vperm.xlu0 %2788, %v2762
        %v2790 = vpop.permute.xlu0 %2789
        %2791 = vset.pattern.permute.xlu0 0
        %2792 = vperm.xlu0 %2791, %v2763
        %v2793 = vpop.permute.xlu0 %2792
        %2794 = vset.pattern.permute.xlu0 0
        %2795 = vperm.xlu0 %2794, %v2764
        %v2796 = vpop.permute.xlu0 %2795
        %2797 = vset.pattern.permute.xlu0 0
        %2798 = vperm.xlu0 %2797, %v2765
        %v2799 = vpop.permute.xlu0 %2798
        %2800 = vset.pattern.permute.xlu0 0
        %2801 = vperm.xlu0 %2800, %v2766
        %v2802 = vpop.permute.xlu0 %2801
        %2803 = vset.pattern.permute.xlu0 0
        %2804 = vperm.xlu0 %2803, %v2767
        %v2805 = vpop.permute.xlu0 %2804
        %2806 = vset.pattern.permute.xlu0 0
        %2807 = vperm.xlu0 %2806, %v2768
        %v2808 = vpop.permute.xlu0 %2807
        %2809 = vset.pattern.permute.xlu0 0
        %2810 = vperm.xlu0 %2809, %v2769
        %v2811 = vpop.permute.xlu0 %2810
        %2812 = vset.pattern.permute.xlu0 0
        %2813 = vperm.xlu0 %2812, %v2770
        %v2814 = vpop.permute.xlu0 %2813
        %2815 = vset.pattern.permute.xlu0 0
        %2816 = vperm.xlu0 %2815, %v2771
        %v2817 = vpop.permute.xlu0 %2816
        %2818 = vset.pattern.permute.xlu0 0
        %2819 = vperm.xlu0 %2818, %v2772
        %v2820 = vpop.permute.xlu0 %2819
        %vm2821 = vcmp.eq.s32.totalorder %v2775, 1
        %vm2822 = vcmp.eq.s32.totalorder %v2778, 1
        %vm2823 = vcmp.eq.s32.totalorder %v2781, 1
        %vm2824 = vcmp.eq.s32.totalorder %v2784, 1
        %vm2825 = vcmp.eq.s32.totalorder %v2787, 1
        %vm2826 = vcmp.eq.s32.totalorder %v2790, 1
        %vm2827 = vcmp.eq.s32.totalorder %v2793, 1
        %vm2828 = vcmp.eq.s32.totalorder %v2796, 1
        %vm2829 = vcmp.eq.s32.totalorder %v2799, 1
        %vm2830 = vcmp.eq.s32.totalorder %v2802, 1
        %vm2831 = vcmp.eq.s32.totalorder %v2805, 1
        %vm2832 = vcmp.eq.s32.totalorder %v2808, 1
        %vm2833 = vcmp.eq.s32.totalorder %v2811, 1
        %vm2834 = vcmp.eq.s32.totalorder %v2814, 1
        %vm2835 = vcmp.eq.s32.totalorder %v2817, 1
        %vm2836 = vcmp.eq.s32.totalorder %v2820, 1
        %v2837 = vsel %vm2821, %v2709, 0.0
        %v2838 = vsel %vm2822, %v2710, 0.0
        %v2839 = vsel %vm2823, %v2711, 0.0
        %v2840 = vsel %vm2824, %v2712, 0.0
        %v2841 = vsel %vm2825, %v2713, 0.0
        %v2842 = vsel %vm2826, %v2714, 0.0
        %v2843 = vsel %vm2827, %v2715, 0.0
        %v2844 = vsel %vm2828, %v2716, 0.0
        %v2845 = vsel %vm2829, %v2717, 0.0
        %v2846 = vsel %vm2830, %v2718, 0.0
        %v2847 = vsel %vm2831, %v2719, 0.0
        %v2848 = vsel %vm2832, %v2720, 0.0
        %v2849 = vsel %vm2833, %v2721, 0.0
        %v2850 = vsel %vm2834, %v2722, 0.0
        %v2851 = vsel %vm2835, %v2723, 0.0
        %v2852 = vsel %vm2836, %v2724, 0.0
        %2853 = vst [vmem:[#allocation4] sm:$0xff] 0.0
        %2854 = vst [vmem:[#allocation4 + $0x8] sm:$0xff] 0.0
        %2855 = vst [vmem:[#allocation4 + $0x10] sm:$0xff] 0.0
        %2856 = vst [vmem:[#allocation4 + $0x18] sm:$0xff] 0.0
        %2857 = vst [vmem:[#allocation4 + $0x20] sm:$0x3] 0.0
        %2858 = vst [vmem:[#allocation4 + $0x22] sm:$0xff] %v2837
        %2859 = vst [vmem:[#allocation4 + $0x2a] sm:$0xff] %v2838
        %2860 = vst [vmem:[#allocation4 + $0x32] sm:$0xff] %v2839
        %2861 = vst [vmem:[#allocation4 + $0x3a] sm:$0xff] %v2840
        %2862 = vst [vmem:[#allocation4 + $0x42] sm:$0xff] %v2841
        %2863 = vst [vmem:[#allocation4 + $0x4a] sm:$0xff] %v2842
        %2864 = vst [vmem:[#allocation4 + $0x52] sm:$0xff] %v2843
        %2865 = vst [vmem:[#allocation4 + $0x5a] sm:$0xff] %v2844
        %2866 = vst [vmem:[#allocation4 + $0x62] sm:$0xff] %v2845
        %2867 = vst [vmem:[#allocation4 + $0x6a] sm:$0xff] %v2846
        %2868 = vst [vmem:[#allocation4 + $0x72] sm:$0xff] %v2847
        %2869 = vst [vmem:[#allocation4 + $0x7a] sm:$0xff] %v2848
        %2870 = vst [vmem:[#allocation4 + $0x82] sm:$0xff] %v2849
        %2871 = vst [vmem:[#allocation4 + $0x8a] sm:$0xff] %v2850
        %2872 = vst [vmem:[#allocation4 + $0x92] sm:$0xff] %v2851
        %2873 = vst [vmem:[#allocation4 + $0x9a] sm:$0xff] %v2852
        %2874 = vst [vmem:[#allocation4 + $0xa0] sm:$0xff] 0.0
        %2875 = vst [vmem:[#allocation4 + $0xa8] sm:$0xff] 0.0
        %2876 = vst [vmem:[#allocation4 + $0xb0] sm:$0xff] 0.0
        %2877 = vst [vmem:[#allocation4 + $0xb8] sm:$0xff] 0.0
        %2878 = vst [vmem:[#allocation4 + $0xc0] sm:$0x3] 0.0
        %v2879 = vld [vmem:[#allocation4] sm:$0xff]
        %v2880 = vld [vmem:[#allocation4 + $0x8] sm:$0xff]
        %v2881 = vld [vmem:[#allocation4 + $0x10] sm:$0xff]
        %v2882 = vld [vmem:[#allocation4 + $0x18] sm:$0xff]
        %v2883 = vld [vmem:[#allocation4 + $0x20] sm:$0xff]
        %v2884 = vld [vmem:[#allocation4 + $0x28] sm:$0xff]
        %v2885 = vld [vmem:[#allocation4 + $0x30] sm:$0xff]
        %v2886 = vld [vmem:[#allocation4 + $0x38] sm:$0xff]
        %v2887 = vld [vmem:[#allocation4 + $0x40] sm:$0xff]
        %v2888 = vld [vmem:[#allocation4 + $0x48] sm:$0xff]
        %v2889 = vld [vmem:[#allocation4 + $0x50] sm:$0xff]
        %v2890 = vld [vmem:[#allocation4 + $0x58] sm:$0xff]
        %v2891 = vld [vmem:[#allocation4 + $0x60] sm:$0xff]
        %v2892 = vld [vmem:[#allocation4 + $0x68] sm:$0xff]
        %v2893 = vld [vmem:[#allocation4 + $0x70] sm:$0xff]
        %v2894 = vld [vmem:[#allocation4 + $0x78] sm:$0xff]
        %v2895 = vld [vmem:[#allocation4 + $0x80] sm:$0xff]
        %v2896 = vld [vmem:[#allocation4 + $0x88] sm:$0xff]
        %v2897 = vld [vmem:[#allocation4 + $0x90] sm:$0xff]
        %v2898 = vld [vmem:[#allocation4 + $0x98] sm:$0xff]
        %v2899 = vld [vmem:[#allocation4 + $0x1] sm:$0xff]
        %v2900 = vld [vmem:[#allocation4 + $0x9] sm:$0xff]
        %v2901 = vld [vmem:[#allocation4 + $0x11] sm:$0xff]
        %v2902 = vld [vmem:[#allocation4 + $0x19] sm:$0xff]
        %v2903 = vld [vmem:[#allocation4 + $0x21] sm:$0xff]
        %v2904 = vld [vmem:[#allocation4 + $0x29] sm:$0xff]
        %v2905 = vld [vmem:[#allocation4 + $0x31] sm:$0xff]
        %v2906 = vld [vmem:[#allocation4 + $0x39] sm:$0xff]
        %v2907 = vld [vmem:[#allocation4 + $0x41] sm:$0xff]
        %v2908 = vld [vmem:[#allocation4 + $0x49] sm:$0xff]
        %v2909 = vld [vmem:[#allocation4 + $0x51] sm:$0xff]
        %v2910 = vld [vmem:[#allocation4 + $0x59] sm:$0xff]
        %v2911 = vld [vmem:[#allocation4 + $0x61] sm:$0xff]
        %v2912 = vld [vmem:[#allocation4 + $0x69] sm:$0xff]
        %v2913 = vld [vmem:[#allocation4 + $0x71] sm:$0xff]
        %v2914 = vld [vmem:[#allocation4 + $0x79] sm:$0xff]
        %v2915 = vld [vmem:[#allocation4 + $0x81] sm:$0xff]
        %v2916 = vld [vmem:[#allocation4 + $0x89] sm:$0xff]
        %v2917 = vld [vmem:[#allocation4 + $0x91] sm:$0xff]
        %v2918 = vld [vmem:[#allocation4 + $0x99] sm:$0xff]
        %v2919 = vld [vmem:[#allocation4 + $0x2] sm:$0xff]
        %v2920 = vld [vmem:[#allocation4 + $0xa] sm:$0xff]
        %v2921 = vld [vmem:[#allocation4 + $0x12] sm:$0xff]
        %v2922 = vld [vmem:[#allocation4 + $0x1a] sm:$0xff]
        %v2923 = vld [vmem:[#allocation4 + $0x22] sm:$0xff]
        %v2924 = vld [vmem:[#allocation4 + $0x2a] sm:$0xff]
        %v2925 = vld [vmem:[#allocation4 + $0x32] sm:$0xff]
        %v2926 = vld [vmem:[#allocation4 + $0x3a] sm:$0xff]
        %v2927 = vld [vmem:[#allocation4 + $0x42] sm:$0xff]
        %v2928 = vld [vmem:[#allocation4 + $0x4a] sm:$0xff]
        %v2929 = vld [vmem:[#allocation4 + $0x52] sm:$0xff]
        %v2930 = vld [vmem:[#allocation4 + $0x5a] sm:$0xff]
        %v2931 = vld [vmem:[#allocation4 + $0x62] sm:$0xff]
        %v2932 = vld [vmem:[#allocation4 + $0x6a] sm:$0xff]
        %v2933 = vld [vmem:[#allocation4 + $0x72] sm:$0xff]
        %v2934 = vld [vmem:[#allocation4 + $0x7a] sm:$0xff]
        %v2935 = vld [vmem:[#allocation4 + $0x82] sm:$0xff]
        %v2936 = vld [vmem:[#allocation4 + $0x8a] sm:$0xff]
        %v2937 = vld [vmem:[#allocation4 + $0x92] sm:$0xff]
        %v2938 = vld [vmem:[#allocation4 + $0x9a] sm:$0xff]
        %v2939 = vld [vmem:[#allocation4 + $0xa0] sm:$0xff]
        %v2940 = vld [vmem:[#allocation4 + $0xa8] sm:$0xff]
        %v2941 = vld [vmem:[#allocation4 + $0xa1] sm:$0xff]
        %v2942 = vld [vmem:[#allocation4 + $0xa9] sm:$0xff]
        %v2943 = vld [vmem:[#allocation4 + $0xa2] sm:$0xff]
        %v2944 = vld [vmem:[#allocation4 + $0xaa] sm:$0xff]
        %v2945 = vld [vmem:[#allocation4 + $0xb0] sm:$0xff]
        %v2946 = vld [vmem:[#allocation4 + $0xb8] sm:$0xff]
        %v2947 = vld [vmem:[#allocation4 + $0xb1] sm:$0xff]
        %v2948 = vld [vmem:[#allocation4 + $0xb9] sm:$0xff]
        %v2949 = vld [vmem:[#allocation4 + $0x22] sm:$0xff]
        %v2950 = vld [vmem:[#allocation4 + $0x2a] sm:$0xff]
        %v2951 = vld [vmem:[#allocation4 + $0x32] sm:$0xff]
        %v2952 = vld [vmem:[#allocation4 + $0x3a] sm:$0xff]
        %v2953 = vld [vmem:[#allocation4 + $0x42] sm:$0xff]
        %v2954 = vld [vmem:[#allocation4 + $0x4a] sm:$0xff]
        %v2955 = vld [vmem:[#allocation4 + $0x52] sm:$0xff]
        %v2956 = vld [vmem:[#allocation4 + $0x5a] sm:$0xff]
        %v2957 = vld [vmem:[#allocation4 + $0x62] sm:$0xff]
        %v2958 = vld [vmem:[#allocation4 + $0x6a] sm:$0xff]
        %v2959 = vld [vmem:[#allocation4 + $0x72] sm:$0xff]
        %v2960 = vld [vmem:[#allocation4 + $0x7a] sm:$0xff]
        %v2961 = vld [vmem:[#allocation4 + $0x82] sm:$0xff]
        %v2962 = vld [vmem:[#allocation4 + $0x8a] sm:$0xff]
        %v2963 = vld [vmem:[#allocation4 + $0x92] sm:$0xff]
        %v2964 = vld [vmem:[#allocation4 + $0x9a] sm:$0xff]
        %v2965 = vld [vmem:[#allocation4 + $0xa2] sm:$0xff]
        %v2966 = vld [vmem:[#allocation4 + $0xaa] sm:$0xff]
        %v2967 = vld [vmem:[#allocation4 + $0xb2] sm:$0xff]
        %v2968 = vld [vmem:[#allocation4 + $0xba] sm:$0xff]
        %v2969 = vpack.c.bf16 %v2880, %v2879
        %v2970 = vpack.c.bf16 %v2900, %v2899
        %v2971 = vpack.c.bf16 %v2920, %v2919
        %v2972 = vpack.c.bf16 %v2882, %v2881
        %v2973 = vpack.c.bf16 %v2902, %v2901
        %v2974 = vpack.c.bf16 %v2922, %v2921
        %v2975 = vpack.c.bf16 %v2884, %v2883
        %v2976 = vpack.c.bf16 %v2904, %v2903
        %v2977 = vpack.c.bf16 %v2950, %v2949
        %v2978 = vpack.c.bf16 %v2924, %v2923
        %v2979 = vpack.c.bf16 %v2886, %v2885
        %v2980 = vpack.c.bf16 %v2906, %v2905
        %v2981 = vpack.c.bf16 %v2952, %v2951
        %v2982 = vpack.c.bf16 %v2926, %v2925
        %v2983 = vpack.c.bf16 %v2888, %v2887
        %v2984 = vpack.c.bf16 %v2908, %v2907
        %v2985 = vpack.c.bf16 %v2954, %v2953
        %v2986 = vpack.c.bf16 %v2928, %v2927
        %v2987 = vpack.c.bf16 %v2890, %v2889
        %v2988 = vpack.c.bf16 %v2910, %v2909
        %v2989 = vpack.c.bf16 %v2956, %v2955
        %v2990 = vpack.c.bf16 %v2930, %v2929
        %v2991 = vpack.c.bf16 %v2892, %v2891
        %v2992 = vpack.c.bf16 %v2912, %v2911
        %v2993 = vpack.c.bf16 %v2958, %v2957
        %v2994 = vpack.c.bf16 %v2932, %v2931
        %v2995 = vpack.c.bf16 %v2894, %v2893
        %v2996 = vpack.c.bf16 %v2914, %v2913
        %v2997 = vpack.c.bf16 %v2960, %v2959
        %v2998 = vpack.c.bf16 %v2934, %v2933
        %v2999 = vpack.c.bf16 %v2896, %v2895
        %v3000 = vpack.c.bf16 %v2916, %v2915
        %v3001 = vpack.c.bf16 %v2962, %v2961
        %v3002 = vpack.c.bf16 %v2936, %v2935
        %v3003 = vpack.c.bf16 %v2898, %v2897
        %v3004 = vpack.c.bf16 %v2918, %v2917
        %v3005 = vpack.c.bf16 %v2964, %v2963
        %v3006 = vpack.c.bf16 %v2938, %v2937
        %v3007 = vpack.c.bf16 %v2940, %v2939
        %v3008 = vpack.c.bf16 %v2942, %v2941
        %v3009 = vpack.c.bf16 %v2966, %v2965
        %v3010 = vpack.c.bf16 %v2944, %v2943
        %v3011 = vpack.c.bf16 %v2946, %v2945
        %v3012 = vpack.c.bf16 %v2948, %v2947
        %v3013 = vpack.c.bf16 %v2968, %v2967
        %v3014 = vld [vmem:[#allocation10 + $0x480] sm:$0xf]
        %v3015 = vld [vmem:[#allocation10 + $0x484] sm:$0xf]
        %v3016 = vld [vmem:[#allocation10 + $0x488] sm:$0xf]
        %v3017 = vld [vmem:[#allocation10 + $0x48c] sm:$0xf]
        %v3018 = vld [vmem:[#allocation10 + $0x490] sm:$0xf]
        %v3019 = vld [vmem:[#allocation10 + $0x494] sm:$0xf]
        %v3020 = vld [vmem:[#allocation10 + $0x498] sm:$0xf]
        %v3021 = vld [vmem:[#allocation10 + $0x49c] sm:$0xf]
        %v3022 = vld [vmem:[#allocation10 + $0x4a0] sm:$0xf]
        %v3023 = vld [vmem:[#allocation10 + $0x4a4] sm:$0xf]
        %v3024 = vld [vmem:[#allocation10 + $0x4a8] sm:$0xf]
        %v3025 = vld [vmem:[#allocation10 + $0x4ac] sm:$0xf]
        %v3026 = vld [vmem:[#allocation10 + $0x4b0] sm:$0xf]
        %v3027 = vld [vmem:[#allocation10 + $0x4b4] sm:$0xf]
        %v3028 = vld [vmem:[#allocation10 + $0x4b8] sm:$0xf]
        %v3029 = vld [vmem:[#allocation10 + $0x4bc] sm:$0xf]
        %v3030 = vld [vmem:[#allocation10 + $0x4c0] sm:$0xf]
        %v3031 = vld [vmem:[#allocation10 + $0x4c4] sm:$0xf]
        %v3032 = vld [vmem:[#allocation10 + $0x4c8] sm:$0xf]
        %v3033 = vld [vmem:[#allocation10 + $0x4cc] sm:$0xf]
        %v3034 = vld [vmem:[#allocation10 + $0x4d0] sm:$0xf]
        %v3035 = vld [vmem:[#allocation10 + $0x4d4] sm:$0xf]
        %v3036 = vld [vmem:[#allocation10 + $0x4d8] sm:$0xf]
        %v3037 = vld [vmem:[#allocation10 + $0x4dc] sm:$0xf]
        %v3038 = vld [vmem:[#allocation10 + $0x4e0] sm:$0xf]
        %v3039 = vld [vmem:[#allocation10 + $0x4e4] sm:$0xf]
        %v3040 = vld [vmem:[#allocation10 + $0x4e8] sm:$0xf]
        %v3041 = vld [vmem:[#allocation10 + $0x4ec] sm:$0xf]
        %v3042 = vld [vmem:[#allocation10 + $0x4f0] sm:$0xf]
        %v3043 = vld [vmem:[#allocation10 + $0x4f4] sm:$0xf]
        %v3044 = vld [vmem:[#allocation10 + $0x4f8] sm:$0xf]
        %v3045 = vld [vmem:[#allocation10 + $0x4fc] sm:$0xf]
        %v3046 = vld [vmem:[#allocation10 + $0x500] sm:$0xf]
        %v3047 = vld [vmem:[#allocation10 + $0x504] sm:$0xf]
        %v3048 = vld [vmem:[#allocation10 + $0x508] sm:$0xf]
        %v3049 = vld [vmem:[#allocation10 + $0x50c] sm:$0xf]
        %v3050 = vld [vmem:[#allocation10 + $0x510] sm:$0xf]
        %v3051 = vld [vmem:[#allocation10 + $0x514] sm:$0xf]
        %v3052 = vld [vmem:[#allocation10 + $0x518] sm:$0xf]
        %v3053 = vld [vmem:[#allocation10 + $0x51c] sm:$0xf]
        %v3054 = vld [vmem:[#allocation10 + $0x520] sm:$0xf]
        %v3055 = vld [vmem:[#allocation10 + $0x524] sm:$0xf]
        %v3056 = vld [vmem:[#allocation10 + $0x528] sm:$0xf]
        %v3057 = vld [vmem:[#allocation10 + $0x52c] sm:$0xf]
        %v3058 = vld [vmem:[#allocation10 + $0x530] sm:$0xf]
        %v3059 = vld [vmem:[#allocation10 + $0x534] sm:$0xf]
        %v3060 = vld [vmem:[#allocation10 + $0x538] sm:$0xf]
        %v3061 = vld [vmem:[#allocation10 + $0x53c] sm:$0xf]
        %v3062 = vld [vmem:[#allocation10 + $0x540] sm:$0xf]
        %v3063 = vld [vmem:[#allocation10 + $0x544] sm:$0xf]
        %v3064 = vld [vmem:[#allocation10 + $0x548] sm:$0xf]
        %v3065 = vld [vmem:[#allocation10 + $0x54c] sm:$0xf]
        %v3066 = vld [vmem:[#allocation10 + $0x550] sm:$0xf]
        %v3067 = vld [vmem:[#allocation10 + $0x554] sm:$0xf]
        %v3068 = vld [vmem:[#allocation10 + $0x558] sm:$0xf]
        %v3069 = vld [vmem:[#allocation10 + $0x55c] sm:$0xf]
        %v3070 = vld [vmem:[#allocation10 + $0x560] sm:$0xf]
        %v3071 = vld [vmem:[#allocation10 + $0x564] sm:$0xf]
        %v3072 = vld [vmem:[#allocation10 + $0x568] sm:$0xf]
        %v3073 = vld [vmem:[#allocation10 + $0x56c] sm:$0xf]
        %v3074 = vld [vmem:[#allocation10 + $0x570] sm:$0xf]
        %v3075 = vld [vmem:[#allocation10 + $0x574] sm:$0xf]
        %v3076 = vld [vmem:[#allocation10 + $0x578] sm:$0xf]
        %v3077 = vld [vmem:[#allocation10 + $0x57c] sm:$0xf]
        %v3078 = vld [vmem:[#allocation10 + $0x580] sm:$0xf]
        %v3079 = vld [vmem:[#allocation10 + $0x584] sm:$0xf]
        %v3080 = vld [vmem:[#allocation10 + $0x588] sm:$0xf]
        %v3081 = vld [vmem:[#allocation10 + $0x58c] sm:$0xf]
        %v3082 = vld [vmem:[#allocation10 + $0x590] sm:$0xf]
        %v3083 = vld [vmem:[#allocation10 + $0x594] sm:$0xf]
        %v3084 = vld [vmem:[#allocation10 + $0x598] sm:$0xf]
        %v3085 = vld [vmem:[#allocation10 + $0x59c] sm:$0xf]
        %v3086 = vld [vmem:[#allocation10 + $0x5a0] sm:$0xf]
        %v3087 = vld [vmem:[#allocation10 + $0x5a4] sm:$0xf]
        %v3088 = vld [vmem:[#allocation10 + $0x5a8] sm:$0xf]
        %v3089 = vld [vmem:[#allocation10 + $0x5ac] sm:$0xf]
        %v3090 = vld [vmem:[#allocation10 + $0x5b0] sm:$0xf]
        %v3091 = vld [vmem:[#allocation10 + $0x5b4] sm:$0xf]
        %v3092 = vld [vmem:[#allocation10 + $0x5b8] sm:$0xf]
        %v3093 = vld [vmem:[#allocation10 + $0x5bc] sm:$0xf]
        %v3094 = vld [vmem:[#allocation10 + $0x5c0] sm:$0xf]
        %v3095 = vld [vmem:[#allocation10 + $0x5c4] sm:$0xf]
        %v3096 = vld [vmem:[#allocation10 + $0x5c8] sm:$0xf]
        %v3097 = vld [vmem:[#allocation10 + $0x5cc] sm:$0xf]
        %v3098 = vld [vmem:[#allocation10 + $0x5d0] sm:$0xf]
        %v3099 = vld [vmem:[#allocation10 + $0x5d4] sm:$0xf]
        %v3100 = vld [vmem:[#allocation10 + $0x5d8] sm:$0xf]
        %v3101 = vld [vmem:[#allocation10 + $0x5dc] sm:$0xf]
        %v3102 = vld [vmem:[#allocation10 + $0x5e0] sm:$0xf]
        %v3103 = vld [vmem:[#allocation10 + $0x5e4] sm:$0xf]
        %v3104 = vld [vmem:[#allocation10 + $0x5e8] sm:$0xf]
        %v3105 = vld [vmem:[#allocation10 + $0x5ec] sm:$0xf]
        %v3106 = vld [vmem:[#allocation10 + $0x5f0] sm:$0xf]
        %v3107 = vld [vmem:[#allocation10 + $0x5f4] sm:$0xf]
        %v3108 = vld [vmem:[#allocation10 + $0x5f8] sm:$0xf]
        %v3109 = vld [vmem:[#allocation10 + $0x5fc] sm:$0xf]
        %v3110 = vld [vmem:[#allocation10 + $0x600] sm:$0xf]
        %v3111 = vld [vmem:[#allocation10 + $0x604] sm:$0xf]
        %v3112 = vld [vmem:[#allocation10 + $0x608] sm:$0xf]
        %v3113 = vld [vmem:[#allocation10 + $0x60c] sm:$0xf]
        %v3114 = vld [vmem:[#allocation10 + $0x610] sm:$0xf]
        %v3115 = vld [vmem:[#allocation10 + $0x614] sm:$0xf]
        %v3116 = vld [vmem:[#allocation10 + $0x618] sm:$0xf]
        %v3117 = vld [vmem:[#allocation10 + $0x61c] sm:$0xf]
        %v3118 = vld [vmem:[#allocation10 + $0x620] sm:$0xf]
        %v3119 = vld [vmem:[#allocation10 + $0x624] sm:$0xf]
        %v3120 = vld [vmem:[#allocation10 + $0x628] sm:$0xf]
        %v3121 = vld [vmem:[#allocation10 + $0x62c] sm:$0xf]
        %v3122 = vld [vmem:[#allocation10 + $0x630] sm:$0xf]
        %v3123 = vld [vmem:[#allocation10 + $0x634] sm:$0xf]
        %v3124 = vld [vmem:[#allocation10 + $0x638] sm:$0xf]
        %v3125 = vld [vmem:[#allocation10 + $0x63c] sm:$0xf]
        %v3126 = vld [vmem:[#allocation10 + $0x640] sm:$0xf]
        %v3127 = vld [vmem:[#allocation10 + $0x644] sm:$0xf]
        %v3128 = vld [vmem:[#allocation10 + $0x648] sm:$0xf]
        %v3129 = vld [vmem:[#allocation10 + $0x64c] sm:$0xf]
        %v3130 = vld [vmem:[#allocation10 + $0x650] sm:$0xf]
        %v3131 = vld [vmem:[#allocation10 + $0x654] sm:$0xf]
        %v3132 = vld [vmem:[#allocation10 + $0x658] sm:$0xf]
        %v3133 = vld [vmem:[#allocation10 + $0x65c] sm:$0xf]
        %v3134 = vld [vmem:[#allocation10 + $0x660] sm:$0xf]
        %v3135 = vld [vmem:[#allocation10 + $0x664] sm:$0xf]
        %v3136 = vld [vmem:[#allocation10 + $0x668] sm:$0xf]
        %v3137 = vld [vmem:[#allocation10 + $0x66c] sm:$0xf]
        %v3138 = vld [vmem:[#allocation10 + $0x670] sm:$0xf]
        %v3139 = vld [vmem:[#allocation10 + $0x674] sm:$0xf]
        %v3140 = vld [vmem:[#allocation10 + $0x678] sm:$0xf]
        %v3141 = vld [vmem:[#allocation10 + $0x67c] sm:$0xf]
        %v3142 = vld [vmem:[#allocation10 + $0x680] sm:$0xf]
        %v3143 = vld [vmem:[#allocation10 + $0x684] sm:$0xf]
        %v3144 = vld [vmem:[#allocation10 + $0x688] sm:$0xf]
        %v3145 = vld [vmem:[#allocation10 + $0x68c] sm:$0xf]
        %v3146 = vld [vmem:[#allocation10 + $0x690] sm:$0xf]
        %v3147 = vld [vmem:[#allocation10 + $0x694] sm:$0xf]
        %v3148 = vld [vmem:[#allocation10 + $0x698] sm:$0xf]
        %v3149 = vld [vmem:[#allocation10 + $0x69c] sm:$0xf]
        %v3150 = vld [vmem:[#allocation10 + $0x6a0] sm:$0xf]
        %v3151 = vld [vmem:[#allocation10 + $0x6a4] sm:$0xf]
        %v3152 = vld [vmem:[#allocation10 + $0x6a8] sm:$0xf]
        %v3153 = vld [vmem:[#allocation10 + $0x6ac] sm:$0xf]
        %v3154 = vld [vmem:[#allocation10 + $0x6b0] sm:$0xf]
        %v3155 = vld [vmem:[#allocation10 + $0x6b4] sm:$0xf]
        %v3156 = vld [vmem:[#allocation10 + $0x6b8] sm:$0xf]
        %v3157 = vld [vmem:[#allocation10 + $0x6bc] sm:$0xf]
        %v3158 = vld [vmem:[#allocation12 + $0x2] sm:$0x1]
        %v3159 = vlaneseq
        %v3160 = vshrl.u32 %v3159, 7
        %v3161 = vsub.s32 0, %v3160
        %v3162 = vrot.slane %v3158, %v3161
        %v3307 = vunpack.c.l.b16 %v3014
        %v3308 = vunpack.c.l.b16 %v3015
        %v3309 = vunpack.c.l.b16 %v3016
        %v3310 = vunpack.c.l.b16 %v3017
        %v3311 = vunpack.c.l.b16 %v3018
        %v3312 = vunpack.c.l.b16 %v3019
        %v3313 = vunpack.c.l.b16 %v3020
        %v3314 = vunpack.c.l.b16 %v3021
        %v3315 = vunpack.c.l.b16 %v3022
        %v3316 = vunpack.c.l.b16 %v3023
        %v3317 = vunpack.c.l.b16 %v3024
        %v3318 = vunpack.c.l.b16 %v3025
        %v3319 = vunpack.c.l.b16 %v3026
        %v3320 = vunpack.c.l.b16 %v3027
        %v3321 = vunpack.c.l.b16 %v3028
        %v3322 = vunpack.c.l.b16 %v3029
        %v3323 = vunpack.c.l.b16 %v3030
        %v3324 = vunpack.c.l.b16 %v3031
        %v3325 = vunpack.c.l.b16 %v3032
        %v3326 = vunpack.c.l.b16 %v3033
        %v3327 = vunpack.c.l.b16 %v3034
        %v3328 = vunpack.c.l.b16 %v3035
        %v3329 = vunpack.c.l.b16 %v3036
        %v3330 = vunpack.c.l.b16 %v3037
        %v3331 = vunpack.c.l.b16 %v3038
        %v3332 = vunpack.c.l.b16 %v3039
        %v3333 = vunpack.c.l.b16 %v3040
        %v3334 = vunpack.c.l.b16 %v3041
        %v3335 = vunpack.c.l.b16 %v3042
        %v3336 = vunpack.c.l.b16 %v3043
        %v3337 = vunpack.c.l.b16 %v3044
        %v3338 = vunpack.c.l.b16 %v3045
        %v3339 = vunpack.c.l.b16 %v3046
        %v3340 = vunpack.c.l.b16 %v3047
        %v3341 = vunpack.c.l.b16 %v3048
        %v3342 = vunpack.c.l.b16 %v3049
        %v3343 = vunpack.c.l.b16 %v3050
        %v3344 = vunpack.c.l.b16 %v3051
        %v3345 = vunpack.c.l.b16 %v3052
        %v3346 = vunpack.c.l.b16 %v3053
        %v3347 = vunpack.c.l.b16 %v3054
        %v3348 = vunpack.c.l.b16 %v3055
        %v3349 = vunpack.c.l.b16 %v3056
        %v3350 = vunpack.c.l.b16 %v3057
        %v3351 = vunpack.c.l.b16 %v3058
        %v3352 = vunpack.c.l.b16 %v3059
        %v3353 = vunpack.c.l.b16 %v3060
        %v3354 = vunpack.c.l.b16 %v3061
        %v3355 = vunpack.c.l.b16 %v3062
        %v3356 = vunpack.c.l.b16 %v3063
        %v3357 = vunpack.c.l.b16 %v3064
        %v3358 = vunpack.c.l.b16 %v3065
        %v3359 = vunpack.c.l.b16 %v3066
        %v3360 = vunpack.c.l.b16 %v3067
        %v3361 = vunpack.c.l.b16 %v3068
        %v3362 = vunpack.c.l.b16 %v3069
        %v3363 = vunpack.c.l.b16 %v3070
        %v3364 = vunpack.c.l.b16 %v3071
        %v3365 = vunpack.c.l.b16 %v3072
        %v3366 = vunpack.c.l.b16 %v3073
        %v3367 = vunpack.c.l.b16 %v3074
        %v3368 = vunpack.c.l.b16 %v3075
        %v3369 = vunpack.c.l.b16 %v3076
        %v3370 = vunpack.c.l.b16 %v3077
        %v3371 = vunpack.c.l.b16 %v3078
        %v3372 = vunpack.c.l.b16 %v3079
        %v3373 = vunpack.c.l.b16 %v3080
        %v3374 = vunpack.c.l.b16 %v3081
        %v3375 = vunpack.c.l.b16 %v3082
        %v3376 = vunpack.c.l.b16 %v3083
        %v3377 = vunpack.c.l.b16 %v3084
        %v3378 = vunpack.c.l.b16 %v3085
        %v3379 = vunpack.c.l.b16 %v3086
        %v3380 = vunpack.c.l.b16 %v3087
        %v3381 = vunpack.c.l.b16 %v3088
        %v3382 = vunpack.c.l.b16 %v3089
        %v3383 = vunpack.c.l.b16 %v3090
        %v3384 = vunpack.c.l.b16 %v3091
        %v3385 = vunpack.c.l.b16 %v3092
        %v3386 = vunpack.c.l.b16 %v3093
        %v3387 = vunpack.c.l.b16 %v3094
        %v3388 = vunpack.c.l.b16 %v3095
        %v3389 = vunpack.c.l.b16 %v3096
        %v3390 = vunpack.c.l.b16 %v3097
        %v3391 = vunpack.c.l.b16 %v3098
        %v3392 = vunpack.c.l.b16 %v3099
        %v3393 = vunpack.c.l.b16 %v3100
        %v3394 = vunpack.c.l.b16 %v3101
        %v3395 = vunpack.c.l.b16 %v3102
        %v3396 = vunpack.c.l.b16 %v3103
        %v3397 = vunpack.c.l.b16 %v3104
        %v3398 = vunpack.c.l.b16 %v3105
        %v3399 = vunpack.c.l.b16 %v3106
        %v3400 = vunpack.c.l.b16 %v3107
        %v3401 = vunpack.c.l.b16 %v3108
        %v3402 = vunpack.c.l.b16 %v3109
        %v3403 = vunpack.c.l.b16 %v3110
        %v3404 = vunpack.c.l.b16 %v3111
        %v3405 = vunpack.c.l.b16 %v3112
        %v3406 = vunpack.c.l.b16 %v3113
        %v3407 = vunpack.c.l.b16 %v3114
        %v3408 = vunpack.c.l.b16 %v3115
        %v3409 = vunpack.c.l.b16 %v3116
        %v3410 = vunpack.c.l.b16 %v3117
        %v3411 = vunpack.c.l.b16 %v3118
        %v3412 = vunpack.c.l.b16 %v3119
        %v3413 = vunpack.c.l.b16 %v3120
        %v3414 = vunpack.c.l.b16 %v3121
        %v3415 = vunpack.c.l.b16 %v3122
        %v3416 = vunpack.c.l.b16 %v3123
        %v3417 = vunpack.c.l.b16 %v3124
        %v3418 = vunpack.c.l.b16 %v3125
        %v3419 = vunpack.c.l.b16 %v3126
        %v3420 = vunpack.c.l.b16 %v3127
        %v3421 = vunpack.c.l.b16 %v3128
        %v3422 = vunpack.c.l.b16 %v3129
        %v3423 = vunpack.c.l.b16 %v3130
        %v3424 = vunpack.c.l.b16 %v3131
        %v3425 = vunpack.c.l.b16 %v3132
        %v3426 = vunpack.c.l.b16 %v3133
        %v3427 = vunpack.c.l.b16 %v3134
        %v3428 = vunpack.c.l.b16 %v3135
        %v3429 = vunpack.c.l.b16 %v3136
        %v3430 = vunpack.c.l.b16 %v3137
        %v3431 = vunpack.c.l.b16 %v3138
        %v3432 = vunpack.c.l.b16 %v3139
        %v3433 = vunpack.c.l.b16 %v3140
        %v3434 = vunpack.c.l.b16 %v3141
        %v3435 = vunpack.c.l.b16 %v3142
        %v3436 = vunpack.c.l.b16 %v3143
        %v3437 = vunpack.c.l.b16 %v3144
        %v3438 = vunpack.c.l.b16 %v3145
        %v3439 = vunpack.c.l.b16 %v3146
        %v3440 = vunpack.c.l.b16 %v3147
        %v3441 = vunpack.c.l.b16 %v3148
        %v3442 = vunpack.c.l.b16 %v3149
        %v3443 = vunpack.c.l.b16 %v3150
        %v3444 = vunpack.c.l.b16 %v3151
        %v3445 = vunpack.c.l.b16 %v3152
        %v3446 = vunpack.c.l.b16 %v3153
        %v3447 = vunpack.c.l.b16 %v3154
        %v3448 = vunpack.c.l.b16 %v3155
        %v3449 = vunpack.c.l.b16 %v3156
        %v3450 = vunpack.c.l.b16 %v3157
        %v3451 = vpack.c.b16 %v3308, %v3307
        %v3452 = vpack.c.b16 %v3310, %v3309
        %v3453 = vpack.c.b16 %v3312, %v3311
        %v3454 = vpack.c.b16 %v3314, %v3313
        %v3455 = vpack.c.b16 %v3316, %v3315
        %v3456 = vpack.c.b16 %v3318, %v3317
        %v3457 = vpack.c.b16 %v3320, %v3319
        %v3458 = vpack.c.b16 %v3322, %v3321
        %v3459 = vpack.c.b16 %v3324, %v3323
        %v3460 = vpack.c.b16 %v3326, %v3325
        %v3461 = vpack.c.b16 %v3328, %v3327
        %v3462 = vpack.c.b16 %v3330, %v3329
        %v3463 = vpack.c.b16 %v3332, %v3331
        %v3464 = vpack.c.b16 %v3334, %v3333
        %v3465 = vpack.c.b16 %v3336, %v3335
        %v3466 = vpack.c.b16 %v3338, %v3337
        %v3467 = vpack.c.b16 %v3340, %v3339
        %v3468 = vpack.c.b16 %v3342, %v3341
        %v3469 = vpack.c.b16 %v3344, %v3343
        %v3470 = vpack.c.b16 %v3346, %v3345
        %v3471 = vpack.c.b16 %v3348, %v3347
        %v3472 = vpack.c.b16 %v3350, %v3349
        %v3473 = vpack.c.b16 %v3352, %v3351
        %v3474 = vpack.c.b16 %v3354, %v3353
        %v3475 = vpack.c.b16 %v3356, %v3355
        %v3476 = vpack.c.b16 %v3358, %v3357
        %v3477 = vpack.c.b16 %v3360, %v3359
        %v3478 = vpack.c.b16 %v3362, %v3361
        %v3479 = vpack.c.b16 %v3364, %v3363
        %v3480 = vpack.c.b16 %v3366, %v3365
        %v3481 = vpack.c.b16 %v3368, %v3367
        %v3482 = vpack.c.b16 %v3370, %v3369
        %v3483 = vpack.c.b16 %v3372, %v3371
        %v3484 = vpack.c.b16 %v3374, %v3373
        %v3485 = vpack.c.b16 %v3376, %v3375
        %v3486 = vpack.c.b16 %v3378, %v3377
        %v3487 = vpack.c.b16 %v3380, %v3379
        %v3488 = vpack.c.b16 %v3382, %v3381
        %v3489 = vpack.c.b16 %v3384, %v3383
        %v3490 = vpack.c.b16 %v3386, %v3385
        %v3491 = vpack.c.b16 %v3388, %v3387
        %v3492 = vpack.c.b16 %v3390, %v3389
        %v3493 = vpack.c.b16 %v3392, %v3391
        %v3494 = vpack.c.b16 %v3394, %v3393
        %v3495 = vpack.c.b16 %v3396, %v3395
        %v3496 = vpack.c.b16 %v3398, %v3397
        %v3497 = vpack.c.b16 %v3400, %v3399
        %v3498 = vpack.c.b16 %v3402, %v3401
        %v3499 = vpack.c.b16 %v3404, %v3403
        %v3500 = vpack.c.b16 %v3406, %v3405
        %v3501 = vpack.c.b16 %v3408, %v3407
        %v3502 = vpack.c.b16 %v3410, %v3409
        %v3503 = vpack.c.b16 %v3412, %v3411
        %v3504 = vpack.c.b16 %v3414, %v3413
        %v3505 = vpack.c.b16 %v3416, %v3415
        %v3506 = vpack.c.b16 %v3418, %v3417
        %v3507 = vpack.c.b16 %v3420, %v3419
        %v3508 = vpack.c.b16 %v3422, %v3421
        %v3509 = vpack.c.b16 %v3424, %v3423
        %v3510 = vpack.c.b16 %v3426, %v3425
        %v3511 = vpack.c.b16 %v3428, %v3427
        %v3512 = vpack.c.b16 %v3430, %v3429
        %v3513 = vpack.c.b16 %v3432, %v3431
        %v3514 = vpack.c.b16 %v3434, %v3433
        %v3515 = vpack.c.b16 %v3436, %v3435
        %v3516 = vpack.c.b16 %v3438, %v3437
        %v3517 = vpack.c.b16 %v3440, %v3439
        %v3518 = vpack.c.b16 %v3442, %v3441
        %v3519 = vpack.c.b16 %v3444, %v3443
        %v3520 = vpack.c.b16 %v3446, %v3445
        %v3521 = vpack.c.b16 %v3448, %v3447
        %v3522 = vpack.c.b16 %v3450, %v3449
        %3595 = vmatprep.subr.bf16.mxu0 0
        %3596 = vmatpush1.bf16.msra.mxu0 %v3458
        %3597 = vmatprep.subr.bf16.mxu0 0
        %3598 = vmatpush1.bf16.msra.mxu0 %v3457
        %3599 = vmatprep.subr.bf16.mxu0 0
        %3600 = vmatpush1.bf16.msra.mxu0 %v3456
        %3601 = vmatprep.subr.bf16.mxu0 0
        %3602 = vmatpush1.bf16.msra.mxu0 %v3455
        %3603 = vmatprep.subr.bf16.mxu0 0
        %3604 = vmatpush1.bf16.msra.mxu0 %v3454
        %3605 = vmatprep.subr.bf16.mxu0 0
        %3606 = vmatpush1.bf16.msra.mxu0 %v3453
        %3607 = vmatprep.subr.bf16.mxu0 0
        %3608 = vmatpush1.bf16.msra.mxu0 %v3452
        %3609 = vmatprep.subr.bf16.mxu0 0
        %3610 = vmatpush1.bf16.msra.mxu0 %v3451
        %3611 = vmatprep.subr.bf16.mxu0 0
        %3612 = vmatpush2.bf16.msra.mxu0 %v3466
        %3613 = vmatprep.subr.bf16.mxu0 0
        %3614 = vmatpush2.bf16.msra.mxu0 %v3465
        %3615 = vmatprep.subr.bf16.mxu0 0
        %3616 = vmatpush2.bf16.msra.mxu0 %v3464
        %3617 = vmatprep.subr.bf16.mxu0 0
        %3618 = vmatpush2.bf16.msra.mxu0 %v3463
        %3619 = vmatprep.subr.bf16.mxu0 0
        %3620 = vmatpush2.bf16.msra.mxu0 %v3462
        %3621 = vmatprep.subr.bf16.mxu0 0
        %3622 = vmatpush2.bf16.msra.mxu0 %v3461
        %3623 = vmatprep.subr.bf16.mxu0 0
        %3624 = vmatpush2.bf16.msra.mxu0 %v3460
        %3625 = vmatprep.subr.bf16.mxu0 0
        %3626 = vmatpush2.bf16.msra.mxu0 %v3459
        %3627 = vmatprep.mubr.bf16.mxu0 %v2970
        %3628 = vmatmul.mubr.bf16.gmra.mxu0 %v2969
        %v3629 = vpop.f32.mrf.mxu0
        %v3630 = vadd.f32 %v3162, %v3629
        %v3631 = vpop.f32.mrf.mxu0
        %v3632 = vpop.f32.mrf.mxu0
        %v3633 = vadd.f32 %v3162, %v3632
        %v3634 = vpop.f32.mrf.mxu0
        %3635 = vmatprep.mubr.bf16.mxu0 %v2973
        %3636 = vmatmul.mubr.bf16.gmra.mxu0 %v2972
        %v3637 = vpop.f32.mrf.mxu0
        %v3638 = vadd.f32 %v3162, %v3637
        %v3639 = vpop.f32.mrf.mxu0
        %v3640 = vpop.f32.mrf.mxu0
        %v3641 = vadd.f32 %v3162, %v3640
        %v3642 = vpop.f32.mrf.mxu0
        %3643 = vmatprep.mubr.bf16.mxu0 %v2976
        %3644 = vmatmul.mubr.bf16.gmra.mxu0 %v2975
        %v3645 = vpop.f32.mrf.mxu0
        %v3646 = vadd.f32 %v3162, %v3645
        %v3647 = vpop.f32.mrf.mxu0
        %v3648 = vpop.f32.mrf.mxu0
        %v3649 = vadd.f32 %v3162, %v3648
        %v3650 = vpop.f32.mrf.mxu0
        %3651 = vmatprep.mubr.bf16.mxu0 %v2980
        %3652 = vmatmul.mubr.bf16.gmra.mxu0 %v2979
        %v3653 = vpop.f32.mrf.mxu0
        %v3654 = vadd.f32 %v3162, %v3653
        %v3655 = vpop.f32.mrf.mxu0
        %v3656 = vpop.f32.mrf.mxu0
        %v3657 = vadd.f32 %v3162, %v3656
        %v3658 = vpop.f32.mrf.mxu0
        %3659 = vmatprep.mubr.bf16.mxu0 %v2984
        %3660 = vmatmul.mubr.bf16.gmra.mxu0 %v2983
        %v3661 = vpop.f32.mrf.mxu0
        %v3662 = vadd.f32 %v3162, %v3661
        %v3663 = vpop.f32.mrf.mxu0
        %v3664 = vpop.f32.mrf.mxu0
        %v3665 = vadd.f32 %v3162, %v3664
        %v3666 = vpop.f32.mrf.mxu0
        %3667 = vmatprep.mubr.bf16.mxu0 %v2988
        %3668 = vmatmul.mubr.bf16.gmra.mxu0 %v2987
        %v3669 = vpop.f32.mrf.mxu0
        %v3670 = vadd.f32 %v3162, %v3669
        %v3671 = vpop.f32.mrf.mxu0
        %v3672 = vpop.f32.mrf.mxu0
        %v3673 = vadd.f32 %v3162, %v3672
        %v3674 = vpop.f32.mrf.mxu0
        %3675 = vmatprep.mubr.bf16.mxu0 %v2992
        %3676 = vmatmul.mubr.bf16.gmra.mxu0 %v2991
        %v3677 = vpop.f32.mrf.mxu0
        %v3678 = vadd.f32 %v3162, %v3677
        %v3679 = vpop.f32.mrf.mxu0
        %v3680 = vpop.f32.mrf.mxu0
        %v3681 = vadd.f32 %v3162, %v3680
        %v3682 = vpop.f32.mrf.mxu0
        %3683 = vmatprep.mubr.bf16.mxu0 %v2996
        %3684 = vmatmul.mubr.bf16.gmra.mxu0 %v2995
        %v3685 = vpop.f32.mrf.mxu0
        %v3686 = vadd.f32 %v3162, %v3685
        %v3687 = vpop.f32.mrf.mxu0
        %v3688 = vpop.f32.mrf.mxu0
        %v3689 = vadd.f32 %v3162, %v3688
        %v3690 = vpop.f32.mrf.mxu0
        %3691 = vmatprep.mubr.bf16.mxu0 %v3000
        %3692 = vmatmul.mubr.bf16.gmra.mxu0 %v2999
        %v3693 = vpop.f32.mrf.mxu0
        %v3694 = vadd.f32 %v3162, %v3693
        %v3695 = vpop.f32.mrf.mxu0
        %v3696 = vpop.f32.mrf.mxu0
        %v3697 = vadd.f32 %v3162, %v3696
        %v3698 = vpop.f32.mrf.mxu0
        %3699 = vmatprep.mubr.bf16.mxu0 %v3004
        %3700 = vmatmul.mubr.bf16.gmra.mxu0 %v3003
        %v3701 = vpop.f32.mrf.mxu0
        %v3702 = vadd.f32 %v3162, %v3701
        %v3703 = vpop.f32.mrf.mxu0
        %v3704 = vpop.f32.mrf.mxu0
        %v3705 = vadd.f32 %v3162, %v3704
        %v3706 = vpop.f32.mrf.mxu0
        %3707 = vdwg.mxu0
        %3708 = vmatprep.subr.bf16.mxu0 0
        %3709 = vmatpush1.bf16.msra.mxu0 %v3474
        %3710 = vmatprep.subr.bf16.mxu0 0
        %3711 = vmatpush1.bf16.msra.mxu0 %v3473
        %3712 = vmatprep.subr.bf16.mxu0 0
        %3713 = vmatpush1.bf16.msra.mxu0 %v3472
        %3714 = vmatprep.subr.bf16.mxu0 0
        %3715 = vmatpush1.bf16.msra.mxu0 %v3471
        %3716 = vmatprep.subr.bf16.mxu0 0
        %3717 = vmatpush1.bf16.msra.mxu0 %v3470
        %3718 = vmatprep.subr.bf16.mxu0 0
        %3719 = vmatpush1.bf16.msra.mxu0 %v3469
        %3720 = vmatprep.subr.bf16.mxu0 0
        %3721 = vmatpush1.bf16.msra.mxu0 %v3468
        %3722 = vmatprep.subr.bf16.mxu0 0
        %3723 = vmatpush1.bf16.msra.mxu0 %v3467
        %3724 = vmatprep.subr.bf16.mxu0 0
        %3725 = vmatpush2.bf16.msra.mxu0 %v3482
        %3726 = vmatprep.subr.bf16.mxu0 0
        %3727 = vmatpush2.bf16.msra.mxu0 %v3481
        %3728 = vmatprep.subr.bf16.mxu0 0
        %3729 = vmatpush2.bf16.msra.mxu0 %v3480
        %3730 = vmatprep.subr.bf16.mxu0 0
        %3731 = vmatpush2.bf16.msra.mxu0 %v3479
        %3732 = vmatprep.subr.bf16.mxu0 0
        %3733 = vmatpush2.bf16.msra.mxu0 %v3478
        %3734 = vmatprep.subr.bf16.mxu0 0
        %3735 = vmatpush2.bf16.msra.mxu0 %v3477
        %3736 = vmatprep.subr.bf16.mxu0 0
        %3737 = vmatpush2.bf16.msra.mxu0 %v3476
        %3738 = vmatprep.subr.bf16.mxu0 0
        %3739 = vmatpush2.bf16.msra.mxu0 %v3475
        %3740 = vmatprep.mubr.bf16.mxu0 %v2972
        %3741 = vmatmul.mubr.bf16.gmra.mxu0 %v2971
        %v3742 = vpop.f32.mrf.mxu0
        %v3743 = vadd.f32 %v3630, %v3742
        %v3744 = vpop.f32.mrf.mxu0
        %v3745 = vpop.f32.mrf.mxu0
        %v3746 = vadd.f32 %v3633, %v3745
        %v3747 = vpop.f32.mrf.mxu0
        %3748 = vmatprep.mubr.bf16.mxu0 %v2975
        %3749 = vmatmul.mubr.bf16.gmra.mxu0 %v2974
        %v3750 = vpop.f32.mrf.mxu0
        %v3751 = vadd.f32 %v3638, %v3750
        %v3752 = vpop.f32.mrf.mxu0
        %v3753 = vpop.f32.mrf.mxu0
        %v3754 = vadd.f32 %v3641, %v3753
        %v3755 = vpop.f32.mrf.mxu0
        %3756 = vmatprep.mubr.bf16.mxu0 %v2979
        %3757 = vmatmul.mubr.bf16.gmra.mxu0 %v2978
        %v3758 = vpop.f32.mrf.mxu0
        %v3759 = vadd.f32 %v3646, %v3758
        %v3760 = vpop.f32.mrf.mxu0
        %v3761 = vpop.f32.mrf.mxu0
        %v3762 = vadd.f32 %v3649, %v3761
        %v3763 = vpop.f32.mrf.mxu0
        %3764 = vmatprep.mubr.bf16.mxu0 %v2983
        %3765 = vmatmul.mubr.bf16.gmra.mxu0 %v2982
        %v3766 = vpop.f32.mrf.mxu0
        %v3767 = vadd.f32 %v3654, %v3766
        %v3768 = vpop.f32.mrf.mxu0
        %v3769 = vpop.f32.mrf.mxu0
        %v3770 = vadd.f32 %v3657, %v3769
        %v3771 = vpop.f32.mrf.mxu0
        %3772 = vmatprep.mubr.bf16.mxu0 %v2987
        %3773 = vmatmul.mubr.bf16.gmra.mxu0 %v2986
        %v3774 = vpop.f32.mrf.mxu0
        %v3775 = vadd.f32 %v3662, %v3774
        %v3776 = vpop.f32.mrf.mxu0
        %v3777 = vpop.f32.mrf.mxu0
        %v3778 = vadd.f32 %v3665, %v3777
        %v3779 = vpop.f32.mrf.mxu0
        %3780 = vmatprep.mubr.bf16.mxu0 %v2991
        %3781 = vmatmul.mubr.bf16.gmra.mxu0 %v2990
        %v3782 = vpop.f32.mrf.mxu0
        %v3783 = vadd.f32 %v3670, %v3782
        %v3784 = vpop.f32.mrf.mxu0
        %v3785 = vpop.f32.mrf.mxu0
        %v3786 = vadd.f32 %v3673, %v3785
        %v3787 = vpop.f32.mrf.mxu0
        %3788 = vmatprep.mubr.bf16.mxu0 %v2995
        %3789 = vmatmul.mubr.bf16.gmra.mxu0 %v2994
        %v3790 = vpop.f32.mrf.mxu0
        %v3791 = vadd.f32 %v3678, %v3790
        %v3792 = vpop.f32.mrf.mxu0
        %v3793 = vpop.f32.mrf.mxu0
        %v3794 = vadd.f32 %v3681, %v3793
        %v3795 = vpop.f32.mrf.mxu0
        %3796 = vmatprep.mubr.bf16.mxu0 %v2999
        %3797 = vmatmul.mubr.bf16.gmra.mxu0 %v2998
        %v3798 = vpop.f32.mrf.mxu0
        %v3799 = vadd.f32 %v3686, %v3798
        %v3800 = vpop.f32.mrf.mxu0
        %v3801 = vpop.f32.mrf.mxu0
        %v3802 = vadd.f32 %v3689, %v3801
        %v3803 = vpop.f32.mrf.mxu0
        %3804 = vmatprep.mubr.bf16.mxu0 %v3003
        %3805 = vmatmul.mubr.bf16.gmra.mxu0 %v3002
        %v3806 = vpop.f32.mrf.mxu0
        %v3807 = vadd.f32 %v3694, %v3806
        %v3808 = vpop.f32.mrf.mxu0
        %v3809 = vpop.f32.mrf.mxu0
        %v3810 = vadd.f32 %v3697, %v3809
        %v3811 = vpop.f32.mrf.mxu0
        %3812 = vmatprep.mubr.bf16.mxu0 %v3007
        %3813 = vmatmul.mubr.bf16.gmra.mxu0 %v3006
        %v3814 = vpop.f32.mrf.mxu0
        %v3815 = vadd.f32 %v3702, %v3814
        %v3816 = vpop.f32.mrf.mxu0
        %v3817 = vpop.f32.mrf.mxu0
        %v3818 = vadd.f32 %v3705, %v3817
        %v3819 = vpop.f32.mrf.mxu0
        %3820 = vdwg.mxu0
        %3821 = vmatprep.subr.bf16.mxu0 0
        %3822 = vmatpush1.bf16.msra.mxu0 %v3490
        %3823 = vmatprep.subr.bf16.mxu0 0
        %3824 = vmatpush1.bf16.msra.mxu0 %v3489
        %3825 = vmatprep.subr.bf16.mxu0 0
        %3826 = vmatpush1.bf16.msra.mxu0 %v3488
        %3827 = vmatprep.subr.bf16.mxu0 0
        %3828 = vmatpush1.bf16.msra.mxu0 %v3487
        %3829 = vmatprep.subr.bf16.mxu0 0
        %3830 = vmatpush1.bf16.msra.mxu0 %v3486
        %3831 = vmatprep.subr.bf16.mxu0 0
        %3832 = vmatpush1.bf16.msra.mxu0 %v3485
        %3833 = vmatprep.subr.bf16.mxu0 0
        %3834 = vmatpush1.bf16.msra.mxu0 %v3484
        %3835 = vmatprep.subr.bf16.mxu0 0
        %3836 = vmatpush1.bf16.msra.mxu0 %v3483
        %3837 = vmatprep.subr.bf16.mxu0 0
        %3838 = vmatpush2.bf16.msra.mxu0 %v3498
        %3839 = vmatprep.subr.bf16.mxu0 0
        %3840 = vmatpush2.bf16.msra.mxu0 %v3497
        %3841 = vmatprep.subr.bf16.mxu0 0
        %3842 = vmatpush2.bf16.msra.mxu0 %v3496
        %3843 = vmatprep.subr.bf16.mxu0 0
        %3844 = vmatpush2.bf16.msra.mxu0 %v3495
        %3845 = vmatprep.subr.bf16.mxu0 0
        %3846 = vmatpush2.bf16.msra.mxu0 %v3494
        %3847 = vmatprep.subr.bf16.mxu0 0
        %3848 = vmatpush2.bf16.msra.mxu0 %v3493
        %3849 = vmatprep.subr.bf16.mxu0 0
        %3850 = vmatpush2.bf16.msra.mxu0 %v3492
        %3851 = vmatprep.subr.bf16.mxu0 0
        %3852 = vmatpush2.bf16.msra.mxu0 %v3491
        %3853 = vmatprep.mubr.bf16.mxu0 %v2974
        %3854 = vmatmul.mubr.bf16.gmra.mxu0 %v2973
        %v3855 = vpop.f32.mrf.mxu0
        %v3856 = vadd.f32 %v3743, %v3855
        %v3857 = vpop.f32.mrf.mxu0
        %v3858 = vpop.f32.mrf.mxu0
        %v3859 = vadd.f32 %v3746, %v3858
        %v3860 = vpop.f32.mrf.mxu0
        %3861 = vmatprep.mubr.bf16.mxu0 %v2978
        %3862 = vmatmul.mubr.bf16.gmra.mxu0 %v2976
        %v3863 = vpop.f32.mrf.mxu0
        %v3864 = vadd.f32 %v3751, %v3863
        %v3865 = vpop.f32.mrf.mxu0
        %v3866 = vpop.f32.mrf.mxu0
        %v3867 = vadd.f32 %v3754, %v3866
        %v3868 = vpop.f32.mrf.mxu0
        %3869 = vmatprep.mubr.bf16.mxu0 %v2982
        %3870 = vmatmul.mubr.bf16.gmra.mxu0 %v2980
        %v3871 = vpop.f32.mrf.mxu0
        %v3872 = vadd.f32 %v3759, %v3871
        %v3873 = vpop.f32.mrf.mxu0
        %v3874 = vpop.f32.mrf.mxu0
        %v3875 = vadd.f32 %v3762, %v3874
        %v3876 = vpop.f32.mrf.mxu0
        %3877 = vmatprep.mubr.bf16.mxu0 %v2986
        %3878 = vmatmul.mubr.bf16.gmra.mxu0 %v2984
        %v3879 = vpop.f32.mrf.mxu0
        %v3880 = vadd.f32 %v3767, %v3879
        %v3881 = vpop.f32.mrf.mxu0
        %v3882 = vpop.f32.mrf.mxu0
        %v3883 = vadd.f32 %v3770, %v3882
        %v3884 = vpop.f32.mrf.mxu0
        %3885 = vmatprep.mubr.bf16.mxu0 %v2990
        %3886 = vmatmul.mubr.bf16.gmra.mxu0 %v2988
        %v3887 = vpop.f32.mrf.mxu0
        %v3888 = vadd.f32 %v3775, %v3887
        %v3889 = vpop.f32.mrf.mxu0
        %v3890 = vpop.f32.mrf.mxu0
        %v3891 = vadd.f32 %v3778, %v3890
        %v3892 = vpop.f32.mrf.mxu0
        %3893 = vmatprep.mubr.bf16.mxu0 %v2994
        %3894 = vmatmul.mubr.bf16.gmra.mxu0 %v2992
        %v3895 = vpop.f32.mrf.mxu0
        %v3896 = vadd.f32 %v3783, %v3895
        %v3897 = vpop.f32.mrf.mxu0
        %v3898 = vpop.f32.mrf.mxu0
        %v3899 = vadd.f32 %v3786, %v3898
        %v3900 = vpop.f32.mrf.mxu0
        %3901 = vmatprep.mubr.bf16.mxu0 %v2998
        %3902 = vmatmul.mubr.bf16.gmra.mxu0 %v2996
        %v3903 = vpop.f32.mrf.mxu0
        %v3904 = vadd.f32 %v3791, %v3903
        %v3905 = vpop.f32.mrf.mxu0
        %v3906 = vpop.f32.mrf.mxu0
        %v3907 = vadd.f32 %v3794, %v3906
        %v3908 = vpop.f32.mrf.mxu0
        %3909 = vmatprep.mubr.bf16.mxu0 %v3002
        %3910 = vmatmul.mubr.bf16.gmra.mxu0 %v3000
        %v3911 = vpop.f32.mrf.mxu0
        %v3912 = vadd.f32 %v3799, %v3911
        %v3913 = vpop.f32.mrf.mxu0
        %v3914 = vpop.f32.mrf.mxu0
        %v3915 = vadd.f32 %v3802, %v3914
        %v3916 = vpop.f32.mrf.mxu0
        %3917 = vmatprep.mubr.bf16.mxu0 %v3006
        %3918 = vmatmul.mubr.bf16.gmra.mxu0 %v3004
        %v3919 = vpop.f32.mrf.mxu0
        %v3920 = vadd.f32 %v3807, %v3919
        %v3921 = vpop.f32.mrf.mxu0
        %v3922 = vpop.f32.mrf.mxu0
        %v3923 = vadd.f32 %v3810, %v3922
        %v3924 = vpop.f32.mrf.mxu0
        %3925 = vmatprep.mubr.bf16.mxu0 %v3010
        %3926 = vmatmul.mubr.bf16.gmra.mxu0 %v3008
        %v3927 = vpop.f32.mrf.mxu0
        %v3928 = vadd.f32 %v3815, %v3927
        %v3929 = vpop.f32.mrf.mxu0
        %v3930 = vpop.f32.mrf.mxu0
        %v3931 = vadd.f32 %v3818, %v3930
        %v3932 = vpop.f32.mrf.mxu0
        %3933 = vdwg.mxu0
        %3934 = vmatprep.subr.bf16.mxu0 0
        %3935 = vmatpush1.bf16.msra.mxu0 %v3506
        %3936 = vmatprep.subr.bf16.mxu0 0
        %3937 = vmatpush1.bf16.msra.mxu0 %v3505
        %3938 = vmatprep.subr.bf16.mxu0 0
        %3939 = vmatpush1.bf16.msra.mxu0 %v3504
        %3940 = vmatprep.subr.bf16.mxu0 0
        %3941 = vmatpush1.bf16.msra.mxu0 %v3503
        %3942 = vmatprep.subr.bf16.mxu0 0
        %3943 = vmatpush1.bf16.msra.mxu0 %v3502
        %3944 = vmatprep.subr.bf16.mxu0 0
        %3945 = vmatpush1.bf16.msra.mxu0 %v3501
        %3946 = vmatprep.subr.bf16.mxu0 0
        %3947 = vmatpush1.bf16.msra.mxu0 %v3500
        %3948 = vmatprep.subr.bf16.mxu0 0
        %3949 = vmatpush1.bf16.msra.mxu0 %v3499
        %3950 = vmatprep.subr.bf16.mxu0 0
        %3951 = vmatpush2.bf16.msra.mxu0 %v3514
        %3952 = vmatprep.subr.bf16.mxu0 0
        %3953 = vmatpush2.bf16.msra.mxu0 %v3513
        %3954 = vmatprep.subr.bf16.mxu0 0
        %3955 = vmatpush2.bf16.msra.mxu0 %v3512
        %3956 = vmatprep.subr.bf16.mxu0 0
        %3957 = vmatpush2.bf16.msra.mxu0 %v3511
        %3958 = vmatprep.subr.bf16.mxu0 0
        %3959 = vmatpush2.bf16.msra.mxu0 %v3510
        %3960 = vmatprep.subr.bf16.mxu0 0
        %3961 = vmatpush2.bf16.msra.mxu0 %v3509
        %3962 = vmatprep.subr.bf16.mxu0 0
        %3963 = vmatpush2.bf16.msra.mxu0 %v3508
        %3964 = vmatprep.subr.bf16.mxu0 0
        %3965 = vmatpush2.bf16.msra.mxu0 %v3507
        %3966 = vmatprep.mubr.bf16.mxu0 %v2976
        %3967 = vmatmul.mubr.bf16.gmra.mxu0 %v2975
        %v3968 = vpop.f32.mrf.mxu0
        %v3969 = vadd.f32 %v3856, %v3968
        %v3970 = vpop.f32.mrf.mxu0
        %v3971 = vpop.f32.mrf.mxu0
        %v3972 = vadd.f32 %v3859, %v3971
        %v3973 = vpop.f32.mrf.mxu0
        %3974 = vmatprep.mubr.bf16.mxu0 %v2980
        %3975 = vmatmul.mubr.bf16.gmra.mxu0 %v2979
        %v3976 = vpop.f32.mrf.mxu0
        %v3977 = vadd.f32 %v3864, %v3976
        %v3978 = vpop.f32.mrf.mxu0
        %v3979 = vpop.f32.mrf.mxu0
        %v3980 = vadd.f32 %v3867, %v3979
        %v3981 = vpop.f32.mrf.mxu0
        %3982 = vmatprep.mubr.bf16.mxu0 %v2984
        %3983 = vmatmul.mubr.bf16.gmra.mxu0 %v2983
        %v3984 = vpop.f32.mrf.mxu0
        %v3985 = vadd.f32 %v3872, %v3984
        %v3986 = vpop.f32.mrf.mxu0
        %v3987 = vpop.f32.mrf.mxu0
        %v3988 = vadd.f32 %v3875, %v3987
        %v3989 = vpop.f32.mrf.mxu0
        %3990 = vmatprep.mubr.bf16.mxu0 %v2988
        %3991 = vmatmul.mubr.bf16.gmra.mxu0 %v2987
        %v3992 = vpop.f32.mrf.mxu0
        %v3993 = vadd.f32 %v3880, %v3992
        %v3994 = vpop.f32.mrf.mxu0
        %v3995 = vpop.f32.mrf.mxu0
        %v3996 = vadd.f32 %v3883, %v3995
        %v3997 = vpop.f32.mrf.mxu0
        %3998 = vmatprep.mubr.bf16.mxu0 %v2992
        %3999 = vmatmul.mubr.bf16.gmra.mxu0 %v2991
        %v4000 = vpop.f32.mrf.mxu0
        %v4001 = vadd.f32 %v3888, %v4000
        %v4002 = vpop.f32.mrf.mxu0
        %v4003 = vpop.f32.mrf.mxu0
        %v4004 = vadd.f32 %v3891, %v4003
        %v4005 = vpop.f32.mrf.mxu0
        %4006 = vmatprep.mubr.bf16.mxu0 %v2996
        %4007 = vmatmul.mubr.bf16.gmra.mxu0 %v2995
        %v4008 = vpop.f32.mrf.mxu0
        %v4009 = vadd.f32 %v3896, %v4008
        %v4010 = vpop.f32.mrf.mxu0
        %v4011 = vpop.f32.mrf.mxu0
        %v4012 = vadd.f32 %v3899, %v4011
        %v4013 = vpop.f32.mrf.mxu0
        %4014 = vmatprep.mubr.bf16.mxu0 %v3000
        %4015 = vmatmul.mubr.bf16.gmra.mxu0 %v2999
        %v4016 = vpop.f32.mrf.mxu0
        %v4017 = vadd.f32 %v3904, %v4016
        %v4018 = vpop.f32.mrf.mxu0
        %v4019 = vpop.f32.mrf.mxu0
        %v4020 = vadd.f32 %v3907, %v4019
        %v4021 = vpop.f32.mrf.mxu0
        %4022 = vmatprep.mubr.bf16.mxu0 %v3004
        %4023 = vmatmul.mubr.bf16.gmra.mxu0 %v3003
        %v4024 = vpop.f32.mrf.mxu0
        %v4025 = vadd.f32 %v3912, %v4024
        %v4026 = vpop.f32.mrf.mxu0
        %v4027 = vpop.f32.mrf.mxu0
        %v4028 = vadd.f32 %v3915, %v4027
        %v4029 = vpop.f32.mrf.mxu0
        %4030 = vmatprep.mubr.bf16.mxu0 %v3008
        %4031 = vmatmul.mubr.bf16.gmra.mxu0 %v3007
        %v4032 = vpop.f32.mrf.mxu0
        %v4033 = vadd.f32 %v3920, %v4032
        %v4034 = vpop.f32.mrf.mxu0
        %v4035 = vpop.f32.mrf.mxu0
        %v4036 = vadd.f32 %v3923, %v4035
        %v4037 = vpop.f32.mrf.mxu0
        %4038 = vmatprep.mubr.bf16.mxu0 %v3012
        %4039 = vmatmul.mubr.bf16.gmra.mxu0 %v3011
        %v4040 = vpop.f32.mrf.mxu0
        %v4041 = vadd.f32 %v3928, %v4040
        %v4042 = vpop.f32.mrf.mxu0
        %v4043 = vpop.f32.mrf.mxu0
        %v4044 = vadd.f32 %v3931, %v4043
        %v4045 = vpop.f32.mrf.mxu0
        %4046 = vdwg.mxu0
        %4047 = vmatprep.subr.bf16.mxu0 0
        %4048 = vmatpush1.bf16.msra.mxu0 %v3522
        %4049 = vmatprep.subr.bf16.mxu0 0
        %4050 = vmatpush1.bf16.msra.mxu0 %v3521
        %4051 = vmatprep.subr.bf16.mxu0 0
        %4052 = vmatpush1.bf16.msra.mxu0 %v3520
        %4053 = vmatprep.subr.bf16.mxu0 0
        %4054 = vmatpush1.bf16.msra.mxu0 %v3519
        %4055 = vmatprep.subr.bf16.mxu0 0
        %4056 = vmatpush1.bf16.msra.mxu0 %v3518
        %4057 = vmatprep.subr.bf16.mxu0 0
        %4058 = vmatpush1.bf16.msra.mxu0 %v3517
        %4059 = vmatprep.subr.bf16.mxu0 0
        %4060 = vmatpush1.bf16.msra.mxu0 %v3516
        %4061 = vmatprep.subr.bf16.mxu0 0
        %4062 = vmatpush1.bf16.msra.mxu0 %v3515
        %4063 = vmatprep.subr.bf16.mxu0 0
        %4064 = vmatpush2.bf16.msra.mxu0 0
        %4065 = vmatprep.subr.bf16.mxu0 0
        %4066 = vmatpush2.bf16.msra.mxu0 0
        %4067 = vmatprep.subr.bf16.mxu0 0
        %4068 = vmatpush2.bf16.msra.mxu0 0
        %4069 = vmatprep.subr.bf16.mxu0 0
        %4070 = vmatpush2.bf16.msra.mxu0 0
        %4071 = vmatprep.subr.bf16.mxu0 0
        %4072 = vmatpush2.bf16.msra.mxu0 0
        %4073 = vmatprep.subr.bf16.mxu0 0
        %4074 = vmatpush2.bf16.msra.mxu0 0
        %4075 = vmatprep.subr.bf16.mxu0 0
        %4076 = vmatpush2.bf16.msra.mxu0 0
        %4077 = vmatprep.subr.bf16.mxu0 0
        %4078 = vmatpush2.bf16.msra.mxu0 0
        %4079 = vmatprep.mubr.bf16.mxu0 0
        %4080 = vmatmul.mubr.bf16.gmra.mxu0 %v2977
        %v4081 = vpop.f32.mrf.mxu0
        %v4082 = vadd.f32 %v3969, %v4081
        %v4083 = vpop.f32.mrf.mxu0
        %v4084 = vpop.f32.mrf.mxu0
        %v4085 = vadd.f32 %v3972, %v4084
        %v4086 = vpop.f32.mrf.mxu0
        %4087 = vmatprep.mubr.bf16.mxu0 0
        %4088 = vmatmul.mubr.bf16.gmra.mxu0 %v2981
        %v4089 = vpop.f32.mrf.mxu0
        %v4090 = vadd.f32 %v3977, %v4089
        %v4091 = vpop.f32.mrf.mxu0
        %v4092 = vpop.f32.mrf.mxu0
        %v4093 = vadd.f32 %v3980, %v4092
        %v4094 = vpop.f32.mrf.mxu0
        %4095 = vmatprep.mubr.bf16.mxu0 0
        %4096 = vmatmul.mubr.bf16.gmra.mxu0 %v2985
        %v4097 = vpop.f32.mrf.mxu0
        %v4098 = vadd.f32 %v3985, %v4097
        %v4099 = vpop.f32.mrf.mxu0
        %v4100 = vpop.f32.mrf.mxu0
        %v4101 = vadd.f32 %v3988, %v4100
        %v4102 = vpop.f32.mrf.mxu0
        %4103 = vmatprep.mubr.bf16.mxu0 0
        %4104 = vmatmul.mubr.bf16.gmra.mxu0 %v2989
        %v4105 = vpop.f32.mrf.mxu0
        %v4106 = vadd.f32 %v3993, %v4105
        %v4107 = vpop.f32.mrf.mxu0
        %v4108 = vpop.f32.mrf.mxu0
        %v4109 = vadd.f32 %v3996, %v4108
        %v4110 = vpop.f32.mrf.mxu0
        %4111 = vmatprep.mubr.bf16.mxu0 0
        %4112 = vmatmul.mubr.bf16.gmra.mxu0 %v2993
        %v4113 = vpop.f32.mrf.mxu0
        %v4114 = vadd.f32 %v4001, %v4113
        %v4115 = vpop.f32.mrf.mxu0
        %v4116 = vpop.f32.mrf.mxu0
        %v4117 = vadd.f32 %v4004, %v4116
        %v4118 = vpop.f32.mrf.mxu0
        %4119 = vmatprep.mubr.bf16.mxu0 0
        %4120 = vmatmul.mubr.bf16.gmra.mxu0 %v2997
        %v4121 = vpop.f32.mrf.mxu0
        %v4122 = vadd.f32 %v4009, %v4121
        %v4123 = vpop.f32.mrf.mxu0
        %v4124 = vpop.f32.mrf.mxu0
        %v4125 = vadd.f32 %v4012, %v4124
        %v4126 = vpop.f32.mrf.mxu0
        %4127 = vmatprep.mubr.bf16.mxu0 0
        %4128 = vmatmul.mubr.bf16.gmra.mxu0 %v3001
        %v4129 = vpop.f32.mrf.mxu0
        %v4130 = vadd.f32 %v4017, %v4129
        %v4131 = vpop.f32.mrf.mxu0
        %v4132 = vpop.f32.mrf.mxu0
        %v4133 = vadd.f32 %v4020, %v4132
        %v4134 = vpop.f32.mrf.mxu0
        %4135 = vmatprep.mubr.bf16.mxu0 0
        %4136 = vmatmul.mubr.bf16.gmra.mxu0 %v3005
        %v4137 = vpop.f32.mrf.mxu0
        %v4138 = vadd.f32 %v4025, %v4137
        %v4139 = vpop.f32.mrf.mxu0
        %v4140 = vpop.f32.mrf.mxu0
        %v4141 = vadd.f32 %v4028, %v4140
        %v4142 = vpop.f32.mrf.mxu0
        %4143 = vmatprep.mubr.bf16.mxu0 0
        %4144 = vmatmul.mubr.bf16.gmra.mxu0 %v3009
        %v4145 = vpop.f32.mrf.mxu0
        %v4146 = vadd.f32 %v4033, %v4145
        %v4147 = vpop.f32.mrf.mxu0
        %v4148 = vpop.f32.mrf.mxu0
        %v4149 = vadd.f32 %v4036, %v4148
        %v4150 = vpop.f32.mrf.mxu0
        %4151 = vmatprep.mubr.bf16.mxu0 0
        %4152 = vmatmul.mubr.bf16.gmra.mxu0 %v3013
        %v4153 = vpop.f32.mrf.mxu0
        %v4154 = vadd.f32 %v4041, %v4153
        %v4155 = vpop.f32.mrf.mxu0
        %v4156 = vpop.f32.mrf.mxu0
        %v4157 = vadd.f32 %v4044, %v4156
        %v4158 = vpop.f32.mrf.mxu0
        %4159 = vdwg.mxu0
        %vm4160 = vcmp.gt.f32.partialorder %v4082, 0.0
        %vm4161 = vcmp.gt.f32.partialorder %v4085, 0.0
        %vm4162 = vcmp.gt.f32.partialorder %v4090, 0.0
        %vm4163 = vcmp.gt.f32.partialorder %v4093, 0.0
        %vm4164 = vcmp.gt.f32.partialorder %v4098, 0.0
        %vm4165 = vcmp.gt.f32.partialorder %v4101, 0.0
        %vm4166 = vcmp.gt.f32.partialorder %v4106, 0.0
        %vm4167 = vcmp.gt.f32.partialorder %v4109, 0.0
        %vm4168 = vcmp.gt.f32.partialorder %v4114, 0.0
        %vm4169 = vcmp.gt.f32.partialorder %v4117, 0.0
        %vm4170 = vcmp.gt.f32.partialorder %v4122, 0.0
        %vm4171 = vcmp.gt.f32.partialorder %v4125, 0.0
        %vm4172 = vcmp.gt.f32.partialorder %v4130, 0.0
        %vm4173 = vcmp.gt.f32.partialorder %v4133, 0.0
        %vm4174 = vcmp.gt.f32.partialorder %v4138, 0.0
        %vm4175 = vcmp.gt.f32.partialorder %v4141, 0.0
        %vm4176 = vcmp.gt.f32.partialorder %v4146, 0.0
        %vm4177 = vcmp.gt.f32.partialorder %v4149, 0.0
        %vm4178 = vcmp.gt.f32.partialorder %v4154, 0.0
        %vm4179 = vcmp.gt.f32.partialorder %v4157, 0.0
        %v4180 = vmul.f32 %v4082, 0.01
        %v4181 = vmul.f32 %v4085, 0.01
        %v4182 = vmul.f32 %v4090, 0.01
        %v4183 = vmul.f32 %v4093, 0.01
        %v4184 = vmul.f32 %v4098, 0.01
        %v4185 = vmul.f32 %v4101, 0.01
        %v4186 = vmul.f32 %v4106, 0.01
        %v4187 = vmul.f32 %v4109, 0.01
        %v4188 = vmul.f32 %v4114, 0.01
        %v4189 = vmul.f32 %v4117, 0.01
        %v4190 = vmul.f32 %v4122, 0.01
        %v4191 = vmul.f32 %v4125, 0.01
        %v4192 = vmul.f32 %v4130, 0.01
        %v4193 = vmul.f32 %v4133, 0.01
        %v4194 = vmul.f32 %v4138, 0.01
        %v4195 = vmul.f32 %v4141, 0.01
        %v4196 = vmul.f32 %v4146, 0.01
        %v4197 = vmul.f32 %v4149, 0.01
        %v4198 = vmul.f32 %v4154, 0.01
        %v4199 = vmul.f32 %v4157, 0.01
        %v4200 = vsel %vm4160, %v4082, %v4180
        %v4201 = vsel %vm4161, %v4085, %v4181
        %v4202 = vsel %vm4162, %v4090, %v4182
        %v4203 = vsel %vm4163, %v4093, %v4183
        %v4204 = vsel %vm4164, %v4098, %v4184
        %v4205 = vsel %vm4165, %v4101, %v4185
        %v4206 = vsel %vm4166, %v4106, %v4186
        %v4207 = vsel %vm4167, %v4109, %v4187
        %v4208 = vsel %vm4168, %v4114, %v4188
        %v4209 = vsel %vm4169, %v4117, %v4189
        %v4210 = vsel %vm4170, %v4122, %v4190
        %v4211 = vsel %vm4171, %v4125, %v4191
        %v4212 = vsel %vm4172, %v4130, %v4192
        %v4213 = vsel %vm4173, %v4133, %v4193
        %v4214 = vsel %vm4174, %v4138, %v4194
        %v4215 = vsel %vm4175, %v4141, %v4195
        %v4216 = vsel %vm4176, %v4146, %v4196
        %v4217 = vsel %vm4177, %v4149, %v4197
        %v4218 = vsel %vm4178, %v4154, %v4198
        %v4219 = vsel %vm4179, %v4157, %v4199
        %v4220 = vld [vmem:[%s3] sm:$0xff]
        %v4221 = vld [vmem:[%s3 + $0x8] sm:$0xff]
        %v4222 = vld [vmem:[%s3 + $0x10] sm:$0xff]
        %v4223 = vld [vmem:[%s3 + $0x18] sm:$0xff]
        %v4224 = vld [vmem:[%s3 + $0x20] sm:$0xff]
        %v4225 = vld [vmem:[%s3 + $0x28] sm:$0xff]
        %v4226 = vld [vmem:[%s3 + $0x30] sm:$0xff]
        %v4227 = vld [vmem:[%s3 + $0x38] sm:$0xff]
        %v4228 = vld [vmem:[%s3 + $0x40] sm:$0xff]
        %v4229 = vld [vmem:[%s3 + $0x48] sm:$0xff]
        %v4230 = vld [vmem:[%s3 + $0x50] sm:$0xff]
        %v4231 = vld [vmem:[%s3 + $0x58] sm:$0xff]
        %v4232 = vld [vmem:[%s3 + $0x60] sm:$0xff]
        %v4233 = vld [vmem:[%s3 + $0x68] sm:$0xff]
        %v4234 = vld [vmem:[%s3 + $0x70] sm:$0xff]
        %v4235 = vld [vmem:[%s3 + $0x78] sm:$0xff]
        %v4236 = vld [vmem:[%s3 + $0x80] sm:$0xff]
        %v4237 = vld [vmem:[%s3 + $0x88] sm:$0xff]
        %v4238 = vld [vmem:[%s3 + $0x90] sm:$0xff]
        %v4239 = vld [vmem:[%s3 + $0x98] sm:$0xff]
        %vm4240 = vcmp.lt.s32.totalorder %v4220, 10
        %vm4241 = vcmp.lt.s32.totalorder %v4221, 10
        %vm4242 = vcmp.lt.s32.totalorder %v4222, 10
        %vm4243 = vcmp.lt.s32.totalorder %v4223, 10
        %vm4244 = vcmp.lt.s32.totalorder %v4224, 10
        %vm4245 = vcmp.lt.s32.totalorder %v4225, 10
        %vm4246 = vcmp.lt.s32.totalorder %v4226, 10
        %vm4247 = vcmp.lt.s32.totalorder %v4227, 10
        %vm4248 = vcmp.lt.s32.totalorder %v4228, 10
        %vm4249 = vcmp.lt.s32.totalorder %v4229, 10
        %vm4250 = vcmp.lt.s32.totalorder %v4230, 10
        %vm4251 = vcmp.lt.s32.totalorder %v4231, 10
        %vm4252 = vcmp.lt.s32.totalorder %v4232, 10
        %vm4253 = vcmp.lt.s32.totalorder %v4233, 10
        %vm4254 = vcmp.lt.s32.totalorder %v4234, 10
        %vm4255 = vcmp.lt.s32.totalorder %v4235, 10
        %vm4256 = vcmp.lt.s32.totalorder %v4236, 10
        %vm4257 = vcmp.lt.s32.totalorder %v4237, 10
        %vm4258 = vcmp.lt.s32.totalorder %v4238, 10
        %vm4259 = vcmp.lt.s32.totalorder %v4239, 10
        %v4260 = vsel %vm4240, 1, 0
        %v4261 = vsel %vm4241, 1, 0
        %v4262 = vsel %vm4242, 1, 0
        %v4263 = vsel %vm4243, 1, 0
        %v4264 = vsel %vm4244, 1, 0
        %v4265 = vsel %vm4245, 1, 0
        %v4266 = vsel %vm4246, 1, 0
        %v4267 = vsel %vm4247, 1, 0
        %v4268 = vsel %vm4248, 1, 0
        %v4269 = vsel %vm4249, 1, 0
        %v4270 = vsel %vm4250, 1, 0
        %v4271 = vsel %vm4251, 1, 0
        %v4272 = vsel %vm4252, 1, 0
        %v4273 = vsel %vm4253, 1, 0
        %v4274 = vsel %vm4254, 1, 0
        %v4275 = vsel %vm4255, 1, 0
        %v4276 = vsel %vm4256, 1, 0
        %v4277 = vsel %vm4257, 1, 0
        %v4278 = vsel %vm4258, 1, 0
        %v4279 = vsel %vm4259, 1, 0
        %4280 = vset.pattern.permute.xlu0 0
        %4281 = vperm.xlu0 %4280, %v4260
        %v4282 = vpop.permute.xlu0 %4281
        %4283 = vset.pattern.permute.xlu0 0
        %4284 = vperm.xlu0 %4283, %v4261
        %v4285 = vpop.permute.xlu0 %4284
        %4286 = vset.pattern.permute.xlu0 0
        %4287 = vperm.xlu0 %4286, %v4262
        %v4288 = vpop.permute.xlu0 %4287
        %4289 = vset.pattern.permute.xlu0 0
        %4290 = vperm.xlu0 %4289, %v4263
        %v4291 = vpop.permute.xlu0 %4290
        %4292 = vset.pattern.permute.xlu0 0
        %4293 = vperm.xlu0 %4292, %v4264
        %v4294 = vpop.permute.xlu0 %4293
        %4295 = vset.pattern.permute.xlu0 0
        %4296 = vperm.xlu0 %4295, %v4265
        %v4297 = vpop.permute.xlu0 %4296
        %4298 = vset.pattern.permute.xlu0 0
        %4299 = vperm.xlu0 %4298, %v4266
        %v4300 = vpop.permute.xlu0 %4299
        %4301 = vset.pattern.permute.xlu0 0
        %4302 = vperm.xlu0 %4301, %v4267
        %v4303 = vpop.permute.xlu0 %4302
        %4304 = vset.pattern.permute.xlu0 0
        %4305 = vperm.xlu0 %4304, %v4268
        %v4306 = vpop.permute.xlu0 %4305
        %4307 = vset.pattern.permute.xlu0 0
        %4308 = vperm.xlu0 %4307, %v4269
        %v4309 = vpop.permute.xlu0 %4308
        %4310 = vset.pattern.permute.xlu0 0
        %4311 = vperm.xlu0 %4310, %v4270
        %v4312 = vpop.permute.xlu0 %4311
        %4313 = vset.pattern.permute.xlu0 0
        %4314 = vperm.xlu0 %4313, %v4271
        %v4315 = vpop.permute.xlu0 %4314
        %4316 = vset.pattern.permute.xlu0 0
        %4317 = vperm.xlu0 %4316, %v4272
        %v4318 = vpop.permute.xlu0 %4317
        %4319 = vset.pattern.permute.xlu0 0
        %4320 = vperm.xlu0 %4319, %v4273
        %v4321 = vpop.permute.xlu0 %4320
        %4322 = vset.pattern.permute.xlu0 0
        %4323 = vperm.xlu0 %4322, %v4274
        %v4324 = vpop.permute.xlu0 %4323
        %4325 = vset.pattern.permute.xlu0 0
        %4326 = vperm.xlu0 %4325, %v4275
        %v4327 = vpop.permute.xlu0 %4326
        %4328 = vset.pattern.permute.xlu0 0
        %4329 = vperm.xlu0 %4328, %v4276
        %v4330 = vpop.permute.xlu0 %4329
        %4331 = vset.pattern.permute.xlu0 0
        %4332 = vperm.xlu0 %4331, %v4277
        %v4333 = vpop.permute.xlu0 %4332
        %4334 = vset.pattern.permute.xlu0 0
        %4335 = vperm.xlu0 %4334, %v4278
        %v4336 = vpop.permute.xlu0 %4335
        %4337 = vset.pattern.permute.xlu0 0
        %4338 = vperm.xlu0 %4337, %v4279
        %v4339 = vpop.permute.xlu0 %4338
        %vm4340 = vcmp.eq.s32.totalorder %v4282, 1
        %vm4341 = vcmp.eq.s32.totalorder %v4285, 1
        %vm4342 = vcmp.eq.s32.totalorder %v4288, 1
        %vm4343 = vcmp.eq.s32.totalorder %v4291, 1
        %vm4344 = vcmp.eq.s32.totalorder %v4294, 1
        %vm4345 = vcmp.eq.s32.totalorder %v4297, 1
        %vm4346 = vcmp.eq.s32.totalorder %v4300, 1
        %vm4347 = vcmp.eq.s32.totalorder %v4303, 1
        %vm4348 = vcmp.eq.s32.totalorder %v4306, 1
        %vm4349 = vcmp.eq.s32.totalorder %v4309, 1
        %vm4350 = vcmp.eq.s32.totalorder %v4312, 1
        %vm4351 = vcmp.eq.s32.totalorder %v4315, 1
        %vm4352 = vcmp.eq.s32.totalorder %v4318, 1
        %vm4353 = vcmp.eq.s32.totalorder %v4321, 1
        %vm4354 = vcmp.eq.s32.totalorder %v4324, 1
        %vm4355 = vcmp.eq.s32.totalorder %v4327, 1
        %vm4356 = vcmp.eq.s32.totalorder %v4330, 1
        %vm4357 = vcmp.eq.s32.totalorder %v4333, 1
        %vm4358 = vcmp.eq.s32.totalorder %v4336, 1
        %vm4359 = vcmp.eq.s32.totalorder %v4339, 1
        %v4360 = vsel %vm4340, %v4200, 0.0
        %v4361 = vsel %vm4341, %v4201, 0.0
        %v4362 = vsel %vm4342, %v4202, 0.0
        %v4363 = vsel %vm4343, %v4203, 0.0
        %v4364 = vsel %vm4344, %v4204, 0.0
        %v4365 = vsel %vm4345, %v4205, 0.0
        %v4366 = vsel %vm4346, %v4206, 0.0
        %v4367 = vsel %vm4347, %v4207, 0.0
        %v4368 = vsel %vm4348, %v4208, 0.0
        %v4369 = vsel %vm4349, %v4209, 0.0
        %v4370 = vsel %vm4350, %v4210, 0.0
        %v4371 = vsel %vm4351, %v4211, 0.0
        %v4372 = vsel %vm4352, %v4212, 0.0
        %v4373 = vsel %vm4353, %v4213, 0.0
        %v4374 = vsel %vm4354, %v4214, 0.0
        %v4375 = vsel %vm4355, %v4215, 0.0
        %v4376 = vsel %vm4356, %v4216, 0.0
        %v4377 = vsel %vm4357, %v4217, 0.0
        %v4378 = vsel %vm4358, %v4218, 0.0
        %v4379 = vsel %vm4359, %v4219, 0.0
        %4380 = vst [vmem:[#allocation5] sm:$0xff] 0.0
        %4381 = vst [vmem:[#allocation5 + $0x8] sm:$0xff] 0.0
        %4382 = vst [vmem:[#allocation5 + $0x10] sm:$0xff] 0.0
        %4383 = vst [vmem:[#allocation5 + $0x18] sm:$0xff] 0.0
        %4384 = vst [vmem:[#allocation5 + $0x20] sm:$0x3] 0.0
        %4385 = vst [vmem:[#allocation5 + $0x22] sm:$0xff] %v4360
        %4386 = vst [vmem:[#allocation5 + $0x2a] sm:$0xff] %v4361
        %4387 = vst [vmem:[#allocation5 + $0x32] sm:$0xff] %v4362
        %4388 = vst [vmem:[#allocation5 + $0x3a] sm:$0xff] %v4363
        %4389 = vst [vmem:[#allocation5 + $0x42] sm:$0xff] %v4364
        %4390 = vst [vmem:[#allocation5 + $0x4a] sm:$0xff] %v4365
        %4391 = vst [vmem:[#allocation5 + $0x52] sm:$0xff] %v4366
        %4392 = vst [vmem:[#allocation5 + $0x5a] sm:$0xff] %v4367
        %4393 = vst [vmem:[#allocation5 + $0x62] sm:$0xff] %v4368
        %4394 = vst [vmem:[#allocation5 + $0x6a] sm:$0xff] %v4369
        %4395 = vst [vmem:[#allocation5 + $0x72] sm:$0xff] %v4370
        %4396 = vst [vmem:[#allocation5 + $0x7a] sm:$0xff] %v4371
        %4397 = vst [vmem:[#allocation5 + $0x82] sm:$0xff] %v4372
        %4398 = vst [vmem:[#allocation5 + $0x8a] sm:$0xff] %v4373
        %4399 = vst [vmem:[#allocation5 + $0x92] sm:$0xff] %v4374
        %4400 = vst [vmem:[#allocation5 + $0x9a] sm:$0xff] %v4375
        %4401 = vst [vmem:[#allocation5 + $0xa2] sm:$0xff] %v4376
        %4402 = vst [vmem:[#allocation5 + $0xaa] sm:$0xff] %v4377
        %4403 = vst [vmem:[#allocation5 + $0xb2] sm:$0xff] %v4378
        %4404 = vst [vmem:[#allocation5 + $0xba] sm:$0xff] %v4379
        %4405 = vst [vmem:[#allocation5 + $0xc0] sm:$0xff] 0.0
        %4406 = vst [vmem:[#allocation5 + $0xc8] sm:$0xff] 0.0
        %4407 = vst [vmem:[#allocation5 + $0xd0] sm:$0xff] 0.0
        %4408 = vst [vmem:[#allocation5 + $0xd8] sm:$0xff] 0.0
        %4409 = vst [vmem:[#allocation5 + $0xe0] sm:$0x3] 0.0
        %v4410 = vld [vmem:[#allocation5] sm:$0xff]
        %v4411 = vld [vmem:[#allocation5 + $0x8] sm:$0xff]
        %v4412 = vld [vmem:[#allocation5 + $0x10] sm:$0xff]
        %v4413 = vld [vmem:[#allocation5 + $0x18] sm:$0xff]
        %v4414 = vld [vmem:[#allocation5 + $0x20] sm:$0xff]
        %v4415 = vld [vmem:[#allocation5 + $0x28] sm:$0xff]
        %v4416 = vld [vmem:[#allocation5 + $0x30] sm:$0xff]
        %v4417 = vld [vmem:[#allocation5 + $0x38] sm:$0xff]
        %v4418 = vld [vmem:[#allocation5 + $0x40] sm:$0xff]
        %v4419 = vld [vmem:[#allocation5 + $0x48] sm:$0xff]
        %v4420 = vld [vmem:[#allocation5 + $0x50] sm:$0xff]
        %v4421 = vld [vmem:[#allocation5 + $0x58] sm:$0xff]
        %v4422 = vld [vmem:[#allocation5 + $0x60] sm:$0xff]
        %v4423 = vld [vmem:[#allocation5 + $0x68] sm:$0xff]
        %v4424 = vld [vmem:[#allocation5 + $0x70] sm:$0xff]
        %v4425 = vld [vmem:[#allocation5 + $0x78] sm:$0xff]
        %v4426 = vld [vmem:[#allocation5 + $0x80] sm:$0xff]
        %v4427 = vld [vmem:[#allocation5 + $0x88] sm:$0xff]
        %v4428 = vld [vmem:[#allocation5 + $0x90] sm:$0xff]
        %v4429 = vld [vmem:[#allocation5 + $0x98] sm:$0xff]
        %v4430 = vld [vmem:[#allocation5 + $0xa0] sm:$0xff]
        %v4431 = vld [vmem:[#allocation5 + $0xa8] sm:$0xff]
        %v4432 = vld [vmem:[#allocation5 + $0xb0] sm:$0xff]
        %v4433 = vld [vmem:[#allocation5 + $0xb8] sm:$0xff]
        %v4434 = vld [vmem:[#allocation5 + $0x1] sm:$0xff]
        %v4435 = vld [vmem:[#allocation5 + $0x9] sm:$0xff]
        %v4436 = vld [vmem:[#allocation5 + $0x11] sm:$0xff]
        %v4437 = vld [vmem:[#allocation5 + $0x19] sm:$0xff]
        %v4438 = vld [vmem:[#allocation5 + $0x21] sm:$0xff]
        %v4439 = vld [vmem:[#allocation5 + $0x29] sm:$0xff]
        %v4440 = vld [vmem:[#allocation5 + $0x31] sm:$0xff]
        %v4441 = vld [vmem:[#allocation5 + $0x39] sm:$0xff]
        %v4442 = vld [vmem:[#allocation5 + $0x41] sm:$0xff]
        %v4443 = vld [vmem:[#allocation5 + $0x49] sm:$0xff]
        %v4444 = vld [vmem:[#allocation5 + $0x51] sm:$0xff]
        %v4445 = vld [vmem:[#allocation5 + $0x59] sm:$0xff]
        %v4446 = vld [vmem:[#allocation5 + $0x61] sm:$0xff]
        %v4447 = vld [vmem:[#allocation5 + $0x69] sm:$0xff]
        %v4448 = vld [vmem:[#allocation5 + $0x71] sm:$0xff]
        %v4449 = vld [vmem:[#allocation5 + $0x79] sm:$0xff]
        %v4450 = vld [vmem:[#allocation5 + $0x81] sm:$0xff]
        %v4451 = vld [vmem:[#allocation5 + $0x89] sm:$0xff]
        %v4452 = vld [vmem:[#allocation5 + $0x91] sm:$0xff]
        %v4453 = vld [vmem:[#allocation5 + $0x99] sm:$0xff]
        %v4454 = vld [vmem:[#allocation5 + $0xa1] sm:$0xff]
        %v4455 = vld [vmem:[#allocation5 + $0xa9] sm:$0xff]
        %v4456 = vld [vmem:[#allocation5 + $0xb1] sm:$0xff]
        %v4457 = vld [vmem:[#allocation5 + $0xb9] sm:$0xff]
        %v4458 = vld [vmem:[#allocation5 + $0x2] sm:$0xff]
        %v4459 = vld [vmem:[#allocation5 + $0xa] sm:$0xff]
        %v4460 = vld [vmem:[#allocation5 + $0x12] sm:$0xff]
        %v4461 = vld [vmem:[#allocation5 + $0x1a] sm:$0xff]
        %v4462 = vld [vmem:[#allocation5 + $0x22] sm:$0xff]
        %v4463 = vld [vmem:[#allocation5 + $0x2a] sm:$0xff]
        %v4464 = vld [vmem:[#allocation5 + $0x32] sm:$0xff]
        %v4465 = vld [vmem:[#allocation5 + $0x3a] sm:$0xff]
        %v4466 = vld [vmem:[#allocation5 + $0x42] sm:$0xff]
        %v4467 = vld [vmem:[#allocation5 + $0x4a] sm:$0xff]
        %v4468 = vld [vmem:[#allocation5 + $0x52] sm:$0xff]
        %v4469 = vld [vmem:[#allocation5 + $0x5a] sm:$0xff]
        %v4470 = vld [vmem:[#allocation5 + $0x62] sm:$0xff]
        %v4471 = vld [vmem:[#allocation5 + $0x6a] sm:$0xff]
        %v4472 = vld [vmem:[#allocation5 + $0x72] sm:$0xff]
        %v4473 = vld [vmem:[#allocation5 + $0x7a] sm:$0xff]
        %v4474 = vld [vmem:[#allocation5 + $0x82] sm:$0xff]
        %v4475 = vld [vmem:[#allocation5 + $0x8a] sm:$0xff]
        %v4476 = vld [vmem:[#allocation5 + $0x92] sm:$0xff]
        %v4477 = vld [vmem:[#allocation5 + $0x9a] sm:$0xff]
        %v4478 = vld [vmem:[#allocation5 + $0xa2] sm:$0xff]
        %v4479 = vld [vmem:[#allocation5 + $0xaa] sm:$0xff]
        %v4480 = vld [vmem:[#allocation5 + $0xb2] sm:$0xff]
        %v4481 = vld [vmem:[#allocation5 + $0xba] sm:$0xff]
        %v4482 = vld [vmem:[#allocation5 + $0xc0] sm:$0xff]
        %v4483 = vld [vmem:[#allocation5 + $0xc8] sm:$0xff]
        %v4484 = vld [vmem:[#allocation5 + $0xc1] sm:$0xff]
        %v4485 = vld [vmem:[#allocation5 + $0xc9] sm:$0xff]
        %v4486 = vld [vmem:[#allocation5 + $0xc2] sm:$0xff]
        %v4487 = vld [vmem:[#allocation5 + $0xca] sm:$0xff]
        %v4488 = vld [vmem:[#allocation5 + $0xd0] sm:$0xff]
        %v4489 = vld [vmem:[#allocation5 + $0xd8] sm:$0xff]
        %v4490 = vld [vmem:[#allocation5 + $0xd1] sm:$0xff]
        %v4491 = vld [vmem:[#allocation5 + $0xd9] sm:$0xff]
        %v4492 = vld [vmem:[#allocation5 + $0x22] sm:$0xff]
        %v4493 = vld [vmem:[#allocation5 + $0x2a] sm:$0xff]
        %v4494 = vld [vmem:[#allocation5 + $0x32] sm:$0xff]
        %v4495 = vld [vmem:[#allocation5 + $0x3a] sm:$0xff]
        %v4496 = vld [vmem:[#allocation5 + $0x42] sm:$0xff]
        %v4497 = vld [vmem:[#allocation5 + $0x4a] sm:$0xff]
        %v4498 = vld [vmem:[#allocation5 + $0x52] sm:$0xff]
        %v4499 = vld [vmem:[#allocation5 + $0x5a] sm:$0xff]
        %v4500 = vld [vmem:[#allocation5 + $0x62] sm:$0xff]
        %v4501 = vld [vmem:[#allocation5 + $0x6a] sm:$0xff]
        %v4502 = vld [vmem:[#allocation5 + $0x72] sm:$0xff]
        %v4503 = vld [vmem:[#allocation5 + $0x7a] sm:$0xff]
        %v4504 = vld [vmem:[#allocation5 + $0x82] sm:$0xff]
        %v4505 = vld [vmem:[#allocation5 + $0x8a] sm:$0xff]
        %v4506 = vld [vmem:[#allocation5 + $0x92] sm:$0xff]
        %v4507 = vld [vmem:[#allocation5 + $0x9a] sm:$0xff]
        %v4508 = vld [vmem:[#allocation5 + $0xa2] sm:$0xff]
        %v4509 = vld [vmem:[#allocation5 + $0xaa] sm:$0xff]
        %v4510 = vld [vmem:[#allocation5 + $0xb2] sm:$0xff]
        %v4511 = vld [vmem:[#allocation5 + $0xba] sm:$0xff]
        %v4512 = vld [vmem:[#allocation5 + $0xc2] sm:$0xff]
        %v4513 = vld [vmem:[#allocation5 + $0xca] sm:$0xff]
        %v4514 = vld [vmem:[#allocation5 + $0xd2] sm:$0xff]
        %v4515 = vld [vmem:[#allocation5 + $0xda] sm:$0xff]
        %v4516 = vpack.c.bf16 %v4411, %v4410
        %v4517 = vpack.c.bf16 %v4435, %v4434
        %v4518 = vpack.c.bf16 %v4459, %v4458
        %v4519 = vpack.c.bf16 %v4413, %v4412
        %v4520 = vpack.c.bf16 %v4437, %v4436
        %v4521 = vpack.c.bf16 %v4461, %v4460
        %v4522 = vpack.c.bf16 %v4415, %v4414
        %v4523 = vpack.c.bf16 %v4439, %v4438
        %v4524 = vpack.c.bf16 %v4493, %v4492
        %v4525 = vpack.c.bf16 %v4463, %v4462
        %v4526 = vpack.c.bf16 %v4417, %v4416
        %v4527 = vpack.c.bf16 %v4441, %v4440
        %v4528 = vpack.c.bf16 %v4495, %v4494
        %v4529 = vpack.c.bf16 %v4465, %v4464
        %v4530 = vpack.c.bf16 %v4419, %v4418
        %v4531 = vpack.c.bf16 %v4443, %v4442
        %v4532 = vpack.c.bf16 %v4497, %v4496
        %v4533 = vpack.c.bf16 %v4467, %v4466
        %v4534 = vpack.c.bf16 %v4421, %v4420
        %v4535 = vpack.c.bf16 %v4445, %v4444
        %v4536 = vpack.c.bf16 %v4499, %v4498
        %v4537 = vpack.c.bf16 %v4469, %v4468
        %v4538 = vpack.c.bf16 %v4423, %v4422
        %v4539 = vpack.c.bf16 %v4447, %v4446
        %v4540 = vpack.c.bf16 %v4501, %v4500
        %v4541 = vpack.c.bf16 %v4471, %v4470
        %v4542 = vpack.c.bf16 %v4425, %v4424
        %v4543 = vpack.c.bf16 %v4449, %v4448
        %v4544 = vpack.c.bf16 %v4503, %v4502
        %v4545 = vpack.c.bf16 %v4473, %v4472
        %v4546 = vpack.c.bf16 %v4427, %v4426
        %v4547 = vpack.c.bf16 %v4451, %v4450
        %v4548 = vpack.c.bf16 %v4505, %v4504
        %v4549 = vpack.c.bf16 %v4475, %v4474
        %v4550 = vpack.c.bf16 %v4429, %v4428
        %v4551 = vpack.c.bf16 %v4453, %v4452
        %v4552 = vpack.c.bf16 %v4507, %v4506
        %v4553 = vpack.c.bf16 %v4477, %v4476
        %v4554 = vpack.c.bf16 %v4431, %v4430
        %v4555 = vpack.c.bf16 %v4455, %v4454
        %v4556 = vpack.c.bf16 %v4509, %v4508
        %v4557 = vpack.c.bf16 %v4479, %v4478
        %v4558 = vpack.c.bf16 %v4433, %v4432
        %v4559 = vpack.c.bf16 %v4457, %v4456
        %v4560 = vpack.c.bf16 %v4511, %v4510
        %v4561 = vpack.c.bf16 %v4481, %v4480
        %v4562 = vpack.c.bf16 %v4483, %v4482
        %v4563 = vpack.c.bf16 %v4485, %v4484
        %v4564 = vpack.c.bf16 %v4513, %v4512
        %v4565 = vpack.c.bf16 %v4487, %v4486
        %v4566 = vpack.c.bf16 %v4489, %v4488
        %v4567 = vpack.c.bf16 %v4491, %v4490
        %v4568 = vpack.c.bf16 %v4515, %v4514
        %v4569 = vld [vmem:[#allocation10 + $0x6c0] sm:$0xf]
        %v4570 = vld [vmem:[#allocation10 + $0x6c4] sm:$0xf]
        %v4571 = vld [vmem:[#allocation10 + $0x6c8] sm:$0xf]
        %v4572 = vld [vmem:[#allocation10 + $0x6cc] sm:$0xf]
        %v4573 = vld [vmem:[#allocation10 + $0x6d0] sm:$0xf]
        %v4574 = vld [vmem:[#allocation10 + $0x6d4] sm:$0xf]
        %v4575 = vld [vmem:[#allocation10 + $0x6d8] sm:$0xf]
        %v4576 = vld [vmem:[#allocation10 + $0x6dc] sm:$0xf]
        %v4577 = vld [vmem:[#allocation10 + $0x6e0] sm:$0xf]
        %v4578 = vld [vmem:[#allocation10 + $0x6e4] sm:$0xf]
        %v4579 = vld [vmem:[#allocation10 + $0x6e8] sm:$0xf]
        %v4580 = vld [vmem:[#allocation10 + $0x6ec] sm:$0xf]
        %v4581 = vld [vmem:[#allocation10 + $0x6f0] sm:$0xf]
        %v4582 = vld [vmem:[#allocation10 + $0x6f4] sm:$0xf]
        %v4583 = vld [vmem:[#allocation10 + $0x6f8] sm:$0xf]
        %v4584 = vld [vmem:[#allocation10 + $0x6fc] sm:$0xf]
        %v4585 = vld [vmem:[#allocation10 + $0x700] sm:$0xf]
        %v4586 = vld [vmem:[#allocation10 + $0x704] sm:$0xf]
        %v4587 = vld [vmem:[#allocation10 + $0x708] sm:$0xf]
        %v4588 = vld [vmem:[#allocation10 + $0x70c] sm:$0xf]
        %v4589 = vld [vmem:[#allocation10 + $0x710] sm:$0xf]
        %v4590 = vld [vmem:[#allocation10 + $0x714] sm:$0xf]
        %v4591 = vld [vmem:[#allocation10 + $0x718] sm:$0xf]
        %v4592 = vld [vmem:[#allocation10 + $0x71c] sm:$0xf]
        %v4593 = vld [vmem:[#allocation10 + $0x720] sm:$0xf]
        %v4594 = vld [vmem:[#allocation10 + $0x724] sm:$0xf]
        %v4595 = vld [vmem:[#allocation10 + $0x728] sm:$0xf]
        %v4596 = vld [vmem:[#allocation10 + $0x72c] sm:$0xf]
        %v4597 = vld [vmem:[#allocation10 + $0x730] sm:$0xf]
        %v4598 = vld [vmem:[#allocation10 + $0x734] sm:$0xf]
        %v4599 = vld [vmem:[#allocation10 + $0x738] sm:$0xf]
        %v4600 = vld [vmem:[#allocation10 + $0x73c] sm:$0xf]
        %v4601 = vld [vmem:[#allocation10 + $0x740] sm:$0xf]
        %v4602 = vld [vmem:[#allocation10 + $0x744] sm:$0xf]
        %v4603 = vld [vmem:[#allocation10 + $0x748] sm:$0xf]
        %v4604 = vld [vmem:[#allocation10 + $0x74c] sm:$0xf]
        %v4605 = vld [vmem:[#allocation10 + $0x750] sm:$0xf]
        %v4606 = vld [vmem:[#allocation10 + $0x754] sm:$0xf]
        %v4607 = vld [vmem:[#allocation10 + $0x758] sm:$0xf]
        %v4608 = vld [vmem:[#allocation10 + $0x75c] sm:$0xf]
        %v4609 = vld [vmem:[#allocation10 + $0x760] sm:$0xf]
        %v4610 = vld [vmem:[#allocation10 + $0x764] sm:$0xf]
        %v4611 = vld [vmem:[#allocation10 + $0x768] sm:$0xf]
        %v4612 = vld [vmem:[#allocation10 + $0x76c] sm:$0xf]
        %v4613 = vld [vmem:[#allocation10 + $0x770] sm:$0xf]
        %v4614 = vld [vmem:[#allocation10 + $0x774] sm:$0xf]
        %v4615 = vld [vmem:[#allocation10 + $0x778] sm:$0xf]
        %v4616 = vld [vmem:[#allocation10 + $0x77c] sm:$0xf]
        %v4617 = vld [vmem:[#allocation10 + $0x780] sm:$0xf]
        %v4618 = vld [vmem:[#allocation10 + $0x784] sm:$0xf]
        %v4619 = vld [vmem:[#allocation10 + $0x788] sm:$0xf]
        %v4620 = vld [vmem:[#allocation10 + $0x78c] sm:$0xf]
        %v4621 = vld [vmem:[#allocation10 + $0x790] sm:$0xf]
        %v4622 = vld [vmem:[#allocation10 + $0x794] sm:$0xf]
        %v4623 = vld [vmem:[#allocation10 + $0x798] sm:$0xf]
        %v4624 = vld [vmem:[#allocation10 + $0x79c] sm:$0xf]
        %v4625 = vld [vmem:[#allocation10 + $0x7a0] sm:$0xf]
        %v4626 = vld [vmem:[#allocation10 + $0x7a4] sm:$0xf]
        %v4627 = vld [vmem:[#allocation10 + $0x7a8] sm:$0xf]
        %v4628 = vld [vmem:[#allocation10 + $0x7ac] sm:$0xf]
        %v4629 = vld [vmem:[#allocation10 + $0x7b0] sm:$0xf]
        %v4630 = vld [vmem:[#allocation10 + $0x7b4] sm:$0xf]
        %v4631 = vld [vmem:[#allocation10 + $0x7b8] sm:$0xf]
        %v4632 = vld [vmem:[#allocation10 + $0x7bc] sm:$0xf]
        %v4633 = vld [vmem:[#allocation10 + $0x7c0] sm:$0xf]
        %v4634 = vld [vmem:[#allocation10 + $0x7c4] sm:$0xf]
        %v4635 = vld [vmem:[#allocation10 + $0x7c8] sm:$0xf]
        %v4636 = vld [vmem:[#allocation10 + $0x7cc] sm:$0xf]
        %v4637 = vld [vmem:[#allocation10 + $0x7d0] sm:$0xf]
        %v4638 = vld [vmem:[#allocation10 + $0x7d4] sm:$0xf]
        %v4639 = vld [vmem:[#allocation10 + $0x7d8] sm:$0xf]
        %v4640 = vld [vmem:[#allocation10 + $0x7dc] sm:$0xf]
        %v4641 = vld [vmem:[#allocation10 + $0x7e0] sm:$0xf]
        %v4642 = vld [vmem:[#allocation10 + $0x7e4] sm:$0xf]
        %v4643 = vld [vmem:[#allocation10 + $0x7e8] sm:$0xf]
        %v4644 = vld [vmem:[#allocation10 + $0x7ec] sm:$0xf]
        %v4645 = vld [vmem:[#allocation10 + $0x7f0] sm:$0xf]
        %v4646 = vld [vmem:[#allocation10 + $0x7f4] sm:$0xf]
        %v4647 = vld [vmem:[#allocation10 + $0x7f8] sm:$0xf]
        %v4648 = vld [vmem:[#allocation10 + $0x7fc] sm:$0xf]
        %v4649 = vld [vmem:[#allocation10 + $0x800] sm:$0xf]
        %v4650 = vld [vmem:[#allocation10 + $0x804] sm:$0xf]
        %v4651 = vld [vmem:[#allocation10 + $0x808] sm:$0xf]
        %v4652 = vld [vmem:[#allocation10 + $0x80c] sm:$0xf]
        %v4653 = vld [vmem:[#allocation10 + $0x810] sm:$0xf]
        %v4654 = vld [vmem:[#allocation10 + $0x814] sm:$0xf]
        %v4655 = vld [vmem:[#allocation10 + $0x818] sm:$0xf]
        %v4656 = vld [vmem:[#allocation10 + $0x81c] sm:$0xf]
        %v4657 = vld [vmem:[#allocation10 + $0x820] sm:$0xf]
        %v4658 = vld [vmem:[#allocation10 + $0x824] sm:$0xf]
        %v4659 = vld [vmem:[#allocation10 + $0x828] sm:$0xf]
        %v4660 = vld [vmem:[#allocation10 + $0x82c] sm:$0xf]
        %v4661 = vld [vmem:[#allocation10 + $0x830] sm:$0xf]
        %v4662 = vld [vmem:[#allocation10 + $0x834] sm:$0xf]
        %v4663 = vld [vmem:[#allocation10 + $0x838] sm:$0xf]
        %v4664 = vld [vmem:[#allocation10 + $0x83c] sm:$0xf]
        %v4665 = vld [vmem:[#allocation10 + $0x840] sm:$0xf]
        %v4666 = vld [vmem:[#allocation10 + $0x844] sm:$0xf]
        %v4667 = vld [vmem:[#allocation10 + $0x848] sm:$0xf]
        %v4668 = vld [vmem:[#allocation10 + $0x84c] sm:$0xf]
        %v4669 = vld [vmem:[#allocation10 + $0x850] sm:$0xf]
        %v4670 = vld [vmem:[#allocation10 + $0x854] sm:$0xf]
        %v4671 = vld [vmem:[#allocation10 + $0x858] sm:$0xf]
        %v4672 = vld [vmem:[#allocation10 + $0x85c] sm:$0xf]
        %v4673 = vld [vmem:[#allocation10 + $0x860] sm:$0xf]
        %v4674 = vld [vmem:[#allocation10 + $0x864] sm:$0xf]
        %v4675 = vld [vmem:[#allocation10 + $0x868] sm:$0xf]
        %v4676 = vld [vmem:[#allocation10 + $0x86c] sm:$0xf]
        %v4677 = vld [vmem:[#allocation10 + $0x870] sm:$0xf]
        %v4678 = vld [vmem:[#allocation10 + $0x874] sm:$0xf]
        %v4679 = vld [vmem:[#allocation10 + $0x878] sm:$0xf]
        %v4680 = vld [vmem:[#allocation10 + $0x87c] sm:$0xf]
        %v4681 = vld [vmem:[#allocation10 + $0x880] sm:$0xf]
        %v4682 = vld [vmem:[#allocation10 + $0x884] sm:$0xf]
        %v4683 = vld [vmem:[#allocation10 + $0x888] sm:$0xf]
        %v4684 = vld [vmem:[#allocation10 + $0x88c] sm:$0xf]
        %v4685 = vld [vmem:[#allocation10 + $0x890] sm:$0xf]
        %v4686 = vld [vmem:[#allocation10 + $0x894] sm:$0xf]
        %v4687 = vld [vmem:[#allocation10 + $0x898] sm:$0xf]
        %v4688 = vld [vmem:[#allocation10 + $0x89c] sm:$0xf]
        %v4689 = vld [vmem:[#allocation10 + $0x8a0] sm:$0xf]
        %v4690 = vld [vmem:[#allocation10 + $0x8a4] sm:$0xf]
        %v4691 = vld [vmem:[#allocation10 + $0x8a8] sm:$0xf]
        %v4692 = vld [vmem:[#allocation10 + $0x8ac] sm:$0xf]
        %v4693 = vld [vmem:[#allocation10 + $0x8b0] sm:$0xf]
        %v4694 = vld [vmem:[#allocation10 + $0x8b4] sm:$0xf]
        %v4695 = vld [vmem:[#allocation10 + $0x8b8] sm:$0xf]
        %v4696 = vld [vmem:[#allocation10 + $0x8bc] sm:$0xf]
        %v4697 = vld [vmem:[#allocation10 + $0x8c0] sm:$0xf]
        %v4698 = vld [vmem:[#allocation10 + $0x8c4] sm:$0xf]
        %v4699 = vld [vmem:[#allocation10 + $0x8c8] sm:$0xf]
        %v4700 = vld [vmem:[#allocation10 + $0x8cc] sm:$0xf]
        %v4701 = vld [vmem:[#allocation10 + $0x8d0] sm:$0xf]
        %v4702 = vld [vmem:[#allocation10 + $0x8d4] sm:$0xf]
        %v4703 = vld [vmem:[#allocation10 + $0x8d8] sm:$0xf]
        %v4704 = vld [vmem:[#allocation10 + $0x8dc] sm:$0xf]
        %v4705 = vld [vmem:[#allocation10 + $0x8e0] sm:$0xf]
        %v4706 = vld [vmem:[#allocation10 + $0x8e4] sm:$0xf]
        %v4707 = vld [vmem:[#allocation10 + $0x8e8] sm:$0xf]
        %v4708 = vld [vmem:[#allocation10 + $0x8ec] sm:$0xf]
        %v4709 = vld [vmem:[#allocation10 + $0x8f0] sm:$0xf]
        %v4710 = vld [vmem:[#allocation10 + $0x8f4] sm:$0xf]
        %v4711 = vld [vmem:[#allocation10 + $0x8f8] sm:$0xf]
        %v4712 = vld [vmem:[#allocation10 + $0x8fc] sm:$0xf]
        %v4713 = vld [vmem:[#allocation12 + $0x3] sm:$0x1]
        %v4714 = vlaneseq
        %v4715 = vshrl.u32 %v4714, 7
        %v4716 = vsub.s32 0, %v4715
        %v4717 = vrot.slane %v4713, %v4716
        %v4862 = vunpack.c.l.b16 %v4569
        %v4863 = vunpack.c.l.b16 %v4570
        %v4864 = vunpack.c.l.b16 %v4571
        %v4865 = vunpack.c.l.b16 %v4572
        %v4866 = vunpack.c.l.b16 %v4573
        %v4867 = vunpack.c.l.b16 %v4574
        %v4868 = vunpack.c.l.b16 %v4575
        %v4869 = vunpack.c.l.b16 %v4576
        %v4870 = vunpack.c.l.b16 %v4577
        %v4871 = vunpack.c.l.b16 %v4578
        %v4872 = vunpack.c.l.b16 %v4579
        %v4873 = vunpack.c.l.b16 %v4580
        %v4874 = vunpack.c.l.b16 %v4581
        %v4875 = vunpack.c.l.b16 %v4582
        %v4876 = vunpack.c.l.b16 %v4583
        %v4877 = vunpack.c.l.b16 %v4584
        %v4878 = vunpack.c.l.b16 %v4585
        %v4879 = vunpack.c.l.b16 %v4586
        %v4880 = vunpack.c.l.b16 %v4587
        %v4881 = vunpack.c.l.b16 %v4588
        %v4882 = vunpack.c.l.b16 %v4589
        %v4883 = vunpack.c.l.b16 %v4590
        %v4884 = vunpack.c.l.b16 %v4591
        %v4885 = vunpack.c.l.b16 %v4592
        %v4886 = vunpack.c.l.b16 %v4593
        %v4887 = vunpack.c.l.b16 %v4594
        %v4888 = vunpack.c.l.b16 %v4595
        %v4889 = vunpack.c.l.b16 %v4596
        %v4890 = vunpack.c.l.b16 %v4597
        %v4891 = vunpack.c.l.b16 %v4598
        %v4892 = vunpack.c.l.b16 %v4599
        %v4893 = vunpack.c.l.b16 %v4600
        %v4894 = vunpack.c.l.b16 %v4601
        %v4895 = vunpack.c.l.b16 %v4602
        %v4896 = vunpack.c.l.b16 %v4603
        %v4897 = vunpack.c.l.b16 %v4604
        %v4898 = vunpack.c.l.b16 %v4605
        %v4899 = vunpack.c.l.b16 %v4606
        %v4900 = vunpack.c.l.b16 %v4607
        %v4901 = vunpack.c.l.b16 %v4608
        %v4902 = vunpack.c.l.b16 %v4609
        %v4903 = vunpack.c.l.b16 %v4610
        %v4904 = vunpack.c.l.b16 %v4611
        %v4905 = vunpack.c.l.b16 %v4612
        %v4906 = vunpack.c.l.b16 %v4613
        %v4907 = vunpack.c.l.b16 %v4614
        %v4908 = vunpack.c.l.b16 %v4615
        %v4909 = vunpack.c.l.b16 %v4616
        %v4910 = vunpack.c.l.b16 %v4617
        %v4911 = vunpack.c.l.b16 %v4618
        %v4912 = vunpack.c.l.b16 %v4619
        %v4913 = vunpack.c.l.b16 %v4620
        %v4914 = vunpack.c.l.b16 %v4621
        %v4915 = vunpack.c.l.b16 %v4622
        %v4916 = vunpack.c.l.b16 %v4623
        %v4917 = vunpack.c.l.b16 %v4624
        %v4918 = vunpack.c.l.b16 %v4625
        %v4919 = vunpack.c.l.b16 %v4626
        %v4920 = vunpack.c.l.b16 %v4627
        %v4921 = vunpack.c.l.b16 %v4628
        %v4922 = vunpack.c.l.b16 %v4629
        %v4923 = vunpack.c.l.b16 %v4630
        %v4924 = vunpack.c.l.b16 %v4631
        %v4925 = vunpack.c.l.b16 %v4632
        %v4926 = vunpack.c.l.b16 %v4633
        %v4927 = vunpack.c.l.b16 %v4634
        %v4928 = vunpack.c.l.b16 %v4635
        %v4929 = vunpack.c.l.b16 %v4636
        %v4930 = vunpack.c.l.b16 %v4637
        %v4931 = vunpack.c.l.b16 %v4638
        %v4932 = vunpack.c.l.b16 %v4639
        %v4933 = vunpack.c.l.b16 %v4640
        %v4934 = vunpack.c.l.b16 %v4641
        %v4935 = vunpack.c.l.b16 %v4642
        %v4936 = vunpack.c.l.b16 %v4643
        %v4937 = vunpack.c.l.b16 %v4644
        %v4938 = vunpack.c.l.b16 %v4645
        %v4939 = vunpack.c.l.b16 %v4646
        %v4940 = vunpack.c.l.b16 %v4647
        %v4941 = vunpack.c.l.b16 %v4648
        %v4942 = vunpack.c.l.b16 %v4649
        %v4943 = vunpack.c.l.b16 %v4650
        %v4944 = vunpack.c.l.b16 %v4651
        %v4945 = vunpack.c.l.b16 %v4652
        %v4946 = vunpack.c.l.b16 %v4653
        %v4947 = vunpack.c.l.b16 %v4654
        %v4948 = vunpack.c.l.b16 %v4655
        %v4949 = vunpack.c.l.b16 %v4656
        %v4950 = vunpack.c.l.b16 %v4657
        %v4951 = vunpack.c.l.b16 %v4658
        %v4952 = vunpack.c.l.b16 %v4659
        %v4953 = vunpack.c.l.b16 %v4660
        %v4954 = vunpack.c.l.b16 %v4661
        %v4955 = vunpack.c.l.b16 %v4662
        %v4956 = vunpack.c.l.b16 %v4663
        %v4957 = vunpack.c.l.b16 %v4664
        %v4958 = vunpack.c.l.b16 %v4665
        %v4959 = vunpack.c.l.b16 %v4666
        %v4960 = vunpack.c.l.b16 %v4667
        %v4961 = vunpack.c.l.b16 %v4668
        %v4962 = vunpack.c.l.b16 %v4669
        %v4963 = vunpack.c.l.b16 %v4670
        %v4964 = vunpack.c.l.b16 %v4671
        %v4965 = vunpack.c.l.b16 %v4672
        %v4966 = vunpack.c.l.b16 %v4673
        %v4967 = vunpack.c.l.b16 %v4674
        %v4968 = vunpack.c.l.b16 %v4675
        %v4969 = vunpack.c.l.b16 %v4676
        %v4970 = vunpack.c.l.b16 %v4677
        %v4971 = vunpack.c.l.b16 %v4678
        %v4972 = vunpack.c.l.b16 %v4679
        %v4973 = vunpack.c.l.b16 %v4680
        %v4974 = vunpack.c.l.b16 %v4681
        %v4975 = vunpack.c.l.b16 %v4682
        %v4976 = vunpack.c.l.b16 %v4683
        %v4977 = vunpack.c.l.b16 %v4684
        %v4978 = vunpack.c.l.b16 %v4685
        %v4979 = vunpack.c.l.b16 %v4686
        %v4980 = vunpack.c.l.b16 %v4687
        %v4981 = vunpack.c.l.b16 %v4688
        %v4982 = vunpack.c.l.b16 %v4689
        %v4983 = vunpack.c.l.b16 %v4690
        %v4984 = vunpack.c.l.b16 %v4691
        %v4985 = vunpack.c.l.b16 %v4692
        %v4986 = vunpack.c.l.b16 %v4693
        %v4987 = vunpack.c.l.b16 %v4694
        %v4988 = vunpack.c.l.b16 %v4695
        %v4989 = vunpack.c.l.b16 %v4696
        %v4990 = vunpack.c.l.b16 %v4697
        %v4991 = vunpack.c.l.b16 %v4698
        %v4992 = vunpack.c.l.b16 %v4699
        %v4993 = vunpack.c.l.b16 %v4700
        %v4994 = vunpack.c.l.b16 %v4701
        %v4995 = vunpack.c.l.b16 %v4702
        %v4996 = vunpack.c.l.b16 %v4703
        %v4997 = vunpack.c.l.b16 %v4704
        %v4998 = vunpack.c.l.b16 %v4705
        %v4999 = vunpack.c.l.b16 %v4706
        %v5000 = vunpack.c.l.b16 %v4707
        %v5001 = vunpack.c.l.b16 %v4708
        %v5002 = vunpack.c.l.b16 %v4709
        %v5003 = vunpack.c.l.b16 %v4710
        %v5004 = vunpack.c.l.b16 %v4711
        %v5005 = vunpack.c.l.b16 %v4712
        %v5006 = vpack.c.b16 %v4863, %v4862
        %v5007 = vpack.c.b16 %v4865, %v4864
        %v5008 = vpack.c.b16 %v4867, %v4866
        %v5009 = vpack.c.b16 %v4869, %v4868
        %v5010 = vpack.c.b16 %v4871, %v4870
        %v5011 = vpack.c.b16 %v4873, %v4872
        %v5012 = vpack.c.b16 %v4875, %v4874
        %v5013 = vpack.c.b16 %v4877, %v4876
        %v5014 = vpack.c.b16 %v4879, %v4878
        %v5015 = vpack.c.b16 %v4881, %v4880
        %v5016 = vpack.c.b16 %v4883, %v4882
        %v5017 = vpack.c.b16 %v4885, %v4884
        %v5018 = vpack.c.b16 %v4887, %v4886
        %v5019 = vpack.c.b16 %v4889, %v4888
        %v5020 = vpack.c.b16 %v4891, %v4890
        %v5021 = vpack.c.b16 %v4893, %v4892
        %v5022 = vpack.c.b16 %v4895, %v4894
        %v5023 = vpack.c.b16 %v4897, %v4896
        %v5024 = vpack.c.b16 %v4899, %v4898
        %v5025 = vpack.c.b16 %v4901, %v4900
        %v5026 = vpack.c.b16 %v4903, %v4902
        %v5027 = vpack.c.b16 %v4905, %v4904
        %v5028 = vpack.c.b16 %v4907, %v4906
        %v5029 = vpack.c.b16 %v4909, %v4908
        %v5030 = vpack.c.b16 %v4911, %v4910
        %v5031 = vpack.c.b16 %v4913, %v4912
        %v5032 = vpack.c.b16 %v4915, %v4914
        %v5033 = vpack.c.b16 %v4917, %v4916
        %v5034 = vpack.c.b16 %v4919, %v4918
        %v5035 = vpack.c.b16 %v4921, %v4920
        %v5036 = vpack.c.b16 %v4923, %v4922
        %v5037 = vpack.c.b16 %v4925, %v4924
        %v5038 = vpack.c.b16 %v4927, %v4926
        %v5039 = vpack.c.b16 %v4929, %v4928
        %v5040 = vpack.c.b16 %v4931, %v4930
        %v5041 = vpack.c.b16 %v4933, %v4932
        %v5042 = vpack.c.b16 %v4935, %v4934
        %v5043 = vpack.c.b16 %v4937, %v4936
        %v5044 = vpack.c.b16 %v4939, %v4938
        %v5045 = vpack.c.b16 %v4941, %v4940
        %v5046 = vpack.c.b16 %v4943, %v4942
        %v5047 = vpack.c.b16 %v4945, %v4944
        %v5048 = vpack.c.b16 %v4947, %v4946
        %v5049 = vpack.c.b16 %v4949, %v4948
        %v5050 = vpack.c.b16 %v4951, %v4950
        %v5051 = vpack.c.b16 %v4953, %v4952
        %v5052 = vpack.c.b16 %v4955, %v4954
        %v5053 = vpack.c.b16 %v4957, %v4956
        %v5054 = vpack.c.b16 %v4959, %v4958
        %v5055 = vpack.c.b16 %v4961, %v4960
        %v5056 = vpack.c.b16 %v4963, %v4962
        %v5057 = vpack.c.b16 %v4965, %v4964
        %v5058 = vpack.c.b16 %v4967, %v4966
        %v5059 = vpack.c.b16 %v4969, %v4968
        %v5060 = vpack.c.b16 %v4971, %v4970
        %v5061 = vpack.c.b16 %v4973, %v4972
        %v5062 = vpack.c.b16 %v4975, %v4974
        %v5063 = vpack.c.b16 %v4977, %v4976
        %v5064 = vpack.c.b16 %v4979, %v4978
        %v5065 = vpack.c.b16 %v4981, %v4980
        %v5066 = vpack.c.b16 %v4983, %v4982
        %v5067 = vpack.c.b16 %v4985, %v4984
        %v5068 = vpack.c.b16 %v4987, %v4986
        %v5069 = vpack.c.b16 %v4989, %v4988
        %v5070 = vpack.c.b16 %v4991, %v4990
        %v5071 = vpack.c.b16 %v4993, %v4992
        %v5072 = vpack.c.b16 %v4995, %v4994
        %v5073 = vpack.c.b16 %v4997, %v4996
        %v5074 = vpack.c.b16 %v4999, %v4998
        %v5075 = vpack.c.b16 %v5001, %v5000
        %v5076 = vpack.c.b16 %v5003, %v5002
        %v5077 = vpack.c.b16 %v5005, %v5004
        %5150 = vmatprep.subr.bf16.mxu0 0
        %5151 = vmatpush1.bf16.msra.mxu0 %v5013
        %5152 = vmatprep.subr.bf16.mxu0 0
        %5153 = vmatpush1.bf16.msra.mxu0 %v5012
        %5154 = vmatprep.subr.bf16.mxu0 0
        %5155 = vmatpush1.bf16.msra.mxu0 %v5011
        %5156 = vmatprep.subr.bf16.mxu0 0
        %5157 = vmatpush1.bf16.msra.mxu0 %v5010
        %5158 = vmatprep.subr.bf16.mxu0 0
        %5159 = vmatpush1.bf16.msra.mxu0 %v5009
        %5160 = vmatprep.subr.bf16.mxu0 0
        %5161 = vmatpush1.bf16.msra.mxu0 %v5008
        %5162 = vmatprep.subr.bf16.mxu0 0
        %5163 = vmatpush1.bf16.msra.mxu0 %v5007
        %5164 = vmatprep.subr.bf16.mxu0 0
        %5165 = vmatpush1.bf16.msra.mxu0 %v5006
        %5166 = vmatprep.subr.bf16.mxu0 0
        %5167 = vmatpush2.bf16.msra.mxu0 %v5021
        %5168 = vmatprep.subr.bf16.mxu0 0
        %5169 = vmatpush2.bf16.msra.mxu0 %v5020
        %5170 = vmatprep.subr.bf16.mxu0 0
        %5171 = vmatpush2.bf16.msra.mxu0 %v5019
        %5172 = vmatprep.subr.bf16.mxu0 0
        %5173 = vmatpush2.bf16.msra.mxu0 %v5018
        %5174 = vmatprep.subr.bf16.mxu0 0
        %5175 = vmatpush2.bf16.msra.mxu0 %v5017
        %5176 = vmatprep.subr.bf16.mxu0 0
        %5177 = vmatpush2.bf16.msra.mxu0 %v5016
        %5178 = vmatprep.subr.bf16.mxu0 0
        %5179 = vmatpush2.bf16.msra.mxu0 %v5015
        %5180 = vmatprep.subr.bf16.mxu0 0
        %5181 = vmatpush2.bf16.msra.mxu0 %v5014
        %5182 = vmatprep.mubr.bf16.mxu0 %v4517
        %5183 = vmatmul.mubr.bf16.gmra.mxu0 %v4516
        %v5184 = vpop.f32.mrf.mxu0
        %v5185 = vadd.f32 %v4717, %v5184
        %v5186 = vpop.f32.mrf.mxu0
        %v5187 = vpop.f32.mrf.mxu0
        %v5188 = vadd.f32 %v4717, %v5187
        %v5189 = vpop.f32.mrf.mxu0
        %5190 = vmatprep.mubr.bf16.mxu0 %v4520
        %5191 = vmatmul.mubr.bf16.gmra.mxu0 %v4519
        %v5192 = vpop.f32.mrf.mxu0
        %v5193 = vadd.f32 %v4717, %v5192
        %v5194 = vpop.f32.mrf.mxu0
        %v5195 = vpop.f32.mrf.mxu0
        %v5196 = vadd.f32 %v4717, %v5195
        %v5197 = vpop.f32.mrf.mxu0
        %5198 = vmatprep.mubr.bf16.mxu0 %v4523
        %5199 = vmatmul.mubr.bf16.gmra.mxu0 %v4522
        %v5200 = vpop.f32.mrf.mxu0
        %v5201 = vadd.f32 %v4717, %v5200
        %v5202 = vpop.f32.mrf.mxu0
        %v5203 = vpop.f32.mrf.mxu0
        %v5204 = vadd.f32 %v4717, %v5203
        %v5205 = vpop.f32.mrf.mxu0
        %5206 = vmatprep.mubr.bf16.mxu0 %v4527
        %5207 = vmatmul.mubr.bf16.gmra.mxu0 %v4526
        %v5208 = vpop.f32.mrf.mxu0
        %v5209 = vadd.f32 %v4717, %v5208
        %v5210 = vpop.f32.mrf.mxu0
        %v5211 = vpop.f32.mrf.mxu0
        %v5212 = vadd.f32 %v4717, %v5211
        %v5213 = vpop.f32.mrf.mxu0
        %5214 = vmatprep.mubr.bf16.mxu0 %v4531
        %5215 = vmatmul.mubr.bf16.gmra.mxu0 %v4530
        %v5216 = vpop.f32.mrf.mxu0
        %v5217 = vadd.f32 %v4717, %v5216
        %v5218 = vpop.f32.mrf.mxu0
        %v5219 = vpop.f32.mrf.mxu0
        %v5220 = vadd.f32 %v4717, %v5219
        %v5221 = vpop.f32.mrf.mxu0
        %5222 = vmatprep.mubr.bf16.mxu0 %v4535
        %5223 = vmatmul.mubr.bf16.gmra.mxu0 %v4534
        %v5224 = vpop.f32.mrf.mxu0
        %v5225 = vadd.f32 %v4717, %v5224
        %v5226 = vpop.f32.mrf.mxu0
        %v5227 = vpop.f32.mrf.mxu0
        %v5228 = vadd.f32 %v4717, %v5227
        %v5229 = vpop.f32.mrf.mxu0
        %5230 = vmatprep.mubr.bf16.mxu0 %v4539
        %5231 = vmatmul.mubr.bf16.gmra.mxu0 %v4538
        %v5232 = vpop.f32.mrf.mxu0
        %v5233 = vadd.f32 %v4717, %v5232
        %v5234 = vpop.f32.mrf.mxu0
        %v5235 = vpop.f32.mrf.mxu0
        %v5236 = vadd.f32 %v4717, %v5235
        %v5237 = vpop.f32.mrf.mxu0
        %5238 = vmatprep.mubr.bf16.mxu0 %v4543
        %5239 = vmatmul.mubr.bf16.gmra.mxu0 %v4542
        %v5240 = vpop.f32.mrf.mxu0
        %v5241 = vadd.f32 %v4717, %v5240
        %v5242 = vpop.f32.mrf.mxu0
        %v5243 = vpop.f32.mrf.mxu0
        %v5244 = vadd.f32 %v4717, %v5243
        %v5245 = vpop.f32.mrf.mxu0
        %5246 = vmatprep.mubr.bf16.mxu0 %v4547
        %5247 = vmatmul.mubr.bf16.gmra.mxu0 %v4546
        %v5248 = vpop.f32.mrf.mxu0
        %v5249 = vadd.f32 %v4717, %v5248
        %v5250 = vpop.f32.mrf.mxu0
        %v5251 = vpop.f32.mrf.mxu0
        %v5252 = vadd.f32 %v4717, %v5251
        %v5253 = vpop.f32.mrf.mxu0
        %5254 = vmatprep.mubr.bf16.mxu0 %v4551
        %5255 = vmatmul.mubr.bf16.gmra.mxu0 %v4550
        %v5256 = vpop.f32.mrf.mxu0
        %v5257 = vadd.f32 %v4717, %v5256
        %v5258 = vpop.f32.mrf.mxu0
        %v5259 = vpop.f32.mrf.mxu0
        %v5260 = vadd.f32 %v4717, %v5259
        %v5261 = vpop.f32.mrf.mxu0
        %5262 = vmatprep.mubr.bf16.mxu0 %v4555
        %5263 = vmatmul.mubr.bf16.gmra.mxu0 %v4554
        %v5264 = vpop.f32.mrf.mxu0
        %v5265 = vadd.f32 %v4717, %v5264
        %v5266 = vpop.f32.mrf.mxu0
        %v5267 = vpop.f32.mrf.mxu0
        %v5268 = vadd.f32 %v4717, %v5267
        %v5269 = vpop.f32.mrf.mxu0
        %5270 = vmatprep.mubr.bf16.mxu0 %v4559
        %5271 = vmatmul.mubr.bf16.gmra.mxu0 %v4558
        %v5272 = vpop.f32.mrf.mxu0
        %v5273 = vadd.f32 %v4717, %v5272
        %v5274 = vpop.f32.mrf.mxu0
        %v5275 = vpop.f32.mrf.mxu0
        %v5276 = vadd.f32 %v4717, %v5275
        %v5277 = vpop.f32.mrf.mxu0
        %5278 = vdwg.mxu0
        %5279 = vmatprep.subr.bf16.mxu0 0
        %5280 = vmatpush1.bf16.msra.mxu0 %v5029
        %5281 = vmatprep.subr.bf16.mxu0 0
        %5282 = vmatpush1.bf16.msra.mxu0 %v5028
        %5283 = vmatprep.subr.bf16.mxu0 0
        %5284 = vmatpush1.bf16.msra.mxu0 %v5027
        %5285 = vmatprep.subr.bf16.mxu0 0
        %5286 = vmatpush1.bf16.msra.mxu0 %v5026
        %5287 = vmatprep.subr.bf16.mxu0 0
        %5288 = vmatpush1.bf16.msra.mxu0 %v5025
        %5289 = vmatprep.subr.bf16.mxu0 0
        %5290 = vmatpush1.bf16.msra.mxu0 %v5024
        %5291 = vmatprep.subr.bf16.mxu0 0
        %5292 = vmatpush1.bf16.msra.mxu0 %v5023
        %5293 = vmatprep.subr.bf16.mxu0 0
        %5294 = vmatpush1.bf16.msra.mxu0 %v5022
        %5295 = vmatprep.subr.bf16.mxu0 0
        %5296 = vmatpush2.bf16.msra.mxu0 %v5037
        %5297 = vmatprep.subr.bf16.mxu0 0
        %5298 = vmatpush2.bf16.msra.mxu0 %v5036
        %5299 = vmatprep.subr.bf16.mxu0 0
        %5300 = vmatpush2.bf16.msra.mxu0 %v5035
        %5301 = vmatprep.subr.bf16.mxu0 0
        %5302 = vmatpush2.bf16.msra.mxu0 %v5034
        %5303 = vmatprep.subr.bf16.mxu0 0
        %5304 = vmatpush2.bf16.msra.mxu0 %v5033
        %5305 = vmatprep.subr.bf16.mxu0 0
        %5306 = vmatpush2.bf16.msra.mxu0 %v5032
        %5307 = vmatprep.subr.bf16.mxu0 0
        %5308 = vmatpush2.bf16.msra.mxu0 %v5031
        %5309 = vmatprep.subr.bf16.mxu0 0
        %5310 = vmatpush2.bf16.msra.mxu0 %v5030
        %5311 = vmatprep.mubr.bf16.mxu0 %v4519
        %5312 = vmatmul.mubr.bf16.gmra.mxu0 %v4518
        %v5313 = vpop.f32.mrf.mxu0
        %v5314 = vadd.f32 %v5185, %v5313
        %v5315 = vpop.f32.mrf.mxu0
        %v5316 = vpop.f32.mrf.mxu0
        %v5317 = vadd.f32 %v5188, %v5316
        %v5318 = vpop.f32.mrf.mxu0
        %5319 = vmatprep.mubr.bf16.mxu0 %v4522
        %5320 = vmatmul.mubr.bf16.gmra.mxu0 %v4521
        %v5321 = vpop.f32.mrf.mxu0
        %v5322 = vadd.f32 %v5193, %v5321
        %v5323 = vpop.f32.mrf.mxu0
        %v5324 = vpop.f32.mrf.mxu0
        %v5325 = vadd.f32 %v5196, %v5324
        %v5326 = vpop.f32.mrf.mxu0
        %5327 = vmatprep.mubr.bf16.mxu0 %v4526
        %5328 = vmatmul.mubr.bf16.gmra.mxu0 %v4525
        %v5329 = vpop.f32.mrf.mxu0
        %v5330 = vadd.f32 %v5201, %v5329
        %v5331 = vpop.f32.mrf.mxu0
        %v5332 = vpop.f32.mrf.mxu0
        %v5333 = vadd.f32 %v5204, %v5332
        %v5334 = vpop.f32.mrf.mxu0
        %5335 = vmatprep.mubr.bf16.mxu0 %v4530
        %5336 = vmatmul.mubr.bf16.gmra.mxu0 %v4529
        %v5337 = vpop.f32.mrf.mxu0
        %v5338 = vadd.f32 %v5209, %v5337
        %v5339 = vpop.f32.mrf.mxu0
        %v5340 = vpop.f32.mrf.mxu0
        %v5341 = vadd.f32 %v5212, %v5340
        %v5342 = vpop.f32.mrf.mxu0
        %5343 = vmatprep.mubr.bf16.mxu0 %v4534
        %5344 = vmatmul.mubr.bf16.gmra.mxu0 %v4533
        %v5345 = vpop.f32.mrf.mxu0
        %v5346 = vadd.f32 %v5217, %v5345
        %v5347 = vpop.f32.mrf.mxu0
        %v5348 = vpop.f32.mrf.mxu0
        %v5349 = vadd.f32 %v5220, %v5348
        %v5350 = vpop.f32.mrf.mxu0
        %5351 = vmatprep.mubr.bf16.mxu0 %v4538
        %5352 = vmatmul.mubr.bf16.gmra.mxu0 %v4537
        %v5353 = vpop.f32.mrf.mxu0
        %v5354 = vadd.f32 %v5225, %v5353
        %v5355 = vpop.f32.mrf.mxu0
        %v5356 = vpop.f32.mrf.mxu0
        %v5357 = vadd.f32 %v5228, %v5356
        %v5358 = vpop.f32.mrf.mxu0
        %5359 = vmatprep.mubr.bf16.mxu0 %v4542
        %5360 = vmatmul.mubr.bf16.gmra.mxu0 %v4541
        %v5361 = vpop.f32.mrf.mxu0
        %v5362 = vadd.f32 %v5233, %v5361
        %v5363 = vpop.f32.mrf.mxu0
        %v5364 = vpop.f32.mrf.mxu0
        %v5365 = vadd.f32 %v5236, %v5364
        %v5366 = vpop.f32.mrf.mxu0
        %5367 = vmatprep.mubr.bf16.mxu0 %v4546
        %5368 = vmatmul.mubr.bf16.gmra.mxu0 %v4545
        %v5369 = vpop.f32.mrf.mxu0
        %v5370 = vadd.f32 %v5241, %v5369
        %v5371 = vpop.f32.mrf.mxu0
        %v5372 = vpop.f32.mrf.mxu0
        %v5373 = vadd.f32 %v5244, %v5372
        %v5374 = vpop.f32.mrf.mxu0
        %5375 = vmatprep.mubr.bf16.mxu0 %v4550
        %5376 = vmatmul.mubr.bf16.gmra.mxu0 %v4549
        %v5377 = vpop.f32.mrf.mxu0
        %v5378 = vadd.f32 %v5249, %v5377
        %v5379 = vpop.f32.mrf.mxu0
        %v5380 = vpop.f32.mrf.mxu0
        %v5381 = vadd.f32 %v5252, %v5380
        %v5382 = vpop.f32.mrf.mxu0
        %5383 = vmatprep.mubr.bf16.mxu0 %v4554
        %5384 = vmatmul.mubr.bf16.gmra.mxu0 %v4553
        %v5385 = vpop.f32.mrf.mxu0
        %v5386 = vadd.f32 %v5257, %v5385
        %v5387 = vpop.f32.mrf.mxu0
        %v5388 = vpop.f32.mrf.mxu0
        %v5389 = vadd.f32 %v5260, %v5388
        %v5390 = vpop.f32.mrf.mxu0
        %5391 = vmatprep.mubr.bf16.mxu0 %v4558
        %5392 = vmatmul.mubr.bf16.gmra.mxu0 %v4557
        %v5393 = vpop.f32.mrf.mxu0
        %v5394 = vadd.f32 %v5265, %v5393
        %v5395 = vpop.f32.mrf.mxu0
        %v5396 = vpop.f32.mrf.mxu0
        %v5397 = vadd.f32 %v5268, %v5396
        %v5398 = vpop.f32.mrf.mxu0
        %5399 = vmatprep.mubr.bf16.mxu0 %v4562
        %5400 = vmatmul.mubr.bf16.gmra.mxu0 %v4561
        %v5401 = vpop.f32.mrf.mxu0
        %v5402 = vadd.f32 %v5273, %v5401
        %v5403 = vpop.f32.mrf.mxu0
        %v5404 = vpop.f32.mrf.mxu0
        %v5405 = vadd.f32 %v5276, %v5404
        %v5406 = vpop.f32.mrf.mxu0
        %5407 = vdwg.mxu0
        %5408 = vmatprep.subr.bf16.mxu0 0
        %5409 = vmatpush1.bf16.msra.mxu0 %v5045
        %5410 = vmatprep.subr.bf16.mxu0 0
        %5411 = vmatpush1.bf16.msra.mxu0 %v5044
        %5412 = vmatprep.subr.bf16.mxu0 0
        %5413 = vmatpush1.bf16.msra.mxu0 %v5043
        %5414 = vmatprep.subr.bf16.mxu0 0
        %5415 = vmatpush1.bf16.msra.mxu0 %v5042
        %5416 = vmatprep.subr.bf16.mxu0 0
        %5417 = vmatpush1.bf16.msra.mxu0 %v5041
        %5418 = vmatprep.subr.bf16.mxu0 0
        %5419 = vmatpush1.bf16.msra.mxu0 %v5040
        %5420 = vmatprep.subr.bf16.mxu0 0
        %5421 = vmatpush1.bf16.msra.mxu0 %v5039
        %5422 = vmatprep.subr.bf16.mxu0 0
        %5423 = vmatpush1.bf16.msra.mxu0 %v5038
        %5424 = vmatprep.subr.bf16.mxu0 0
        %5425 = vmatpush2.bf16.msra.mxu0 %v5053
        %5426 = vmatprep.subr.bf16.mxu0 0
        %5427 = vmatpush2.bf16.msra.mxu0 %v5052
        %5428 = vmatprep.subr.bf16.mxu0 0
        %5429 = vmatpush2.bf16.msra.mxu0 %v5051
        %5430 = vmatprep.subr.bf16.mxu0 0
        %5431 = vmatpush2.bf16.msra.mxu0 %v5050
        %5432 = vmatprep.subr.bf16.mxu0 0
        %5433 = vmatpush2.bf16.msra.mxu0 %v5049
        %5434 = vmatprep.subr.bf16.mxu0 0
        %5435 = vmatpush2.bf16.msra.mxu0 %v5048
        %5436 = vmatprep.subr.bf16.mxu0 0
        %5437 = vmatpush2.bf16.msra.mxu0 %v5047
        %5438 = vmatprep.subr.bf16.mxu0 0
        %5439 = vmatpush2.bf16.msra.mxu0 %v5046
        %5440 = vmatprep.mubr.bf16.mxu0 %v4521
        %5441 = vmatmul.mubr.bf16.gmra.mxu0 %v4520
        %v5442 = vpop.f32.mrf.mxu0
        %v5443 = vadd.f32 %v5314, %v5442
        %v5444 = vpop.f32.mrf.mxu0
        %v5445 = vpop.f32.mrf.mxu0
        %v5446 = vadd.f32 %v5317, %v5445
        %v5447 = vpop.f32.mrf.mxu0
        %5448 = vmatprep.mubr.bf16.mxu0 %v4525
        %5449 = vmatmul.mubr.bf16.gmra.mxu0 %v4523
        %v5450 = vpop.f32.mrf.mxu0
        %v5451 = vadd.f32 %v5322, %v5450
        %v5452 = vpop.f32.mrf.mxu0
        %v5453 = vpop.f32.mrf.mxu0
        %v5454 = vadd.f32 %v5325, %v5453
        %v5455 = vpop.f32.mrf.mxu0
        %5456 = vmatprep.mubr.bf16.mxu0 %v4529
        %5457 = vmatmul.mubr.bf16.gmra.mxu0 %v4527
        %v5458 = vpop.f32.mrf.mxu0
        %v5459 = vadd.f32 %v5330, %v5458
        %v5460 = vpop.f32.mrf.mxu0
        %v5461 = vpop.f32.mrf.mxu0
        %v5462 = vadd.f32 %v5333, %v5461
        %v5463 = vpop.f32.mrf.mxu0
        %5464 = vmatprep.mubr.bf16.mxu0 %v4533
        %5465 = vmatmul.mubr.bf16.gmra.mxu0 %v4531
        %v5466 = vpop.f32.mrf.mxu0
        %v5467 = vadd.f32 %v5338, %v5466
        %v5468 = vpop.f32.mrf.mxu0
        %v5469 = vpop.f32.mrf.mxu0
        %v5470 = vadd.f32 %v5341, %v5469
        %v5471 = vpop.f32.mrf.mxu0
        %5472 = vmatprep.mubr.bf16.mxu0 %v4537
        %5473 = vmatmul.mubr.bf16.gmra.mxu0 %v4535
        %v5474 = vpop.f32.mrf.mxu0
        %v5475 = vadd.f32 %v5346, %v5474
        %v5476 = vpop.f32.mrf.mxu0
        %v5477 = vpop.f32.mrf.mxu0
        %v5478 = vadd.f32 %v5349, %v5477
        %v5479 = vpop.f32.mrf.mxu0
        %5480 = vmatprep.mubr.bf16.mxu0 %v4541
        %5481 = vmatmul.mubr.bf16.gmra.mxu0 %v4539
        %v5482 = vpop.f32.mrf.mxu0
        %v5483 = vadd.f32 %v5354, %v5482
        %v5484 = vpop.f32.mrf.mxu0
        %v5485 = vpop.f32.mrf.mxu0
        %v5486 = vadd.f32 %v5357, %v5485
        %v5487 = vpop.f32.mrf.mxu0
        %5488 = vmatprep.mubr.bf16.mxu0 %v4545
        %5489 = vmatmul.mubr.bf16.gmra.mxu0 %v4543
        %v5490 = vpop.f32.mrf.mxu0
        %v5491 = vadd.f32 %v5362, %v5490
        %v5492 = vpop.f32.mrf.mxu0
        %v5493 = vpop.f32.mrf.mxu0
        %v5494 = vadd.f32 %v5365, %v5493
        %v5495 = vpop.f32.mrf.mxu0
        %5496 = vmatprep.mubr.bf16.mxu0 %v4549
        %5497 = vmatmul.mubr.bf16.gmra.mxu0 %v4547
        %v5498 = vpop.f32.mrf.mxu0
        %v5499 = vadd.f32 %v5370, %v5498
        %v5500 = vpop.f32.mrf.mxu0
        %v5501 = vpop.f32.mrf.mxu0
        %v5502 = vadd.f32 %v5373, %v5501
        %v5503 = vpop.f32.mrf.mxu0
        %5504 = vmatprep.mubr.bf16.mxu0 %v4553
        %5505 = vmatmul.mubr.bf16.gmra.mxu0 %v4551
        %v5506 = vpop.f32.mrf.mxu0
        %v5507 = vadd.f32 %v5378, %v5506
        %v5508 = vpop.f32.mrf.mxu0
        %v5509 = vpop.f32.mrf.mxu0
        %v5510 = vadd.f32 %v5381, %v5509
        %v5511 = vpop.f32.mrf.mxu0
        %5512 = vmatprep.mubr.bf16.mxu0 %v4557
        %5513 = vmatmul.mubr.bf16.gmra.mxu0 %v4555
        %v5514 = vpop.f32.mrf.mxu0
        %v5515 = vadd.f32 %v5386, %v5514
        %v5516 = vpop.f32.mrf.mxu0
        %v5517 = vpop.f32.mrf.mxu0
        %v5518 = vadd.f32 %v5389, %v5517
        %v5519 = vpop.f32.mrf.mxu0
        %5520 = vmatprep.mubr.bf16.mxu0 %v4561
        %5521 = vmatmul.mubr.bf16.gmra.mxu0 %v4559
        %v5522 = vpop.f32.mrf.mxu0
        %v5523 = vadd.f32 %v5394, %v5522
        %v5524 = vpop.f32.mrf.mxu0
        %v5525 = vpop.f32.mrf.mxu0
        %v5526 = vadd.f32 %v5397, %v5525
        %v5527 = vpop.f32.mrf.mxu0
        %5528 = vmatprep.mubr.bf16.mxu0 %v4565
        %5529 = vmatmul.mubr.bf16.gmra.mxu0 %v4563
        %v5530 = vpop.f32.mrf.mxu0
        %v5531 = vadd.f32 %v5402, %v5530
        %v5532 = vpop.f32.mrf.mxu0
        %v5533 = vpop.f32.mrf.mxu0
        %v5534 = vadd.f32 %v5405, %v5533
        %v5535 = vpop.f32.mrf.mxu0
        %5536 = vdwg.mxu0
        %5537 = vmatprep.subr.bf16.mxu0 0
        %5538 = vmatpush1.bf16.msra.mxu0 %v5061
        %5539 = vmatprep.subr.bf16.mxu0 0
        %5540 = vmatpush1.bf16.msra.mxu0 %v5060
        %5541 = vmatprep.subr.bf16.mxu0 0
        %5542 = vmatpush1.bf16.msra.mxu0 %v5059
        %5543 = vmatprep.subr.bf16.mxu0 0
        %5544 = vmatpush1.bf16.msra.mxu0 %v5058
        %5545 = vmatprep.subr.bf16.mxu0 0
        %5546 = vmatpush1.bf16.msra.mxu0 %v5057
        %5547 = vmatprep.subr.bf16.mxu0 0
        %5548 = vmatpush1.bf16.msra.mxu0 %v5056
        %5549 = vmatprep.subr.bf16.mxu0 0
        %5550 = vmatpush1.bf16.msra.mxu0 %v5055
        %5551 = vmatprep.subr.bf16.mxu0 0
        %5552 = vmatpush1.bf16.msra.mxu0 %v5054
        %5553 = vmatprep.subr.bf16.mxu0 0
        %5554 = vmatpush2.bf16.msra.mxu0 %v5069
        %5555 = vmatprep.subr.bf16.mxu0 0
        %5556 = vmatpush2.bf16.msra.mxu0 %v5068
        %5557 = vmatprep.subr.bf16.mxu0 0
        %5558 = vmatpush2.bf16.msra.mxu0 %v5067
        %5559 = vmatprep.subr.bf16.mxu0 0
        %5560 = vmatpush2.bf16.msra.mxu0 %v5066
        %5561 = vmatprep.subr.bf16.mxu0 0
        %5562 = vmatpush2.bf16.msra.mxu0 %v5065
        %5563 = vmatprep.subr.bf16.mxu0 0
        %5564 = vmatpush2.bf16.msra.mxu0 %v5064
        %5565 = vmatprep.subr.bf16.mxu0 0
        %5566 = vmatpush2.bf16.msra.mxu0 %v5063
        %5567 = vmatprep.subr.bf16.mxu0 0
        %5568 = vmatpush2.bf16.msra.mxu0 %v5062
        %5569 = vmatprep.mubr.bf16.mxu0 %v4523
        %5570 = vmatmul.mubr.bf16.gmra.mxu0 %v4522
        %v5571 = vpop.f32.mrf.mxu0
        %v5572 = vadd.f32 %v5443, %v5571
        %v5573 = vpop.f32.mrf.mxu0
        %v5574 = vpop.f32.mrf.mxu0
        %v5575 = vadd.f32 %v5446, %v5574
        %v5576 = vpop.f32.mrf.mxu0
        %5577 = vmatprep.mubr.bf16.mxu0 %v4527
        %5578 = vmatmul.mubr.bf16.gmra.mxu0 %v4526
        %v5579 = vpop.f32.mrf.mxu0
        %v5580 = vadd.f32 %v5451, %v5579
        %v5581 = vpop.f32.mrf.mxu0
        %v5582 = vpop.f32.mrf.mxu0
        %v5583 = vadd.f32 %v5454, %v5582
        %v5584 = vpop.f32.mrf.mxu0
        %5585 = vmatprep.mubr.bf16.mxu0 %v4531
        %5586 = vmatmul.mubr.bf16.gmra.mxu0 %v4530
        %v5587 = vpop.f32.mrf.mxu0
        %v5588 = vadd.f32 %v5459, %v5587
        %v5589 = vpop.f32.mrf.mxu0
        %v5590 = vpop.f32.mrf.mxu0
        %v5591 = vadd.f32 %v5462, %v5590
        %v5592 = vpop.f32.mrf.mxu0
        %5593 = vmatprep.mubr.bf16.mxu0 %v4535
        %5594 = vmatmul.mubr.bf16.gmra.mxu0 %v4534
        %v5595 = vpop.f32.mrf.mxu0
        %v5596 = vadd.f32 %v5467, %v5595
        %v5597 = vpop.f32.mrf.mxu0
        %v5598 = vpop.f32.mrf.mxu0
        %v5599 = vadd.f32 %v5470, %v5598
        %v5600 = vpop.f32.mrf.mxu0
        %5601 = vmatprep.mubr.bf16.mxu0 %v4539
        %5602 = vmatmul.mubr.bf16.gmra.mxu0 %v4538
        %v5603 = vpop.f32.mrf.mxu0
        %v5604 = vadd.f32 %v5475, %v5603
        %v5605 = vpop.f32.mrf.mxu0
        %v5606 = vpop.f32.mrf.mxu0
        %v5607 = vadd.f32 %v5478, %v5606
        %v5608 = vpop.f32.mrf.mxu0
        %5609 = vmatprep.mubr.bf16.mxu0 %v4543
        %5610 = vmatmul.mubr.bf16.gmra.mxu0 %v4542
        %v5611 = vpop.f32.mrf.mxu0
        %v5612 = vadd.f32 %v5483, %v5611
        %v5613 = vpop.f32.mrf.mxu0
        %v5614 = vpop.f32.mrf.mxu0
        %v5615 = vadd.f32 %v5486, %v5614
        %v5616 = vpop.f32.mrf.mxu0
        %5617 = vmatprep.mubr.bf16.mxu0 %v4547
        %5618 = vmatmul.mubr.bf16.gmra.mxu0 %v4546
        %v5619 = vpop.f32.mrf.mxu0
        %v5620 = vadd.f32 %v5491, %v5619
        %v5621 = vpop.f32.mrf.mxu0
        %v5622 = vpop.f32.mrf.mxu0
        %v5623 = vadd.f32 %v5494, %v5622
        %v5624 = vpop.f32.mrf.mxu0
        %5625 = vmatprep.mubr.bf16.mxu0 %v4551
        %5626 = vmatmul.mubr.bf16.gmra.mxu0 %v4550
        %v5627 = vpop.f32.mrf.mxu0
        %v5628 = vadd.f32 %v5499, %v5627
        %v5629 = vpop.f32.mrf.mxu0
        %v5630 = vpop.f32.mrf.mxu0
        %v5631 = vadd.f32 %v5502, %v5630
        %v5632 = vpop.f32.mrf.mxu0
        %5633 = vmatprep.mubr.bf16.mxu0 %v4555
        %5634 = vmatmul.mubr.bf16.gmra.mxu0 %v4554
        %v5635 = vpop.f32.mrf.mxu0
        %v5636 = vadd.f32 %v5507, %v5635
        %v5637 = vpop.f32.mrf.mxu0
        %v5638 = vpop.f32.mrf.mxu0
        %v5639 = vadd.f32 %v5510, %v5638
        %v5640 = vpop.f32.mrf.mxu0
        %5641 = vmatprep.mubr.bf16.mxu0 %v4559
        %5642 = vmatmul.mubr.bf16.gmra.mxu0 %v4558
        %v5643 = vpop.f32.mrf.mxu0
        %v5644 = vadd.f32 %v5515, %v5643
        %v5645 = vpop.f32.mrf.mxu0
        %v5646 = vpop.f32.mrf.mxu0
        %v5647 = vadd.f32 %v5518, %v5646
        %v5648 = vpop.f32.mrf.mxu0
        %5649 = vmatprep.mubr.bf16.mxu0 %v4563
        %5650 = vmatmul.mubr.bf16.gmra.mxu0 %v4562
        %v5651 = vpop.f32.mrf.mxu0
        %v5652 = vadd.f32 %v5523, %v5651
        %v5653 = vpop.f32.mrf.mxu0
        %v5654 = vpop.f32.mrf.mxu0
        %v5655 = vadd.f32 %v5526, %v5654
        %v5656 = vpop.f32.mrf.mxu0
        %5657 = vmatprep.mubr.bf16.mxu0 %v4567
        %5658 = vmatmul.mubr.bf16.gmra.mxu0 %v4566
        %v5659 = vpop.f32.mrf.mxu0
        %v5660 = vadd.f32 %v5531, %v5659
        %v5661 = vpop.f32.mrf.mxu0
        %v5662 = vpop.f32.mrf.mxu0
        %v5663 = vadd.f32 %v5534, %v5662
        %v5664 = vpop.f32.mrf.mxu0
        %5665 = vdwg.mxu0
        %5666 = vmatprep.subr.bf16.mxu0 0
        %5667 = vmatpush1.bf16.msra.mxu0 %v5077
        %5668 = vmatprep.subr.bf16.mxu0 0
        %5669 = vmatpush1.bf16.msra.mxu0 %v5076
        %5670 = vmatprep.subr.bf16.mxu0 0
        %5671 = vmatpush1.bf16.msra.mxu0 %v5075
        %5672 = vmatprep.subr.bf16.mxu0 0
        %5673 = vmatpush1.bf16.msra.mxu0 %v5074
        %5674 = vmatprep.subr.bf16.mxu0 0
        %5675 = vmatpush1.bf16.msra.mxu0 %v5073
        %5676 = vmatprep.subr.bf16.mxu0 0
        %5677 = vmatpush1.bf16.msra.mxu0 %v5072
        %5678 = vmatprep.subr.bf16.mxu0 0
        %5679 = vmatpush1.bf16.msra.mxu0 %v5071
        %5680 = vmatprep.subr.bf16.mxu0 0
        %5681 = vmatpush1.bf16.msra.mxu0 %v5070
        %5682 = vmatprep.subr.bf16.mxu0 0
        %5683 = vmatpush2.bf16.msra.mxu0 0
        %5684 = vmatprep.subr.bf16.mxu0 0
        %5685 = vmatpush2.bf16.msra.mxu0 0
        %5686 = vmatprep.subr.bf16.mxu0 0
        %5687 = vmatpush2.bf16.msra.mxu0 0
        %5688 = vmatprep.subr.bf16.mxu0 0
        %5689 = vmatpush2.bf16.msra.mxu0 0
        %5690 = vmatprep.subr.bf16.mxu0 0
        %5691 = vmatpush2.bf16.msra.mxu0 0
        %5692 = vmatprep.subr.bf16.mxu0 0
        %5693 = vmatpush2.bf16.msra.mxu0 0
        %5694 = vmatprep.subr.bf16.mxu0 0
        %5695 = vmatpush2.bf16.msra.mxu0 0
        %5696 = vmatprep.subr.bf16.mxu0 0
        %5697 = vmatpush2.bf16.msra.mxu0 0
        %5698 = vmatprep.mubr.bf16.mxu0 0
        %5699 = vmatmul.mubr.bf16.gmra.mxu0 %v4524
        %v5700 = vpop.f32.mrf.mxu0
        %v5701 = vadd.f32 %v5572, %v5700
        %v5702 = vpop.f32.mrf.mxu0
        %v5703 = vpop.f32.mrf.mxu0
        %v5704 = vadd.f32 %v5575, %v5703
        %v5705 = vpop.f32.mrf.mxu0
        %5706 = vmatprep.mubr.bf16.mxu0 0
        %5707 = vmatmul.mubr.bf16.gmra.mxu0 %v4528
        %v5708 = vpop.f32.mrf.mxu0
        %v5709 = vadd.f32 %v5580, %v5708
        %v5710 = vpop.f32.mrf.mxu0
        %v5711 = vpop.f32.mrf.mxu0
        %v5712 = vadd.f32 %v5583, %v5711
        %v5713 = vpop.f32.mrf.mxu0
        %5714 = vmatprep.mubr.bf16.mxu0 0
        %5715 = vmatmul.mubr.bf16.gmra.mxu0 %v4532
        %v5716 = vpop.f32.mrf.mxu0
        %v5717 = vadd.f32 %v5588, %v5716
        %v5718 = vpop.f32.mrf.mxu0
        %v5719 = vpop.f32.mrf.mxu0
        %v5720 = vadd.f32 %v5591, %v5719
        %v5721 = vpop.f32.mrf.mxu0
        %5722 = vmatprep.mubr.bf16.mxu0 0
        %5723 = vmatmul.mubr.bf16.gmra.mxu0 %v4536
        %v5724 = vpop.f32.mrf.mxu0
        %v5725 = vadd.f32 %v5596, %v5724
        %v5726 = vpop.f32.mrf.mxu0
        %v5727 = vpop.f32.mrf.mxu0
        %v5728 = vadd.f32 %v5599, %v5727
        %v5729 = vpop.f32.mrf.mxu0
        %5730 = vmatprep.mubr.bf16.mxu0 0
        %5731 = vmatmul.mubr.bf16.gmra.mxu0 %v4540
        %v5732 = vpop.f32.mrf.mxu0
        %v5733 = vadd.f32 %v5604, %v5732
        %v5734 = vpop.f32.mrf.mxu0
        %v5735 = vpop.f32.mrf.mxu0
        %v5736 = vadd.f32 %v5607, %v5735
        %v5737 = vpop.f32.mrf.mxu0
        %5738 = vmatprep.mubr.bf16.mxu0 0
        %5739 = vmatmul.mubr.bf16.gmra.mxu0 %v4544
        %v5740 = vpop.f32.mrf.mxu0
        %v5741 = vadd.f32 %v5612, %v5740
        %v5742 = vpop.f32.mrf.mxu0
        %v5743 = vpop.f32.mrf.mxu0
        %v5744 = vadd.f32 %v5615, %v5743
        %v5745 = vpop.f32.mrf.mxu0
        %5746 = vmatprep.mubr.bf16.mxu0 0
        %5747 = vmatmul.mubr.bf16.gmra.mxu0 %v4548
        %v5748 = vpop.f32.mrf.mxu0
        %v5749 = vadd.f32 %v5620, %v5748
        %v5750 = vpop.f32.mrf.mxu0
        %v5751 = vpop.f32.mrf.mxu0
        %v5752 = vadd.f32 %v5623, %v5751
        %v5753 = vpop.f32.mrf.mxu0
        %5754 = vmatprep.mubr.bf16.mxu0 0
        %5755 = vmatmul.mubr.bf16.gmra.mxu0 %v4552
        %v5756 = vpop.f32.mrf.mxu0
        %v5757 = vadd.f32 %v5628, %v5756
        %v5758 = vpop.f32.mrf.mxu0
        %v5759 = vpop.f32.mrf.mxu0
        %v5760 = vadd.f32 %v5631, %v5759
        %v5761 = vpop.f32.mrf.mxu0
        %5762 = vmatprep.mubr.bf16.mxu0 0
        %5763 = vmatmul.mubr.bf16.gmra.mxu0 %v4556
        %v5764 = vpop.f32.mrf.mxu0
        %v5765 = vadd.f32 %v5636, %v5764
        %v5766 = vpop.f32.mrf.mxu0
        %v5767 = vpop.f32.mrf.mxu0
        %v5768 = vadd.f32 %v5639, %v5767
        %v5769 = vpop.f32.mrf.mxu0
        %5770 = vmatprep.mubr.bf16.mxu0 0
        %5771 = vmatmul.mubr.bf16.gmra.mxu0 %v4560
        %v5772 = vpop.f32.mrf.mxu0
        %v5773 = vadd.f32 %v5644, %v5772
        %v5774 = vpop.f32.mrf.mxu0
        %v5775 = vpop.f32.mrf.mxu0
        %v5776 = vadd.f32 %v5647, %v5775
        %v5777 = vpop.f32.mrf.mxu0
        %5778 = vmatprep.mubr.bf16.mxu0 0
        %5779 = vmatmul.mubr.bf16.gmra.mxu0 %v4564
        %v5780 = vpop.f32.mrf.mxu0
        %v5781 = vadd.f32 %v5652, %v5780
        %v5782 = vpop.f32.mrf.mxu0
        %v5783 = vpop.f32.mrf.mxu0
        %v5784 = vadd.f32 %v5655, %v5783
        %v5785 = vpop.f32.mrf.mxu0
        %5786 = vmatprep.mubr.bf16.mxu0 0
        %5787 = vmatmul.mubr.bf16.gmra.mxu0 %v4568
        %v5788 = vpop.f32.mrf.mxu0
        %v5789 = vadd.f32 %v5660, %v5788
        %v5790 = vpop.f32.mrf.mxu0
        %v5791 = vpop.f32.mrf.mxu0
        %v5792 = vadd.f32 %v5663, %v5791
        %v5793 = vpop.f32.mrf.mxu0
        %5794 = vdwg.mxu0
        %vm5795 = vcmp.gt.f32.partialorder %v5701, 0.0
        %vm5796 = vcmp.gt.f32.partialorder %v5704, 0.0
        %vm5797 = vcmp.gt.f32.partialorder %v5709, 0.0
        %vm5798 = vcmp.gt.f32.partialorder %v5712, 0.0
        %vm5799 = vcmp.gt.f32.partialorder %v5717, 0.0
        %vm5800 = vcmp.gt.f32.partialorder %v5720, 0.0
        %vm5801 = vcmp.gt.f32.partialorder %v5725, 0.0
        %vm5802 = vcmp.gt.f32.partialorder %v5728, 0.0
        %vm5803 = vcmp.gt.f32.partialorder %v5733, 0.0
        %vm5804 = vcmp.gt.f32.partialorder %v5736, 0.0
        %vm5805 = vcmp.gt.f32.partialorder %v5741, 0.0
        %vm5806 = vcmp.gt.f32.partialorder %v5744, 0.0
        %vm5807 = vcmp.gt.f32.partialorder %v5749, 0.0
        %vm5808 = vcmp.gt.f32.partialorder %v5752, 0.0
        %vm5809 = vcmp.gt.f32.partialorder %v5757, 0.0
        %vm5810 = vcmp.gt.f32.partialorder %v5760, 0.0
        %vm5811 = vcmp.gt.f32.partialorder %v5765, 0.0
        %vm5812 = vcmp.gt.f32.partialorder %v5768, 0.0
        %vm5813 = vcmp.gt.f32.partialorder %v5773, 0.0
        %vm5814 = vcmp.gt.f32.partialorder %v5776, 0.0
        %vm5815 = vcmp.gt.f32.partialorder %v5781, 0.0
        %vm5816 = vcmp.gt.f32.partialorder %v5784, 0.0
        %vm5817 = vcmp.gt.f32.partialorder %v5789, 0.0
        %vm5818 = vcmp.gt.f32.partialorder %v5792, 0.0
        %v5819 = vmul.f32 %v5701, 0.01
        %v5820 = vmul.f32 %v5704, 0.01
        %v5821 = vmul.f32 %v5709, 0.01
        %v5822 = vmul.f32 %v5712, 0.01
        %v5823 = vmul.f32 %v5717, 0.01
        %v5824 = vmul.f32 %v5720, 0.01
        %v5825 = vmul.f32 %v5725, 0.01
        %v5826 = vmul.f32 %v5728, 0.01
        %v5827 = vmul.f32 %v5733, 0.01
        %v5828 = vmul.f32 %v5736, 0.01
        %v5829 = vmul.f32 %v5741, 0.01
        %v5830 = vmul.f32 %v5744, 0.01
        %v5831 = vmul.f32 %v5749, 0.01
        %v5832 = vmul.f32 %v5752, 0.01
        %v5833 = vmul.f32 %v5757, 0.01
        %v5834 = vmul.f32 %v5760, 0.01
        %v5835 = vmul.f32 %v5765, 0.01
        %v5836 = vmul.f32 %v5768, 0.01
        %v5837 = vmul.f32 %v5773, 0.01
        %v5838 = vmul.f32 %v5776, 0.01
        %v5839 = vmul.f32 %v5781, 0.01
        %v5840 = vmul.f32 %v5784, 0.01
        %v5841 = vmul.f32 %v5789, 0.01
        %v5842 = vmul.f32 %v5792, 0.01
        %v5843 = vsel %vm5795, %v5701, %v5819
        %v5844 = vsel %vm5796, %v5704, %v5820
        %v5845 = vsel %vm5797, %v5709, %v5821
        %v5846 = vsel %vm5798, %v5712, %v5822
        %v5847 = vsel %vm5799, %v5717, %v5823
        %v5848 = vsel %vm5800, %v5720, %v5824
        %v5849 = vsel %vm5801, %v5725, %v5825
        %v5850 = vsel %vm5802, %v5728, %v5826
        %v5851 = vsel %vm5803, %v5733, %v5827
        %v5852 = vsel %vm5804, %v5736, %v5828
        %v5853 = vsel %vm5805, %v5741, %v5829
        %v5854 = vsel %vm5806, %v5744, %v5830
        %v5855 = vsel %vm5807, %v5749, %v5831
        %v5856 = vsel %vm5808, %v5752, %v5832
        %v5857 = vsel %vm5809, %v5757, %v5833
        %v5858 = vsel %vm5810, %v5760, %v5834
        %v5859 = vsel %vm5811, %v5765, %v5835
        %v5860 = vsel %vm5812, %v5768, %v5836
        %v5861 = vsel %vm5813, %v5773, %v5837
        %v5862 = vsel %vm5814, %v5776, %v5838
        %v5863 = vsel %vm5815, %v5781, %v5839
        %v5864 = vsel %vm5816, %v5784, %v5840
        %v5865 = vsel %vm5817, %v5789, %v5841
        %v5866 = vsel %vm5818, %v5792, %v5842
        %v5867 = vld [vmem:[%s3] sm:$0xff]
        %v5868 = vld [vmem:[%s3 + $0x8] sm:$0xff]
        %v5869 = vld [vmem:[%s3 + $0x10] sm:$0xff]
        %v5870 = vld [vmem:[%s3 + $0x18] sm:$0xff]
        %v5871 = vld [vmem:[%s3 + $0x20] sm:$0xff]
        %v5872 = vld [vmem:[%s3 + $0x28] sm:$0xff]
        %v5873 = vld [vmem:[%s3 + $0x30] sm:$0xff]
        %v5874 = vld [vmem:[%s3 + $0x38] sm:$0xff]
        %v5875 = vld [vmem:[%s3 + $0x40] sm:$0xff]
        %v5876 = vld [vmem:[%s3 + $0x48] sm:$0xff]
        %v5877 = vld [vmem:[%s3 + $0x50] sm:$0xff]
        %v5878 = vld [vmem:[%s3 + $0x58] sm:$0xff]
        %v5879 = vld [vmem:[%s3 + $0x60] sm:$0xff]
        %v5880 = vld [vmem:[%s3 + $0x68] sm:$0xff]
        %v5881 = vld [vmem:[%s3 + $0x70] sm:$0xff]
        %v5882 = vld [vmem:[%s3 + $0x78] sm:$0xff]
        %v5883 = vld [vmem:[%s3 + $0x80] sm:$0xff]
        %v5884 = vld [vmem:[%s3 + $0x88] sm:$0xff]
        %v5885 = vld [vmem:[%s3 + $0x90] sm:$0xff]
        %v5886 = vld [vmem:[%s3 + $0x98] sm:$0xff]
        %v5887 = vld [vmem:[%s3 + $0xa0] sm:$0xff]
        %v5888 = vld [vmem:[%s3 + $0xa8] sm:$0xff]
        %v5889 = vld [vmem:[%s3 + $0xb0] sm:$0xff]
        %v5890 = vld [vmem:[%s3 + $0xb8] sm:$0xff]
        %vm5891 = vcmp.lt.s32.totalorder %v5867, 12
        %vm5892 = vcmp.lt.s32.totalorder %v5868, 12
        %vm5893 = vcmp.lt.s32.totalorder %v5869, 12
        %vm5894 = vcmp.lt.s32.totalorder %v5870, 12
        %vm5895 = vcmp.lt.s32.totalorder %v5871, 12
        %vm5896 = vcmp.lt.s32.totalorder %v5872, 12
        %vm5897 = vcmp.lt.s32.totalorder %v5873, 12
        %vm5898 = vcmp.lt.s32.totalorder %v5874, 12
        %vm5899 = vcmp.lt.s32.totalorder %v5875, 12
        %vm5900 = vcmp.lt.s32.totalorder %v5876, 12
        %vm5901 = vcmp.lt.s32.totalorder %v5877, 12
        %vm5902 = vcmp.lt.s32.totalorder %v5878, 12
        %vm5903 = vcmp.lt.s32.totalorder %v5879, 12
        %vm5904 = vcmp.lt.s32.totalorder %v5880, 12
        %vm5905 = vcmp.lt.s32.totalorder %v5881, 12
        %vm5906 = vcmp.lt.s32.totalorder %v5882, 12
        %vm5907 = vcmp.lt.s32.totalorder %v5883, 12
        %vm5908 = vcmp.lt.s32.totalorder %v5884, 12
        %vm5909 = vcmp.lt.s32.totalorder %v5885, 12
        %vm5910 = vcmp.lt.s32.totalorder %v5886, 12
        %vm5911 = vcmp.lt.s32.totalorder %v5887, 12
        %vm5912 = vcmp.lt.s32.totalorder %v5888, 12
        %vm5913 = vcmp.lt.s32.totalorder %v5889, 12
        %vm5914 = vcmp.lt.s32.totalorder %v5890, 12
        %v5915 = vsel %vm5891, 1, 0
        %v5916 = vsel %vm5892, 1, 0
        %v5917 = vsel %vm5893, 1, 0
        %v5918 = vsel %vm5894, 1, 0
        %v5919 = vsel %vm5895, 1, 0
        %v5920 = vsel %vm5896, 1, 0
        %v5921 = vsel %vm5897, 1, 0
        %v5922 = vsel %vm5898, 1, 0
        %v5923 = vsel %vm5899, 1, 0
        %v5924 = vsel %vm5900, 1, 0
        %v5925 = vsel %vm5901, 1, 0
        %v5926 = vsel %vm5902, 1, 0
        %v5927 = vsel %vm5903, 1, 0
        %v5928 = vsel %vm5904, 1, 0
        %v5929 = vsel %vm5905, 1, 0
        %v5930 = vsel %vm5906, 1, 0
        %v5931 = vsel %vm5907, 1, 0
        %v5932 = vsel %vm5908, 1, 0
        %v5933 = vsel %vm5909, 1, 0
        %v5934 = vsel %vm5910, 1, 0
        %v5935 = vsel %vm5911, 1, 0
        %v5936 = vsel %vm5912, 1, 0
        %v5937 = vsel %vm5913, 1, 0
        %v5938 = vsel %vm5914, 1, 0
        %5939 = vset.pattern.permute.xlu0 0
        %5940 = vperm.xlu0 %5939, %v5915
        %v5941 = vpop.permute.xlu0 %5940
        %5942 = vset.pattern.permute.xlu0 0
        %5943 = vperm.xlu0 %5942, %v5916
        %v5944 = vpop.permute.xlu0 %5943
        %5945 = vset.pattern.permute.xlu0 0
        %5946 = vperm.xlu0 %5945, %v5917
        %v5947 = vpop.permute.xlu0 %5946
        %5948 = vset.pattern.permute.xlu0 0
        %5949 = vperm.xlu0 %5948, %v5918
        %v5950 = vpop.permute.xlu0 %5949
        %5951 = vset.pattern.permute.xlu0 0
        %5952 = vperm.xlu0 %5951, %v5919
        %v5953 = vpop.permute.xlu0 %5952
        %5954 = vset.pattern.permute.xlu0 0
        %5955 = vperm.xlu0 %5954, %v5920
        %v5956 = vpop.permute.xlu0 %5955
        %5957 = vset.pattern.permute.xlu0 0
        %5958 = vperm.xlu0 %5957, %v5921
        %v5959 = vpop.permute.xlu0 %5958
        %5960 = vset.pattern.permute.xlu0 0
        %5961 = vperm.xlu0 %5960, %v5922
        %v5962 = vpop.permute.xlu0 %5961
        %5963 = vset.pattern.permute.xlu0 0
        %5964 = vperm.xlu0 %5963, %v5923
        %v5965 = vpop.permute.xlu0 %5964
        %5966 = vset.pattern.permute.xlu0 0
        %5967 = vperm.xlu0 %5966, %v5924
        %v5968 = vpop.permute.xlu0 %5967
        %5969 = vset.pattern.permute.xlu0 0
        %5970 = vperm.xlu0 %5969, %v5925
        %v5971 = vpop.permute.xlu0 %5970
        %5972 = vset.pattern.permute.xlu0 0
        %5973 = vperm.xlu0 %5972, %v5926
        %v5974 = vpop.permute.xlu0 %5973
        %5975 = vset.pattern.permute.xlu0 0
        %5976 = vperm.xlu0 %5975, %v5927
        %v5977 = vpop.permute.xlu0 %5976
        %5978 = vset.pattern.permute.xlu0 0
        %5979 = vperm.xlu0 %5978, %v5928
        %v5980 = vpop.permute.xlu0 %5979
        %5981 = vset.pattern.permute.xlu0 0
        %5982 = vperm.xlu0 %5981, %v5929
        %v5983 = vpop.permute.xlu0 %5982
        %5984 = vset.pattern.permute.xlu0 0
        %5985 = vperm.xlu0 %5984, %v5930
        %v5986 = vpop.permute.xlu0 %5985
        %5987 = vset.pattern.permute.xlu0 0
        %5988 = vperm.xlu0 %5987, %v5931
        %v5989 = vpop.permute.xlu0 %5988
        %5990 = vset.pattern.permute.xlu0 0
        %5991 = vperm.xlu0 %5990, %v5932
        %v5992 = vpop.permute.xlu0 %5991
        %5993 = vset.pattern.permute.xlu0 0
        %5994 = vperm.xlu0 %5993, %v5933
        %v5995 = vpop.permute.xlu0 %5994
        %5996 = vset.pattern.permute.xlu0 0
        %5997 = vperm.xlu0 %5996, %v5934
        %v5998 = vpop.permute.xlu0 %5997
        %5999 = vset.pattern.permute.xlu0 0
        %6000 = vperm.xlu0 %5999, %v5935
        %v6001 = vpop.permute.xlu0 %6000
        %6002 = vset.pattern.permute.xlu0 0
        %6003 = vperm.xlu0 %6002, %v5936
        %v6004 = vpop.permute.xlu0 %6003
        %6005 = vset.pattern.permute.xlu0 0
        %6006 = vperm.xlu0 %6005, %v5937
        %v6007 = vpop.permute.xlu0 %6006
        %6008 = vset.pattern.permute.xlu0 0
        %6009 = vperm.xlu0 %6008, %v5938
        %v6010 = vpop.permute.xlu0 %6009
        %vm6011 = vcmp.eq.s32.totalorder %v5941, 1
        %vm6012 = vcmp.eq.s32.totalorder %v5944, 1
        %vm6013 = vcmp.eq.s32.totalorder %v5947, 1
        %vm6014 = vcmp.eq.s32.totalorder %v5950, 1
        %vm6015 = vcmp.eq.s32.totalorder %v5953, 1
        %vm6016 = vcmp.eq.s32.totalorder %v5956, 1
        %vm6017 = vcmp.eq.s32.totalorder %v5959, 1
        %vm6018 = vcmp.eq.s32.totalorder %v5962, 1
        %vm6019 = vcmp.eq.s32.totalorder %v5965, 1
        %vm6020 = vcmp.eq.s32.totalorder %v5968, 1
        %vm6021 = vcmp.eq.s32.totalorder %v5971, 1
        %vm6022 = vcmp.eq.s32.totalorder %v5974, 1
        %vm6023 = vcmp.eq.s32.totalorder %v5977, 1
        %vm6024 = vcmp.eq.s32.totalorder %v5980, 1
        %vm6025 = vcmp.eq.s32.totalorder %v5983, 1
        %vm6026 = vcmp.eq.s32.totalorder %v5986, 1
        %vm6027 = vcmp.eq.s32.totalorder %v5989, 1
        %vm6028 = vcmp.eq.s32.totalorder %v5992, 1
        %vm6029 = vcmp.eq.s32.totalorder %v5995, 1
        %vm6030 = vcmp.eq.s32.totalorder %v5998, 1
        %vm6031 = vcmp.eq.s32.totalorder %v6001, 1
        %vm6032 = vcmp.eq.s32.totalorder %v6004, 1
        %vm6033 = vcmp.eq.s32.totalorder %v6007, 1
        %vm6034 = vcmp.eq.s32.totalorder %v6010, 1
        %v6035 = vsel %vm6011, %v5843, 0.0
        %v6036 = vsel %vm6012, %v5844, 0.0
        %v6037 = vsel %vm6013, %v5845, 0.0
        %v6038 = vsel %vm6014, %v5846, 0.0
        %v6039 = vsel %vm6015, %v5847, 0.0
        %v6040 = vsel %vm6016, %v5848, 0.0
        %v6041 = vsel %vm6017, %v5849, 0.0
        %v6042 = vsel %vm6018, %v5850, 0.0
        %v6043 = vsel %vm6019, %v5851, 0.0
        %v6044 = vsel %vm6020, %v5852, 0.0
        %v6045 = vsel %vm6021, %v5853, 0.0
        %v6046 = vsel %vm6022, %v5854, 0.0
        %v6047 = vsel %vm6023, %v5855, 0.0
        %v6048 = vsel %vm6024, %v5856, 0.0
        %v6049 = vsel %vm6025, %v5857, 0.0
        %v6050 = vsel %vm6026, %v5858, 0.0
        %v6051 = vsel %vm6027, %v5859, 0.0
        %v6052 = vsel %vm6028, %v5860, 0.0
        %v6053 = vsel %vm6029, %v5861, 0.0
        %v6054 = vsel %vm6030, %v5862, 0.0
        %v6055 = vsel %vm6031, %v5863, 0.0
        %v6056 = vsel %vm6032, %v5864, 0.0
        %v6057 = vsel %vm6033, %v5865, 0.0
        %v6058 = vsel %vm6034, %v5866, 0.0
        %6059 = vst [vmem:[#allocation6] sm:$0xff] 0.0
        %6060 = vst [vmem:[#allocation6 + $0x8] sm:$0xff] 0.0
        %6061 = vst [vmem:[#allocation6 + $0x10] sm:$0xff] 0.0
        %6062 = vst [vmem:[#allocation6 + $0x18] sm:$0xff] 0.0
        %6063 = vst [vmem:[#allocation6 + $0x20] sm:$0x3] 0.0
        %6064 = vst [vmem:[#allocation6 + $0x22] sm:$0xff] %v6035
        %6065 = vst [vmem:[#allocation6 + $0x2a] sm:$0xff] %v6036
        %6066 = vst [vmem:[#allocation6 + $0x32] sm:$0xff] %v6037
        %6067 = vst [vmem:[#allocation6 + $0x3a] sm:$0xff] %v6038
        %6068 = vst [vmem:[#allocation6 + $0x42] sm:$0xff] %v6039
        %6069 = vst [vmem:[#allocation6 + $0x4a] sm:$0xff] %v6040
        %6070 = vst [vmem:[#allocation6 + $0x52] sm:$0xff] %v6041
        %6071 = vst [vmem:[#allocation6 + $0x5a] sm:$0xff] %v6042
        %6072 = vst [vmem:[#allocation6 + $0x62] sm:$0xff] %v6043
        %6073 = vst [vmem:[#allocation6 + $0x6a] sm:$0xff] %v6044
        %6074 = vst [vmem:[#allocation6 + $0x72] sm:$0xff] %v6045
        %6075 = vst [vmem:[#allocation6 + $0x7a] sm:$0xff] %v6046
        %6076 = vst [vmem:[#allocation6 + $0x82] sm:$0xff] %v6047
        %6077 = vst [vmem:[#allocation6 + $0x8a] sm:$0xff] %v6048
        %6078 = vst [vmem:[#allocation6 + $0x92] sm:$0xff] %v6049
        %6079 = vst [vmem:[#allocation6 + $0x9a] sm:$0xff] %v6050
        %6080 = vst [vmem:[#allocation6 + $0xa2] sm:$0xff] %v6051
        %6081 = vst [vmem:[#allocation6 + $0xaa] sm:$0xff] %v6052
        %6082 = vst [vmem:[#allocation6 + $0xb2] sm:$0xff] %v6053
        %6083 = vst [vmem:[#allocation6 + $0xba] sm:$0xff] %v6054
        %6084 = vst [vmem:[#allocation6 + $0xc2] sm:$0xff] %v6055
        %6085 = vst [vmem:[#allocation6 + $0xca] sm:$0xff] %v6056
        %6086 = vst [vmem:[#allocation6 + $0xd2] sm:$0xff] %v6057
        %6087 = vst [vmem:[#allocation6 + $0xda] sm:$0xff] %v6058
        %6088 = vst [vmem:[#allocation6 + $0xe0] sm:$0xff] 0.0
        %6089 = vst [vmem:[#allocation6 + $0xe8] sm:$0xff] 0.0
        %6090 = vst [vmem:[#allocation6 + $0xf0] sm:$0xff] 0.0
        %6091 = vst [vmem:[#allocation6 + $0xf8] sm:$0xff] 0.0
        %6092 = vst [vmem:[#allocation6 + $0x100] sm:$0x3] 0.0
        %v6093 = vld [vmem:[#allocation6] sm:$0xff]
        %v6094 = vld [vmem:[#allocation6 + $0x8] sm:$0xff]
        %v6095 = vld [vmem:[#allocation6 + $0x10] sm:$0xff]
        %v6096 = vld [vmem:[#allocation6 + $0x18] sm:$0xff]
        %v6097 = vld [vmem:[#allocation6 + $0x20] sm:$0xff]
        %v6098 = vld [vmem:[#allocation6 + $0x28] sm:$0xff]
        %v6099 = vld [vmem:[#allocation6 + $0x30] sm:$0xff]
        %v6100 = vld [vmem:[#allocation6 + $0x38] sm:$0xff]
        %v6101 = vld [vmem:[#allocation6 + $0x40] sm:$0xff]
        %v6102 = vld [vmem:[#allocation6 + $0x48] sm:$0xff]
        %v6103 = vld [vmem:[#allocation6 + $0x50] sm:$0xff]
        %v6104 = vld [vmem:[#allocation6 + $0x58] sm:$0xff]
        %v6105 = vld [vmem:[#allocation6 + $0x60] sm:$0xff]
        %v6106 = vld [vmem:[#allocation6 + $0x68] sm:$0xff]
        %v6107 = vld [vmem:[#allocation6 + $0x70] sm:$0xff]
        %v6108 = vld [vmem:[#allocation6 + $0x78] sm:$0xff]
        %v6109 = vld [vmem:[#allocation6 + $0x80] sm:$0xff]
        %v6110 = vld [vmem:[#allocation6 + $0x88] sm:$0xff]
        %v6111 = vld [vmem:[#allocation6 + $0x90] sm:$0xff]
        %v6112 = vld [vmem:[#allocation6 + $0x98] sm:$0xff]
        %v6113 = vld [vmem:[#allocation6 + $0xa0] sm:$0xff]
        %v6114 = vld [vmem:[#allocation6 + $0xa8] sm:$0xff]
        %v6115 = vld [vmem:[#allocation6 + $0xb0] sm:$0xff]
        %v6116 = vld [vmem:[#allocation6 + $0xb8] sm:$0xff]
        %v6117 = vld [vmem:[#allocation6 + $0xc0] sm:$0xff]
        %v6118 = vld [vmem:[#allocation6 + $0xc8] sm:$0xff]
        %v6119 = vld [vmem:[#allocation6 + $0xd0] sm:$0xff]
        %v6120 = vld [vmem:[#allocation6 + $0xd8] sm:$0xff]
        %v6121 = vld [vmem:[#allocation6 + $0x1] sm:$0xff]
        %v6122 = vld [vmem:[#allocation6 + $0x9] sm:$0xff]
        %v6123 = vld [vmem:[#allocation6 + $0x11] sm:$0xff]
        %v6124 = vld [vmem:[#allocation6 + $0x19] sm:$0xff]
        %v6125 = vld [vmem:[#allocation6 + $0x21] sm:$0xff]
        %v6126 = vld [vmem:[#allocation6 + $0x29] sm:$0xff]
        %v6127 = vld [vmem:[#allocation6 + $0x31] sm:$0xff]
        %v6128 = vld [vmem:[#allocation6 + $0x39] sm:$0xff]
        %v6129 = vld [vmem:[#allocation6 + $0x41] sm:$0xff]
        %v6130 = vld [vmem:[#allocation6 + $0x49] sm:$0xff]
        %v6131 = vld [vmem:[#allocation6 + $0x51] sm:$0xff]
        %v6132 = vld [vmem:[#allocation6 + $0x59] sm:$0xff]
        %v6133 = vld [vmem:[#allocation6 + $0x61] sm:$0xff]
        %v6134 = vld [vmem:[#allocation6 + $0x69] sm:$0xff]
        %v6135 = vld [vmem:[#allocation6 + $0x71] sm:$0xff]
        %v6136 = vld [vmem:[#allocation6 + $0x79] sm:$0xff]
        %v6137 = vld [vmem:[#allocation6 + $0x81] sm:$0xff]
        %v6138 = vld [vmem:[#allocation6 + $0x89] sm:$0xff]
        %v6139 = vld [vmem:[#allocation6 + $0x91] sm:$0xff]
        %v6140 = vld [vmem:[#allocation6 + $0x99] sm:$0xff]
        %v6141 = vld [vmem:[#allocation6 + $0xa1] sm:$0xff]
        %v6142 = vld [vmem:[#allocation6 + $0xa9] sm:$0xff]
        %v6143 = vld [vmem:[#allocation6 + $0xb1] sm:$0xff]
        %v6144 = vld [vmem:[#allocation6 + $0xb9] sm:$0xff]
        %v6145 = vld [vmem:[#allocation6 + $0xc1] sm:$0xff]
        %v6146 = vld [vmem:[#allocation6 + $0xc9] sm:$0xff]
        %v6147 = vld [vmem:[#allocation6 + $0xd1] sm:$0xff]
        %v6148 = vld [vmem:[#allocation6 + $0xd9] sm:$0xff]
        %v6149 = vld [vmem:[#allocation6 + $0x2] sm:$0xff]
        %v6150 = vld [vmem:[#allocation6 + $0xa] sm:$0xff]
        %v6151 = vld [vmem:[#allocation6 + $0x12] sm:$0xff]
        %v6152 = vld [vmem:[#allocation6 + $0x1a] sm:$0xff]
        %v6153 = vld [vmem:[#allocation6 + $0x22] sm:$0xff]
        %v6154 = vld [vmem:[#allocation6 + $0x2a] sm:$0xff]
        %v6155 = vld [vmem:[#allocation6 + $0x32] sm:$0xff]
        %v6156 = vld [vmem:[#allocation6 + $0x3a] sm:$0xff]
        %v6157 = vld [vmem:[#allocation6 + $0x42] sm:$0xff]
        %v6158 = vld [vmem:[#allocation6 + $0x4a] sm:$0xff]
        %v6159 = vld [vmem:[#allocation6 + $0x52] sm:$0xff]
        %v6160 = vld [vmem:[#allocation6 + $0x5a] sm:$0xff]
        %v6161 = vld [vmem:[#allocation6 + $0x62] sm:$0xff]
        %v6162 = vld [vmem:[#allocation6 + $0x6a] sm:$0xff]
        %v6163 = vld [vmem:[#allocation6 + $0x72] sm:$0xff]
        %v6164 = vld [vmem:[#allocation6 + $0x7a] sm:$0xff]
        %v6165 = vld [vmem:[#allocation6 + $0x82] sm:$0xff]
        %v6166 = vld [vmem:[#allocation6 + $0x8a] sm:$0xff]
        %v6167 = vld [vmem:[#allocation6 + $0x92] sm:$0xff]
        %v6168 = vld [vmem:[#allocation6 + $0x9a] sm:$0xff]
        %v6169 = vld [vmem:[#allocation6 + $0xa2] sm:$0xff]
        %v6170 = vld [vmem:[#allocation6 + $0xaa] sm:$0xff]
        %v6171 = vld [vmem:[#allocation6 + $0xb2] sm:$0xff]
        %v6172 = vld [vmem:[#allocation6 + $0xba] sm:$0xff]
        %v6173 = vld [vmem:[#allocation6 + $0xc2] sm:$0xff]
        %v6174 = vld [vmem:[#allocation6 + $0xca] sm:$0xff]
        %v6175 = vld [vmem:[#allocation6 + $0xd2] sm:$0xff]
        %v6176 = vld [vmem:[#allocation6 + $0xda] sm:$0xff]
        %v6177 = vld [vmem:[#allocation6 + $0xe0] sm:$0xff]
        %v6178 = vld [vmem:[#allocation6 + $0xe8] sm:$0xff]
        %v6179 = vld [vmem:[#allocation6 + $0xe1] sm:$0xff]
        %v6180 = vld [vmem:[#allocation6 + $0xe9] sm:$0xff]
        %v6181 = vld [vmem:[#allocation6 + $0xe2] sm:$0xff]
        %v6182 = vld [vmem:[#allocation6 + $0xea] sm:$0xff]
        %v6183 = vld [vmem:[#allocation6 + $0xf0] sm:$0xff]
        %v6184 = vld [vmem:[#allocation6 + $0xf8] sm:$0xff]
        %v6185 = vld [vmem:[#allocation6 + $0xf1] sm:$0xff]
        %v6186 = vld [vmem:[#allocation6 + $0xf9] sm:$0xff]
        %v6187 = vld [vmem:[#allocation6 + $0x22] sm:$0xff]
        %v6188 = vld [vmem:[#allocation6 + $0x2a] sm:$0xff]
        %v6189 = vld [vmem:[#allocation6 + $0x32] sm:$0xff]
        %v6190 = vld [vmem:[#allocation6 + $0x3a] sm:$0xff]
        %v6191 = vld [vmem:[#allocation6 + $0x42] sm:$0xff]
        %v6192 = vld [vmem:[#allocation6 + $0x4a] sm:$0xff]
        %v6193 = vld [vmem:[#allocation6 + $0x52] sm:$0xff]
        %v6194 = vld [vmem:[#allocation6 + $0x5a] sm:$0xff]
        %v6195 = vld [vmem:[#allocation6 + $0x62] sm:$0xff]
        %v6196 = vld [vmem:[#allocation6 + $0x6a] sm:$0xff]
        %v6197 = vld [vmem:[#allocation6 + $0x72] sm:$0xff]
        %v6198 = vld [vmem:[#allocation6 + $0x7a] sm:$0xff]
        %v6199 = vld [vmem:[#allocation6 + $0x82] sm:$0xff]
        %v6200 = vld [vmem:[#allocation6 + $0x8a] sm:$0xff]
        %v6201 = vld [vmem:[#allocation6 + $0x92] sm:$0xff]
        %v6202 = vld [vmem:[#allocation6 + $0x9a] sm:$0xff]
        %v6203 = vld [vmem:[#allocation6 + $0xa2] sm:$0xff]
        %v6204 = vld [vmem:[#allocation6 + $0xaa] sm:$0xff]
        %v6205 = vld [vmem:[#allocation6 + $0xb2] sm:$0xff]
        %v6206 = vld [vmem:[#allocation6 + $0xba] sm:$0xff]
        %v6207 = vld [vmem:[#allocation6 + $0xc2] sm:$0xff]
        %v6208 = vld [vmem:[#allocation6 + $0xca] sm:$0xff]
        %v6209 = vld [vmem:[#allocation6 + $0xd2] sm:$0xff]
        %v6210 = vld [vmem:[#allocation6 + $0xda] sm:$0xff]
        %v6211 = vld [vmem:[#allocation6 + $0xe2] sm:$0xff]
        %v6212 = vld [vmem:[#allocation6 + $0xea] sm:$0xff]
        %v6213 = vld [vmem:[#allocation6 + $0xf2] sm:$0xff]
        %v6214 = vld [vmem:[#allocation6 + $0xfa] sm:$0xff]
        %v6215 = vpack.c.bf16 %v6094, %v6093
        %v6216 = vpack.c.bf16 %v6122, %v6121
        %v6217 = vpack.c.bf16 %v6150, %v6149
        %v6218 = vpack.c.bf16 %v6096, %v6095
        %v6219 = vpack.c.bf16 %v6124, %v6123
        %v6220 = vpack.c.bf16 %v6152, %v6151
        %v6221 = vpack.c.bf16 %v6098, %v6097
        %v6222 = vpack.c.bf16 %v6126, %v6125
        %v6223 = vpack.c.bf16 %v6188, %v6187
        %v6224 = vpack.c.bf16 %v6154, %v6153
        %v6225 = vpack.c.bf16 %v6100, %v6099
        %v6226 = vpack.c.bf16 %v6128, %v6127
        %v6227 = vpack.c.bf16 %v6190, %v6189
        %v6228 = vpack.c.bf16 %v6156, %v6155
        %v6229 = vpack.c.bf16 %v6102, %v6101
        %v6230 = vpack.c.bf16 %v6130, %v6129
        %v6231 = vpack.c.bf16 %v6192, %v6191
        %v6232 = vpack.c.bf16 %v6158, %v6157
        %v6233 = vpack.c.bf16 %v6104, %v6103
        %v6234 = vpack.c.bf16 %v6132, %v6131
        %v6235 = vpack.c.bf16 %v6194, %v6193
        %v6236 = vpack.c.bf16 %v6160, %v6159
        %v6237 = vpack.c.bf16 %v6106, %v6105
        %v6238 = vpack.c.bf16 %v6134, %v6133
        %v6239 = vpack.c.bf16 %v6196, %v6195
        %v6240 = vpack.c.bf16 %v6162, %v6161
        %v6241 = vpack.c.bf16 %v6108, %v6107
        %v6242 = vpack.c.bf16 %v6136, %v6135
        %v6243 = vpack.c.bf16 %v6198, %v6197
        %v6244 = vpack.c.bf16 %v6164, %v6163
        %v6245 = vpack.c.bf16 %v6110, %v6109
        %v6246 = vpack.c.bf16 %v6138, %v6137
        %v6247 = vpack.c.bf16 %v6200, %v6199
        %v6248 = vpack.c.bf16 %v6166, %v6165
        %v6249 = vpack.c.bf16 %v6112, %v6111
        %v6250 = vpack.c.bf16 %v6140, %v6139
        %v6251 = vpack.c.bf16 %v6202, %v6201
        %v6252 = vpack.c.bf16 %v6168, %v6167
        %v6253 = vpack.c.bf16 %v6114, %v6113
        %v6254 = vpack.c.bf16 %v6142, %v6141
        %v6255 = vpack.c.bf16 %v6204, %v6203
        %v6256 = vpack.c.bf16 %v6170, %v6169
        %v6257 = vpack.c.bf16 %v6116, %v6115
        %v6258 = vpack.c.bf16 %v6144, %v6143
        %v6259 = vpack.c.bf16 %v6206, %v6205
        %v6260 = vpack.c.bf16 %v6172, %v6171
        %v6261 = vpack.c.bf16 %v6118, %v6117
        %v6262 = vpack.c.bf16 %v6146, %v6145
        %v6263 = vpack.c.bf16 %v6208, %v6207
        %v6264 = vpack.c.bf16 %v6174, %v6173
        %v6265 = vpack.c.bf16 %v6120, %v6119
        %v6266 = vpack.c.bf16 %v6148, %v6147
        %v6267 = vpack.c.bf16 %v6210, %v6209
        %v6268 = vpack.c.bf16 %v6176, %v6175
        %v6269 = vpack.c.bf16 %v6178, %v6177
        %v6270 = vpack.c.bf16 %v6180, %v6179
        %v6271 = vpack.c.bf16 %v6212, %v6211
        %v6272 = vpack.c.bf16 %v6182, %v6181
        %v6273 = vpack.c.bf16 %v6184, %v6183
        %v6274 = vpack.c.bf16 %v6186, %v6185
        %v6275 = vpack.c.bf16 %v6214, %v6213
        %v6276 = vld [vmem:[#allocation10 + $0x900] sm:$0xf]
        %v6277 = vld [vmem:[#allocation10 + $0x904] sm:$0xf]
        %v6278 = vld [vmem:[#allocation10 + $0x908] sm:$0xf]
        %v6279 = vld [vmem:[#allocation10 + $0x90c] sm:$0xf]
        %v6280 = vld [vmem:[#allocation10 + $0x910] sm:$0xf]
        %v6281 = vld [vmem:[#allocation10 + $0x914] sm:$0xf]
        %v6282 = vld [vmem:[#allocation10 + $0x918] sm:$0xf]
        %v6283 = vld [vmem:[#allocation10 + $0x91c] sm:$0xf]
        %v6284 = vld [vmem:[#allocation10 + $0x920] sm:$0xf]
        %v6285 = vld [vmem:[#allocation10 + $0x924] sm:$0xf]
        %v6286 = vld [vmem:[#allocation10 + $0x928] sm:$0xf]
        %v6287 = vld [vmem:[#allocation10 + $0x92c] sm:$0xf]
        %v6288 = vld [vmem:[#allocation10 + $0x930] sm:$0xf]
        %v6289 = vld [vmem:[#allocation10 + $0x934] sm:$0xf]
        %v6290 = vld [vmem:[#allocation10 + $0x938] sm:$0xf]
        %v6291 = vld [vmem:[#allocation10 + $0x93c] sm:$0xf]
        %v6292 = vld [vmem:[#allocation10 + $0x940] sm:$0xf]
        %v6293 = vld [vmem:[#allocation10 + $0x944] sm:$0xf]
        %v6294 = vld [vmem:[#allocation10 + $0x948] sm:$0xf]
        %v6295 = vld [vmem:[#allocation10 + $0x94c] sm:$0xf]
        %v6296 = vld [vmem:[#allocation10 + $0x950] sm:$0xf]
        %v6297 = vld [vmem:[#allocation10 + $0x954] sm:$0xf]
        %v6298 = vld [vmem:[#allocation10 + $0x958] sm:$0xf]
        %v6299 = vld [vmem:[#allocation10 + $0x95c] sm:$0xf]
        %v6300 = vld [vmem:[#allocation10 + $0x960] sm:$0xf]
        %v6301 = vld [vmem:[#allocation10 + $0x964] sm:$0xf]
        %v6302 = vld [vmem:[#allocation10 + $0x968] sm:$0xf]
        %v6303 = vld [vmem:[#allocation10 + $0x96c] sm:$0xf]
        %v6304 = vld [vmem:[#allocation10 + $0x970] sm:$0xf]
        %v6305 = vld [vmem:[#allocation10 + $0x974] sm:$0xf]
        %v6306 = vld [vmem:[#allocation10 + $0x978] sm:$0xf]
        %v6307 = vld [vmem:[#allocation10 + $0x97c] sm:$0xf]
        %v6308 = vld [vmem:[#allocation10 + $0x980] sm:$0xf]
        %v6309 = vld [vmem:[#allocation10 + $0x984] sm:$0xf]
        %v6310 = vld [vmem:[#allocation10 + $0x988] sm:$0xf]
        %v6311 = vld [vmem:[#allocation10 + $0x98c] sm:$0xf]
        %v6312 = vld [vmem:[#allocation10 + $0x990] sm:$0xf]
        %v6313 = vld [vmem:[#allocation10 + $0x994] sm:$0xf]
        %v6314 = vld [vmem:[#allocation10 + $0x998] sm:$0xf]
        %v6315 = vld [vmem:[#allocation10 + $0x99c] sm:$0xf]
        %v6316 = vld [vmem:[#allocation10 + $0x9a0] sm:$0xf]
        %v6317 = vld [vmem:[#allocation10 + $0x9a4] sm:$0xf]
        %v6318 = vld [vmem:[#allocation10 + $0x9a8] sm:$0xf]
        %v6319 = vld [vmem:[#allocation10 + $0x9ac] sm:$0xf]
        %v6320 = vld [vmem:[#allocation10 + $0x9b0] sm:$0xf]
        %v6321 = vld [vmem:[#allocation10 + $0x9b4] sm:$0xf]
        %v6322 = vld [vmem:[#allocation10 + $0x9b8] sm:$0xf]
        %v6323 = vld [vmem:[#allocation10 + $0x9bc] sm:$0xf]
        %v6324 = vld [vmem:[#allocation10 + $0x9c0] sm:$0xf]
        %v6325 = vld [vmem:[#allocation10 + $0x9c4] sm:$0xf]
        %v6326 = vld [vmem:[#allocation10 + $0x9c8] sm:$0xf]
        %v6327 = vld [vmem:[#allocation10 + $0x9cc] sm:$0xf]
        %v6328 = vld [vmem:[#allocation10 + $0x9d0] sm:$0xf]
        %v6329 = vld [vmem:[#allocation10 + $0x9d4] sm:$0xf]
        %v6330 = vld [vmem:[#allocation10 + $0x9d8] sm:$0xf]
        %v6331 = vld [vmem:[#allocation10 + $0x9dc] sm:$0xf]
        %v6332 = vld [vmem:[#allocation10 + $0x9e0] sm:$0xf]
        %v6333 = vld [vmem:[#allocation10 + $0x9e4] sm:$0xf]
        %v6334 = vld [vmem:[#allocation10 + $0x9e8] sm:$0xf]
        %v6335 = vld [vmem:[#allocation10 + $0x9ec] sm:$0xf]
        %v6336 = vld [vmem:[#allocation10 + $0x9f0] sm:$0xf]
        %v6337 = vld [vmem:[#allocation10 + $0x9f4] sm:$0xf]
        %v6338 = vld [vmem:[#allocation10 + $0x9f8] sm:$0xf]
        %v6339 = vld [vmem:[#allocation10 + $0x9fc] sm:$0xf]
        %v6340 = vld [vmem:[#allocation10 + $0xa00] sm:$0xf]
        %v6341 = vld [vmem:[#allocation10 + $0xa04] sm:$0xf]
        %v6342 = vld [vmem:[#allocation10 + $0xa08] sm:$0xf]
        %v6343 = vld [vmem:[#allocation10 + $0xa0c] sm:$0xf]
        %v6344 = vld [vmem:[#allocation10 + $0xa10] sm:$0xf]
        %v6345 = vld [vmem:[#allocation10 + $0xa14] sm:$0xf]
        %v6346 = vld [vmem:[#allocation10 + $0xa18] sm:$0xf]
        %v6347 = vld [vmem:[#allocation10 + $0xa1c] sm:$0xf]
        %v6348 = vld [vmem:[#allocation10 + $0xa20] sm:$0xf]
        %v6349 = vld [vmem:[#allocation10 + $0xa24] sm:$0xf]
        %v6350 = vld [vmem:[#allocation10 + $0xa28] sm:$0xf]
        %v6351 = vld [vmem:[#allocation10 + $0xa2c] sm:$0xf]
        %v6352 = vld [vmem:[#allocation10 + $0xa30] sm:$0xf]
        %v6353 = vld [vmem:[#allocation10 + $0xa34] sm:$0xf]
        %v6354 = vld [vmem:[#allocation10 + $0xa38] sm:$0xf]
        %v6355 = vld [vmem:[#allocation10 + $0xa3c] sm:$0xf]
        %v6356 = vld [vmem:[#allocation10 + $0xa40] sm:$0xf]
        %v6357 = vld [vmem:[#allocation10 + $0xa44] sm:$0xf]
        %v6358 = vld [vmem:[#allocation10 + $0xa48] sm:$0xf]
        %v6359 = vld [vmem:[#allocation10 + $0xa4c] sm:$0xf]
        %v6360 = vld [vmem:[#allocation10 + $0xa50] sm:$0xf]
        %v6361 = vld [vmem:[#allocation10 + $0xa54] sm:$0xf]
        %v6362 = vld [vmem:[#allocation10 + $0xa58] sm:$0xf]
        %v6363 = vld [vmem:[#allocation10 + $0xa5c] sm:$0xf]
        %v6364 = vld [vmem:[#allocation10 + $0xa60] sm:$0xf]
        %v6365 = vld [vmem:[#allocation10 + $0xa64] sm:$0xf]
        %v6366 = vld [vmem:[#allocation10 + $0xa68] sm:$0xf]
        %v6367 = vld [vmem:[#allocation10 + $0xa6c] sm:$0xf]
        %v6368 = vld [vmem:[#allocation10 + $0xa70] sm:$0xf]
        %v6369 = vld [vmem:[#allocation10 + $0xa74] sm:$0xf]
        %v6370 = vld [vmem:[#allocation10 + $0xa78] sm:$0xf]
        %v6371 = vld [vmem:[#allocation10 + $0xa7c] sm:$0xf]
        %v6372 = vld [vmem:[#allocation10 + $0xa80] sm:$0xf]
        %v6373 = vld [vmem:[#allocation10 + $0xa84] sm:$0xf]
        %v6374 = vld [vmem:[#allocation10 + $0xa88] sm:$0xf]
        %v6375 = vld [vmem:[#allocation10 + $0xa8c] sm:$0xf]
        %v6376 = vld [vmem:[#allocation10 + $0xa90] sm:$0xf]
        %v6377 = vld [vmem:[#allocation10 + $0xa94] sm:$0xf]
        %v6378 = vld [vmem:[#allocation10 + $0xa98] sm:$0xf]
        %v6379 = vld [vmem:[#allocation10 + $0xa9c] sm:$0xf]
        %v6380 = vld [vmem:[#allocation10 + $0xaa0] sm:$0xf]
        %v6381 = vld [vmem:[#allocation10 + $0xaa4] sm:$0xf]
        %v6382 = vld [vmem:[#allocation10 + $0xaa8] sm:$0xf]
        %v6383 = vld [vmem:[#allocation10 + $0xaac] sm:$0xf]
        %v6384 = vld [vmem:[#allocation10 + $0xab0] sm:$0xf]
        %v6385 = vld [vmem:[#allocation10 + $0xab4] sm:$0xf]
        %v6386 = vld [vmem:[#allocation10 + $0xab8] sm:$0xf]
        %v6387 = vld [vmem:[#allocation10 + $0xabc] sm:$0xf]
        %v6388 = vld [vmem:[#allocation10 + $0xac0] sm:$0xf]
        %v6389 = vld [vmem:[#allocation10 + $0xac4] sm:$0xf]
        %v6390 = vld [vmem:[#allocation10 + $0xac8] sm:$0xf]
        %v6391 = vld [vmem:[#allocation10 + $0xacc] sm:$0xf]
        %v6392 = vld [vmem:[#allocation10 + $0xad0] sm:$0xf]
        %v6393 = vld [vmem:[#allocation10 + $0xad4] sm:$0xf]
        %v6394 = vld [vmem:[#allocation10 + $0xad8] sm:$0xf]
        %v6395 = vld [vmem:[#allocation10 + $0xadc] sm:$0xf]
        %v6396 = vld [vmem:[#allocation10 + $0xae0] sm:$0xf]
        %v6397 = vld [vmem:[#allocation10 + $0xae4] sm:$0xf]
        %v6398 = vld [vmem:[#allocation10 + $0xae8] sm:$0xf]
        %v6399 = vld [vmem:[#allocation10 + $0xaec] sm:$0xf]
        %v6400 = vld [vmem:[#allocation10 + $0xaf0] sm:$0xf]
        %v6401 = vld [vmem:[#allocation10 + $0xaf4] sm:$0xf]
        %v6402 = vld [vmem:[#allocation10 + $0xaf8] sm:$0xf]
        %v6403 = vld [vmem:[#allocation10 + $0xafc] sm:$0xf]
        %v6404 = vld [vmem:[#allocation10 + $0xb00] sm:$0xf]
        %v6405 = vld [vmem:[#allocation10 + $0xb04] sm:$0xf]
        %v6406 = vld [vmem:[#allocation10 + $0xb08] sm:$0xf]
        %v6407 = vld [vmem:[#allocation10 + $0xb0c] sm:$0xf]
        %v6408 = vld [vmem:[#allocation10 + $0xb10] sm:$0xf]
        %v6409 = vld [vmem:[#allocation10 + $0xb14] sm:$0xf]
        %v6410 = vld [vmem:[#allocation10 + $0xb18] sm:$0xf]
        %v6411 = vld [vmem:[#allocation10 + $0xb1c] sm:$0xf]
        %v6412 = vld [vmem:[#allocation10 + $0xb20] sm:$0xf]
        %v6413 = vld [vmem:[#allocation10 + $0xb24] sm:$0xf]
        %v6414 = vld [vmem:[#allocation10 + $0xb28] sm:$0xf]
        %v6415 = vld [vmem:[#allocation10 + $0xb2c] sm:$0xf]
        %v6416 = vld [vmem:[#allocation10 + $0xb30] sm:$0xf]
        %v6417 = vld [vmem:[#allocation10 + $0xb34] sm:$0xf]
        %v6418 = vld [vmem:[#allocation10 + $0xb38] sm:$0xf]
        %v6419 = vld [vmem:[#allocation10 + $0xb3c] sm:$0xf]
        %v6420 = vld [vmem:[#allocation12 + $0x4] sm:$0x1]
        %v6421 = vlaneseq
        %v6422 = vshrl.u32 %v6421, 7
        %v6423 = vsub.s32 0, %v6422
        %v6424 = vrot.slane %v6420, %v6423
        %v6569 = vunpack.c.l.b16 %v6276
        %v6570 = vunpack.c.l.b16 %v6277
        %v6571 = vunpack.c.l.b16 %v6278
        %v6572 = vunpack.c.l.b16 %v6279
        %v6573 = vunpack.c.l.b16 %v6280
        %v6574 = vunpack.c.l.b16 %v6281
        %v6575 = vunpack.c.l.b16 %v6282
        %v6576 = vunpack.c.l.b16 %v6283
        %v6577 = vunpack.c.l.b16 %v6284
        %v6578 = vunpack.c.l.b16 %v6285
        %v6579 = vunpack.c.l.b16 %v6286
        %v6580 = vunpack.c.l.b16 %v6287
        %v6581 = vunpack.c.l.b16 %v6288
        %v6582 = vunpack.c.l.b16 %v6289
        %v6583 = vunpack.c.l.b16 %v6290
        %v6584 = vunpack.c.l.b16 %v6291
        %v6585 = vunpack.c.l.b16 %v6292
        %v6586 = vunpack.c.l.b16 %v6293
        %v6587 = vunpack.c.l.b16 %v6294
        %v6588 = vunpack.c.l.b16 %v6295
        %v6589 = vunpack.c.l.b16 %v6296
        %v6590 = vunpack.c.l.b16 %v6297
        %v6591 = vunpack.c.l.b16 %v6298
        %v6592 = vunpack.c.l.b16 %v6299
        %v6593 = vunpack.c.l.b16 %v6300
        %v6594 = vunpack.c.l.b16 %v6301
        %v6595 = vunpack.c.l.b16 %v6302
        %v6596 = vunpack.c.l.b16 %v6303
        %v6597 = vunpack.c.l.b16 %v6304
        %v6598 = vunpack.c.l.b16 %v6305
        %v6599 = vunpack.c.l.b16 %v6306
        %v6600 = vunpack.c.l.b16 %v6307
        %v6601 = vunpack.c.l.b16 %v6308
        %v6602 = vunpack.c.l.b16 %v6309
        %v6603 = vunpack.c.l.b16 %v6310
        %v6604 = vunpack.c.l.b16 %v6311
        %v6605 = vunpack.c.l.b16 %v6312
        %v6606 = vunpack.c.l.b16 %v6313
        %v6607 = vunpack.c.l.b16 %v6314
        %v6608 = vunpack.c.l.b16 %v6315
        %v6609 = vunpack.c.l.b16 %v6316
        %v6610 = vunpack.c.l.b16 %v6317
        %v6611 = vunpack.c.l.b16 %v6318
        %v6612 = vunpack.c.l.b16 %v6319
        %v6613 = vunpack.c.l.b16 %v6320
        %v6614 = vunpack.c.l.b16 %v6321
        %v6615 = vunpack.c.l.b16 %v6322
        %v6616 = vunpack.c.l.b16 %v6323
        %v6617 = vunpack.c.l.b16 %v6324
        %v6618 = vunpack.c.l.b16 %v6325
        %v6619 = vunpack.c.l.b16 %v6326
        %v6620 = vunpack.c.l.b16 %v6327
        %v6621 = vunpack.c.l.b16 %v6328
        %v6622 = vunpack.c.l.b16 %v6329
        %v6623 = vunpack.c.l.b16 %v6330
        %v6624 = vunpack.c.l.b16 %v6331
        %v6625 = vunpack.c.l.b16 %v6332
        %v6626 = vunpack.c.l.b16 %v6333
        %v6627 = vunpack.c.l.b16 %v6334
        %v6628 = vunpack.c.l.b16 %v6335
        %v6629 = vunpack.c.l.b16 %v6336
        %v6630 = vunpack.c.l.b16 %v6337
        %v6631 = vunpack.c.l.b16 %v6338
        %v6632 = vunpack.c.l.b16 %v6339
        %v6633 = vunpack.c.l.b16 %v6340
        %v6634 = vunpack.c.l.b16 %v6341
        %v6635 = vunpack.c.l.b16 %v6342
        %v6636 = vunpack.c.l.b16 %v6343
        %v6637 = vunpack.c.l.b16 %v6344
        %v6638 = vunpack.c.l.b16 %v6345
        %v6639 = vunpack.c.l.b16 %v6346
        %v6640 = vunpack.c.l.b16 %v6347
        %v6641 = vunpack.c.l.b16 %v6348
        %v6642 = vunpack.c.l.b16 %v6349
        %v6643 = vunpack.c.l.b16 %v6350
        %v6644 = vunpack.c.l.b16 %v6351
        %v6645 = vunpack.c.l.b16 %v6352
        %v6646 = vunpack.c.l.b16 %v6353
        %v6647 = vunpack.c.l.b16 %v6354
        %v6648 = vunpack.c.l.b16 %v6355
        %v6649 = vunpack.c.l.b16 %v6356
        %v6650 = vunpack.c.l.b16 %v6357
        %v6651 = vunpack.c.l.b16 %v6358
        %v6652 = vunpack.c.l.b16 %v6359
        %v6653 = vunpack.c.l.b16 %v6360
        %v6654 = vunpack.c.l.b16 %v6361
        %v6655 = vunpack.c.l.b16 %v6362
        %v6656 = vunpack.c.l.b16 %v6363
        %v6657 = vunpack.c.l.b16 %v6364
        %v6658 = vunpack.c.l.b16 %v6365
        %v6659 = vunpack.c.l.b16 %v6366
        %v6660 = vunpack.c.l.b16 %v6367
        %v6661 = vunpack.c.l.b16 %v6368
        %v6662 = vunpack.c.l.b16 %v6369
        %v6663 = vunpack.c.l.b16 %v6370
        %v6664 = vunpack.c.l.b16 %v6371
        %v6665 = vunpack.c.l.b16 %v6372
        %v6666 = vunpack.c.l.b16 %v6373
        %v6667 = vunpack.c.l.b16 %v6374
        %v6668 = vunpack.c.l.b16 %v6375
        %v6669 = vunpack.c.l.b16 %v6376
        %v6670 = vunpack.c.l.b16 %v6377
        %v6671 = vunpack.c.l.b16 %v6378
        %v6672 = vunpack.c.l.b16 %v6379
        %v6673 = vunpack.c.l.b16 %v6380
        %v6674 = vunpack.c.l.b16 %v6381
        %v6675 = vunpack.c.l.b16 %v6382
        %v6676 = vunpack.c.l.b16 %v6383
        %v6677 = vunpack.c.l.b16 %v6384
        %v6678 = vunpack.c.l.b16 %v6385
        %v6679 = vunpack.c.l.b16 %v6386
        %v6680 = vunpack.c.l.b16 %v6387
        %v6681 = vunpack.c.l.b16 %v6388
        %v6682 = vunpack.c.l.b16 %v6389
        %v6683 = vunpack.c.l.b16 %v6390
        %v6684 = vunpack.c.l.b16 %v6391
        %v6685 = vunpack.c.l.b16 %v6392
        %v6686 = vunpack.c.l.b16 %v6393
        %v6687 = vunpack.c.l.b16 %v6394
        %v6688 = vunpack.c.l.b16 %v6395
        %v6689 = vunpack.c.l.b16 %v6396
        %v6690 = vunpack.c.l.b16 %v6397
        %v6691 = vunpack.c.l.b16 %v6398
        %v6692 = vunpack.c.l.b16 %v6399
        %v6693 = vunpack.c.l.b16 %v6400
        %v6694 = vunpack.c.l.b16 %v6401
        %v6695 = vunpack.c.l.b16 %v6402
        %v6696 = vunpack.c.l.b16 %v6403
        %v6697 = vunpack.c.l.b16 %v6404
        %v6698 = vunpack.c.l.b16 %v6405
        %v6699 = vunpack.c.l.b16 %v6406
        %v6700 = vunpack.c.l.b16 %v6407
        %v6701 = vunpack.c.l.b16 %v6408
        %v6702 = vunpack.c.l.b16 %v6409
        %v6703 = vunpack.c.l.b16 %v6410
        %v6704 = vunpack.c.l.b16 %v6411
        %v6705 = vunpack.c.l.b16 %v6412
        %v6706 = vunpack.c.l.b16 %v6413
        %v6707 = vunpack.c.l.b16 %v6414
        %v6708 = vunpack.c.l.b16 %v6415
        %v6709 = vunpack.c.l.b16 %v6416
        %v6710 = vunpack.c.l.b16 %v6417
        %v6711 = vunpack.c.l.b16 %v6418
        %v6712 = vunpack.c.l.b16 %v6419
        %v6713 = vpack.c.b16 %v6570, %v6569
        %v6714 = vpack.c.b16 %v6572, %v6571
        %v6715 = vpack.c.b16 %v6574, %v6573
        %v6716 = vpack.c.b16 %v6576, %v6575
        %v6717 = vpack.c.b16 %v6578, %v6577
        %v6718 = vpack.c.b16 %v6580, %v6579
        %v6719 = vpack.c.b16 %v6582, %v6581
        %v6720 = vpack.c.b16 %v6584, %v6583
        %v6721 = vpack.c.b16 %v6586, %v6585
        %v6722 = vpack.c.b16 %v6588, %v6587
        %v6723 = vpack.c.b16 %v6590, %v6589
        %v6724 = vpack.c.b16 %v6592, %v6591
        %v6725 = vpack.c.b16 %v6594, %v6593
        %v6726 = vpack.c.b16 %v6596, %v6595
        %v6727 = vpack.c.b16 %v6598, %v6597
        %v6728 = vpack.c.b16 %v6600, %v6599
        %v6729 = vpack.c.b16 %v6602, %v6601
        %v6730 = vpack.c.b16 %v6604, %v6603
        %v6731 = vpack.c.b16 %v6606, %v6605
        %v6732 = vpack.c.b16 %v6608, %v6607
        %v6733 = vpack.c.b16 %v6610, %v6609
        %v6734 = vpack.c.b16 %v6612, %v6611
        %v6735 = vpack.c.b16 %v6614, %v6613
        %v6736 = vpack.c.b16 %v6616, %v6615
        %v6737 = vpack.c.b16 %v6618, %v6617
        %v6738 = vpack.c.b16 %v6620, %v6619
        %v6739 = vpack.c.b16 %v6622, %v6621
        %v6740 = vpack.c.b16 %v6624, %v6623
        %v6741 = vpack.c.b16 %v6626, %v6625
        %v6742 = vpack.c.b16 %v6628, %v6627
        %v6743 = vpack.c.b16 %v6630, %v6629
        %v6744 = vpack.c.b16 %v6632, %v6631
        %v6745 = vpack.c.b16 %v6634, %v6633
        %v6746 = vpack.c.b16 %v6636, %v6635
        %v6747 = vpack.c.b16 %v6638, %v6637
        %v6748 = vpack.c.b16 %v6640, %v6639
        %v6749 = vpack.c.b16 %v6642, %v6641
        %v6750 = vpack.c.b16 %v6644, %v6643
        %v6751 = vpack.c.b16 %v6646, %v6645
        %v6752 = vpack.c.b16 %v6648, %v6647
        %v6753 = vpack.c.b16 %v6650, %v6649
        %v6754 = vpack.c.b16 %v6652, %v6651
        %v6755 = vpack.c.b16 %v6654, %v6653
        %v6756 = vpack.c.b16 %v6656, %v6655
        %v6757 = vpack.c.b16 %v6658, %v6657
        %v6758 = vpack.c.b16 %v6660, %v6659
        %v6759 = vpack.c.b16 %v6662, %v6661
        %v6760 = vpack.c.b16 %v6664, %v6663
        %v6761 = vpack.c.b16 %v6666, %v6665
        %v6762 = vpack.c.b16 %v6668, %v6667
        %v6763 = vpack.c.b16 %v6670, %v6669
        %v6764 = vpack.c.b16 %v6672, %v6671
        %v6765 = vpack.c.b16 %v6674, %v6673
        %v6766 = vpack.c.b16 %v6676, %v6675
        %v6767 = vpack.c.b16 %v6678, %v6677
        %v6768 = vpack.c.b16 %v6680, %v6679
        %v6769 = vpack.c.b16 %v6682, %v6681
        %v6770 = vpack.c.b16 %v6684, %v6683
        %v6771 = vpack.c.b16 %v6686, %v6685
        %v6772 = vpack.c.b16 %v6688, %v6687
        %v6773 = vpack.c.b16 %v6690, %v6689
        %v6774 = vpack.c.b16 %v6692, %v6691
        %v6775 = vpack.c.b16 %v6694, %v6693
        %v6776 = vpack.c.b16 %v6696, %v6695
        %v6777 = vpack.c.b16 %v6698, %v6697
        %v6778 = vpack.c.b16 %v6700, %v6699
        %v6779 = vpack.c.b16 %v6702, %v6701
        %v6780 = vpack.c.b16 %v6704, %v6703
        %v6781 = vpack.c.b16 %v6706, %v6705
        %v6782 = vpack.c.b16 %v6708, %v6707
        %v6783 = vpack.c.b16 %v6710, %v6709
        %v6784 = vpack.c.b16 %v6712, %v6711
        %6857 = vmatprep.subr.bf16.mxu0 0
        %6858 = vmatpush1.bf16.msra.mxu0 %v6720
        %6859 = vmatprep.subr.bf16.mxu0 0
        %6860 = vmatpush1.bf16.msra.mxu0 %v6719
        %6861 = vmatprep.subr.bf16.mxu0 0
        %6862 = vmatpush1.bf16.msra.mxu0 %v6718
        %6863 = vmatprep.subr.bf16.mxu0 0
        %6864 = vmatpush1.bf16.msra.mxu0 %v6717
        %6865 = vmatprep.subr.bf16.mxu0 0
        %6866 = vmatpush1.bf16.msra.mxu0 %v6716
        %6867 = vmatprep.subr.bf16.mxu0 0
        %6868 = vmatpush1.bf16.msra.mxu0 %v6715
        %6869 = vmatprep.subr.bf16.mxu0 0
        %6870 = vmatpush1.bf16.msra.mxu0 %v6714
        %6871 = vmatprep.subr.bf16.mxu0 0
        %6872 = vmatpush1.bf16.msra.mxu0 %v6713
        %6873 = vmatprep.subr.bf16.mxu0 0
        %6874 = vmatpush2.bf16.msra.mxu0 %v6728
        %6875 = vmatprep.subr.bf16.mxu0 0
        %6876 = vmatpush2.bf16.msra.mxu0 %v6727
        %6877 = vmatprep.subr.bf16.mxu0 0
        %6878 = vmatpush2.bf16.msra.mxu0 %v6726
        %6879 = vmatprep.subr.bf16.mxu0 0
        %6880 = vmatpush2.bf16.msra.mxu0 %v6725
        %6881 = vmatprep.subr.bf16.mxu0 0
        %6882 = vmatpush2.bf16.msra.mxu0 %v6724
        %6883 = vmatprep.subr.bf16.mxu0 0
        %6884 = vmatpush2.bf16.msra.mxu0 %v6723
        %6885 = vmatprep.subr.bf16.mxu0 0
        %6886 = vmatpush2.bf16.msra.mxu0 %v6722
        %6887 = vmatprep.subr.bf16.mxu0 0
        %6888 = vmatpush2.bf16.msra.mxu0 %v6721
        %6889 = vmatprep.mubr.bf16.mxu0 %v6216
        %6890 = vmatmul.mubr.bf16.gmra.mxu0 %v6215
        %v6891 = vpop.f32.mrf.mxu0
        %v6892 = vadd.f32 %v6424, %v6891
        %v6893 = vpop.f32.mrf.mxu0
        %v6894 = vpop.f32.mrf.mxu0
        %v6895 = vadd.f32 %v6424, %v6894
        %v6896 = vpop.f32.mrf.mxu0
        %6897 = vmatprep.mubr.bf16.mxu0 %v6219
        %6898 = vmatmul.mubr.bf16.gmra.mxu0 %v6218
        %v6899 = vpop.f32.mrf.mxu0
        %v6900 = vadd.f32 %v6424, %v6899
        %v6901 = vpop.f32.mrf.mxu0
        %v6902 = vpop.f32.mrf.mxu0
        %v6903 = vadd.f32 %v6424, %v6902
        %v6904 = vpop.f32.mrf.mxu0
        %6905 = vmatprep.mubr.bf16.mxu0 %v6222
        %6906 = vmatmul.mubr.bf16.gmra.mxu0 %v6221
        %v6907 = vpop.f32.mrf.mxu0
        %v6908 = vadd.f32 %v6424, %v6907
        %v6909 = vpop.f32.mrf.mxu0
        %v6910 = vpop.f32.mrf.mxu0
        %v6911 = vadd.f32 %v6424, %v6910
        %v6912 = vpop.f32.mrf.mxu0
        %6913 = vmatprep.mubr.bf16.mxu0 %v6226
        %6914 = vmatmul.mubr.bf16.gmra.mxu0 %v6225
        %v6915 = vpop.f32.mrf.mxu0
        %v6916 = vadd.f32 %v6424, %v6915
        %v6917 = vpop.f32.mrf.mxu0
        %v6918 = vpop.f32.mrf.mxu0
        %v6919 = vadd.f32 %v6424, %v6918
        %v6920 = vpop.f32.mrf.mxu0
        %6921 = vmatprep.mubr.bf16.mxu0 %v6230
        %6922 = vmatmul.mubr.bf16.gmra.mxu0 %v6229
        %v6923 = vpop.f32.mrf.mxu0
        %v6924 = vadd.f32 %v6424, %v6923
        %v6925 = vpop.f32.mrf.mxu0
        %v6926 = vpop.f32.mrf.mxu0
        %v6927 = vadd.f32 %v6424, %v6926
        %v6928 = vpop.f32.mrf.mxu0
        %6929 = vmatprep.mubr.bf16.mxu0 %v6234
        %6930 = vmatmul.mubr.bf16.gmra.mxu0 %v6233
        %v6931 = vpop.f32.mrf.mxu0
        %v6932 = vadd.f32 %v6424, %v6931
        %v6933 = vpop.f32.mrf.mxu0
        %v6934 = vpop.f32.mrf.mxu0
        %v6935 = vadd.f32 %v6424, %v6934
        %v6936 = vpop.f32.mrf.mxu0
        %6937 = vmatprep.mubr.bf16.mxu0 %v6238
        %6938 = vmatmul.mubr.bf16.gmra.mxu0 %v6237
        %v6939 = vpop.f32.mrf.mxu0
        %v6940 = vadd.f32 %v6424, %v6939
        %v6941 = vpop.f32.mrf.mxu0
        %v6942 = vpop.f32.mrf.mxu0
        %v6943 = vadd.f32 %v6424, %v6942
        %v6944 = vpop.f32.mrf.mxu0
        %6945 = vmatprep.mubr.bf16.mxu0 %v6242
        %6946 = vmatmul.mubr.bf16.gmra.mxu0 %v6241
        %v6947 = vpop.f32.mrf.mxu0
        %v6948 = vadd.f32 %v6424, %v6947
        %v6949 = vpop.f32.mrf.mxu0
        %v6950 = vpop.f32.mrf.mxu0
        %v6951 = vadd.f32 %v6424, %v6950
        %v6952 = vpop.f32.mrf.mxu0
        %6953 = vmatprep.mubr.bf16.mxu0 %v6246
        %6954 = vmatmul.mubr.bf16.gmra.mxu0 %v6245
        %v6955 = vpop.f32.mrf.mxu0
        %v6956 = vadd.f32 %v6424, %v6955
        %v6957 = vpop.f32.mrf.mxu0
        %v6958 = vpop.f32.mrf.mxu0
        %v6959 = vadd.f32 %v6424, %v6958
        %v6960 = vpop.f32.mrf.mxu0
        %6961 = vmatprep.mubr.bf16.mxu0 %v6250
        %6962 = vmatmul.mubr.bf16.gmra.mxu0 %v6249
        %v6963 = vpop.f32.mrf.mxu0
        %v6964 = vadd.f32 %v6424, %v6963
        %v6965 = vpop.f32.mrf.mxu0
        %v6966 = vpop.f32.mrf.mxu0
        %v6967 = vadd.f32 %v6424, %v6966
        %v6968 = vpop.f32.mrf.mxu0
        %6969 = vmatprep.mubr.bf16.mxu0 %v6254
        %6970 = vmatmul.mubr.bf16.gmra.mxu0 %v6253
        %v6971 = vpop.f32.mrf.mxu0
        %v6972 = vadd.f32 %v6424, %v6971
        %v6973 = vpop.f32.mrf.mxu0
        %v6974 = vpop.f32.mrf.mxu0
        %v6975 = vadd.f32 %v6424, %v6974
        %v6976 = vpop.f32.mrf.mxu0
        %6977 = vmatprep.mubr.bf16.mxu0 %v6258
        %6978 = vmatmul.mubr.bf16.gmra.mxu0 %v6257
        %v6979 = vpop.f32.mrf.mxu0
        %v6980 = vadd.f32 %v6424, %v6979
        %v6981 = vpop.f32.mrf.mxu0
        %v6982 = vpop.f32.mrf.mxu0
        %v6983 = vadd.f32 %v6424, %v6982
        %v6984 = vpop.f32.mrf.mxu0
        %6985 = vmatprep.mubr.bf16.mxu0 %v6262
        %6986 = vmatmul.mubr.bf16.gmra.mxu0 %v6261
        %v6987 = vpop.f32.mrf.mxu0
        %v6988 = vadd.f32 %v6424, %v6987
        %v6989 = vpop.f32.mrf.mxu0
        %v6990 = vpop.f32.mrf.mxu0
        %v6991 = vadd.f32 %v6424, %v6990
        %v6992 = vpop.f32.mrf.mxu0
        %6993 = vmatprep.mubr.bf16.mxu0 %v6266
        %6994 = vmatmul.mubr.bf16.gmra.mxu0 %v6265
        %v6995 = vpop.f32.mrf.mxu0
        %v6996 = vadd.f32 %v6424, %v6995
        %v6997 = vpop.f32.mrf.mxu0
        %v6998 = vpop.f32.mrf.mxu0
        %v6999 = vadd.f32 %v6424, %v6998
        %v7000 = vpop.f32.mrf.mxu0
        %7001 = vdwg.mxu0
        %7002 = vmatprep.subr.bf16.mxu0 0
        %7003 = vmatpush1.bf16.msra.mxu0 %v6736
        %7004 = vmatprep.subr.bf16.mxu0 0
        %7005 = vmatpush1.bf16.msra.mxu0 %v6735
        %7006 = vmatprep.subr.bf16.mxu0 0
        %7007 = vmatpush1.bf16.msra.mxu0 %v6734
        %7008 = vmatprep.subr.bf16.mxu0 0
        %7009 = vmatpush1.bf16.msra.mxu0 %v6733
        %7010 = vmatprep.subr.bf16.mxu0 0
        %7011 = vmatpush1.bf16.msra.mxu0 %v6732
        %7012 = vmatprep.subr.bf16.mxu0 0
        %7013 = vmatpush1.bf16.msra.mxu0 %v6731
        %7014 = vmatprep.subr.bf16.mxu0 0
        %7015 = vmatpush1.bf16.msra.mxu0 %v6730
        %7016 = vmatprep.subr.bf16.mxu0 0
        %7017 = vmatpush1.bf16.msra.mxu0 %v6729
        %7018 = vmatprep.subr.bf16.mxu0 0
        %7019 = vmatpush2.bf16.msra.mxu0 %v6744
        %7020 = vmatprep.subr.bf16.mxu0 0
        %7021 = vmatpush2.bf16.msra.mxu0 %v6743
        %7022 = vmatprep.subr.bf16.mxu0 0
        %7023 = vmatpush2.bf16.msra.mxu0 %v6742
        %7024 = vmatprep.subr.bf16.mxu0 0
        %7025 = vmatpush2.bf16.msra.mxu0 %v6741
        %7026 = vmatprep.subr.bf16.mxu0 0
        %7027 = vmatpush2.bf16.msra.mxu0 %v6740
        %7028 = vmatprep.subr.bf16.mxu0 0
        %7029 = vmatpush2.bf16.msra.mxu0 %v6739
        %7030 = vmatprep.subr.bf16.mxu0 0
        %7031 = vmatpush2.bf16.msra.mxu0 %v6738
        %7032 = vmatprep.subr.bf16.mxu0 0
        %7033 = vmatpush2.bf16.msra.mxu0 %v6737
        %7034 = vmatprep.mubr.bf16.mxu0 %v6218
        %7035 = vmatmul.mubr.bf16.gmra.mxu0 %v6217
        %v7036 = vpop.f32.mrf.mxu0
        %v7037 = vadd.f32 %v6892, %v7036
        %v7038 = vpop.f32.mrf.mxu0
        %v7039 = vpop.f32.mrf.mxu0
        %v7040 = vadd.f32 %v6895, %v7039
        %v7041 = vpop.f32.mrf.mxu0
        %7042 = vmatprep.mubr.bf16.mxu0 %v6221
        %7043 = vmatmul.mubr.bf16.gmra.mxu0 %v6220
        %v7044 = vpop.f32.mrf.mxu0
        %v7045 = vadd.f32 %v6900, %v7044
        %v7046 = vpop.f32.mrf.mxu0
        %v7047 = vpop.f32.mrf.mxu0
        %v7048 = vadd.f32 %v6903, %v7047
        %v7049 = vpop.f32.mrf.mxu0
        %7050 = vmatprep.mubr.bf16.mxu0 %v6225
        %7051 = vmatmul.mubr.bf16.gmra.mxu0 %v6224
        %v7052 = vpop.f32.mrf.mxu0
        %v7053 = vadd.f32 %v6908, %v7052
        %v7054 = vpop.f32.mrf.mxu0
        %v7055 = vpop.f32.mrf.mxu0
        %v7056 = vadd.f32 %v6911, %v7055
        %v7057 = vpop.f32.mrf.mxu0
        %7058 = vmatprep.mubr.bf16.mxu0 %v6229
        %7059 = vmatmul.mubr.bf16.gmra.mxu0 %v6228
        %v7060 = vpop.f32.mrf.mxu0
        %v7061 = vadd.f32 %v6916, %v7060
        %v7062 = vpop.f32.mrf.mxu0
        %v7063 = vpop.f32.mrf.mxu0
        %v7064 = vadd.f32 %v6919, %v7063
        %v7065 = vpop.f32.mrf.mxu0
        %7066 = vmatprep.mubr.bf16.mxu0 %v6233
        %7067 = vmatmul.mubr.bf16.gmra.mxu0 %v6232
        %v7068 = vpop.f32.mrf.mxu0
        %v7069 = vadd.f32 %v6924, %v7068
        %v7070 = vpop.f32.mrf.mxu0
        %v7071 = vpop.f32.mrf.mxu0
        %v7072 = vadd.f32 %v6927, %v7071
        %v7073 = vpop.f32.mrf.mxu0
        %7074 = vmatprep.mubr.bf16.mxu0 %v6237
        %7075 = vmatmul.mubr.bf16.gmra.mxu0 %v6236
        %v7076 = vpop.f32.mrf.mxu0
        %v7077 = vadd.f32 %v6932, %v7076
        %v7078 = vpop.f32.mrf.mxu0
        %v7079 = vpop.f32.mrf.mxu0
        %v7080 = vadd.f32 %v6935, %v7079
        %v7081 = vpop.f32.mrf.mxu0
        %7082 = vmatprep.mubr.bf16.mxu0 %v6241
        %7083 = vmatmul.mubr.bf16.gmra.mxu0 %v6240
        %v7084 = vpop.f32.mrf.mxu0
        %v7085 = vadd.f32 %v6940, %v7084
        %v7086 = vpop.f32.mrf.mxu0
        %v7087 = vpop.f32.mrf.mxu0
        %v7088 = vadd.f32 %v6943, %v7087
        %v7089 = vpop.f32.mrf.mxu0
        %7090 = vmatprep.mubr.bf16.mxu0 %v6245
        %7091 = vmatmul.mubr.bf16.gmra.mxu0 %v6244
        %v7092 = vpop.f32.mrf.mxu0
        %v7093 = vadd.f32 %v6948, %v7092
        %v7094 = vpop.f32.mrf.mxu0
        %v7095 = vpop.f32.mrf.mxu0
        %v7096 = vadd.f32 %v6951, %v7095
        %v7097 = vpop.f32.mrf.mxu0
        %7098 = vmatprep.mubr.bf16.mxu0 %v6249
        %7099 = vmatmul.mubr.bf16.gmra.mxu0 %v6248
        %v7100 = vpop.f32.mrf.mxu0
        %v7101 = vadd.f32 %v6956, %v7100
        %v7102 = vpop.f32.mrf.mxu0
        %v7103 = vpop.f32.mrf.mxu0
        %v7104 = vadd.f32 %v6959, %v7103
        %v7105 = vpop.f32.mrf.mxu0
        %7106 = vmatprep.mubr.bf16.mxu0 %v6253
        %7107 = vmatmul.mubr.bf16.gmra.mxu0 %v6252
        %v7108 = vpop.f32.mrf.mxu0
        %v7109 = vadd.f32 %v6964, %v7108
        %v7110 = vpop.f32.mrf.mxu0
        %v7111 = vpop.f32.mrf.mxu0
        %v7112 = vadd.f32 %v6967, %v7111
        %v7113 = vpop.f32.mrf.mxu0
        %7114 = vmatprep.mubr.bf16.mxu0 %v6257
        %7115 = vmatmul.mubr.bf16.gmra.mxu0 %v6256
        %v7116 = vpop.f32.mrf.mxu0
        %v7117 = vadd.f32 %v6972, %v7116
        %v7118 = vpop.f32.mrf.mxu0
        %v7119 = vpop.f32.mrf.mxu0
        %v7120 = vadd.f32 %v6975, %v7119
        %v7121 = vpop.f32.mrf.mxu0
        %7122 = vmatprep.mubr.bf16.mxu0 %v6261
        %7123 = vmatmul.mubr.bf16.gmra.mxu0 %v6260
        %v7124 = vpop.f32.mrf.mxu0
        %v7125 = vadd.f32 %v6980, %v7124
        %v7126 = vpop.f32.mrf.mxu0
        %v7127 = vpop.f32.mrf.mxu0
        %v7128 = vadd.f32 %v6983, %v7127
        %v7129 = vpop.f32.mrf.mxu0
        %7130 = vmatprep.mubr.bf16.mxu0 %v6265
        %7131 = vmatmul.mubr.bf16.gmra.mxu0 %v6264
        %v7132 = vpop.f32.mrf.mxu0
        %v7133 = vadd.f32 %v6988, %v7132
        %v7134 = vpop.f32.mrf.mxu0
        %v7135 = vpop.f32.mrf.mxu0
        %v7136 = vadd.f32 %v6991, %v7135
        %v7137 = vpop.f32.mrf.mxu0
        %7138 = vmatprep.mubr.bf16.mxu0 %v6269
        %7139 = vmatmul.mubr.bf16.gmra.mxu0 %v6268
        %v7140 = vpop.f32.mrf.mxu0
        %v7141 = vadd.f32 %v6996, %v7140
        %v7142 = vpop.f32.mrf.mxu0
        %v7143 = vpop.f32.mrf.mxu0
        %v7144 = vadd.f32 %v6999, %v7143
        %v7145 = vpop.f32.mrf.mxu0
        %7146 = vdwg.mxu0
        %7147 = vmatprep.subr.bf16.mxu0 0
        %7148 = vmatpush1.bf16.msra.mxu0 %v6752
        %7149 = vmatprep.subr.bf16.mxu0 0
        %7150 = vmatpush1.bf16.msra.mxu0 %v6751
        %7151 = vmatprep.subr.bf16.mxu0 0
        %7152 = vmatpush1.bf16.msra.mxu0 %v6750
        %7153 = vmatprep.subr.bf16.mxu0 0
        %7154 = vmatpush1.bf16.msra.mxu0 %v6749
        %7155 = vmatprep.subr.bf16.mxu0 0
        %7156 = vmatpush1.bf16.msra.mxu0 %v6748
        %7157 = vmatprep.subr.bf16.mxu0 0
        %7158 = vmatpush1.bf16.msra.mxu0 %v6747
        %7159 = vmatprep.subr.bf16.mxu0 0
        %7160 = vmatpush1.bf16.msra.mxu0 %v6746
        %7161 = vmatprep.subr.bf16.mxu0 0
        %7162 = vmatpush1.bf16.msra.mxu0 %v6745
        %7163 = vmatprep.subr.bf16.mxu0 0
        %7164 = vmatpush2.bf16.msra.mxu0 %v6760
        %7165 = vmatprep.subr.bf16.mxu0 0
        %7166 = vmatpush2.bf16.msra.mxu0 %v6759
        %7167 = vmatprep.subr.bf16.mxu0 0
        %7168 = vmatpush2.bf16.msra.mxu0 %v6758
        %7169 = vmatprep.subr.bf16.mxu0 0
        %7170 = vmatpush2.bf16.msra.mxu0 %v6757
        %7171 = vmatprep.subr.bf16.mxu0 0
        %7172 = vmatpush2.bf16.msra.mxu0 %v6756
        %7173 = vmatprep.subr.bf16.mxu0 0
        %7174 = vmatpush2.bf16.msra.mxu0 %v6755
        %7175 = vmatprep.subr.bf16.mxu0 0
        %7176 = vmatpush2.bf16.msra.mxu0 %v6754
        %7177 = vmatprep.subr.bf16.mxu0 0
        %7178 = vmatpush2.bf16.msra.mxu0 %v6753
        %7179 = vmatprep.mubr.bf16.mxu0 %v6220
        %7180 = vmatmul.mubr.bf16.gmra.mxu0 %v6219
        %v7181 = vpop.f32.mrf.mxu0
        %v7182 = vadd.f32 %v7037, %v7181
        %v7183 = vpop.f32.mrf.mxu0
        %v7184 = vpop.f32.mrf.mxu0
        %v7185 = vadd.f32 %v7040, %v7184
        %v7186 = vpop.f32.mrf.mxu0
        %7187 = vmatprep.mubr.bf16.mxu0 %v6224
        %7188 = vmatmul.mubr.bf16.gmra.mxu0 %v6222
        %v7189 = vpop.f32.mrf.mxu0
        %v7190 = vadd.f32 %v7045, %v7189
        %v7191 = vpop.f32.mrf.mxu0
        %v7192 = vpop.f32.mrf.mxu0
        %v7193 = vadd.f32 %v7048, %v7192
        %v7194 = vpop.f32.mrf.mxu0
        %7195 = vmatprep.mubr.bf16.mxu0 %v6228
        %7196 = vmatmul.mubr.bf16.gmra.mxu0 %v6226
        %v7197 = vpop.f32.mrf.mxu0
        %v7198 = vadd.f32 %v7053, %v7197
        %v7199 = vpop.f32.mrf.mxu0
        %v7200 = vpop.f32.mrf.mxu0
        %v7201 = vadd.f32 %v7056, %v7200
        %v7202 = vpop.f32.mrf.mxu0
        %7203 = vmatprep.mubr.bf16.mxu0 %v6232
        %7204 = vmatmul.mubr.bf16.gmra.mxu0 %v6230
        %v7205 = vpop.f32.mrf.mxu0
        %v7206 = vadd.f32 %v7061, %v7205
        %v7207 = vpop.f32.mrf.mxu0
        %v7208 = vpop.f32.mrf.mxu0
        %v7209 = vadd.f32 %v7064, %v7208
        %v7210 = vpop.f32.mrf.mxu0
        %7211 = vmatprep.mubr.bf16.mxu0 %v6236
        %7212 = vmatmul.mubr.bf16.gmra.mxu0 %v6234
        %v7213 = vpop.f32.mrf.mxu0
        %v7214 = vadd.f32 %v7069, %v7213
        %v7215 = vpop.f32.mrf.mxu0
        %v7216 = vpop.f32.mrf.mxu0
        %v7217 = vadd.f32 %v7072, %v7216
        %v7218 = vpop.f32.mrf.mxu0
        %7219 = vmatprep.mubr.bf16.mxu0 %v6240
        %7220 = vmatmul.mubr.bf16.gmra.mxu0 %v6238
        %v7221 = vpop.f32.mrf.mxu0
        %v7222 = vadd.f32 %v7077, %v7221
        %v7223 = vpop.f32.mrf.mxu0
        %v7224 = vpop.f32.mrf.mxu0
        %v7225 = vadd.f32 %v7080, %v7224
        %v7226 = vpop.f32.mrf.mxu0
        %7227 = vmatprep.mubr.bf16.mxu0 %v6244
        %7228 = vmatmul.mubr.bf16.gmra.mxu0 %v6242
        %v7229 = vpop.f32.mrf.mxu0
        %v7230 = vadd.f32 %v7085, %v7229
        %v7231 = vpop.f32.mrf.mxu0
        %v7232 = vpop.f32.mrf.mxu0
        %v7233 = vadd.f32 %v7088, %v7232
        %v7234 = vpop.f32.mrf.mxu0
        %7235 = vmatprep.mubr.bf16.mxu0 %v6248
        %7236 = vmatmul.mubr.bf16.gmra.mxu0 %v6246
        %v7237 = vpop.f32.mrf.mxu0
        %v7238 = vadd.f32 %v7093, %v7237
        %v7239 = vpop.f32.mrf.mxu0
        %v7240 = vpop.f32.mrf.mxu0
        %v7241 = vadd.f32 %v7096, %v7240
        %v7242 = vpop.f32.mrf.mxu0
        %7243 = vmatprep.mubr.bf16.mxu0 %v6252
        %7244 = vmatmul.mubr.bf16.gmra.mxu0 %v6250
        %v7245 = vpop.f32.mrf.mxu0
        %v7246 = vadd.f32 %v7101, %v7245
        %v7247 = vpop.f32.mrf.mxu0
        %v7248 = vpop.f32.mrf.mxu0
        %v7249 = vadd.f32 %v7104, %v7248
        %v7250 = vpop.f32.mrf.mxu0
        %7251 = vmatprep.mubr.bf16.mxu0 %v6256
        %7252 = vmatmul.mubr.bf16.gmra.mxu0 %v6254
        %v7253 = vpop.f32.mrf.mxu0
        %v7254 = vadd.f32 %v7109, %v7253
        %v7255 = vpop.f32.mrf.mxu0
        %v7256 = vpop.f32.mrf.mxu0
        %v7257 = vadd.f32 %v7112, %v7256
        %v7258 = vpop.f32.mrf.mxu0
        %7259 = vmatprep.mubr.bf16.mxu0 %v6260
        %7260 = vmatmul.mubr.bf16.gmra.mxu0 %v6258
        %v7261 = vpop.f32.mrf.mxu0
        %v7262 = vadd.f32 %v7117, %v7261
        %v7263 = vpop.f32.mrf.mxu0
        %v7264 = vpop.f32.mrf.mxu0
        %v7265 = vadd.f32 %v7120, %v7264
        %v7266 = vpop.f32.mrf.mxu0
        %7267 = vmatprep.mubr.bf16.mxu0 %v6264
        %7268 = vmatmul.mubr.bf16.gmra.mxu0 %v6262
        %v7269 = vpop.f32.mrf.mxu0
        %v7270 = vadd.f32 %v7125, %v7269
        %v7271 = vpop.f32.mrf.mxu0
        %v7272 = vpop.f32.mrf.mxu0
        %v7273 = vadd.f32 %v7128, %v7272
        %v7274 = vpop.f32.mrf.mxu0
        %7275 = vmatprep.mubr.bf16.mxu0 %v6268
        %7276 = vmatmul.mubr.bf16.gmra.mxu0 %v6266
        %v7277 = vpop.f32.mrf.mxu0
        %v7278 = vadd.f32 %v7133, %v7277
        %v7279 = vpop.f32.mrf.mxu0
        %v7280 = vpop.f32.mrf.mxu0
        %v7281 = vadd.f32 %v7136, %v7280
        %v7282 = vpop.f32.mrf.mxu0
        %7283 = vmatprep.mubr.bf16.mxu0 %v6272
        %7284 = vmatmul.mubr.bf16.gmra.mxu0 %v6270
        %v7285 = vpop.f32.mrf.mxu0
        %v7286 = vadd.f32 %v7141, %v7285
        %v7287 = vpop.f32.mrf.mxu0
        %v7288 = vpop.f32.mrf.mxu0
        %v7289 = vadd.f32 %v7144, %v7288
        %v7290 = vpop.f32.mrf.mxu0
        %7291 = vdwg.mxu0
        %7292 = vmatprep.subr.bf16.mxu0 0
        %7293 = vmatpush1.bf16.msra.mxu0 %v6768
        %7294 = vmatprep.subr.bf16.mxu0 0
        %7295 = vmatpush1.bf16.msra.mxu0 %v6767
        %7296 = vmatprep.subr.bf16.mxu0 0
        %7297 = vmatpush1.bf16.msra.mxu0 %v6766
        %7298 = vmatprep.subr.bf16.mxu0 0
        %7299 = vmatpush1.bf16.msra.mxu0 %v6765
        %7300 = vmatprep.subr.bf16.mxu0 0
        %7301 = vmatpush1.bf16.msra.mxu0 %v6764
        %7302 = vmatprep.subr.bf16.mxu0 0
        %7303 = vmatpush1.bf16.msra.mxu0 %v6763
        %7304 = vmatprep.subr.bf16.mxu0 0
        %7305 = vmatpush1.bf16.msra.mxu0 %v6762
        %7306 = vmatprep.subr.bf16.mxu0 0
        %7307 = vmatpush1.bf16.msra.mxu0 %v6761
        %7308 = vmatprep.subr.bf16.mxu0 0
        %7309 = vmatpush2.bf16.msra.mxu0 %v6776
        %7310 = vmatprep.subr.bf16.mxu0 0
        %7311 = vmatpush2.bf16.msra.mxu0 %v6775
        %7312 = vmatprep.subr.bf16.mxu0 0
        %7313 = vmatpush2.bf16.msra.mxu0 %v6774
        %7314 = vmatprep.subr.bf16.mxu0 0
        %7315 = vmatpush2.bf16.msra.mxu0 %v6773
        %7316 = vmatprep.subr.bf16.mxu0 0
        %7317 = vmatpush2.bf16.msra.mxu0 %v6772
        %7318 = vmatprep.subr.bf16.mxu0 0
        %7319 = vmatpush2.bf16.msra.mxu0 %v6771
        %7320 = vmatprep.subr.bf16.mxu0 0
        %7321 = vmatpush2.bf16.msra.mxu0 %v6770
        %7322 = vmatprep.subr.bf16.mxu0 0
        %7323 = vmatpush2.bf16.msra.mxu0 %v6769
        %7324 = vmatprep.mubr.bf16.mxu0 %v6222
        %7325 = vmatmul.mubr.bf16.gmra.mxu0 %v6221
        %v7326 = vpop.f32.mrf.mxu0
        %v7327 = vadd.f32 %v7182, %v7326
        %v7328 = vpop.f32.mrf.mxu0
        %v7329 = vpop.f32.mrf.mxu0
        %v7330 = vadd.f32 %v7185, %v7329
        %v7331 = vpop.f32.mrf.mxu0
        %7332 = vmatprep.mubr.bf16.mxu0 %v6226
        %7333 = vmatmul.mubr.bf16.gmra.mxu0 %v6225
        %v7334 = vpop.f32.mrf.mxu0
        %v7335 = vadd.f32 %v7190, %v7334
        %v7336 = vpop.f32.mrf.mxu0
        %v7337 = vpop.f32.mrf.mxu0
        %v7338 = vadd.f32 %v7193, %v7337
        %v7339 = vpop.f32.mrf.mxu0
        %7340 = vmatprep.mubr.bf16.mxu0 %v6230
        %7341 = vmatmul.mubr.bf16.gmra.mxu0 %v6229
        %v7342 = vpop.f32.mrf.mxu0
        %v7343 = vadd.f32 %v7198, %v7342
        %v7344 = vpop.f32.mrf.mxu0
        %v7345 = vpop.f32.mrf.mxu0
        %v7346 = vadd.f32 %v7201, %v7345
        %v7347 = vpop.f32.mrf.mxu0
        %7348 = vmatprep.mubr.bf16.mxu0 %v6234
        %7349 = vmatmul.mubr.bf16.gmra.mxu0 %v6233
        %v7350 = vpop.f32.mrf.mxu0
        %v7351 = vadd.f32 %v7206, %v7350
        %v7352 = vpop.f32.mrf.mxu0
        %v7353 = vpop.f32.mrf.mxu0
        %v7354 = vadd.f32 %v7209, %v7353
        %v7355 = vpop.f32.mrf.mxu0
        %7356 = vmatprep.mubr.bf16.mxu0 %v6238
        %7357 = vmatmul.mubr.bf16.gmra.mxu0 %v6237
        %v7358 = vpop.f32.mrf.mxu0
        %v7359 = vadd.f32 %v7214, %v7358
        %v7360 = vpop.f32.mrf.mxu0
        %v7361 = vpop.f32.mrf.mxu0
        %v7362 = vadd.f32 %v7217, %v7361
        %v7363 = vpop.f32.mrf.mxu0
        %7364 = vmatprep.mubr.bf16.mxu0 %v6242
        %7365 = vmatmul.mubr.bf16.gmra.mxu0 %v6241
        %v7366 = vpop.f32.mrf.mxu0
        %v7367 = vadd.f32 %v7222, %v7366
        %v7368 = vpop.f32.mrf.mxu0
        %v7369 = vpop.f32.mrf.mxu0
        %v7370 = vadd.f32 %v7225, %v7369
        %v7371 = vpop.f32.mrf.mxu0
        %7372 = vmatprep.mubr.bf16.mxu0 %v6246
        %7373 = vmatmul.mubr.bf16.gmra.mxu0 %v6245
        %v7374 = vpop.f32.mrf.mxu0
        %v7375 = vadd.f32 %v7230, %v7374
        %v7376 = vpop.f32.mrf.mxu0
        %v7377 = vpop.f32.mrf.mxu0
        %v7378 = vadd.f32 %v7233, %v7377
        %v7379 = vpop.f32.mrf.mxu0
        %7380 = vmatprep.mubr.bf16.mxu0 %v6250
        %7381 = vmatmul.mubr.bf16.gmra.mxu0 %v6249
        %v7382 = vpop.f32.mrf.mxu0
        %v7383 = vadd.f32 %v7238, %v7382
        %v7384 = vpop.f32.mrf.mxu0
        %v7385 = vpop.f32.mrf.mxu0
        %v7386 = vadd.f32 %v7241, %v7385
        %v7387 = vpop.f32.mrf.mxu0
        %7388 = vmatprep.mubr.bf16.mxu0 %v6254
        %7389 = vmatmul.mubr.bf16.gmra.mxu0 %v6253
        %v7390 = vpop.f32.mrf.mxu0
        %v7391 = vadd.f32 %v7246, %v7390
        %v7392 = vpop.f32.mrf.mxu0
        %v7393 = vpop.f32.mrf.mxu0
        %v7394 = vadd.f32 %v7249, %v7393
        %v7395 = vpop.f32.mrf.mxu0
        %7396 = vmatprep.mubr.bf16.mxu0 %v6258
        %7397 = vmatmul.mubr.bf16.gmra.mxu0 %v6257
        %v7398 = vpop.f32.mrf.mxu0
        %v7399 = vadd.f32 %v7254, %v7398
        %v7400 = vpop.f32.mrf.mxu0
        %v7401 = vpop.f32.mrf.mxu0
        %v7402 = vadd.f32 %v7257, %v7401
        %v7403 = vpop.f32.mrf.mxu0
        %7404 = vmatprep.mubr.bf16.mxu0 %v6262
        %7405 = vmatmul.mubr.bf16.gmra.mxu0 %v6261
        %v7406 = vpop.f32.mrf.mxu0
        %v7407 = vadd.f32 %v7262, %v7406
        %v7408 = vpop.f32.mrf.mxu0
        %v7409 = vpop.f32.mrf.mxu0
        %v7410 = vadd.f32 %v7265, %v7409
        %v7411 = vpop.f32.mrf.mxu0
        %7412 = vmatprep.mubr.bf16.mxu0 %v6266
        %7413 = vmatmul.mubr.bf16.gmra.mxu0 %v6265
        %v7414 = vpop.f32.mrf.mxu0
        %v7415 = vadd.f32 %v7270, %v7414
        %v7416 = vpop.f32.mrf.mxu0
        %v7417 = vpop.f32.mrf.mxu0
        %v7418 = vadd.f32 %v7273, %v7417
        %v7419 = vpop.f32.mrf.mxu0
        %7420 = vmatprep.mubr.bf16.mxu0 %v6270
        %7421 = vmatmul.mubr.bf16.gmra.mxu0 %v6269
        %v7422 = vpop.f32.mrf.mxu0
        %v7423 = vadd.f32 %v7278, %v7422
        %v7424 = vpop.f32.mrf.mxu0
        %v7425 = vpop.f32.mrf.mxu0
        %v7426 = vadd.f32 %v7281, %v7425
        %v7427 = vpop.f32.mrf.mxu0
        %7428 = vmatprep.mubr.bf16.mxu0 %v6274
        %7429 = vmatmul.mubr.bf16.gmra.mxu0 %v6273
        %v7430 = vpop.f32.mrf.mxu0
        %v7431 = vadd.f32 %v7286, %v7430
        %v7432 = vpop.f32.mrf.mxu0
        %v7433 = vpop.f32.mrf.mxu0
        %v7434 = vadd.f32 %v7289, %v7433
        %v7435 = vpop.f32.mrf.mxu0
        %7436 = vdwg.mxu0
        %7437 = vmatprep.subr.bf16.mxu0 0
        %7438 = vmatpush1.bf16.msra.mxu0 %v6784
        %7439 = vmatprep.subr.bf16.mxu0 0
        %7440 = vmatpush1.bf16.msra.mxu0 %v6783
        %7441 = vmatprep.subr.bf16.mxu0 0
        %7442 = vmatpush1.bf16.msra.mxu0 %v6782
        %7443 = vmatprep.subr.bf16.mxu0 0
        %7444 = vmatpush1.bf16.msra.mxu0 %v6781
        %7445 = vmatprep.subr.bf16.mxu0 0
        %7446 = vmatpush1.bf16.msra.mxu0 %v6780
        %7447 = vmatprep.subr.bf16.mxu0 0
        %7448 = vmatpush1.bf16.msra.mxu0 %v6779
        %7449 = vmatprep.subr.bf16.mxu0 0
        %7450 = vmatpush1.bf16.msra.mxu0 %v6778
        %7451 = vmatprep.subr.bf16.mxu0 0
        %7452 = vmatpush1.bf16.msra.mxu0 %v6777
        %7453 = vmatprep.subr.bf16.mxu0 0
        %7454 = vmatpush2.bf16.msra.mxu0 0
        %7455 = vmatprep.subr.bf16.mxu0 0
        %7456 = vmatpush2.bf16.msra.mxu0 0
        %7457 = vmatprep.subr.bf16.mxu0 0
        %7458 = vmatpush2.bf16.msra.mxu0 0
        %7459 = vmatprep.subr.bf16.mxu0 0
        %7460 = vmatpush2.bf16.msra.mxu0 0
        %7461 = vmatprep.subr.bf16.mxu0 0
        %7462 = vmatpush2.bf16.msra.mxu0 0
        %7463 = vmatprep.subr.bf16.mxu0 0
        %7464 = vmatpush2.bf16.msra.mxu0 0
        %7465 = vmatprep.subr.bf16.mxu0 0
        %7466 = vmatpush2.bf16.msra.mxu0 0
        %7467 = vmatprep.subr.bf16.mxu0 0
        %7468 = vmatpush2.bf16.msra.mxu0 0
        %7469 = vmatprep.mubr.bf16.mxu0 0
        %7470 = vmatmul.mubr.bf16.gmra.mxu0 %v6223
        %v7471 = vpop.f32.mrf.mxu0
        %v7472 = vadd.f32 %v7327, %v7471
        %v7473 = vpop.f32.mrf.mxu0
        %v7474 = vpop.f32.mrf.mxu0
        %v7475 = vadd.f32 %v7330, %v7474
        %v7476 = vpop.f32.mrf.mxu0
        %7477 = vmatprep.mubr.bf16.mxu0 0
        %7478 = vmatmul.mubr.bf16.gmra.mxu0 %v6227
        %v7479 = vpop.f32.mrf.mxu0
        %v7480 = vadd.f32 %v7335, %v7479
        %v7481 = vpop.f32.mrf.mxu0
        %v7482 = vpop.f32.mrf.mxu0
        %v7483 = vadd.f32 %v7338, %v7482
        %v7484 = vpop.f32.mrf.mxu0
        %7485 = vmatprep.mubr.bf16.mxu0 0
        %7486 = vmatmul.mubr.bf16.gmra.mxu0 %v6231
        %v7487 = vpop.f32.mrf.mxu0
        %v7488 = vadd.f32 %v7343, %v7487
        %v7489 = vpop.f32.mrf.mxu0
        %v7490 = vpop.f32.mrf.mxu0
        %v7491 = vadd.f32 %v7346, %v7490
        %v7492 = vpop.f32.mrf.mxu0
        %7493 = vmatprep.mubr.bf16.mxu0 0
        %7494 = vmatmul.mubr.bf16.gmra.mxu0 %v6235
        %v7495 = vpop.f32.mrf.mxu0
        %v7496 = vadd.f32 %v7351, %v7495
        %v7497 = vpop.f32.mrf.mxu0
        %v7498 = vpop.f32.mrf.mxu0
        %v7499 = vadd.f32 %v7354, %v7498
        %v7500 = vpop.f32.mrf.mxu0
        %7501 = vmatprep.mubr.bf16.mxu0 0
        %7502 = vmatmul.mubr.bf16.gmra.mxu0 %v6239
        %v7503 = vpop.f32.mrf.mxu0
        %v7504 = vadd.f32 %v7359, %v7503
        %v7505 = vpop.f32.mrf.mxu0
        %v7506 = vpop.f32.mrf.mxu0
        %v7507 = vadd.f32 %v7362, %v7506
        %v7508 = vpop.f32.mrf.mxu0
        %7509 = vmatprep.mubr.bf16.mxu0 0
        %7510 = vmatmul.mubr.bf16.gmra.mxu0 %v6243
        %v7511 = vpop.f32.mrf.mxu0
        %v7512 = vadd.f32 %v7367, %v7511
        %v7513 = vpop.f32.mrf.mxu0
        %v7514 = vpop.f32.mrf.mxu0
        %v7515 = vadd.f32 %v7370, %v7514
        %v7516 = vpop.f32.mrf.mxu0
        %7517 = vmatprep.mubr.bf16.mxu0 0
        %7518 = vmatmul.mubr.bf16.gmra.mxu0 %v6247
        %v7519 = vpop.f32.mrf.mxu0
        %v7520 = vadd.f32 %v7375, %v7519
        %v7521 = vpop.f32.mrf.mxu0
        %v7522 = vpop.f32.mrf.mxu0
        %v7523 = vadd.f32 %v7378, %v7522
        %v7524 = vpop.f32.mrf.mxu0
        %7525 = vmatprep.mubr.bf16.mxu0 0
        %7526 = vmatmul.mubr.bf16.gmra.mxu0 %v6251
        %v7527 = vpop.f32.mrf.mxu0
        %v7528 = vadd.f32 %v7383, %v7527
        %v7529 = vpop.f32.mrf.mxu0
        %v7530 = vpop.f32.mrf.mxu0
        %v7531 = vadd.f32 %v7386, %v7530
        %v7532 = vpop.f32.mrf.mxu0
        %7533 = vmatprep.mubr.bf16.mxu0 0
        %7534 = vmatmul.mubr.bf16.gmra.mxu0 %v6255
        %v7535 = vpop.f32.mrf.mxu0
        %v7536 = vadd.f32 %v7391, %v7535
        %v7537 = vpop.f32.mrf.mxu0
        %v7538 = vpop.f32.mrf.mxu0
        %v7539 = vadd.f32 %v7394, %v7538
        %v7540 = vpop.f32.mrf.mxu0
        %7541 = vmatprep.mubr.bf16.mxu0 0
        %7542 = vmatmul.mubr.bf16.gmra.mxu0 %v6259
        %v7543 = vpop.f32.mrf.mxu0
        %v7544 = vadd.f32 %v7399, %v7543
        %v7545 = vpop.f32.mrf.mxu0
        %v7546 = vpop.f32.mrf.mxu0
        %v7547 = vadd.f32 %v7402, %v7546
        %v7548 = vpop.f32.mrf.mxu0
        %7549 = vmatprep.mubr.bf16.mxu0 0
        %7550 = vmatmul.mubr.bf16.gmra.mxu0 %v6263
        %v7551 = vpop.f32.mrf.mxu0
        %v7552 = vadd.f32 %v7407, %v7551
        %v7553 = vpop.f32.mrf.mxu0
        %v7554 = vpop.f32.mrf.mxu0
        %v7555 = vadd.f32 %v7410, %v7554
        %v7556 = vpop.f32.mrf.mxu0
        %7557 = vmatprep.mubr.bf16.mxu0 0
        %7558 = vmatmul.mubr.bf16.gmra.mxu0 %v6267
        %v7559 = vpop.f32.mrf.mxu0
        %v7560 = vadd.f32 %v7415, %v7559
        %v7561 = vpop.f32.mrf.mxu0
        %v7562 = vpop.f32.mrf.mxu0
        %v7563 = vadd.f32 %v7418, %v7562
        %v7564 = vpop.f32.mrf.mxu0
        %7565 = vmatprep.mubr.bf16.mxu0 0
        %7566 = vmatmul.mubr.bf16.gmra.mxu0 %v6271
        %v7567 = vpop.f32.mrf.mxu0
        %v7568 = vadd.f32 %v7423, %v7567
        %v7569 = vpop.f32.mrf.mxu0
        %v7570 = vpop.f32.mrf.mxu0
        %v7571 = vadd.f32 %v7426, %v7570
        %v7572 = vpop.f32.mrf.mxu0
        %7573 = vmatprep.mubr.bf16.mxu0 0
        %7574 = vmatmul.mubr.bf16.gmra.mxu0 %v6275
        %v7575 = vpop.f32.mrf.mxu0
        %v7576 = vadd.f32 %v7431, %v7575
        %v7577 = vpop.f32.mrf.mxu0
        %v7578 = vpop.f32.mrf.mxu0
        %v7579 = vadd.f32 %v7434, %v7578
        %v7580 = vpop.f32.mrf.mxu0
        %7581 = vdwg.mxu0
        %v7582 = vmax.f32 %v7472, 0.0
        %v7583 = vmax.f32 %v7475, 0.0
        %v7584 = vmax.f32 %v7480, 0.0
        %v7585 = vmax.f32 %v7483, 0.0
        %v7586 = vmax.f32 %v7488, 0.0
        %v7587 = vmax.f32 %v7491, 0.0
        %v7588 = vmax.f32 %v7496, 0.0
        %v7589 = vmax.f32 %v7499, 0.0
        %v7590 = vmax.f32 %v7504, 0.0
        %v7591 = vmax.f32 %v7507, 0.0
        %v7592 = vmax.f32 %v7512, 0.0
        %v7593 = vmax.f32 %v7515, 0.0
        %v7594 = vmax.f32 %v7520, 0.0
        %v7595 = vmax.f32 %v7523, 0.0
        %v7596 = vmax.f32 %v7528, 0.0
        %v7597 = vmax.f32 %v7531, 0.0
        %v7598 = vmax.f32 %v7536, 0.0
        %v7599 = vmax.f32 %v7539, 0.0
        %v7600 = vmax.f32 %v7544, 0.0
        %v7601 = vmax.f32 %v7547, 0.0
        %v7602 = vmax.f32 %v7552, 0.0
        %v7603 = vmax.f32 %v7555, 0.0
        %v7604 = vmax.f32 %v7560, 0.0
        %v7605 = vmax.f32 %v7563, 0.0
        %v7606 = vmax.f32 %v7568, 0.0
        %v7607 = vmax.f32 %v7571, 0.0
        %v7608 = vmax.f32 %v7576, 0.0
        %v7609 = vmax.f32 %v7579, 0.0
        %7610 = vst [vmem:[%s242] sm:$0xff] %v7582
        %7611 = vst [vmem:[%s242 + $0x8] sm:$0xff] %v7583
        %7612 = vst [vmem:[%s242 + $0x10] sm:$0xff] %v7584
        %7613 = vst [vmem:[%s242 + $0x18] sm:$0xff] %v7585
        %7614 = vst [vmem:[%s242 + $0x20] sm:$0xff] %v7586
        %7615 = vst [vmem:[%s242 + $0x28] sm:$0xff] %v7587
        %7616 = vst [vmem:[%s242 + $0x30] sm:$0xff] %v7588
        %7617 = vst [vmem:[%s242 + $0x38] sm:$0xff] %v7589
        %7618 = vst [vmem:[%s242 + $0x40] sm:$0xff] %v7590
        %7619 = vst [vmem:[%s242 + $0x48] sm:$0xff] %v7591
        %7620 = vst [vmem:[%s242 + $0x50] sm:$0xff] %v7592
        %7621 = vst [vmem:[%s242 + $0x58] sm:$0xff] %v7593
        %7622 = vst [vmem:[%s242 + $0x60] sm:$0xff] %v7594
        %7623 = vst [vmem:[%s242 + $0x68] sm:$0xff] %v7595
        %7624 = vst [vmem:[%s242 + $0x70] sm:$0xff] %v7596
        %7625 = vst [vmem:[%s242 + $0x78] sm:$0xff] %v7597
        %7626 = vst [vmem:[%s242 + $0x80] sm:$0xff] %v7598
        %7627 = vst [vmem:[%s242 + $0x88] sm:$0xff] %v7599
        %7628 = vst [vmem:[%s242 + $0x90] sm:$0xff] %v7600
        %7629 = vst [vmem:[%s242 + $0x98] sm:$0xff] %v7601
        %7630 = vst [vmem:[%s242 + $0xa0] sm:$0xff] %v7602
        %7631 = vst [vmem:[%s242 + $0xa8] sm:$0xff] %v7603
        %7632 = vst [vmem:[%s242 + $0xb0] sm:$0xff] %v7604
        %7633 = vst [vmem:[%s242 + $0xb8] sm:$0xff] %v7605
        %7634 = vst [vmem:[%s242 + $0xc0] sm:$0xff] %v7606
        %7635 = vst [vmem:[%s242 + $0xc8] sm:$0xff] %v7607
        %7636 = vst [vmem:[%s242 + $0xd0] sm:$0xff] %v7608
        %7637 = vst [vmem:[%s242 + $0xd8] sm:$0xff] %v7609
        %s7638 = sand.u32 %s119, 1
        %s7639 = scalar_lea.sflag [#allocation9], %s7638
        %s7640 = sand.u32 %s119, 1
        %s7641 = smul.addr %s7640, 224
        %s7642 = scalar_lea.vmem [#allocation13], %s7641
        // Predicated region
        $region49: #{tpu_custom_call.1} parent=35 // pred_check
          %p7643 = pneg %p129
        $region50: #{tpu_custom_call.1} parent=35 // pred_check_branch
          %7645 = sbr.rel (%p7643) target = $region52
        $region51: #{tpu_custom_call.1} parent=35 // pred_region
          %s7647 = ssub.s32 3584, 3584
          %7648 = vsyncadd %s7639, %s7647
          %s7649 = smul.addr %s22, 28
          %s7650 = smul.addr %s7649, 128
          %s7651 = scalar_lea.hbm %s4, %s7650
          %s7652 = sshll.u32 %s7642, 4
          %s7653 = int_to_ptr.vmem [resolvable:$true] %s7652
          %7658 = dma.vmem_to_hbm [thread:$0]  %s7653, 3584, %s7651, %s7639, 128, 128, 8
        $region52: #{tpu_custom_call.1} parent=35 // pred_fallthru
          _
      $region36: #{tpu_custom_call.1} parent=5 // pred_fallthru
        _
      %p7659 = scmp.le.s32.totalorder 2, %s17
      // Predicated region
      $region53: #{tpu_custom_call.1} parent=5 // pred_check
        %p7660 = pneg %p7659
      $region54: #{tpu_custom_call.1} parent=5 // pred_check_branch
        %7662 = sbr.rel (%p7660) target = $region56
      $region55: #{tpu_custom_call.1} parent=5 // pred_region
        %s7663 = ssub.s32 %s17, 2
        // Predicated region
        $region57: #{tpu_custom_call.1} parent=55 // pred_check
          %p7664 = pneg %p135
        $region58: #{tpu_custom_call.1} parent=55 // pred_check_branch
          %7666 = sbr.rel (%p7664) target = $region60
        $region59: #{tpu_custom_call.1} parent=55 // pred_region
          %s7667 = sand.u32 %s120, 1
          %s7668 = scalar_lea.sflag [#allocation9], %s7667
          %s7669 = sand.u32 %s120, 1
          %s7670 = smul.addr %s7669, 224
          %s7671 = scalar_lea.vmem [#allocation13], %s7670
          %7672 = dma.done %s7668, 3584
        $region60: #{tpu_custom_call.1} parent=55 // pred_fallthru
          _
      $region56: #{tpu_custom_call.1} parent=5 // pred_fallthru
        _
    $region6: #{tpu_custom_call.1} parent=1 // loop_footer
      %s21 = sadd.s32 1, %s17
    $region7: #{tpu_custom_call.1} parent=1 // loop_footer_branch
      %16 = sbr.rel target = $region3
    $region8: #{tpu_custom_call.1} parent=1 // loop_exit
      _
    %7673 = vsyncpa [#allocation8], 1
    %s7674 = scalar_lea.sflag [#allocation8], 1
    %7675 = vsyncpa %s7674, 1
    %7676 = vsyncpa [#allocation11], 1
    %7677 = vsyncpa [#allocation9], 1
    %s7678 = scalar_lea.sflag [#allocation9], 1
    %7679 = vsyncpa %s7678, 1

</llo_original>
